<compile_context>
chip_gen: v5e
topology: v5e:2x2
jax: 0.10.0
libtpu: 0.0.40
codegen_flags: <defaults>
</compile_context>

<pallas_src>
import math

import jax
import jax.numpy as jnp
from jax.experimental import pallas as pl
from jax.experimental.pallas import tpu as pltpu

KERNEL_SIZE = 5          # config.encoder_kernel_size
BN_EPS = 1e-5


def _round_up(x, m):
    return ((x + m - 1) // m) * m


def _vmem_limit(working_set_bytes):
    # 2x headroom over the estimated working set, clamped below v7x's 64 MiB
    # physical VMEM but above the 16/32 MiB scoped defaults.
    return int(min(max(2 * working_set_bytes, 24 << 20), 48 << 20))


# ----------------------------------------------------------------- fused conv stack
def _conv_stack_kernel(x_ref, w_ref, scale_ref, shift_ref, o_ref, act_ref):
    # x_ref:   (Tp, BB, E) bf16, Tp = T + 2*pad, time halos already zero
    # w_ref:   (L, K, E_in, E_out) bf16
    # scale/shift: (L, 1, E) f32  (folded conv-bias + BatchNorm, eval stats)
    # o_ref:   (Tlp, BB, E) bf16  (Tlp >= T, tail zero-filled for the LSTM chunks)
    # act_ref: (Tp, BB, E) bf16   inter-stage activation (halo rows stay zero)
    Tp, BB, E = x_ref.shape
    L, K = w_ref.shape[0], w_ref.shape[1]
    T = Tp - (K - 1)
    Tlp = o_ref.shape[0]
    pad = (K - 1) // 2

    # PyTorch zero-pads every conv independently: keep the scratch halos at zero.
    act_ref[0:pad] = jnp.zeros((pad, BB, E), act_ref.dtype)
    act_ref[Tp - pad:] = jnp.zeros((pad, BB, E), act_ref.dtype)
    if Tlp > T:
        o_ref[T:] = jnp.zeros((Tlp - T, BB, E), o_ref.dtype)

    for s in range(L):                        # static unroll over the 3 stages
        src = x_ref if s == 0 else act_ref
        acc = jnp.zeros((T * BB, E), jnp.float32)
        for k in range(K):                    # static unroll over the taps
            xk = src[k:k + T].reshape(T * BB, E)
            acc = acc + jnp.dot(xk, w_ref[s, k],
                                preferred_element_type=jnp.float32)
        y = jnp.maximum(acc * scale_ref[s] + shift_ref[s], 0.0)   # bias+BN+ReLU
        y = y.reshape(T, BB, E)
        if s < L - 1:
            act_ref[pad:pad + T] = y.astype(act_ref.dtype)
        else:
            o_ref[0:T] = y.astype(o_ref.dtype)


def conv_stack(xpad, w, scale, shift, *, Tlp):
    # xpad: (T + 2*pad, Bp, E) bf16 time-major, batch padded to a multiple of 8
    Tp, Bp, E = xpad.shape
    L, K = w.shape[0], w.shape[1]
    T = Tp - (K - 1)
    BB = 8                                     # batch rows (sublanes) per grid step
    est = (3 * Tp * BB * E * 2                 # x blocks (dbl-buffered) + act scratch
           + 2 * Tlp * BB * E * 2              # out blocks (dbl-buffered)
           + L * K * E * E * 2 + 2 * L * E * 4
           + T * BB * E * 4)                   # f32 accumulator
    # TODO(synk): for very long utterances add a halo'd T-tile grid axis; the fused
    # kernel currently keeps the full time extent of one 8-row batch tile in VMEM.
    return pl.pallas_call(
        _conv_stack_kernel,
        out_shape=jax.ShapeDtypeStruct((Tlp, Bp, E), jnp.bfloat16),
        grid=(Bp // BB,),
        in_specs=[
            pl.BlockSpec((Tp, BB, E), lambda b: (0, b, 0)),
            pl.BlockSpec((L, K, E, E), lambda b: (0, 0, 0, 0)),
            pl.BlockSpec((L, 1, E), lambda b: (0, 0, 0)),
            pl.BlockSpec((L, 1, E), lambda b: (0, 0, 0)),
        ],
        out_specs=pl.BlockSpec((Tlp, BB, E), lambda b: (0, b, 0)),
        scratch_shapes=[pltpu.VMEM((Tp, BB, E), jnp.bfloat16)],
        compiler_params=pltpu.CompilerParams(
            dimension_semantics=("parallel",),
            vmem_limit_bytes=_vmem_limit(est)),
    )(xpad, w, scale, shift)


# ---------------------------------------------------------------------- bi-LSTM
def _bilstm_kernel(lens_ref, xf_ref, xb_ref, wih_ref, whh_ref, b_ref,
                   of_ref, ob_ref, zxf_ref, zxb_ref, h_ref, c_ref):
    # lens_ref: (Bp, 1) i32
    # xf_ref/xb_ref: (CT*Bp, E) bf16   fwd / bwd time-chunk (time-major rows)
    # wih_ref: (2, E, 4H) bf16   whh_ref: (2, H, 4H) bf16   b_ref: (2, 1, 4H) f32
    # of_ref/ob_ref: (CT*Bp, H) f32    per-direction output chunks
    # zxf_ref/zxb_ref: (CT*Bp, 4H) bf16 scratch: hoisted x @ W_ih + bias
    # h_ref/c_ref: (2, Bp, H) f32 state carried across chunks ([0]=fwd, [1]=bwd)
    ci = pl.program_id(0)
    nc = pl.num_programs(0)
    H = whh_ref.shape[1]
    Bp = h_ref.shape[1]
    CT = xf_ref.shape[0] // Bp

    @pl.when(ci == 0)
    def _():                                   # fresh state at each sequence end
        h_ref[...] = jnp.zeros_like(h_ref)
        c_ref[...] = jnp.zeros_like(c_ref)

    # Hoisted input projections for the whole chunk: one big-M MXU matmul per
    # direction, bias folded in, stored bf16 to halve the biggest VMEM consumer.
    zxf_ref[...] = (jnp.dot(xf_ref[...], wih_ref[0],
                            preferred_element_type=jnp.float32)
                    + b_ref[0]).astype(zxf_ref.dtype)
    zxb_ref[...] = (jnp.dot(xb_ref[...], wih_ref[1],
                            preferred_element_type=jnp.float32)
                    + b_ref[1]).astype(zxb_ref.dtype)

    whh_f = whh_ref[0]                         # (H, 4H) bf16, resident for the chunk
    whh_b = whh_ref[1]
    lens = lens_ref[...]                       # (Bp, 1) i32
    t0_f = ci * CT                             # absolute start time of the fwd chunk
    t0_b = (nc - 1 - ci) * CT                  # absolute start time of the bwd chunk

    def lstm_cell(z, c_prev):                  # PyTorch gate order i, f, g, o
        i = jax.nn.sigmoid(z[:, 0 * H:1 * H])
        f = jax.nn.sigmoid(z[:, 1 * H:2 * H])
        g = jnp.tanh(z[:, 2 * H:3 * H])
        o = jax.nn.sigmoid(z[:, 3 * H:4 * H])
        c_new = f * c_prev + i * g
        return o * jnp.tanh(c_new), c_new

    # TODO(synk): hold W_hh resident in the MXU across the CT timesteps with
    # pltpu.matmul_push_rhs / matmul_acc_lhs / matmul_pop instead of re-streaming
    # the (H, 4H) weights through jnp.dot every step.
    def step(s, carry):
        h_f, c_f, h_b, c_b = carry
        rf = pl.multiple_of(s * Bp, Bp)                  # fwd: ascending time
        rb = pl.multiple_of((CT - 1 - s) * Bp, Bp)       # bwd: descending time

        z_f = (zxf_ref[pl.ds(rf, Bp)].astype(jnp.float32)
               + jnp.dot(h_f.astype(whh_f.dtype), whh_f,
                         preferred_element_type=jnp.float32))
        z_b = (zxb_ref[pl.ds(rb, Bp)].astype(jnp.float32)
               + jnp.dot(h_b.astype(whh_b.dtype), whh_b,
                         preferred_element_type=jnp.float32))
        h_f, c_f = lstm_cell(z_f, c_f)         # two independent chains in the same
        h_b, c_b = lstm_cell(z_b, c_b)         # body -> ILP on single-TC chips

        # pack_padded / pad_packed semantics: zero state & output past each length
        m_f = ((t0_f + s) < lens).astype(jnp.float32)            # (Bp, 1)
        m_b = ((t0_b + (CT - 1 - s)) < lens).astype(jnp.float32)
        h_f, c_f = h_f * m_f, c_f * m_f
        h_b, c_b = h_b * m_b, c_b * m_b

        of_ref[pl.ds(rf, Bp)] = h_f            # unmasked (Bp, H) sublane-aligned store
        ob_ref[pl.ds(rb, Bp)] = h_b
        return h_f, c_f, h_b, c_b

    h_f, c_f, h_b, c_b = jax.lax.fori_loop(
        0, CT, step, (h_ref[0], c_ref[0], h_ref[1], c_ref[1]), unroll=2)
    h_ref[0] = h_f                             # carry state into the next chunk
    c_ref[0] = c_f
    h_ref[1] = h_b
    c_ref[1] = c_b


def bilstm(x_tbe, lens, wih, whh, b, *, CT, T, B):
    # x_tbe: (Tlp, Bp, E) bf16 time-major (conv output, already chunk-padded)
    Tlp, Bp, E = x_tbe.shape
    H = E // 2
    nc = Tlp // CT
    x2d = x_tbe.reshape(Tlp * Bp, E)           # free view (collapse time into sublanes)

    est = (2 * 2 * CT * Bp * E * 2             # two direction chunks, double-buffered
           + 2 * 2 * CT * Bp * H * 4           # two output chunks, double-buffered
           + 2 * CT * Bp * 4 * H * 2           # bf16 zx scratch
           + 2 * (E + H) * 4 * H * 2 + 2 * 4 * H * 4
           + 4 * Bp * H * 4)                   # h/c state

    of, ob = pl.pallas_call(
        _bilstm_kernel,
        out_shape=(jax.ShapeDtypeStruct((Tlp * Bp, H), jnp.float32),
                   jax.ShapeDtypeStruct((Tlp * Bp, H), jnp.float32)),
        grid=(nc,),
        in_specs=[
            pl.BlockSpec((Bp, 1), lambda c: (0, 0)),
            pl.BlockSpec((CT * Bp, E), lambda c: (c, 0)),               # fwd chunk
            pl.BlockSpec((CT * Bp, E), lambda c: (nc - 1 - c, 0)),      # bwd chunk
            pl.BlockSpec((2, E, 4 * H), lambda c: (0, 0, 0)),
            pl.BlockSpec((2, H, 4 * H), lambda c: (0, 0, 0)),
            pl.BlockSpec((2, 1, 4 * H), lambda c: (0, 0, 0)),
        ],
        out_specs=(pl.BlockSpec((CT * Bp, H), lambda c: (c, 0)),
                   pl.BlockSpec((CT * Bp, H), lambda c: (nc - 1 - c, 0))),
        scratch_shapes=[
            pltpu.VMEM((CT * Bp, 4 * H), jnp.bfloat16),   # fwd x @ W_ih + b
            pltpu.VMEM((CT * Bp, 4 * H), jnp.bfloat16),   # bwd x @ W_ih + b
            pltpu.VMEM((2, Bp, H), jnp.float32),          # h carried across chunks
            pltpu.VMEM((2, Bp, H), jnp.float32),          # c carried across chunks
        ],
        compiler_params=pltpu.CompilerParams(
            dimension_semantics=("arbitrary",),
            vmem_limit_bytes=_vmem_limit(est)),
    )(lens, x2d, x2d, wih, whh, b)

    out = jnp.concatenate([of.reshape(Tlp, Bp, H), ob.reshape(Tlp, Bp, H)], axis=-1)
    return jnp.transpose(out[:T, :B], (1, 0, 2))          # (B, T, 2H) f32


# ----------------------------------------------------------------------- params
def init_params(key, vocab_size, E, K):
    keys = jax.random.split(key, 16)
    H = E // 2
    gain = math.sqrt(2.0)                      # calculate_gain('relu')
    params = {"embedding": jax.random.normal(keys[0], (vocab_size, E), jnp.float32)}

    conv_w, conv_scale, conv_shift = [], [], []
    for idx in range(3):
        fan = E * K
        a = gain * math.sqrt(6.0 / (fan + fan))          # xavier_uniform (C_out,C_in,K)
        w = jax.random.uniform(keys[1 + idx], (E, E, K), jnp.float32, -a, a)
        bound = 1.0 / math.sqrt(E * K)
        bias = jax.random.uniform(keys[4 + idx], (E,), jnp.float32, -bound, bound)
        # BatchNorm1d (eval, fresh stats): gamma=1, beta=0, mean=0, var=1
        scale = jnp.ones((E,), jnp.float32) / jnp.sqrt(1.0 + BN_EPS)
        shift = bias * scale
        conv_w.append(jnp.transpose(w, (2, 1, 0)))       # (K, C_in, C_out)
        conv_scale.append(scale.reshape(1, E))
        conv_shift.append(shift.reshape(1, E))
    params["conv_w"] = jnp.stack(conv_w).astype(jnp.bfloat16)     # (3, K, E, E)
    params["conv_scale"] = jnp.stack(conv_scale)                  # (3, 1, E)
    params["conv_shift"] = jnp.stack(conv_shift)                  # (3, 1, E)

    bound = 1.0 / math.sqrt(H)

    def u(k, shape):
        return jax.random.uniform(k, shape, jnp.float32, -bound, bound)

    wih = jnp.stack([u(keys[7], (E, 4 * H)), u(keys[11], (E, 4 * H))])    # W_ih.T
    whh = jnp.stack([u(keys[8], (H, 4 * H)), u(keys[12], (H, 4 * H))])    # W_hh.T
    b_f = (u(keys[9], (4 * H,)) + u(keys[10], (4 * H,))).reshape(1, 4 * H)
    b_b = (u(keys[13], (4 * H,)) + u(keys[14], (4 * H,))).reshape(1, 4 * H)
    params["lstm_wih"] = wih.astype(jnp.bfloat16)   # (2, E, 4H), [fwd, bwd]
    params["lstm_whh"] = whh.astype(jnp.bfloat16)   # (2, H, 4H)
    params["lstm_b"] = jnp.stack([b_f, b_b])        # (2, 1, 4H) f32, b_ih + b_hh
    return params


# ---------------------------------------------------------------------- forward
def encoder_forward(params, text, text_lengths, *, chunk=64):
    # chunk: LSTM time-chunk length; raise (e.g. 128) on v6e's roomy VMEM, lower it
    # (or rely on the bf16 zx scratch) if the working set grows on v7x / v5e.
    B, T = text.shape
    E = params["embedding"].shape[1]
    H = E // 2
    K = params["conv_w"].shape[1]
    pad = (K - 1) // 2
    assert H % 128 == 0, "encoder_embedding_dim must be a multiple of 256 (H lane-aligned)"

    Bp = _round_up(B, 8)                        # sublane-aligned batch
    CT = min(chunk, _round_up(T, 8))            # LSTM time-chunk length
    Tlp = _round_up(T, CT)                      # chunk-padded time extent

    # Embedding gather straight into time-major layout: only the small int32 index
    # grid is transposed, the (T, B, E) activation never round-trips a transpose.
    x = jnp.take(params["embedding"], jnp.transpose(text), axis=0).astype(jnp.bfloat16)
    # zero halo for the first conv + zero rows for the padded batch entries
    x = jnp.pad(x, ((pad, pad), (0, Bp - B), (0, 0)))             # (T+2*pad, Bp, E)

    xc = conv_stack(x, params["conv_w"], params["conv_scale"],
                    params["conv_shift"], Tlp=Tlp)                # (Tlp, Bp, E) bf16
    # dropout(train=False) is identity -> nothing to do

    lens = jnp.pad(text_lengths.astype(jnp.int32), (0, Bp - B)).reshape(Bp, 1)
    return bilstm(xc, lens, params["lstm_wih"], params["lstm_whh"],
                  params["lstm_b"], CT=CT, T=T, B=B)              # (B, T, E) f32


if __name__ == "__main__":
    VOCAB, E, B, T = 20, 256, 2, 16
    key = jax.random.PRNGKey(0)
    pkey, tkey = jax.random.split(key)

    params = init_params(pkey, VOCAB, E, KERNEL_SIZE)
    text = jax.random.randint(tkey, (B, T), 0, VOCAB, dtype=jnp.int32)
    text_lengths = jnp.array([T, T - 2], dtype=jnp.int32)

    out = encoder_forward(params, text, text_lengths)
    out = jax.block_until_ready(out)
    assert out.shape == (B, T, E)
    assert bool(jnp.all(out[1, T - 2:, :] == 0.0))    # padded steps are zero
    print("KERNEL_OK")
</pallas_src>

<mosaic_0001>
module attributes {stable_mosaic.version = 11 : i64} {
  func.func @_conv_stack_kernel(%arg0: i32, %arg1: memref<20x8x256xbf16, #tpu.memory_space<vmem>>, %arg2: memref<3x5x256x256xbf16, #tpu.memory_space<vmem>>, %arg3: memref<3x1x256xf32, #tpu.memory_space<vmem>>, %arg4: memref<3x1x256xf32, #tpu.memory_space<vmem>>, %arg5: memref<16x8x256xbf16, #tpu.memory_space<vmem>>, %arg6: memref<20x8x256xbf16, #tpu.memory_space<vmem>>) attributes {dimension_semantics = [#tpu.dimension_semantics<parallel>], iteration_bounds = array<i64: 1>, scalar_prefetch = 0 : i64, scratch_operands = 1 : i64, tpu.core_type = #tpu.core_type<tc>, window_params = [{transform_indices = @transform_0, window_bounds = array<i64: 20, 8, 256>}, {pipeline_mode = #tpu.pipeline_mode<synchronous>, transform_indices = @transform_1, window_bounds = array<i64: 3, 5, 256, 256>}, {pipeline_mode = #tpu.pipeline_mode<synchronous>, transform_indices = @transform_2, window_bounds = array<i64: 3, 1, 256>}, {pipeline_mode = #tpu.pipeline_mode<synchronous>, transform_indices = @transform_3, window_bounds = array<i64: 3, 1, 256>}, {transform_indices = @transform_4, window_bounds = array<i64: 16, 8, 256>}]} {
    %cst = arith.constant 0.000000e+00 : bf16
    %0 = vector.broadcast %cst : bf16 to vector<2x8x256xbf16>
    %c0 = arith.constant 0 : index
    %c0_0 = arith.constant 0 : index
    %c0_1 = arith.constant 0 : index
    %1 = vector.load %arg6[%c0, %c0_0, %c0_1] : memref<20x8x256xbf16, #tpu.memory_space<vmem>>, vector<2x8x256xbf16>
    tpu.vector_store %arg6[%c0, %c0_0, %c0_1], %0 {strides = array<i32>} : memref<20x8x256xbf16, #tpu.memory_space<vmem>>, vector<2x8x256xbf16>,
    %cst_2 = arith.constant 0.000000e+00 : bf16
    %2 = vector.broadcast %cst_2 : bf16 to vector<2x8x256xbf16>
    %c18 = arith.constant 18 : index
    %c0_3 = arith.constant 0 : index
    %c0_4 = arith.constant 0 : index
    %3 = vector.load %arg6[%c18, %c0_3, %c0_4] : memref<20x8x256xbf16, #tpu.memory_space<vmem>>, vector<2x8x256xbf16>
    tpu.vector_store %arg6[%c18, %c0_3, %c0_4], %2 {strides = array<i32>} : memref<20x8x256xbf16, #tpu.memory_space<vmem>>, vector<2x8x256xbf16>,
    %cst_5 = arith.constant 0.000000e+00 : f32
    %4 = vector.broadcast %cst_5 : f32 to vector<128x256xf32>
    %c0_6 = arith.constant 0 : index
    %c0_7 = arith.constant 0 : index
    %c0_8 = arith.constant 0 : index
    %5 = vector.load %arg1[%c0_6, %c0_7, %c0_8] : memref<20x8x256xbf16, #tpu.memory_space<vmem>>, vector<16x8x256xbf16>
    %6 = vector.shape_cast %5 : vector<16x8x256xbf16> to vector<128x256xbf16>
    %c0_9 = arith.constant 0 : index
    %c0_10 = arith.constant 0 : index
    %c0_11 = arith.constant 0 : index
    %c0_12 = arith.constant 0 : index
    %7 = vector.load %arg2[%c0_9, %c0_10, %c0_11, %c0_12] : memref<3x5x256x256xbf16, #tpu.memory_space<vmem>>, vector<1x1x256x256xbf16>
    %8 = vector.shape_cast %7 : vector<1x1x256x256xbf16> to vector<256x256xbf16>
    %cst_13 = arith.constant dense<0.000000e+00> : vector<128x256xf32>
    %9 = tpu.matmul %6, %8, %cst_13 {dimension_numbers = #tpu.dot_dimension_numbers<[1], [0], [0], [1], [0, 0, 1, 1], [], []>} : vector<128x256xbf16>, vector<256x256xbf16>, vector<128x256xf32> -> vector<128x256xf32>
    %10 = arith.addf %4, %9 : vector<128x256xf32>
    %c1 = arith.constant 1 : index
    %c0_14 = arith.constant 0 : index
    %c0_15 = arith.constant 0 : index
    %11 = vector.load %arg1[%c1, %c0_14, %c0_15] : memref<20x8x256xbf16, #tpu.memory_space<vmem>>, vector<16x8x256xbf16>
    %12 = vector.shape_cast %11 : vector<16x8x256xbf16> to vector<128x256xbf16>
    %c0_16 = arith.constant 0 : index
    %c1_17 = arith.constant 1 : index
    %c0_18 = arith.constant 0 : index
    %c0_19 = arith.constant 0 : index
    %13 = vector.load %arg2[%c0_16, %c1_17, %c0_18, %c0_19] : memref<3x5x256x256xbf16, #tpu.memory_space<vmem>>, vector<1x1x256x256xbf16>
    %14 = vector.shape_cast %13 : vector<1x1x256x256xbf16> to vector<256x256xbf16>
    %cst_20 = arith.constant dense<0.000000e+00> : vector<128x256xf32>
    %15 = tpu.matmul %12, %14, %cst_20 {dimension_numbers = #tpu.dot_dimension_numbers<[1], [0], [0], [1], [0, 0, 1, 1], [], []>} : vector<128x256xbf16>, vector<256x256xbf16>, vector<128x256xf32> -> vector<128x256xf32>
    %16 = arith.addf %10, %15 : vector<128x256xf32>
    %c2 = arith.constant 2 : index
    %c0_21 = arith.constant 0 : index
    %c0_22 = arith.constant 0 : index
    %17 = vector.load %arg1[%c2, %c0_21, %c0_22] : memref<20x8x256xbf16, #tpu.memory_space<vmem>>, vector<16x8x256xbf16>
    %18 = vector.shape_cast %17 : vector<16x8x256xbf16> to vector<128x256xbf16>
    %c0_23 = arith.constant 0 : index
    %c2_24 = arith.constant 2 : index
    %c0_25 = arith.constant 0 : index
    %c0_26 = arith.constant 0 : index
    %19 = vector.load %arg2[%c0_23, %c2_24, %c0_25, %c0_26] : memref<3x5x256x256xbf16, #tpu.memory_space<vmem>>, vector<1x1x256x256xbf16>
    %20 = vector.shape_cast %19 : vector<1x1x256x256xbf16> to vector<256x256xbf16>
    %cst_27 = arith.constant dense<0.000000e+00> : vector<128x256xf32>
    %21 = tpu.matmul %18, %20, %cst_27 {dimension_numbers = #tpu.dot_dimension_numbers<[1], [0], [0], [1], [0, 0, 1, 1], [], []>} : vector<128x256xbf16>, vector<256x256xbf16>, vector<128x256xf32> -> vector<128x256xf32>
    %22 = arith.addf %16, %21 : vector<128x256xf32>
    %c3 = arith.constant 3 : index
    %c0_28 = arith.constant 0 : index
    %c0_29 = arith.constant 0 : index
    %23 = vector.load %arg1[%c3, %c0_28, %c0_29] : memref<20x8x256xbf16, #tpu.memory_space<vmem>>, vector<16x8x256xbf16>
    %24 = vector.shape_cast %23 : vector<16x8x256xbf16> to vector<128x256xbf16>
    %c0_30 = arith.constant 0 : index
    %c3_31 = arith.constant 3 : index
    %c0_32 = arith.constant 0 : index
    %c0_33 = arith.constant 0 : index
    %25 = vector.load %arg2[%c0_30, %c3_31, %c0_32, %c0_33] : memref<3x5x256x256xbf16, #tpu.memory_space<vmem>>, vector<1x1x256x256xbf16>
    %26 = vector.shape_cast %25 : vector<1x1x256x256xbf16> to vector<256x256xbf16>
    %cst_34 = arith.constant dense<0.000000e+00> : vector<128x256xf32>
    %27 = tpu.matmul %24, %26, %cst_34 {dimension_numbers = #tpu.dot_dimension_numbers<[1], [0], [0], [1], [0, 0, 1, 1], [], []>} : vector<128x256xbf16>, vector<256x256xbf16>, vector<128x256xf32> -> vector<128x256xf32>
    %28 = arith.addf %22, %27 : vector<128x256xf32>
    %c4 = arith.constant 4 : index
    %c0_35 = arith.constant 0 : index
    %c0_36 = arith.constant 0 : index
    %29 = vector.load %arg1[%c4, %c0_35, %c0_36] : memref<20x8x256xbf16, #tpu.memory_space<vmem>>, vector<16x8x256xbf16>
    %30 = vector.shape_cast %29 : vector<16x8x256xbf16> to vector<128x256xbf16>
    %c0_37 = arith.constant 0 : index
    %c4_38 = arith.constant 4 : index
    %c0_39 = arith.constant 0 : index
    %c0_40 = arith.constant 0 : index
    %31 = vector.load %arg2[%c0_37, %c4_38, %c0_39, %c0_40] : memref<3x5x256x256xbf16, #tpu.memory_space<vmem>>, vector<1x1x256x256xbf16>
    %32 = vector.shape_cast %31 : vector<1x1x256x256xbf16> to vector<256x256xbf16>
    %cst_41 = arith.constant dense<0.000000e+00> : vector<128x256xf32>
    %33 = tpu.matmul %30, %32, %cst_41 {dimension_numbers = #tpu.dot_dimension_numbers<[1], [0], [0], [1], [0, 0, 1, 1], [], []>} : vector<128x256xbf16>, vector<256x256xbf16>, vector<128x256xf32> -> vector<128x256xf32>
    %34 = arith.addf %28, %33 : vector<128x256xf32>
    %c0_42 = arith.constant 0 : index
    %c0_43 = arith.constant 0 : index
    %c0_44 = arith.constant 0 : index
    %35 = vector.load %arg3[%c0_42, %c0_43, %c0_44] : memref<3x1x256xf32, #tpu.memory_space<vmem>>, vector<1x1x256xf32>
    %36 = vector.shape_cast %35 : vector<1x1x256xf32> to vector<1x256xf32>
    %37 = vector.broadcast %36 : vector<1x256xf32> to vector<128x256xf32>
    %38 = arith.mulf %34, %37 : vector<128x256xf32>
    %c0_45 = arith.constant 0 : index
    %c0_46 = arith.constant 0 : index
    %c0_47 = arith.constant 0 : index
    %39 = vector.load %arg4[%c0_45, %c0_46, %c0_47] : memref<3x1x256xf32, #tpu.memory_space<vmem>>, vector<1x1x256xf32>
    %40 = vector.shape_cast %39 : vector<1x1x256xf32> to vector<1x256xf32>
    %41 = vector.broadcast %40 : vector<1x256xf32> to vector<128x256xf32>
    %42 = arith.addf %38, %41 : vector<128x256xf32>
    %cst_48 = arith.constant 0.000000e+00 : f32
    %43 = vector.broadcast %cst_48 : f32 to vector<128x256xf32>
    %44 = arith.maximumf %42, %43 : vector<128x256xf32>
    %45 = vector.shape_cast %44 : vector<128x256xf32> to vector<16x8x256xf32>
    %46 = arith.truncf %45 : vector<16x8x256xf32> to vector<16x8x256xbf16>
    %c2_49 = arith.constant 2 : index
    %c0_50 = arith.constant 0 : index
    %c0_51 = arith.constant 0 : index
    %47 = vector.load %arg6[%c2_49, %c0_50, %c0_51] : memref<20x8x256xbf16, #tpu.memory_space<vmem>>, vector<16x8x256xbf16>
    tpu.vector_store %arg6[%c2_49, %c0_50, %c0_51], %46 {strides = array<i32>} : memref<20x8x256xbf16, #tpu.memory_space<vmem>>, vector<16x8x256xbf16>,
    %cst_52 = arith.constant 0.000000e+00 : f32
    %48 = vector.broadcast %cst_52 : f32 to vector<128x256xf32>
    %c0_53 = arith.constant 0 : index
    %c0_54 = arith.constant 0 : index
    %c0_55 = arith.constant 0 : index
    %49 = vector.load %arg6[%c0_53, %c0_54, %c0_55] : memref<20x8x256xbf16, #tpu.memory_space<vmem>>, vector<16x8x256xbf16>
    %50 = vector.shape_cast %49 : vector<16x8x256xbf16> to vector<128x256xbf16>
    %c1_56 = arith.constant 1 : index
    %c0_57 = arith.constant 0 : index
    %c0_58 = arith.constant 0 : index
    %c0_59 = arith.constant 0 : index
    %51 = vector.load %arg2[%c1_56, %c0_57, %c0_58, %c0_59] : memref<3x5x256x256xbf16, #tpu.memory_space<vmem>>, vector<1x1x256x256xbf16>
    %52 = vector.shape_cast %51 : vector<1x1x256x256xbf16> to vector<256x256xbf16>
    %cst_60 = arith.constant dense<0.000000e+00> : vector<128x256xf32>
    %53 = tpu.matmul %50, %52, %cst_60 {dimension_numbers = #tpu.dot_dimension_numbers<[1], [0], [0], [1], [0, 0, 1, 1], [], []>} : vector<128x256xbf16>, vector<256x256xbf16>, vector<128x256xf32> -> vector<128x256xf32>
    %54 = arith.addf %48, %53 : vector<128x256xf32>
    %c1_61 = arith.constant 1 : index
    %c0_62 = arith.constant 0 : index
    %c0_63 = arith.constant 0 : index
    %55 = vector.load %arg6[%c1_61, %c0_62, %c0_63] : memref<20x8x256xbf16, #tpu.memory_space<vmem>>, vector<16x8x256xbf16>
    %56 = vector.shape_cast %55 : vector<16x8x256xbf16> to vector<128x256xbf16>
    %c1_64 = arith.constant 1 : index
    %c1_65 = arith.constant 1 : index
    %c0_66 = arith.constant 0 : index
    %c0_67 = arith.constant 0 : index
    %57 = vector.load %arg2[%c1_64, %c1_65, %c0_66, %c0_67] : memref<3x5x256x256xbf16, #tpu.memory_space<vmem>>, vector<1x1x256x256xbf16>
    %58 = vector.shape_cast %57 : vector<1x1x256x256xbf16> to vector<256x256xbf16>
    %cst_68 = arith.constant dense<0.000000e+00> : vector<128x256xf32>
    %59 = tpu.matmul %56, %58, %cst_68 {dimension_numbers = #tpu.dot_dimension_numbers<[1], [0], [0], [1], [0, 0, 1, 1], [], []>} : vector<128x256xbf16>, vector<256x256xbf16>, vector<128x256xf32> -> vector<128x256xf32>
    %60 = arith.addf %54, %59 : vector<128x256xf32>
    %c2_69 = arith.constant 2 : index
    %c0_70 = arith.constant 0 : index
    %c0_71 = arith.constant 0 : index
    %61 = vector.load %arg6[%c2_69, %c0_70, %c0_71] : memref<20x8x256xbf16, #tpu.memory_space<vmem>>, vector<16x8x256xbf16>
    %62 = vector.shape_cast %61 : vector<16x8x256xbf16> to vector<128x256xbf16>
    %c1_72 = arith.constant 1 : index
    %c2_73 = arith.constant 2 : index
    %c0_74 = arith.constant 0 : index
    %c0_75 = arith.constant 0 : index
    %63 = vector.load %arg2[%c1_72, %c2_73, %c0_74, %c0_75] : memref<3x5x256x256xbf16, #tpu.memory_space<vmem>>, vector<1x1x256x256xbf16>
    %64 = vector.shape_cast %63 : vector<1x1x256x256xbf16> to vector<256x256xbf16>
    %cst_76 = arith.constant dense<0.000000e+00> : vector<128x256xf32>
    %65 = tpu.matmul %62, %64, %cst_76 {dimension_numbers = #tpu.dot_dimension_numbers<[1], [0], [0], [1], [0, 0, 1, 1], [], []>} : vector<128x256xbf16>, vector<256x256xbf16>, vector<128x256xf32> -> vector<128x256xf32>
    %66 = arith.addf %60, %65 : vector<128x256xf32>
    %c3_77 = arith.constant 3 : index
    %c0_78 = arith.constant 0 : index
    %c0_79 = arith.constant 0 : index
    %67 = vector.load %arg6[%c3_77, %c0_78, %c0_79] : memref<20x8x256xbf16, #tpu.memory_space<vmem>>, vector<16x8x256xbf16>
    %68 = vector.shape_cast %67 : vector<16x8x256xbf16> to vector<128x256xbf16>
    %c1_80 = arith.constant 1 : index
    %c3_81 = arith.constant 3 : index
    %c0_82 = arith.constant 0 : index
    %c0_83 = arith.constant 0 : index
    %69 = vector.load %arg2[%c1_80, %c3_81, %c0_82, %c0_83] : memref<3x5x256x256xbf16, #tpu.memory_space<vmem>>, vector<1x1x256x256xbf16>
    %70 = vector.shape_cast %69 : vector<1x1x256x256xbf16> to vector<256x256xbf16>
    %cst_84 = arith.constant dense<0.000000e+00> : vector<128x256xf32>
    %71 = tpu.matmul %68, %70, %cst_84 {dimension_numbers = #tpu.dot_dimension_numbers<[1], [0], [0], [1], [0, 0, 1, 1], [], []>} : vector<128x256xbf16>, vector<256x256xbf16>, vector<128x256xf32> -> vector<128x256xf32>
    %72 = arith.addf %66, %71 : vector<128x256xf32>
    %c4_85 = arith.constant 4 : index
    %c0_86 = arith.constant 0 : index
    %c0_87 = arith.constant 0 : index
    %73 = vector.load %arg6[%c4_85, %c0_86, %c0_87] : memref<20x8x256xbf16, #tpu.memory_space<vmem>>, vector<16x8x256xbf16>
    %74 = vector.shape_cast %73 : vector<16x8x256xbf16> to vector<128x256xbf16>
    %c1_88 = arith.constant 1 : index
    %c4_89 = arith.constant 4 : index
    %c0_90 = arith.constant 0 : index
    %c0_91 = arith.constant 0 : index
    %75 = vector.load %arg2[%c1_88, %c4_89, %c0_90, %c0_91] : memref<3x5x256x256xbf16, #tpu.memory_space<vmem>>, vector<1x1x256x256xbf16>
    %76 = vector.shape_cast %75 : vector<1x1x256x256xbf16> to vector<256x256xbf16>
    %cst_92 = arith.constant dense<0.000000e+00> : vector<128x256xf32>
    %77 = tpu.matmul %74, %76, %cst_92 {dimension_numbers = #tpu.dot_dimension_numbers<[1], [0], [0], [1], [0, 0, 1, 1], [], []>} : vector<128x256xbf16>, vector<256x256xbf16>, vector<128x256xf32> -> vector<128x256xf32>
    %78 = arith.addf %72, %77 : vector<128x256xf32>
    %c1_93 = arith.constant 1 : index
    %c0_94 = arith.constant 0 : index
    %c0_95 = arith.constant 0 : index
    %79 = vector.load %arg3[%c1_93, %c0_94, %c0_95] : memref<3x1x256xf32, #tpu.memory_space<vmem>>, vector<1x1x256xf32>
    %80 = vector.shape_cast %79 : vector<1x1x256xf32> to vector<1x256xf32>
    %81 = vector.broadcast %80 : vector<1x256xf32> to vector<128x256xf32>
    %82 = arith.mulf %78, %81 : vector<128x256xf32>
    %c1_96 = arith.constant 1 : index
    %c0_97 = arith.constant 0 : index
    %c0_98 = arith.constant 0 : index
    %83 = vector.load %arg4[%c1_96, %c0_97, %c0_98] : memref<3x1x256xf32, #tpu.memory_space<vmem>>, vector<1x1x256xf32>
    %84 = vector.shape_cast %83 : vector<1x1x256xf32> to vector<1x256xf32>
    %85 = vector.broadcast %84 : vector<1x256xf32> to vector<128x256xf32>
    %86 = arith.addf %82, %85 : vector<128x256xf32>
    %cst_99 = arith.constant 0.000000e+00 : f32
    %87 = vector.broadcast %cst_99 : f32 to vector<128x256xf32>
    %88 = arith.maximumf %86, %87 : vector<128x256xf32>
    %89 = vector.shape_cast %88 : vector<128x256xf32> to vector<16x8x256xf32>
    %90 = arith.truncf %89 : vector<16x8x256xf32> to vector<16x8x256xbf16>
    %c2_100 = arith.constant 2 : index
    %c0_101 = arith.constant 0 : index
    %c0_102 = arith.constant 0 : index
    %91 = vector.load %arg6[%c2_100, %c0_101, %c0_102] : memref<20x8x256xbf16, #tpu.memory_space<vmem>>, vector<16x8x256xbf16>
    tpu.vector_store %arg6[%c2_100, %c0_101, %c0_102], %90 {strides = array<i32>} : memref<20x8x256xbf16, #tpu.memory_space<vmem>>, vector<16x8x256xbf16>,
    %cst_103 = arith.constant 0.000000e+00 : f32
    %92 = vector.broadcast %cst_103 : f32 to vector<128x256xf32>
    %c0_104 = arith.constant 0 : index
    %c0_105 = arith.constant 0 : index
    %c0_106 = arith.constant 0 : index
    %93 = vector.load %arg6[%c0_104, %c0_105, %c0_106] : memref<20x8x256xbf16, #tpu.memory_space<vmem>>, vector<16x8x256xbf16>
    %94 = vector.shape_cast %93 : vector<16x8x256xbf16> to vector<128x256xbf16>
    %c2_107 = arith.constant 2 : index
    %c0_108 = arith.constant 0 : index
    %c0_109 = arith.constant 0 : index
    %c0_110 = arith.constant 0 : index
    %95 = vector.load %arg2[%c2_107, %c0_108, %c0_109, %c0_110] : memref<3x5x256x256xbf16, #tpu.memory_space<vmem>>, vector<1x1x256x256xbf16>
    %96 = vector.shape_cast %95 : vector<1x1x256x256xbf16> to vector<256x256xbf16>
    %cst_111 = arith.constant dense<0.000000e+00> : vector<128x256xf32>
    %97 = tpu.matmul %94, %96, %cst_111 {dimension_numbers = #tpu.dot_dimension_numbers<[1], [0], [0], [1], [0, 0, 1, 1], [], []>} : vector<128x256xbf16>, vector<256x256xbf16>, vector<128x256xf32> -> vector<128x256xf32>
    %98 = arith.addf %92, %97 : vector<128x256xf32>
    %c1_112 = arith.constant 1 : index
    %c0_113 = arith.constant 0 : index
    %c0_114 = arith.constant 0 : index
    %99 = vector.load %arg6[%c1_112, %c0_113, %c0_114] : memref<20x8x256xbf16, #tpu.memory_space<vmem>>, vector<16x8x256xbf16>
    %100 = vector.shape_cast %99 : vector<16x8x256xbf16> to vector<128x256xbf16>
    %c2_115 = arith.constant 2 : index
    %c1_116 = arith.constant 1 : index
    %c0_117 = arith.constant 0 : index
    %c0_118 = arith.constant 0 : index
    %101 = vector.load %arg2[%c2_115, %c1_116, %c0_117, %c0_118] : memref<3x5x256x256xbf16, #tpu.memory_space<vmem>>, vector<1x1x256x256xbf16>
    %102 = vector.shape_cast %101 : vector<1x1x256x256xbf16> to vector<256x256xbf16>
    %cst_119 = arith.constant dense<0.000000e+00> : vector<128x256xf32>
    %103 = tpu.matmul %100, %102, %cst_119 {dimension_numbers = #tpu.dot_dimension_numbers<[1], [0], [0], [1], [0, 0, 1, 1], [], []>} : vector<128x256xbf16>, vector<256x256xbf16>, vector<128x256xf32> -> vector<128x256xf32>
    %104 = arith.addf %98, %103 : vector<128x256xf32>
    %c2_120 = arith.constant 2 : index
    %c0_121 = arith.constant 0 : index
    %c0_122 = arith.constant 0 : index
    %105 = vector.load %arg6[%c2_120, %c0_121, %c0_122] : memref<20x8x256xbf16, #tpu.memory_space<vmem>>, vector<16x8x256xbf16>
    %106 = vector.shape_cast %105 : vector<16x8x256xbf16> to vector<128x256xbf16>
    %c2_123 = arith.constant 2 : index
    %c2_124 = arith.constant 2 : index
    %c0_125 = arith.constant 0 : index
    %c0_126 = arith.constant 0 : index
    %107 = vector.load %arg2[%c2_123, %c2_124, %c0_125, %c0_126] : memref<3x5x256x256xbf16, #tpu.memory_space<vmem>>, vector<1x1x256x256xbf16>
    %108 = vector.shape_cast %107 : vector<1x1x256x256xbf16> to vector<256x256xbf16>
    %cst_127 = arith.constant dense<0.000000e+00> : vector<128x256xf32>
    %109 = tpu.matmul %106, %108, %cst_127 {dimension_numbers = #tpu.dot_dimension_numbers<[1], [0], [0], [1], [0, 0, 1, 1], [], []>} : vector<128x256xbf16>, vector<256x256xbf16>, vector<128x256xf32> -> vector<128x256xf32>
    %110 = arith.addf %104, %109 : vector<128x256xf32>
    %c3_128 = arith.constant 3 : index
    %c0_129 = arith.constant 0 : index
    %c0_130 = arith.constant 0 : index
    %111 = vector.load %arg6[%c3_128, %c0_129, %c0_130] : memref<20x8x256xbf16, #tpu.memory_space<vmem>>, vector<16x8x256xbf16>
    %112 = vector.shape_cast %111 : vector<16x8x256xbf16> to vector<128x256xbf16>
    %c2_131 = arith.constant 2 : index
    %c3_132 = arith.constant 3 : index
    %c0_133 = arith.constant 0 : index
    %c0_134 = arith.constant 0 : index
    %113 = vector.load %arg2[%c2_131, %c3_132, %c0_133, %c0_134] : memref<3x5x256x256xbf16, #tpu.memory_space<vmem>>, vector<1x1x256x256xbf16>
    %114 = vector.shape_cast %113 : vector<1x1x256x256xbf16> to vector<256x256xbf16>
    %cst_135 = arith.constant dense<0.000000e+00> : vector<128x256xf32>
    %115 = tpu.matmul %112, %114, %cst_135 {dimension_numbers = #tpu.dot_dimension_numbers<[1], [0], [0], [1], [0, 0, 1, 1], [], []>} : vector<128x256xbf16>, vector<256x256xbf16>, vector<128x256xf32> -> vector<128x256xf32>
    %116 = arith.addf %110, %115 : vector<128x256xf32>
    %c4_136 = arith.constant 4 : index
    %c0_137 = arith.constant 0 : index
    %c0_138 = arith.constant 0 : index
    %117 = vector.load %arg6[%c4_136, %c0_137, %c0_138] : memref<20x8x256xbf16, #tpu.memory_space<vmem>>, vector<16x8x256xbf16>
    %118 = vector.shape_cast %117 : vector<16x8x256xbf16> to vector<128x256xbf16>
    %c2_139 = arith.constant 2 : index
    %c4_140 = arith.constant 4 : index
    %c0_141 = arith.constant 0 : index
    %c0_142 = arith.constant 0 : index
    %119 = vector.load %arg2[%c2_139, %c4_140, %c0_141, %c0_142] : memref<3x5x256x256xbf16, #tpu.memory_space<vmem>>, vector<1x1x256x256xbf16>
    %120 = vector.shape_cast %119 : vector<1x1x256x256xbf16> to vector<256x256xbf16>
    %cst_143 = arith.constant dense<0.000000e+00> : vector<128x256xf32>
    %121 = tpu.matmul %118, %120, %cst_143 {dimension_numbers = #tpu.dot_dimension_numbers<[1], [0], [0], [1], [0, 0, 1, 1], [], []>} : vector<128x256xbf16>, vector<256x256xbf16>, vector<128x256xf32> -> vector<128x256xf32>
    %122 = arith.addf %116, %121 : vector<128x256xf32>
    %c2_144 = arith.constant 2 : index
    %c0_145 = arith.constant 0 : index
    %c0_146 = arith.constant 0 : index
    %123 = vector.load %arg3[%c2_144, %c0_145, %c0_146] : memref<3x1x256xf32, #tpu.memory_space<vmem>>, vector<1x1x256xf32>
    %124 = vector.shape_cast %123 : vector<1x1x256xf32> to vector<1x256xf32>
    %125 = vector.broadcast %124 : vector<1x256xf32> to vector<128x256xf32>
    %126 = arith.mulf %122, %125 : vector<128x256xf32>
    %c2_147 = arith.constant 2 : index
    %c0_148 = arith.constant 0 : index
    %c0_149 = arith.constant 0 : index
    %127 = vector.load %arg4[%c2_147, %c0_148, %c0_149] : memref<3x1x256xf32, #tpu.memory_space<vmem>>, vector<1x1x256xf32>
    %128 = vector.shape_cast %127 : vector<1x1x256xf32> to vector<1x256xf32>
    %129 = vector.broadcast %128 : vector<1x256xf32> to vector<128x256xf32>
    %130 = arith.addf %126, %129 : vector<128x256xf32>
    %cst_150 = arith.constant 0.000000e+00 : f32
    %131 = vector.broadcast %cst_150 : f32 to vector<128x256xf32>
    %132 = arith.maximumf %130, %131 : vector<128x256xf32>
    %133 = vector.shape_cast %132 : vector<128x256xf32> to vector<16x8x256xf32>
    %134 = arith.truncf %133 : vector<16x8x256xf32> to vector<16x8x256xbf16>
    %c0_151 = arith.constant 0 : index
    %c0_152 = arith.constant 0 : index
    %c0_153 = arith.constant 0 : index
    %135 = vector.load %arg5[%c0_151, %c0_152, %c0_153] : memref<16x8x256xbf16, #tpu.memory_space<vmem>>, vector<16x8x256xbf16>
    tpu.vector_store %arg5[%c0_151, %c0_152, %c0_153], %134 {strides = array<i32>} : memref<16x8x256xbf16, #tpu.memory_space<vmem>>, vector<16x8x256xbf16>,
    return
  }
  func.func @transform_0(%arg0: i32) -> (i32, i32, i32) {
    %c0_i32 = arith.constant 0 : i32
    %c0_i32_0 = arith.constant 0 : i32
    %c0_i32_1 = arith.constant 0 : i32
    return %c0_i32, %arg0, %c0_i32_0 : i32, i32, i32
  }
  func.func @transform_1(%arg0: i32) -> (i32, i32, i32, i32) {
    %c0_i32 = arith.constant 0 : i32
    %c0_i32_0 = arith.constant 0 : i32
    %c0_i32_1 = arith.constant 0 : i32
    %c0_i32_2 = arith.constant 0 : i32
    %c0_i32_3 = arith.constant 0 : i32
    return %c0_i32, %c0_i32_0, %c0_i32_1, %c0_i32_2 : i32, i32, i32, i32
  }
  func.func @transform_2(%arg0: i32) -> (i32, i32, i32) {
    %c0_i32 = arith.constant 0 : i32
    %c0_i32_0 = arith.constant 0 : i32
    %c0_i32_1 = arith.constant 0 : i32
    %c0_i32_2 = arith.constant 0 : i32
    return %c0_i32, %c0_i32_0, %c0_i32_1 : i32, i32, i32
  }
  func.func @transform_3(%arg0: i32) -> (i32, i32, i32) {
    %c0_i32 = arith.constant 0 : i32
    %c0_i32_0 = arith.constant 0 : i32
    %c0_i32_1 = arith.constant 0 : i32
    %c0_i32_2 = arith.constant 0 : i32
    return %c0_i32, %c0_i32_0, %c0_i32_1 : i32, i32, i32
  }
  func.func @transform_4(%arg0: i32) -> (i32, i32, i32) {
    %c0_i32 = arith.constant 0 : i32
    %c0_i32_0 = arith.constant 0 : i32
    %c0_i32_1 = arith.constant 0 : i32
    return %c0_i32, %arg0, %c0_i32_0 : i32, i32, i32
  }
}

</mosaic_0001>

<llo_original>
// kernel: tpu_custom_call.1
$region0: #{tpu_custom_call.1}
  #allocation0 [shape = 'u32[]', space=smem, size = 0x4, offset = 0x4, fixed_abs, tag = 'smem constant byte address 0x4 - core index']
  #allocation1 [shape = 'u32[72,128]{1,0:T(1,128)}', space=vmem, size = 0x9000, scoped, tag = 'internal scratch']
  #allocation2 [shape = 'bf16[20,8,256]{2,1,0:T(8,128)(2,1)}', space=vmem, size = 0x14000, scoped, tag = 'scratch operand']
  %s0 = inlined_call_operand.hbm [shape: bf16[20,8,256], index: 0, kind: input, shape index: {}]
  %s1 = inlined_call_operand.hbm [shape: bf16[3,5,256,256], index: 1, kind: input, shape index: {}]
  %s2 = inlined_call_operand.hbm [shape: f32[3,1,256], index: 2, kind: input, shape index: {}]
  %s3 = inlined_call_operand.hbm [shape: f32[3,1,256], index: 3, kind: input, shape index: {}]
  %s4 = inlined_call_operand.hbm [shape: bf16[16,8,256], index: 4, kind: output, shape index: {}]
  %s5 = sld [smem:[#allocation0]]
  $region42: #{tpu_custom_call.1} parent=0
    _
  %s7 = ssub.s32 1, %s5
  %s8 = scalar_select 0, %s7, %s5
  $region1: #{tpu_custom_call.1} parent=0
    #allocation3 [shape = 'u8[81920]{0}', space=vmem, size = 0x14000, scoped, tag = 'input window, operand 0, single buffered']
    #allocation4 [shape = 's32[1]{0}', space=sflag, size = 0x4, scoped, tag = 'scoped memory for tpu_custom_call.1']
    #allocation5 [shape = 's32[1]{0}', space=sflag, size = 0x4, scoped, tag = 'scoped memory for tpu_custom_call.1']
    #allocation6 [shape = 'u8[1966080]{0}', space=vmem, size = 0x1e0000, scoped, tag = 'input window, operand 1, single buffered']
    #allocation7 [shape = 's32[1]{0}', space=sflag, size = 0x4, scoped, tag = 'scoped memory for tpu_custom_call.1']
    #allocation8 [shape = 'u8[3072]{0}', space=vmem, size = 0xc00, scoped, tag = 'input window, operand 2, single buffered']
    #allocation9 [shape = 'u8[3072]{0}', space=vmem, size = 0xc00, scoped, tag = 'input window, operand 3, single buffered']
    #allocation10 [shape = 's32[1]{0}', space=sflag, size = 0x4, scoped, tag = 'scoped memory for tpu_custom_call.1']
    #allocation11 [shape = 'u8[65536]{0}', space=vmem, size = 0x10000, scoped, tag = 'output window, operand 0, single buffered']
    %9 = vsyncpa [#allocation4], 0
    %10 = vsyncpa [#allocation7], 0
    %11 = vsyncpa [#allocation10], 0
    %12 = vsyncpa [#allocation5], 0
    // Predicated region
    $region2: #{tpu_custom_call.1} parent=1 // pred_check
      _
    $region3: #{tpu_custom_call.1} parent=1 // pred_check_branch
      %14 = sbr.rel (0) target = $region5
    $region4: #{tpu_custom_call.1} parent=1 // pred_region
      %16 = vsyncadd [#allocation4], 0
      %s17 = sshll.u32 %s0, 4
      %s18 = int_to_ptr.hbm [resolvable:$true] %s17
      %s19 = sshll.u32 [#allocation3], 4
      %s20 = int_to_ptr.vmem [resolvable:$true] %s19
      %25 = dma.hbm_to_vmem [thread:$0]  %s18, 2560, %s20, [#allocation4], 128, 128, 8
    $region5: #{tpu_custom_call.1} parent=1 // pred_fallthru
      _
    // Predicated region
    $region6: #{tpu_custom_call.1} parent=1 // pred_check
      _
    $region7: #{tpu_custom_call.1} parent=1 // pred_check_branch
      %27 = sbr.rel (0) target = $region9
    $region8: #{tpu_custom_call.1} parent=1 // pred_region
      %29 = vsyncadd [#allocation7], 0
      %s30 = sshll.u32 %s1, 4
      %s31 = int_to_ptr.hbm [resolvable:$true] %s30
      %s32 = sshll.u32 [#allocation6], 4
      %s33 = int_to_ptr.vmem [resolvable:$true] %s32
      %38 = dma.hbm_to_vmem [thread:$0]  %s31, 61440, %s33, [#allocation7], 128, 128, 8
    $region9: #{tpu_custom_call.1} parent=1 // pred_fallthru
      _
    // Predicated region
    $region10: #{tpu_custom_call.1} parent=1 // pred_check
      _
    $region11: #{tpu_custom_call.1} parent=1 // pred_check_branch
      %40 = sbr.rel (0) target = $region13
    $region12: #{tpu_custom_call.1} parent=1 // pred_region
      %42 = vsyncadd [#allocation7], 0
      %s43 = sshll.u32 %s2, 4
      %s44 = int_to_ptr.hbm [resolvable:$true] %s43
      %s45 = sshll.u32 [#allocation8], 4
      %s46 = int_to_ptr.vmem [resolvable:$true] %s45
      %51 = dma.hbm_to_vmem [thread:$0]  %s44, 96, %s46, [#allocation7], 32, 32, 2
    $region13: #{tpu_custom_call.1} parent=1 // pred_fallthru
      _
    // Predicated region
    $region14: #{tpu_custom_call.1} parent=1 // pred_check
      _
    $region15: #{tpu_custom_call.1} parent=1 // pred_check_branch
      %53 = sbr.rel (0) target = $region17
    $region16: #{tpu_custom_call.1} parent=1 // pred_region
      %55 = vsyncadd [#allocation10], 0
      %s56 = sshll.u32 %s3, 4
      %s57 = int_to_ptr.hbm [resolvable:$true] %s56
      %s58 = sshll.u32 [#allocation9], 4
      %s59 = int_to_ptr.vmem [resolvable:$true] %s58
      %64 = dma.hbm_to_vmem [thread:$0]  %s57, 96, %s59, [#allocation10], 32, 32, 2
    $region17: #{tpu_custom_call.1} parent=1 // pred_fallthru
      _
    // Predicated region
    $region18: #{tpu_custom_call.1} parent=1 // pred_check
      _
    $region19: #{tpu_custom_call.1} parent=1 // pred_check_branch
      %66 = sbr.rel (0) target = $region21
    $region20: #{tpu_custom_call.1} parent=1 // pred_region
      %68 = dma.done [#allocation4], 2560
    $region21: #{tpu_custom_call.1} parent=1 // pred_fallthru
      _
    // Predicated region
    $region22: #{tpu_custom_call.1} parent=1 // pred_check
      _
    $region23: #{tpu_custom_call.1} parent=1 // pred_check_branch
      %70 = sbr.rel (0) target = $region25
    $region24: #{tpu_custom_call.1} parent=1 // pred_region
      %72 = dma.done [#allocation7], 61440
    $region25: #{tpu_custom_call.1} parent=1 // pred_fallthru
      _
    // Predicated region
    $region26: #{tpu_custom_call.1} parent=1 // pred_check
      _
    $region27: #{tpu_custom_call.1} parent=1 // pred_check_branch
      %74 = sbr.rel (0) target = $region29
    $region28: #{tpu_custom_call.1} parent=1 // pred_region
      %76 = dma.done [#allocation7], 96
    $region29: #{tpu_custom_call.1} parent=1 // pred_fallthru
      _
    // Predicated region
    $region30: #{tpu_custom_call.1} parent=1 // pred_check
      _
    $region31: #{tpu_custom_call.1} parent=1 // pred_check_branch
      %78 = sbr.rel (0) target = $region33
    $region32: #{tpu_custom_call.1} parent=1 // pred_region
      %80 = dma.done [#allocation10], 96
    $region33: #{tpu_custom_call.1} parent=1 // pred_fallthru
      _
    %82 = vst [vmem:[#allocation2] sm:$0xff] 0
    %83 = vst [vmem:[#allocation2 + $0x8] sm:$0xff] 0
    %s84 = scalar_lea.vmem [#allocation2], 144
    %85 = vst [vmem:[%s84] sm:$0xff] 0
    %86 = vst [vmem:[%s84 + $0x8] sm:$0xff] 0
    %v87 = vld [vmem:[#allocation3] sm:$0xff]
    %v88 = vld [vmem:[#allocation3 + $0x8] sm:$0xff]
    %v89 = vld [vmem:[#allocation3 + $0x10] sm:$0xff]
    %v90 = vld [vmem:[#allocation3 + $0x18] sm:$0xff]
    %v91 = vld [vmem:[#allocation3 + $0x20] sm:$0xff]
    %v92 = vld [vmem:[#allocation3 + $0x28] sm:$0xff]
    %v93 = vld [vmem:[#allocation3 + $0x30] sm:$0xff]
    %v94 = vld [vmem:[#allocation3 + $0x38] sm:$0xff]
    %v95 = vld [vmem:[#allocation3 + $0x40] sm:$0xff]
    %v96 = vld [vmem:[#allocation3 + $0x48] sm:$0xff]
    %v97 = vld [vmem:[#allocation3 + $0x50] sm:$0xff]
    %v98 = vld [vmem:[#allocation3 + $0x58] sm:$0xff]
    %v99 = vld [vmem:[#allocation3 + $0x60] sm:$0xff]
    %v100 = vld [vmem:[#allocation3 + $0x68] sm:$0xff]
    %v101 = vld [vmem:[#allocation3 + $0x70] sm:$0xff]
    %v102 = vld [vmem:[#allocation3 + $0x78] sm:$0xff]
    %v103 = vld [vmem:[#allocation6] sm:$0xff]
    %v104 = vld [vmem:[#allocation6 + $0x8] sm:$0xff]
    %v105 = vld [vmem:[#allocation6 + $0x10] sm:$0xff]
    %v106 = vld [vmem:[#allocation6 + $0x18] sm:$0xff]
    %v107 = vld [vmem:[#allocation6 + $0x20] sm:$0xff]
    %v108 = vld [vmem:[#allocation6 + $0x28] sm:$0xff]
    %v109 = vld [vmem:[#allocation6 + $0x30] sm:$0xff]
    %v110 = vld [vmem:[#allocation6 + $0x38] sm:$0xff]
    %v111 = vld [vmem:[#allocation6 + $0x40] sm:$0xff]
    %v112 = vld [vmem:[#allocation6 + $0x48] sm:$0xff]
    %v113 = vld [vmem:[#allocation6 + $0x50] sm:$0xff]
    %v114 = vld [vmem:[#allocation6 + $0x58] sm:$0xff]
    %v115 = vld [vmem:[#allocation6 + $0x60] sm:$0xff]
    %v116 = vld [vmem:[#allocation6 + $0x68] sm:$0xff]
    %v117 = vld [vmem:[#allocation6 + $0x70] sm:$0xff]
    %v118 = vld [vmem:[#allocation6 + $0x78] sm:$0xff]
    %v119 = vld [vmem:[#allocation6 + $0x80] sm:$0xff]
    %v120 = vld [vmem:[#allocation6 + $0x88] sm:$0xff]
    %v121 = vld [vmem:[#allocation6 + $0x90] sm:$0xff]
    %v122 = vld [vmem:[#allocation6 + $0x98] sm:$0xff]
    %v123 = vld [vmem:[#allocation6 + $0xa0] sm:$0xff]
    %v124 = vld [vmem:[#allocation6 + $0xa8] sm:$0xff]
    %v125 = vld [vmem:[#allocation6 + $0xb0] sm:$0xff]
    %v126 = vld [vmem:[#allocation6 + $0xb8] sm:$0xff]
    %v127 = vld [vmem:[#allocation6 + $0xc0] sm:$0xff]
    %v128 = vld [vmem:[#allocation6 + $0xc8] sm:$0xff]
    %v129 = vld [vmem:[#allocation6 + $0xd0] sm:$0xff]
    %v130 = vld [vmem:[#allocation6 + $0xd8] sm:$0xff]
    %v131 = vld [vmem:[#allocation6 + $0xe0] sm:$0xff]
    %v132 = vld [vmem:[#allocation6 + $0xe8] sm:$0xff]
    %v133 = vld [vmem:[#allocation6 + $0xf0] sm:$0xff]
    %v134 = vld [vmem:[#allocation6 + $0xf8] sm:$0xff]
    %s135 = scalar_lea.vmem [#allocation3], 8
    %v136 = vld [vmem:[%s135] sm:$0xff]
    %v137 = vld [vmem:[%s135 + $0x8] sm:$0xff]
    %v138 = vld [vmem:[%s135 + $0x10] sm:$0xff]
    %v139 = vld [vmem:[%s135 + $0x18] sm:$0xff]
    %v140 = vld [vmem:[%s135 + $0x20] sm:$0xff]
    %v141 = vld [vmem:[%s135 + $0x28] sm:$0xff]
    %v142 = vld [vmem:[%s135 + $0x30] sm:$0xff]
    %v143 = vld [vmem:[%s135 + $0x38] sm:$0xff]
    %v144 = vld [vmem:[%s135 + $0x40] sm:$0xff]
    %v145 = vld [vmem:[%s135 + $0x48] sm:$0xff]
    %v146 = vld [vmem:[%s135 + $0x50] sm:$0xff]
    %v147 = vld [vmem:[%s135 + $0x58] sm:$0xff]
    %v148 = vld [vmem:[%s135 + $0x60] sm:$0xff]
    %v149 = vld [vmem:[%s135 + $0x68] sm:$0xff]
    %v150 = vld [vmem:[%s135 + $0x70] sm:$0xff]
    %v151 = vld [vmem:[%s135 + $0x78] sm:$0xff]
    %s152 = scalar_lea.vmem [#allocation6], 256
    %v153 = vld [vmem:[%s152] sm:$0xff]
    %v154 = vld [vmem:[%s152 + $0x8] sm:$0xff]
    %v155 = vld [vmem:[%s152 + $0x10] sm:$0xff]
    %v156 = vld [vmem:[%s152 + $0x18] sm:$0xff]
    %v157 = vld [vmem:[%s152 + $0x20] sm:$0xff]
    %v158 = vld [vmem:[%s152 + $0x28] sm:$0xff]
    %v159 = vld [vmem:[%s152 + $0x30] sm:$0xff]
    %v160 = vld [vmem:[%s152 + $0x38] sm:$0xff]
    %v161 = vld [vmem:[%s152 + $0x40] sm:$0xff]
    %v162 = vld [vmem:[%s152 + $0x48] sm:$0xff]
    %v163 = vld [vmem:[%s152 + $0x50] sm:$0xff]
    %v164 = vld [vmem:[%s152 + $0x58] sm:$0xff]
    %v165 = vld [vmem:[%s152 + $0x60] sm:$0xff]
    %v166 = vld [vmem:[%s152 + $0x68] sm:$0xff]
    %v167 = vld [vmem:[%s152 + $0x70] sm:$0xff]
    %v168 = vld [vmem:[%s152 + $0x78] sm:$0xff]
    %v169 = vld [vmem:[%s152 + $0x80] sm:$0xff]
    %v170 = vld [vmem:[%s152 + $0x88] sm:$0xff]
    %v171 = vld [vmem:[%s152 + $0x90] sm:$0xff]
    %v172 = vld [vmem:[%s152 + $0x98] sm:$0xff]
    %v173 = vld [vmem:[%s152 + $0xa0] sm:$0xff]
    %v174 = vld [vmem:[%s152 + $0xa8] sm:$0xff]
    %v175 = vld [vmem:[%s152 + $0xb0] sm:$0xff]
    %v176 = vld [vmem:[%s152 + $0xb8] sm:$0xff]
    %v177 = vld [vmem:[%s152 + $0xc0] sm:$0xff]
    %v178 = vld [vmem:[%s152 + $0xc8] sm:$0xff]
    %v179 = vld [vmem:[%s152 + $0xd0] sm:$0xff]
    %v180 = vld [vmem:[%s152 + $0xd8] sm:$0xff]
    %v181 = vld [vmem:[%s152 + $0xe0] sm:$0xff]
    %v182 = vld [vmem:[%s152 + $0xe8] sm:$0xff]
    %v183 = vld [vmem:[%s152 + $0xf0] sm:$0xff]
    %v184 = vld [vmem:[%s152 + $0xf8] sm:$0xff]
    %v201 = vunpack.c.l.b16 %v136
    %v202 = vunpack.c.h.b16 %v136
    %v203 = vunpack.c.l.b16 %v137
    %v204 = vunpack.c.h.b16 %v137
    %v205 = vunpack.c.l.b16 %v138
    %v206 = vunpack.c.h.b16 %v138
    %v207 = vunpack.c.l.b16 %v139
    %v208 = vunpack.c.h.b16 %v139
    %v209 = vunpack.c.l.b16 %v140
    %v210 = vunpack.c.h.b16 %v140
    %v211 = vunpack.c.l.b16 %v141
    %v212 = vunpack.c.h.b16 %v141
    %v213 = vunpack.c.l.b16 %v142
    %v214 = vunpack.c.h.b16 %v142
    %v215 = vunpack.c.l.b16 %v143
    %v216 = vunpack.c.h.b16 %v143
    %v217 = vunpack.c.l.b16 %v144
    %v218 = vunpack.c.h.b16 %v144
    %v219 = vunpack.c.l.b16 %v145
    %v220 = vunpack.c.h.b16 %v145
    %v221 = vunpack.c.l.b16 %v146
    %v222 = vunpack.c.h.b16 %v146
    %v223 = vunpack.c.l.b16 %v147
    %v224 = vunpack.c.h.b16 %v147
    %v225 = vunpack.c.l.b16 %v148
    %v226 = vunpack.c.h.b16 %v148
    %v227 = vunpack.c.l.b16 %v149
    %v228 = vunpack.c.h.b16 %v149
    %v229 = vunpack.c.l.b16 %v150
    %v230 = vunpack.c.h.b16 %v150
    %v231 = vunpack.c.l.b16 %v151
    %v232 = vunpack.c.h.b16 %v151
    %v233 = vpack.c.b16 %v203, %v201
    %v234 = vpack.c.b16 %v204, %v202
    %v235 = vpack.c.b16 %v207, %v205
    %v236 = vpack.c.b16 %v208, %v206
    %v237 = vpack.c.b16 %v211, %v209
    %v238 = vpack.c.b16 %v212, %v210
    %v239 = vpack.c.b16 %v215, %v213
    %v240 = vpack.c.b16 %v216, %v214
    %v241 = vpack.c.b16 %v219, %v217
    %v242 = vpack.c.b16 %v220, %v218
    %v243 = vpack.c.b16 %v223, %v221
    %v244 = vpack.c.b16 %v224, %v222
    %v245 = vpack.c.b16 %v227, %v225
    %v246 = vpack.c.b16 %v228, %v226
    %v247 = vpack.c.b16 %v231, %v229
    %v248 = vpack.c.b16 %v232, %v230
    %v297 = vunpack.c.l.b16 %v153
    %v298 = vunpack.c.h.b16 %v153
    %v299 = vunpack.c.l.b16 %v154
    %v300 = vunpack.c.h.b16 %v154
    %v301 = vunpack.c.l.b16 %v155
    %v302 = vunpack.c.h.b16 %v155
    %v303 = vunpack.c.l.b16 %v156
    %v304 = vunpack.c.h.b16 %v156
    %v305 = vunpack.c.l.b16 %v157
    %v306 = vunpack.c.h.b16 %v157
    %v307 = vunpack.c.l.b16 %v158
    %v308 = vunpack.c.h.b16 %v158
    %v309 = vunpack.c.l.b16 %v159
    %v310 = vunpack.c.h.b16 %v159
    %v311 = vunpack.c.l.b16 %v160
    %v312 = vunpack.c.h.b16 %v160
    %v313 = vunpack.c.l.b16 %v161
    %v314 = vunpack.c.h.b16 %v161
    %v315 = vunpack.c.l.b16 %v162
    %v316 = vunpack.c.h.b16 %v162
    %v317 = vunpack.c.l.b16 %v163
    %v318 = vunpack.c.h.b16 %v163
    %v319 = vunpack.c.l.b16 %v164
    %v320 = vunpack.c.h.b16 %v164
    %v321 = vunpack.c.l.b16 %v165
    %v322 = vunpack.c.h.b16 %v165
    %v323 = vunpack.c.l.b16 %v166
    %v324 = vunpack.c.h.b16 %v166
    %v325 = vunpack.c.l.b16 %v167
    %v326 = vunpack.c.h.b16 %v167
    %v327 = vunpack.c.l.b16 %v168
    %v328 = vunpack.c.h.b16 %v168
    %v329 = vunpack.c.l.b16 %v169
    %v330 = vunpack.c.h.b16 %v169
    %v331 = vunpack.c.l.b16 %v170
    %v332 = vunpack.c.h.b16 %v170
    %v333 = vunpack.c.l.b16 %v171
    %v334 = vunpack.c.h.b16 %v171
    %v335 = vunpack.c.l.b16 %v172
    %v336 = vunpack.c.h.b16 %v172
    %v337 = vunpack.c.l.b16 %v173
    %v338 = vunpack.c.h.b16 %v173
    %v339 = vunpack.c.l.b16 %v174
    %v340 = vunpack.c.h.b16 %v174
    %v341 = vunpack.c.l.b16 %v175
    %v342 = vunpack.c.h.b16 %v175
    %v343 = vunpack.c.l.b16 %v176
    %v344 = vunpack.c.h.b16 %v176
    %v345 = vunpack.c.l.b16 %v177
    %v346 = vunpack.c.h.b16 %v177
    %v347 = vunpack.c.l.b16 %v178
    %v348 = vunpack.c.h.b16 %v178
    %v349 = vunpack.c.l.b16 %v179
    %v350 = vunpack.c.h.b16 %v179
    %v351 = vunpack.c.l.b16 %v180
    %v352 = vunpack.c.h.b16 %v180
    %v353 = vunpack.c.l.b16 %v181
    %v354 = vunpack.c.h.b16 %v181
    %v355 = vunpack.c.l.b16 %v182
    %v356 = vunpack.c.h.b16 %v182
    %v357 = vunpack.c.l.b16 %v183
    %v358 = vunpack.c.h.b16 %v183
    %v359 = vunpack.c.l.b16 %v184
    %v360 = vunpack.c.h.b16 %v184
    %v361 = vpack.c.b16 %v299, %v297
    %v362 = vpack.c.b16 %v300, %v298
    %v363 = vpack.c.b16 %v303, %v301
    %v364 = vpack.c.b16 %v304, %v302
    %v365 = vpack.c.b16 %v307, %v305
    %v366 = vpack.c.b16 %v308, %v306
    %v367 = vpack.c.b16 %v311, %v309
    %v368 = vpack.c.b16 %v312, %v310
    %v369 = vpack.c.b16 %v315, %v313
    %v370 = vpack.c.b16 %v316, %v314
    %v371 = vpack.c.b16 %v319, %v317
    %v372 = vpack.c.b16 %v320, %v318
    %v373 = vpack.c.b16 %v323, %v321
    %v374 = vpack.c.b16 %v324, %v322
    %v375 = vpack.c.b16 %v327, %v325
    %v376 = vpack.c.b16 %v328, %v326
    %v377 = vpack.c.b16 %v331, %v329
    %v378 = vpack.c.b16 %v332, %v330
    %v379 = vpack.c.b16 %v335, %v333
    %v380 = vpack.c.b16 %v336, %v334
    %v381 = vpack.c.b16 %v339, %v337
    %v382 = vpack.c.b16 %v340, %v338
    %v383 = vpack.c.b16 %v343, %v341
    %v384 = vpack.c.b16 %v344, %v342
    %v385 = vpack.c.b16 %v347, %v345
    %v386 = vpack.c.b16 %v348, %v346
    %v387 = vpack.c.b16 %v351, %v349
    %v388 = vpack.c.b16 %v352, %v350
    %v389 = vpack.c.b16 %v355, %v353
    %v390 = vpack.c.b16 %v356, %v354
    %v391 = vpack.c.b16 %v359, %v357
    %v392 = vpack.c.b16 %v360, %v358
    %425 = vmatpush.bf16.msra.mxu0 %v375
    %426 = vmatpush.bf16.msra.mxu0 %v373
    %427 = vmatpush.bf16.msra.mxu0 %v371
    %428 = vmatpush.bf16.msra.mxu0 %v369
    %429 = vmatpush.bf16.msra.mxu0 %v367
    %430 = vmatpush.bf16.msra.mxu0 %v365
    %431 = vmatpush.bf16.msra.mxu0 %v363
    %432 = vmatpush.bf16.msra.mxu0 %v361
    %433 = vmatmul.bf16.gmra.mxu0 %v233
    %v434 = vpop.f32.mrf.mxu0
    %v435 = vadd.f32 0.0, %v434
    %v436 = vpop.f32.mrf.mxu0
    %v437 = vadd.f32 0.0, %v436
    %438 = vmatmul.bf16.gmra.mxu0 %v235
    %v439 = vpop.f32.mrf.mxu0
    %v440 = vadd.f32 0.0, %v439
    %v441 = vpop.f32.mrf.mxu0
    %v442 = vadd.f32 0.0, %v441
    %443 = vmatmul.bf16.gmra.mxu0 %v237
    %v444 = vpop.f32.mrf.mxu0
    %v445 = vadd.f32 0.0, %v444
    %v446 = vpop.f32.mrf.mxu0
    %v447 = vadd.f32 0.0, %v446
    %448 = vmatmul.bf16.gmra.mxu0 %v239
    %v449 = vpop.f32.mrf.mxu0
    %v450 = vadd.f32 0.0, %v449
    %v451 = vpop.f32.mrf.mxu0
    %v452 = vadd.f32 0.0, %v451
    %453 = vmatmul.bf16.gmra.mxu0 %v241
    %v454 = vpop.f32.mrf.mxu0
    %v455 = vadd.f32 0.0, %v454
    %v456 = vpop.f32.mrf.mxu0
    %v457 = vadd.f32 0.0, %v456
    %458 = vmatmul.bf16.gmra.mxu0 %v243
    %v459 = vpop.f32.mrf.mxu0
    %v460 = vadd.f32 0.0, %v459
    %v461 = vpop.f32.mrf.mxu0
    %v462 = vadd.f32 0.0, %v461
    %463 = vmatmul.bf16.gmra.mxu0 %v245
    %v464 = vpop.f32.mrf.mxu0
    %v465 = vadd.f32 0.0, %v464
    %v466 = vpop.f32.mrf.mxu0
    %v467 = vadd.f32 0.0, %v466
    %468 = vmatmul.bf16.gmra.mxu0 %v247
    %v469 = vpop.f32.mrf.mxu0
    %v470 = vadd.f32 0.0, %v469
    %v471 = vpop.f32.mrf.mxu0
    %v472 = vadd.f32 0.0, %v471
    %473 = vdwg.mxu0
    %474 = vmatpush.bf16.msra.mxu0 %v391
    %475 = vmatpush.bf16.msra.mxu0 %v389
    %476 = vmatpush.bf16.msra.mxu0 %v387
    %477 = vmatpush.bf16.msra.mxu0 %v385
    %478 = vmatpush.bf16.msra.mxu0 %v383
    %479 = vmatpush.bf16.msra.mxu0 %v381
    %480 = vmatpush.bf16.msra.mxu0 %v379
    %481 = vmatpush.bf16.msra.mxu0 %v377
    %482 = vmatmul.bf16.gmra.mxu0 %v234
    %v483 = vpop.f32.mrf.mxu0
    %v484 = vadd.f32 %v435, %v483
    %v485 = vpop.f32.mrf.mxu0
    %v486 = vadd.f32 %v437, %v485
    %487 = vmatmul.bf16.gmra.mxu0 %v236
    %v488 = vpop.f32.mrf.mxu0
    %v489 = vadd.f32 %v440, %v488
    %v490 = vpop.f32.mrf.mxu0
    %v491 = vadd.f32 %v442, %v490
    %492 = vmatmul.bf16.gmra.mxu0 %v238
    %v493 = vpop.f32.mrf.mxu0
    %v494 = vadd.f32 %v445, %v493
    %v495 = vpop.f32.mrf.mxu0
    %v496 = vadd.f32 %v447, %v495
    %497 = vmatmul.bf16.gmra.mxu0 %v240
    %v498 = vpop.f32.mrf.mxu0
    %v499 = vadd.f32 %v450, %v498
    %v500 = vpop.f32.mrf.mxu0
    %v501 = vadd.f32 %v452, %v500
    %502 = vmatmul.bf16.gmra.mxu0 %v242
    %v503 = vpop.f32.mrf.mxu0
    %v504 = vadd.f32 %v455, %v503
    %v505 = vpop.f32.mrf.mxu0
    %v506 = vadd.f32 %v457, %v505
    %507 = vmatmul.bf16.gmra.mxu0 %v244
    %v508 = vpop.f32.mrf.mxu0
    %v509 = vadd.f32 %v460, %v508
    %v510 = vpop.f32.mrf.mxu0
    %v511 = vadd.f32 %v462, %v510
    %512 = vmatmul.bf16.gmra.mxu0 %v246
    %v513 = vpop.f32.mrf.mxu0
    %v514 = vadd.f32 %v465, %v513
    %v515 = vpop.f32.mrf.mxu0
    %v516 = vadd.f32 %v467, %v515
    %517 = vmatmul.bf16.gmra.mxu0 %v248
    %v518 = vpop.f32.mrf.mxu0
    %v519 = vadd.f32 %v470, %v518
    %v520 = vpop.f32.mrf.mxu0
    %v521 = vadd.f32 %v472, %v520
    %522 = vdwg.mxu0
    %523 = vmatpush.bf16.msra.mxu0 %v376
    %524 = vmatpush.bf16.msra.mxu0 %v374
    %525 = vmatpush.bf16.msra.mxu0 %v372
    %526 = vmatpush.bf16.msra.mxu0 %v370
    %527 = vmatpush.bf16.msra.mxu0 %v368
    %528 = vmatpush.bf16.msra.mxu0 %v366
    %529 = vmatpush.bf16.msra.mxu0 %v364
    %530 = vmatpush.bf16.msra.mxu0 %v362
    %531 = vmatmul.bf16.gmra.mxu0 %v233
    %v532 = vpop.f32.mrf.mxu0
    %v533 = vadd.f32 0.0, %v532
    %v534 = vpop.f32.mrf.mxu0
    %v535 = vadd.f32 0.0, %v534
    %536 = vmatmul.bf16.gmra.mxu0 %v235
    %v537 = vpop.f32.mrf.mxu0
    %v538 = vadd.f32 0.0, %v537
    %v539 = vpop.f32.mrf.mxu0
    %v540 = vadd.f32 0.0, %v539
    %541 = vmatmul.bf16.gmra.mxu0 %v237
    %v542 = vpop.f32.mrf.mxu0
    %v543 = vadd.f32 0.0, %v542
    %v544 = vpop.f32.mrf.mxu0
    %v545 = vadd.f32 0.0, %v544
    %546 = vmatmul.bf16.gmra.mxu0 %v239
    %v547 = vpop.f32.mrf.mxu0
    %v548 = vadd.f32 0.0, %v547
    %v549 = vpop.f32.mrf.mxu0
    %v550 = vadd.f32 0.0, %v549
    %551 = vmatmul.bf16.gmra.mxu0 %v241
    %v552 = vpop.f32.mrf.mxu0
    %v553 = vadd.f32 0.0, %v552
    %v554 = vpop.f32.mrf.mxu0
    %v555 = vadd.f32 0.0, %v554
    %556 = vmatmul.bf16.gmra.mxu0 %v243
    %v557 = vpop.f32.mrf.mxu0
    %v558 = vadd.f32 0.0, %v557
    %v559 = vpop.f32.mrf.mxu0
    %v560 = vadd.f32 0.0, %v559
    %561 = vmatmul.bf16.gmra.mxu0 %v245
    %v562 = vpop.f32.mrf.mxu0
    %v563 = vadd.f32 0.0, %v562
    %v564 = vpop.f32.mrf.mxu0
    %v565 = vadd.f32 0.0, %v564
    %566 = vmatmul.bf16.gmra.mxu0 %v247
    %v567 = vpop.f32.mrf.mxu0
    %v568 = vadd.f32 0.0, %v567
    %v569 = vpop.f32.mrf.mxu0
    %v570 = vadd.f32 0.0, %v569
    %571 = vdwg.mxu0
    %572 = vmatpush.bf16.msra.mxu0 %v392
    %573 = vmatpush.bf16.msra.mxu0 %v390
    %574 = vmatpush.bf16.msra.mxu0 %v388
    %575 = vmatpush.bf16.msra.mxu0 %v386
    %576 = vmatpush.bf16.msra.mxu0 %v384
    %577 = vmatpush.bf16.msra.mxu0 %v382
    %578 = vmatpush.bf16.msra.mxu0 %v380
    %579 = vmatpush.bf16.msra.mxu0 %v378
    %580 = vmatmul.bf16.gmra.mxu0 %v234
    %v581 = vpop.f32.mrf.mxu0
    %v582 = vadd.f32 %v533, %v581
    %v583 = vpop.f32.mrf.mxu0
    %v584 = vadd.f32 %v535, %v583
    %585 = vmatmul.bf16.gmra.mxu0 %v236
    %v586 = vpop.f32.mrf.mxu0
    %v587 = vadd.f32 %v538, %v586
    %v588 = vpop.f32.mrf.mxu0
    %v589 = vadd.f32 %v540, %v588
    %590 = vmatmul.bf16.gmra.mxu0 %v238
    %v591 = vpop.f32.mrf.mxu0
    %v592 = vadd.f32 %v543, %v591
    %v593 = vpop.f32.mrf.mxu0
    %v594 = vadd.f32 %v545, %v593
    %595 = vmatmul.bf16.gmra.mxu0 %v240
    %v596 = vpop.f32.mrf.mxu0
    %v597 = vadd.f32 %v548, %v596
    %v598 = vpop.f32.mrf.mxu0
    %v599 = vadd.f32 %v550, %v598
    %600 = vmatmul.bf16.gmra.mxu0 %v242
    %v601 = vpop.f32.mrf.mxu0
    %v602 = vadd.f32 %v553, %v601
    %v603 = vpop.f32.mrf.mxu0
    %v604 = vadd.f32 %v555, %v603
    %605 = vmatmul.bf16.gmra.mxu0 %v244
    %v606 = vpop.f32.mrf.mxu0
    %v607 = vadd.f32 %v558, %v606
    %v608 = vpop.f32.mrf.mxu0
    %v609 = vadd.f32 %v560, %v608
    %610 = vmatmul.bf16.gmra.mxu0 %v246
    %v611 = vpop.f32.mrf.mxu0
    %v612 = vadd.f32 %v563, %v611
    %v613 = vpop.f32.mrf.mxu0
    %v614 = vadd.f32 %v565, %v613
    %615 = vmatmul.bf16.gmra.mxu0 %v248
    %v616 = vpop.f32.mrf.mxu0
    %v617 = vadd.f32 %v568, %v616
    %v618 = vpop.f32.mrf.mxu0
    %v619 = vadd.f32 %v570, %v618
    %620 = vdwg.mxu0
    %v637 = vunpack.c.l.b16 %v87
    %v638 = vunpack.c.h.b16 %v87
    %v639 = vunpack.c.l.b16 %v88
    %v640 = vunpack.c.h.b16 %v88
    %v641 = vunpack.c.l.b16 %v89
    %v642 = vunpack.c.h.b16 %v89
    %v643 = vunpack.c.l.b16 %v90
    %v644 = vunpack.c.h.b16 %v90
    %v645 = vunpack.c.l.b16 %v91
    %v646 = vunpack.c.h.b16 %v91
    %v647 = vunpack.c.l.b16 %v92
    %v648 = vunpack.c.h.b16 %v92
    %v649 = vunpack.c.l.b16 %v93
    %v650 = vunpack.c.h.b16 %v93
    %v651 = vunpack.c.l.b16 %v94
    %v652 = vunpack.c.h.b16 %v94
    %v653 = vunpack.c.l.b16 %v95
    %v654 = vunpack.c.h.b16 %v95
    %v655 = vunpack.c.l.b16 %v96
    %v656 = vunpack.c.h.b16 %v96
    %v657 = vunpack.c.l.b16 %v97
    %v658 = vunpack.c.h.b16 %v97
    %v659 = vunpack.c.l.b16 %v98
    %v660 = vunpack.c.h.b16 %v98
    %v661 = vunpack.c.l.b16 %v99
    %v662 = vunpack.c.h.b16 %v99
    %v663 = vunpack.c.l.b16 %v100
    %v664 = vunpack.c.h.b16 %v100
    %v665 = vunpack.c.l.b16 %v101
    %v666 = vunpack.c.h.b16 %v101
    %v667 = vunpack.c.l.b16 %v102
    %v668 = vunpack.c.h.b16 %v102
    %v669 = vpack.c.b16 %v639, %v637
    %v670 = vpack.c.b16 %v640, %v638
    %v671 = vpack.c.b16 %v643, %v641
    %v672 = vpack.c.b16 %v644, %v642
    %v673 = vpack.c.b16 %v647, %v645
    %v674 = vpack.c.b16 %v648, %v646
    %v675 = vpack.c.b16 %v651, %v649
    %v676 = vpack.c.b16 %v652, %v650
    %v677 = vpack.c.b16 %v655, %v653
    %v678 = vpack.c.b16 %v656, %v654
    %v679 = vpack.c.b16 %v659, %v657
    %v680 = vpack.c.b16 %v660, %v658
    %v681 = vpack.c.b16 %v663, %v661
    %v682 = vpack.c.b16 %v664, %v662
    %v683 = vpack.c.b16 %v667, %v665
    %v684 = vpack.c.b16 %v668, %v666
    %v733 = vunpack.c.l.b16 %v103
    %v734 = vunpack.c.h.b16 %v103
    %v735 = vunpack.c.l.b16 %v104
    %v736 = vunpack.c.h.b16 %v104
    %v737 = vunpack.c.l.b16 %v105
    %v738 = vunpack.c.h.b16 %v105
    %v739 = vunpack.c.l.b16 %v106
    %v740 = vunpack.c.h.b16 %v106
    %v741 = vunpack.c.l.b16 %v107
    %v742 = vunpack.c.h.b16 %v107
    %v743 = vunpack.c.l.b16 %v108
    %v744 = vunpack.c.h.b16 %v108
    %v745 = vunpack.c.l.b16 %v109
    %v746 = vunpack.c.h.b16 %v109
    %v747 = vunpack.c.l.b16 %v110
    %v748 = vunpack.c.h.b16 %v110
    %v749 = vunpack.c.l.b16 %v111
    %v750 = vunpack.c.h.b16 %v111
    %v751 = vunpack.c.l.b16 %v112
    %v752 = vunpack.c.h.b16 %v112
    %v753 = vunpack.c.l.b16 %v113
    %v754 = vunpack.c.h.b16 %v113
    %v755 = vunpack.c.l.b16 %v114
    %v756 = vunpack.c.h.b16 %v114
    %v757 = vunpack.c.l.b16 %v115
    %v758 = vunpack.c.h.b16 %v115
    %v759 = vunpack.c.l.b16 %v116
    %v760 = vunpack.c.h.b16 %v116
    %v761 = vunpack.c.l.b16 %v117
    %v762 = vunpack.c.h.b16 %v117
    %v763 = vunpack.c.l.b16 %v118
    %v764 = vunpack.c.h.b16 %v118
    %v765 = vunpack.c.l.b16 %v119
    %v766 = vunpack.c.h.b16 %v119
    %v767 = vunpack.c.l.b16 %v120
    %v768 = vunpack.c.h.b16 %v120
    %v769 = vunpack.c.l.b16 %v121
    %v770 = vunpack.c.h.b16 %v121
    %v771 = vunpack.c.l.b16 %v122
    %v772 = vunpack.c.h.b16 %v122
    %v773 = vunpack.c.l.b16 %v123
    %v774 = vunpack.c.h.b16 %v123
    %v775 = vunpack.c.l.b16 %v124
    %v776 = vunpack.c.h.b16 %v124
    %v777 = vunpack.c.l.b16 %v125
    %v778 = vunpack.c.h.b16 %v125
    %v779 = vunpack.c.l.b16 %v126
    %v780 = vunpack.c.h.b16 %v126
    %v781 = vunpack.c.l.b16 %v127
    %v782 = vunpack.c.h.b16 %v127
    %v783 = vunpack.c.l.b16 %v128
    %v784 = vunpack.c.h.b16 %v128
    %v785 = vunpack.c.l.b16 %v129
    %v786 = vunpack.c.h.b16 %v129
    %v787 = vunpack.c.l.b16 %v130
    %v788 = vunpack.c.h.b16 %v130
    %v789 = vunpack.c.l.b16 %v131
    %v790 = vunpack.c.h.b16 %v131
    %v791 = vunpack.c.l.b16 %v132
    %v792 = vunpack.c.h.b16 %v132
    %v793 = vunpack.c.l.b16 %v133
    %v794 = vunpack.c.h.b16 %v133
    %v795 = vunpack.c.l.b16 %v134
    %v796 = vunpack.c.h.b16 %v134
    %v797 = vpack.c.b16 %v735, %v733
    %v798 = vpack.c.b16 %v736, %v734
    %v799 = vpack.c.b16 %v739, %v737
    %v800 = vpack.c.b16 %v740, %v738
    %v801 = vpack.c.b16 %v743, %v741
    %v802 = vpack.c.b16 %v744, %v742
    %v803 = vpack.c.b16 %v747, %v745
    %v804 = vpack.c.b16 %v748, %v746
    %v805 = vpack.c.b16 %v751, %v749
    %v806 = vpack.c.b16 %v752, %v750
    %v807 = vpack.c.b16 %v755, %v753
    %v808 = vpack.c.b16 %v756, %v754
    %v809 = vpack.c.b16 %v759, %v757
    %v810 = vpack.c.b16 %v760, %v758
    %v811 = vpack.c.b16 %v763, %v761
    %v812 = vpack.c.b16 %v764, %v762
    %v813 = vpack.c.b16 %v767, %v765
    %v814 = vpack.c.b16 %v768, %v766
    %v815 = vpack.c.b16 %v771, %v769
    %v816 = vpack.c.b16 %v772, %v770
    %v817 = vpack.c.b16 %v775, %v773
    %v818 = vpack.c.b16 %v776, %v774
    %v819 = vpack.c.b16 %v779, %v777
    %v820 = vpack.c.b16 %v780, %v778
    %v821 = vpack.c.b16 %v783, %v781
    %v822 = vpack.c.b16 %v784, %v782
    %v823 = vpack.c.b16 %v787, %v785
    %v824 = vpack.c.b16 %v788, %v786
    %v825 = vpack.c.b16 %v791, %v789
    %v826 = vpack.c.b16 %v792, %v790
    %v827 = vpack.c.b16 %v795, %v793
    %v828 = vpack.c.b16 %v796, %v794
    %861 = vmatpush.bf16.msra.mxu0 %v811
    %862 = vmatpush.bf16.msra.mxu0 %v809
    %863 = vmatpush.bf16.msra.mxu0 %v807
    %864 = vmatpush.bf16.msra.mxu0 %v805
    %865 = vmatpush.bf16.msra.mxu0 %v803
    %866 = vmatpush.bf16.msra.mxu0 %v801
    %867 = vmatpush.bf16.msra.mxu0 %v799
    %868 = vmatpush.bf16.msra.mxu0 %v797
    %869 = vmatmul.bf16.gmra.mxu0 %v669
    %v870 = vpop.f32.mrf.mxu0
    %v871 = vadd.f32 %v484, %v870
    %v872 = vpop.f32.mrf.mxu0
    %v873 = vadd.f32 %v486, %v872
    %874 = vmatmul.bf16.gmra.mxu0 %v671
    %v875 = vpop.f32.mrf.mxu0
    %v876 = vadd.f32 %v489, %v875
    %v877 = vpop.f32.mrf.mxu0
    %v878 = vadd.f32 %v491, %v877
    %879 = vmatmul.bf16.gmra.mxu0 %v673
    %v880 = vpop.f32.mrf.mxu0
    %v881 = vadd.f32 %v494, %v880
    %v882 = vpop.f32.mrf.mxu0
    %v883 = vadd.f32 %v496, %v882
    %884 = vmatmul.bf16.gmra.mxu0 %v675
    %v885 = vpop.f32.mrf.mxu0
    %v886 = vadd.f32 %v499, %v885
    %v887 = vpop.f32.mrf.mxu0
    %v888 = vadd.f32 %v501, %v887
    %889 = vmatmul.bf16.gmra.mxu0 %v677
    %v890 = vpop.f32.mrf.mxu0
    %v891 = vadd.f32 %v504, %v890
    %v892 = vpop.f32.mrf.mxu0
    %v893 = vadd.f32 %v506, %v892
    %894 = vmatmul.bf16.gmra.mxu0 %v679
    %v895 = vpop.f32.mrf.mxu0
    %v896 = vadd.f32 %v509, %v895
    %v897 = vpop.f32.mrf.mxu0
    %v898 = vadd.f32 %v511, %v897
    %899 = vmatmul.bf16.gmra.mxu0 %v681
    %v900 = vpop.f32.mrf.mxu0
    %v901 = vadd.f32 %v514, %v900
    %v902 = vpop.f32.mrf.mxu0
    %v903 = vadd.f32 %v516, %v902
    %904 = vmatmul.bf16.gmra.mxu0 %v683
    %v905 = vpop.f32.mrf.mxu0
    %v906 = vadd.f32 %v519, %v905
    %v907 = vpop.f32.mrf.mxu0
    %v908 = vadd.f32 %v521, %v907
    %909 = vdwg.mxu0
    %910 = vmatpush.bf16.msra.mxu0 %v827
    %911 = vmatpush.bf16.msra.mxu0 %v825
    %912 = vmatpush.bf16.msra.mxu0 %v823
    %913 = vmatpush.bf16.msra.mxu0 %v821
    %914 = vmatpush.bf16.msra.mxu0 %v819
    %915 = vmatpush.bf16.msra.mxu0 %v817
    %916 = vmatpush.bf16.msra.mxu0 %v815
    %917 = vmatpush.bf16.msra.mxu0 %v813
    %918 = vmatmul.bf16.gmra.mxu0 %v670
    %v919 = vpop.f32.mrf.mxu0
    %v920 = vadd.f32 %v871, %v919
    %v921 = vpop.f32.mrf.mxu0
    %v922 = vadd.f32 %v873, %v921
    %923 = vmatmul.bf16.gmra.mxu0 %v672
    %v924 = vpop.f32.mrf.mxu0
    %v925 = vadd.f32 %v876, %v924
    %v926 = vpop.f32.mrf.mxu0
    %v927 = vadd.f32 %v878, %v926
    %928 = vmatmul.bf16.gmra.mxu0 %v674
    %v929 = vpop.f32.mrf.mxu0
    %v930 = vadd.f32 %v881, %v929
    %v931 = vpop.f32.mrf.mxu0
    %v932 = vadd.f32 %v883, %v931
    %933 = vmatmul.bf16.gmra.mxu0 %v676
    %v934 = vpop.f32.mrf.mxu0
    %v935 = vadd.f32 %v886, %v934
    %v936 = vpop.f32.mrf.mxu0
    %v937 = vadd.f32 %v888, %v936
    %938 = vmatmul.bf16.gmra.mxu0 %v678
    %v939 = vpop.f32.mrf.mxu0
    %v940 = vadd.f32 %v891, %v939
    %v941 = vpop.f32.mrf.mxu0
    %v942 = vadd.f32 %v893, %v941
    %943 = vmatmul.bf16.gmra.mxu0 %v680
    %v944 = vpop.f32.mrf.mxu0
    %v945 = vadd.f32 %v896, %v944
    %v946 = vpop.f32.mrf.mxu0
    %v947 = vadd.f32 %v898, %v946
    %948 = vmatmul.bf16.gmra.mxu0 %v682
    %v949 = vpop.f32.mrf.mxu0
    %v950 = vadd.f32 %v901, %v949
    %v951 = vpop.f32.mrf.mxu0
    %v952 = vadd.f32 %v903, %v951
    %953 = vmatmul.bf16.gmra.mxu0 %v684
    %v954 = vpop.f32.mrf.mxu0
    %v955 = vadd.f32 %v906, %v954
    %v956 = vpop.f32.mrf.mxu0
    %v957 = vadd.f32 %v908, %v956
    %958 = vdwg.mxu0
    %959 = vmatpush.bf16.msra.mxu0 %v812
    %960 = vmatpush.bf16.msra.mxu0 %v810
    %961 = vmatpush.bf16.msra.mxu0 %v808
    %962 = vmatpush.bf16.msra.mxu0 %v806
    %963 = vmatpush.bf16.msra.mxu0 %v804
    %964 = vmatpush.bf16.msra.mxu0 %v802
    %965 = vmatpush.bf16.msra.mxu0 %v800
    %966 = vmatpush.bf16.msra.mxu0 %v798
    %967 = vmatmul.bf16.gmra.mxu0 %v669
    %v968 = vpop.f32.mrf.mxu0
    %v969 = vadd.f32 %v582, %v968
    %v970 = vpop.f32.mrf.mxu0
    %v971 = vadd.f32 %v584, %v970
    %972 = vmatmul.bf16.gmra.mxu0 %v671
    %v973 = vpop.f32.mrf.mxu0
    %v974 = vadd.f32 %v587, %v973
    %v975 = vpop.f32.mrf.mxu0
    %v976 = vadd.f32 %v589, %v975
    %977 = vmatmul.bf16.gmra.mxu0 %v673
    %v978 = vpop.f32.mrf.mxu0
    %v979 = vadd.f32 %v592, %v978
    %v980 = vpop.f32.mrf.mxu0
    %v981 = vadd.f32 %v594, %v980
    %982 = vmatmul.bf16.gmra.mxu0 %v675
    %v983 = vpop.f32.mrf.mxu0
    %v984 = vadd.f32 %v597, %v983
    %v985 = vpop.f32.mrf.mxu0
    %v986 = vadd.f32 %v599, %v985
    %987 = vmatmul.bf16.gmra.mxu0 %v677
    %v988 = vpop.f32.mrf.mxu0
    %v989 = vadd.f32 %v602, %v988
    %v990 = vpop.f32.mrf.mxu0
    %v991 = vadd.f32 %v604, %v990
    %992 = vmatmul.bf16.gmra.mxu0 %v679
    %v993 = vpop.f32.mrf.mxu0
    %v994 = vadd.f32 %v607, %v993
    %v995 = vpop.f32.mrf.mxu0
    %v996 = vadd.f32 %v609, %v995
    %997 = vmatmul.bf16.gmra.mxu0 %v681
    %v998 = vpop.f32.mrf.mxu0
    %v999 = vadd.f32 %v612, %v998
    %v1000 = vpop.f32.mrf.mxu0
    %v1001 = vadd.f32 %v614, %v1000
    %1002 = vmatmul.bf16.gmra.mxu0 %v683
    %v1003 = vpop.f32.mrf.mxu0
    %v1004 = vadd.f32 %v617, %v1003
    %v1005 = vpop.f32.mrf.mxu0
    %v1006 = vadd.f32 %v619, %v1005
    %1007 = vdwg.mxu0
    %1008 = vmatpush.bf16.msra.mxu0 %v828
    %1009 = vmatpush.bf16.msra.mxu0 %v826
    %1010 = vmatpush.bf16.msra.mxu0 %v824
    %1011 = vmatpush.bf16.msra.mxu0 %v822
    %1012 = vmatpush.bf16.msra.mxu0 %v820
    %1013 = vmatpush.bf16.msra.mxu0 %v818
    %1014 = vmatpush.bf16.msra.mxu0 %v816
    %1015 = vmatpush.bf16.msra.mxu0 %v814
    %1016 = vmatmul.bf16.gmra.mxu0 %v670
    %v1017 = vpop.f32.mrf.mxu0
    %v1018 = vadd.f32 %v969, %v1017
    %v1019 = vpop.f32.mrf.mxu0
    %v1020 = vadd.f32 %v971, %v1019
    %1021 = vmatmul.bf16.gmra.mxu0 %v672
    %v1022 = vpop.f32.mrf.mxu0
    %v1023 = vadd.f32 %v974, %v1022
    %v1024 = vpop.f32.mrf.mxu0
    %v1025 = vadd.f32 %v976, %v1024
    %1026 = vmatmul.bf16.gmra.mxu0 %v674
    %v1027 = vpop.f32.mrf.mxu0
    %v1028 = vadd.f32 %v979, %v1027
    %v1029 = vpop.f32.mrf.mxu0
    %v1030 = vadd.f32 %v981, %v1029
    %1031 = vmatmul.bf16.gmra.mxu0 %v676
    %v1032 = vpop.f32.mrf.mxu0
    %v1033 = vadd.f32 %v984, %v1032
    %v1034 = vpop.f32.mrf.mxu0
    %v1035 = vadd.f32 %v986, %v1034
    %1036 = vmatmul.bf16.gmra.mxu0 %v678
    %v1037 = vpop.f32.mrf.mxu0
    %v1038 = vadd.f32 %v989, %v1037
    %v1039 = vpop.f32.mrf.mxu0
    %v1040 = vadd.f32 %v991, %v1039
    %1041 = vmatmul.bf16.gmra.mxu0 %v680
    %v1042 = vpop.f32.mrf.mxu0
    %v1043 = vadd.f32 %v994, %v1042
    %v1044 = vpop.f32.mrf.mxu0
    %v1045 = vadd.f32 %v996, %v1044
    %1046 = vmatmul.bf16.gmra.mxu0 %v682
    %v1047 = vpop.f32.mrf.mxu0
    %v1048 = vadd.f32 %v999, %v1047
    %v1049 = vpop.f32.mrf.mxu0
    %v1050 = vadd.f32 %v1001, %v1049
    %1051 = vmatmul.bf16.gmra.mxu0 %v684
    %v1052 = vpop.f32.mrf.mxu0
    %v1053 = vadd.f32 %v1004, %v1052
    %v1054 = vpop.f32.mrf.mxu0
    %v1055 = vadd.f32 %v1006, %v1054
    %1056 = vdwg.mxu0
    %s1057 = scalar_lea.vmem [#allocation3], 16
    %v1058 = vld [vmem:[%s1057] sm:$0xff]
    %v1059 = vld [vmem:[%s1057 + $0x8] sm:$0xff]
    %v1060 = vld [vmem:[%s1057 + $0x10] sm:$0xff]
    %v1061 = vld [vmem:[%s1057 + $0x18] sm:$0xff]
    %v1062 = vld [vmem:[%s1057 + $0x20] sm:$0xff]
    %v1063 = vld [vmem:[%s1057 + $0x28] sm:$0xff]
    %v1064 = vld [vmem:[%s1057 + $0x30] sm:$0xff]
    %v1065 = vld [vmem:[%s1057 + $0x38] sm:$0xff]
    %v1066 = vld [vmem:[%s1057 + $0x40] sm:$0xff]
    %v1067 = vld [vmem:[%s1057 + $0x48] sm:$0xff]
    %v1068 = vld [vmem:[%s1057 + $0x50] sm:$0xff]
    %v1069 = vld [vmem:[%s1057 + $0x58] sm:$0xff]
    %v1070 = vld [vmem:[%s1057 + $0x60] sm:$0xff]
    %v1071 = vld [vmem:[%s1057 + $0x68] sm:$0xff]
    %v1072 = vld [vmem:[%s1057 + $0x70] sm:$0xff]
    %v1073 = vld [vmem:[%s1057 + $0x78] sm:$0xff]
    %s1074 = scalar_lea.vmem [#allocation6], 512
    %v1075 = vld [vmem:[%s1074] sm:$0xff]
    %v1076 = vld [vmem:[%s1074 + $0x8] sm:$0xff]
    %v1077 = vld [vmem:[%s1074 + $0x10] sm:$0xff]
    %v1078 = vld [vmem:[%s1074 + $0x18] sm:$0xff]
    %v1079 = vld [vmem:[%s1074 + $0x20] sm:$0xff]
    %v1080 = vld [vmem:[%s1074 + $0x28] sm:$0xff]
    %v1081 = vld [vmem:[%s1074 + $0x30] sm:$0xff]
    %v1082 = vld [vmem:[%s1074 + $0x38] sm:$0xff]
    %v1083 = vld [vmem:[%s1074 + $0x40] sm:$0xff]
    %v1084 = vld [vmem:[%s1074 + $0x48] sm:$0xff]
    %v1085 = vld [vmem:[%s1074 + $0x50] sm:$0xff]
    %v1086 = vld [vmem:[%s1074 + $0x58] sm:$0xff]
    %v1087 = vld [vmem:[%s1074 + $0x60] sm:$0xff]
    %v1088 = vld [vmem:[%s1074 + $0x68] sm:$0xff]
    %v1089 = vld [vmem:[%s1074 + $0x70] sm:$0xff]
    %v1090 = vld [vmem:[%s1074 + $0x78] sm:$0xff]
    %v1091 = vld [vmem:[%s1074 + $0x80] sm:$0xff]
    %v1092 = vld [vmem:[%s1074 + $0x88] sm:$0xff]
    %v1093 = vld [vmem:[%s1074 + $0x90] sm:$0xff]
    %v1094 = vld [vmem:[%s1074 + $0x98] sm:$0xff]
    %v1095 = vld [vmem:[%s1074 + $0xa0] sm:$0xff]
    %v1096 = vld [vmem:[%s1074 + $0xa8] sm:$0xff]
    %v1097 = vld [vmem:[%s1074 + $0xb0] sm:$0xff]
    %v1098 = vld [vmem:[%s1074 + $0xb8] sm:$0xff]
    %v1099 = vld [vmem:[%s1074 + $0xc0] sm:$0xff]
    %v1100 = vld [vmem:[%s1074 + $0xc8] sm:$0xff]
    %v1101 = vld [vmem:[%s1074 + $0xd0] sm:$0xff]
    %v1102 = vld [vmem:[%s1074 + $0xd8] sm:$0xff]
    %v1103 = vld [vmem:[%s1074 + $0xe0] sm:$0xff]
    %v1104 = vld [vmem:[%s1074 + $0xe8] sm:$0xff]
    %v1105 = vld [vmem:[%s1074 + $0xf0] sm:$0xff]
    %v1106 = vld [vmem:[%s1074 + $0xf8] sm:$0xff]
    %v1123 = vunpack.c.l.b16 %v1058
    %v1124 = vunpack.c.h.b16 %v1058
    %v1125 = vunpack.c.l.b16 %v1059
    %v1126 = vunpack.c.h.b16 %v1059
    %v1127 = vunpack.c.l.b16 %v1060
    %v1128 = vunpack.c.h.b16 %v1060
    %v1129 = vunpack.c.l.b16 %v1061
    %v1130 = vunpack.c.h.b16 %v1061
    %v1131 = vunpack.c.l.b16 %v1062
    %v1132 = vunpack.c.h.b16 %v1062
    %v1133 = vunpack.c.l.b16 %v1063
    %v1134 = vunpack.c.h.b16 %v1063
    %v1135 = vunpack.c.l.b16 %v1064
    %v1136 = vunpack.c.h.b16 %v1064
    %v1137 = vunpack.c.l.b16 %v1065
    %v1138 = vunpack.c.h.b16 %v1065
    %v1139 = vunpack.c.l.b16 %v1066
    %v1140 = vunpack.c.h.b16 %v1066
    %v1141 = vunpack.c.l.b16 %v1067
    %v1142 = vunpack.c.h.b16 %v1067
    %v1143 = vunpack.c.l.b16 %v1068
    %v1144 = vunpack.c.h.b16 %v1068
    %v1145 = vunpack.c.l.b16 %v1069
    %v1146 = vunpack.c.h.b16 %v1069
    %v1147 = vunpack.c.l.b16 %v1070
    %v1148 = vunpack.c.h.b16 %v1070
    %v1149 = vunpack.c.l.b16 %v1071
    %v1150 = vunpack.c.h.b16 %v1071
    %v1151 = vunpack.c.l.b16 %v1072
    %v1152 = vunpack.c.h.b16 %v1072
    %v1153 = vunpack.c.l.b16 %v1073
    %v1154 = vunpack.c.h.b16 %v1073
    %v1155 = vpack.c.b16 %v1125, %v1123
    %v1156 = vpack.c.b16 %v1126, %v1124
    %v1157 = vpack.c.b16 %v1129, %v1127
    %v1158 = vpack.c.b16 %v1130, %v1128
    %v1159 = vpack.c.b16 %v1133, %v1131
    %v1160 = vpack.c.b16 %v1134, %v1132
    %v1161 = vpack.c.b16 %v1137, %v1135
    %v1162 = vpack.c.b16 %v1138, %v1136
    %v1163 = vpack.c.b16 %v1141, %v1139
    %v1164 = vpack.c.b16 %v1142, %v1140
    %v1165 = vpack.c.b16 %v1145, %v1143
    %v1166 = vpack.c.b16 %v1146, %v1144
    %v1167 = vpack.c.b16 %v1149, %v1147
    %v1168 = vpack.c.b16 %v1150, %v1148
    %v1169 = vpack.c.b16 %v1153, %v1151
    %v1170 = vpack.c.b16 %v1154, %v1152
    %v1219 = vunpack.c.l.b16 %v1075
    %v1220 = vunpack.c.h.b16 %v1075
    %v1221 = vunpack.c.l.b16 %v1076
    %v1222 = vunpack.c.h.b16 %v1076
    %v1223 = vunpack.c.l.b16 %v1077
    %v1224 = vunpack.c.h.b16 %v1077
    %v1225 = vunpack.c.l.b16 %v1078
    %v1226 = vunpack.c.h.b16 %v1078
    %v1227 = vunpack.c.l.b16 %v1079
    %v1228 = vunpack.c.h.b16 %v1079
    %v1229 = vunpack.c.l.b16 %v1080
    %v1230 = vunpack.c.h.b16 %v1080
    %v1231 = vunpack.c.l.b16 %v1081
    %v1232 = vunpack.c.h.b16 %v1081
    %v1233 = vunpack.c.l.b16 %v1082
    %v1234 = vunpack.c.h.b16 %v1082
    %v1235 = vunpack.c.l.b16 %v1083
    %v1236 = vunpack.c.h.b16 %v1083
    %v1237 = vunpack.c.l.b16 %v1084
    %v1238 = vunpack.c.h.b16 %v1084
    %v1239 = vunpack.c.l.b16 %v1085
    %v1240 = vunpack.c.h.b16 %v1085
    %v1241 = vunpack.c.l.b16 %v1086
    %v1242 = vunpack.c.h.b16 %v1086
    %v1243 = vunpack.c.l.b16 %v1087
    %v1244 = vunpack.c.h.b16 %v1087
    %v1245 = vunpack.c.l.b16 %v1088
    %v1246 = vunpack.c.h.b16 %v1088
    %v1247 = vunpack.c.l.b16 %v1089
    %v1248 = vunpack.c.h.b16 %v1089
    %v1249 = vunpack.c.l.b16 %v1090
    %v1250 = vunpack.c.h.b16 %v1090
    %v1251 = vunpack.c.l.b16 %v1091
    %v1252 = vunpack.c.h.b16 %v1091
    %v1253 = vunpack.c.l.b16 %v1092
    %v1254 = vunpack.c.h.b16 %v1092
    %v1255 = vunpack.c.l.b16 %v1093
    %v1256 = vunpack.c.h.b16 %v1093
    %v1257 = vunpack.c.l.b16 %v1094
    %v1258 = vunpack.c.h.b16 %v1094
    %v1259 = vunpack.c.l.b16 %v1095
    %v1260 = vunpack.c.h.b16 %v1095
    %v1261 = vunpack.c.l.b16 %v1096
    %v1262 = vunpack.c.h.b16 %v1096
    %v1263 = vunpack.c.l.b16 %v1097
    %v1264 = vunpack.c.h.b16 %v1097
    %v1265 = vunpack.c.l.b16 %v1098
    %v1266 = vunpack.c.h.b16 %v1098
    %v1267 = vunpack.c.l.b16 %v1099
    %v1268 = vunpack.c.h.b16 %v1099
    %v1269 = vunpack.c.l.b16 %v1100
    %v1270 = vunpack.c.h.b16 %v1100
    %v1271 = vunpack.c.l.b16 %v1101
    %v1272 = vunpack.c.h.b16 %v1101
    %v1273 = vunpack.c.l.b16 %v1102
    %v1274 = vunpack.c.h.b16 %v1102
    %v1275 = vunpack.c.l.b16 %v1103
    %v1276 = vunpack.c.h.b16 %v1103
    %v1277 = vunpack.c.l.b16 %v1104
    %v1278 = vunpack.c.h.b16 %v1104
    %v1279 = vunpack.c.l.b16 %v1105
    %v1280 = vunpack.c.h.b16 %v1105
    %v1281 = vunpack.c.l.b16 %v1106
    %v1282 = vunpack.c.h.b16 %v1106
    %v1283 = vpack.c.b16 %v1221, %v1219
    %v1284 = vpack.c.b16 %v1222, %v1220
    %v1285 = vpack.c.b16 %v1225, %v1223
    %v1286 = vpack.c.b16 %v1226, %v1224
    %v1287 = vpack.c.b16 %v1229, %v1227
    %v1288 = vpack.c.b16 %v1230, %v1228
    %v1289 = vpack.c.b16 %v1233, %v1231
    %v1290 = vpack.c.b16 %v1234, %v1232
    %v1291 = vpack.c.b16 %v1237, %v1235
    %v1292 = vpack.c.b16 %v1238, %v1236
    %v1293 = vpack.c.b16 %v1241, %v1239
    %v1294 = vpack.c.b16 %v1242, %v1240
    %v1295 = vpack.c.b16 %v1245, %v1243
    %v1296 = vpack.c.b16 %v1246, %v1244
    %v1297 = vpack.c.b16 %v1249, %v1247
    %v1298 = vpack.c.b16 %v1250, %v1248
    %v1299 = vpack.c.b16 %v1253, %v1251
    %v1300 = vpack.c.b16 %v1254, %v1252
    %v1301 = vpack.c.b16 %v1257, %v1255
    %v1302 = vpack.c.b16 %v1258, %v1256
    %v1303 = vpack.c.b16 %v1261, %v1259
    %v1304 = vpack.c.b16 %v1262, %v1260
    %v1305 = vpack.c.b16 %v1265, %v1263
    %v1306 = vpack.c.b16 %v1266, %v1264
    %v1307 = vpack.c.b16 %v1269, %v1267
    %v1308 = vpack.c.b16 %v1270, %v1268
    %v1309 = vpack.c.b16 %v1273, %v1271
    %v1310 = vpack.c.b16 %v1274, %v1272
    %v1311 = vpack.c.b16 %v1277, %v1275
    %v1312 = vpack.c.b16 %v1278, %v1276
    %v1313 = vpack.c.b16 %v1281, %v1279
    %v1314 = vpack.c.b16 %v1282, %v1280
    %1347 = vmatpush.bf16.msra.mxu0 %v1297
    %1348 = vmatpush.bf16.msra.mxu0 %v1295
    %1349 = vmatpush.bf16.msra.mxu0 %v1293
    %1350 = vmatpush.bf16.msra.mxu0 %v1291
    %1351 = vmatpush.bf16.msra.mxu0 %v1289
    %1352 = vmatpush.bf16.msra.mxu0 %v1287
    %1353 = vmatpush.bf16.msra.mxu0 %v1285
    %1354 = vmatpush.bf16.msra.mxu0 %v1283
    %1355 = vmatmul.bf16.gmra.mxu0 %v1155
    %v1356 = vpop.f32.mrf.mxu0
    %v1357 = vadd.f32 0.0, %v1356
    %v1358 = vpop.f32.mrf.mxu0
    %v1359 = vadd.f32 0.0, %v1358
    %1360 = vmatmul.bf16.gmra.mxu0 %v1157
    %v1361 = vpop.f32.mrf.mxu0
    %v1362 = vadd.f32 0.0, %v1361
    %v1363 = vpop.f32.mrf.mxu0
    %v1364 = vadd.f32 0.0, %v1363
    %1365 = vmatmul.bf16.gmra.mxu0 %v1159
    %v1366 = vpop.f32.mrf.mxu0
    %v1367 = vadd.f32 0.0, %v1366
    %v1368 = vpop.f32.mrf.mxu0
    %v1369 = vadd.f32 0.0, %v1368
    %1370 = vmatmul.bf16.gmra.mxu0 %v1161
    %v1371 = vpop.f32.mrf.mxu0
    %v1372 = vadd.f32 0.0, %v1371
    %v1373 = vpop.f32.mrf.mxu0
    %v1374 = vadd.f32 0.0, %v1373
    %1375 = vmatmul.bf16.gmra.mxu0 %v1163
    %v1376 = vpop.f32.mrf.mxu0
    %v1377 = vadd.f32 0.0, %v1376
    %v1378 = vpop.f32.mrf.mxu0
    %v1379 = vadd.f32 0.0, %v1378
    %1380 = vmatmul.bf16.gmra.mxu0 %v1165
    %v1381 = vpop.f32.mrf.mxu0
    %v1382 = vadd.f32 0.0, %v1381
    %v1383 = vpop.f32.mrf.mxu0
    %v1384 = vadd.f32 0.0, %v1383
    %1385 = vmatmul.bf16.gmra.mxu0 %v1167
    %v1386 = vpop.f32.mrf.mxu0
    %v1387 = vadd.f32 0.0, %v1386
    %v1388 = vpop.f32.mrf.mxu0
    %v1389 = vadd.f32 0.0, %v1388
    %1390 = vmatmul.bf16.gmra.mxu0 %v1169
    %v1391 = vpop.f32.mrf.mxu0
    %v1392 = vadd.f32 0.0, %v1391
    %v1393 = vpop.f32.mrf.mxu0
    %v1394 = vadd.f32 0.0, %v1393
    %1395 = vdwg.mxu0
    %1396 = vmatpush.bf16.msra.mxu0 %v1313
    %1397 = vmatpush.bf16.msra.mxu0 %v1311
    %1398 = vmatpush.bf16.msra.mxu0 %v1309
    %1399 = vmatpush.bf16.msra.mxu0 %v1307
    %1400 = vmatpush.bf16.msra.mxu0 %v1305
    %1401 = vmatpush.bf16.msra.mxu0 %v1303
    %1402 = vmatpush.bf16.msra.mxu0 %v1301
    %1403 = vmatpush.bf16.msra.mxu0 %v1299
    %1404 = vmatmul.bf16.gmra.mxu0 %v1156
    %v1405 = vpop.f32.mrf.mxu0
    %v1406 = vadd.f32 %v1357, %v1405
    %v1407 = vpop.f32.mrf.mxu0
    %v1408 = vadd.f32 %v1359, %v1407
    %1409 = vmatmul.bf16.gmra.mxu0 %v1158
    %v1410 = vpop.f32.mrf.mxu0
    %v1411 = vadd.f32 %v1362, %v1410
    %v1412 = vpop.f32.mrf.mxu0
    %v1413 = vadd.f32 %v1364, %v1412
    %1414 = vmatmul.bf16.gmra.mxu0 %v1160
    %v1415 = vpop.f32.mrf.mxu0
    %v1416 = vadd.f32 %v1367, %v1415
    %v1417 = vpop.f32.mrf.mxu0
    %v1418 = vadd.f32 %v1369, %v1417
    %1419 = vmatmul.bf16.gmra.mxu0 %v1162
    %v1420 = vpop.f32.mrf.mxu0
    %v1421 = vadd.f32 %v1372, %v1420
    %v1422 = vpop.f32.mrf.mxu0
    %v1423 = vadd.f32 %v1374, %v1422
    %1424 = vmatmul.bf16.gmra.mxu0 %v1164
    %v1425 = vpop.f32.mrf.mxu0
    %v1426 = vadd.f32 %v1377, %v1425
    %v1427 = vpop.f32.mrf.mxu0
    %v1428 = vadd.f32 %v1379, %v1427
    %1429 = vmatmul.bf16.gmra.mxu0 %v1166
    %v1430 = vpop.f32.mrf.mxu0
    %v1431 = vadd.f32 %v1382, %v1430
    %v1432 = vpop.f32.mrf.mxu0
    %v1433 = vadd.f32 %v1384, %v1432
    %1434 = vmatmul.bf16.gmra.mxu0 %v1168
    %v1435 = vpop.f32.mrf.mxu0
    %v1436 = vadd.f32 %v1387, %v1435
    %v1437 = vpop.f32.mrf.mxu0
    %v1438 = vadd.f32 %v1389, %v1437
    %1439 = vmatmul.bf16.gmra.mxu0 %v1170
    %v1440 = vpop.f32.mrf.mxu0
    %v1441 = vadd.f32 %v1392, %v1440
    %v1442 = vpop.f32.mrf.mxu0
    %v1443 = vadd.f32 %v1394, %v1442
    %1444 = vdwg.mxu0
    %1445 = vmatpush.bf16.msra.mxu0 %v1298
    %1446 = vmatpush.bf16.msra.mxu0 %v1296
    %1447 = vmatpush.bf16.msra.mxu0 %v1294
    %1448 = vmatpush.bf16.msra.mxu0 %v1292
    %1449 = vmatpush.bf16.msra.mxu0 %v1290
    %1450 = vmatpush.bf16.msra.mxu0 %v1288
    %1451 = vmatpush.bf16.msra.mxu0 %v1286
    %1452 = vmatpush.bf16.msra.mxu0 %v1284
    %1453 = vmatmul.bf16.gmra.mxu0 %v1155
    %v1454 = vpop.f32.mrf.mxu0
    %v1455 = vadd.f32 0.0, %v1454
    %v1456 = vpop.f32.mrf.mxu0
    %v1457 = vadd.f32 0.0, %v1456
    %1458 = vmatmul.bf16.gmra.mxu0 %v1157
    %v1459 = vpop.f32.mrf.mxu0
    %v1460 = vadd.f32 0.0, %v1459
    %v1461 = vpop.f32.mrf.mxu0
    %v1462 = vadd.f32 0.0, %v1461
    %1463 = vmatmul.bf16.gmra.mxu0 %v1159
    %v1464 = vpop.f32.mrf.mxu0
    %v1465 = vadd.f32 0.0, %v1464
    %v1466 = vpop.f32.mrf.mxu0
    %v1467 = vadd.f32 0.0, %v1466
    %1468 = vmatmul.bf16.gmra.mxu0 %v1161
    %v1469 = vpop.f32.mrf.mxu0
    %v1470 = vadd.f32 0.0, %v1469
    %v1471 = vpop.f32.mrf.mxu0
    %v1472 = vadd.f32 0.0, %v1471
    %1473 = vmatmul.bf16.gmra.mxu0 %v1163
    %v1474 = vpop.f32.mrf.mxu0
    %v1475 = vadd.f32 0.0, %v1474
    %v1476 = vpop.f32.mrf.mxu0
    %v1477 = vadd.f32 0.0, %v1476
    %1478 = vmatmul.bf16.gmra.mxu0 %v1165
    %v1479 = vpop.f32.mrf.mxu0
    %v1480 = vadd.f32 0.0, %v1479
    %v1481 = vpop.f32.mrf.mxu0
    %v1482 = vadd.f32 0.0, %v1481
    %1483 = vmatmul.bf16.gmra.mxu0 %v1167
    %v1484 = vpop.f32.mrf.mxu0
    %v1485 = vadd.f32 0.0, %v1484
    %v1486 = vpop.f32.mrf.mxu0
    %v1487 = vadd.f32 0.0, %v1486
    %1488 = vmatmul.bf16.gmra.mxu0 %v1169
    %v1489 = vpop.f32.mrf.mxu0
    %v1490 = vadd.f32 0.0, %v1489
    %v1491 = vpop.f32.mrf.mxu0
    %v1492 = vadd.f32 0.0, %v1491
    %1493 = vdwg.mxu0
    %1494 = vmatpush.bf16.msra.mxu0 %v1314
    %1495 = vmatpush.bf16.msra.mxu0 %v1312
    %1496 = vmatpush.bf16.msra.mxu0 %v1310
    %1497 = vmatpush.bf16.msra.mxu0 %v1308
    %1498 = vmatpush.bf16.msra.mxu0 %v1306
    %1499 = vmatpush.bf16.msra.mxu0 %v1304
    %1500 = vmatpush.bf16.msra.mxu0 %v1302
    %1501 = vmatpush.bf16.msra.mxu0 %v1300
    %1502 = vmatmul.bf16.gmra.mxu0 %v1156
    %v1503 = vpop.f32.mrf.mxu0
    %v1504 = vadd.f32 %v1455, %v1503
    %v1505 = vpop.f32.mrf.mxu0
    %v1506 = vadd.f32 %v1457, %v1505
    %1507 = vmatmul.bf16.gmra.mxu0 %v1158
    %v1508 = vpop.f32.mrf.mxu0
    %v1509 = vadd.f32 %v1460, %v1508
    %v1510 = vpop.f32.mrf.mxu0
    %v1511 = vadd.f32 %v1462, %v1510
    %1512 = vmatmul.bf16.gmra.mxu0 %v1160
    %v1513 = vpop.f32.mrf.mxu0
    %v1514 = vadd.f32 %v1465, %v1513
    %v1515 = vpop.f32.mrf.mxu0
    %v1516 = vadd.f32 %v1467, %v1515
    %1517 = vmatmul.bf16.gmra.mxu0 %v1162
    %v1518 = vpop.f32.mrf.mxu0
    %v1519 = vadd.f32 %v1470, %v1518
    %v1520 = vpop.f32.mrf.mxu0
    %v1521 = vadd.f32 %v1472, %v1520
    %1522 = vmatmul.bf16.gmra.mxu0 %v1164
    %v1523 = vpop.f32.mrf.mxu0
    %v1524 = vadd.f32 %v1475, %v1523
    %v1525 = vpop.f32.mrf.mxu0
    %v1526 = vadd.f32 %v1477, %v1525
    %1527 = vmatmul.bf16.gmra.mxu0 %v1166
    %v1528 = vpop.f32.mrf.mxu0
    %v1529 = vadd.f32 %v1480, %v1528
    %v1530 = vpop.f32.mrf.mxu0
    %v1531 = vadd.f32 %v1482, %v1530
    %1532 = vmatmul.bf16.gmra.mxu0 %v1168
    %v1533 = vpop.f32.mrf.mxu0
    %v1534 = vadd.f32 %v1485, %v1533
    %v1535 = vpop.f32.mrf.mxu0
    %v1536 = vadd.f32 %v1487, %v1535
    %1537 = vmatmul.bf16.gmra.mxu0 %v1170
    %v1538 = vpop.f32.mrf.mxu0
    %v1539 = vadd.f32 %v1490, %v1538
    %v1540 = vpop.f32.mrf.mxu0
    %v1541 = vadd.f32 %v1492, %v1540
    %1542 = vdwg.mxu0
    %v1543 = vadd.f32 %v920, %v1406
    %v1544 = vadd.f32 %v1018, %v1504
    %v1545 = vadd.f32 %v922, %v1408
    %v1546 = vadd.f32 %v1020, %v1506
    %v1547 = vadd.f32 %v925, %v1411
    %v1548 = vadd.f32 %v1023, %v1509
    %v1549 = vadd.f32 %v927, %v1413
    %v1550 = vadd.f32 %v1025, %v1511
    %v1551 = vadd.f32 %v930, %v1416
    %v1552 = vadd.f32 %v1028, %v1514
    %v1553 = vadd.f32 %v932, %v1418
    %v1554 = vadd.f32 %v1030, %v1516
    %v1555 = vadd.f32 %v935, %v1421
    %v1556 = vadd.f32 %v1033, %v1519
    %v1557 = vadd.f32 %v937, %v1423
    %v1558 = vadd.f32 %v1035, %v1521
    %v1559 = vadd.f32 %v940, %v1426
    %v1560 = vadd.f32 %v1038, %v1524
    %v1561 = vadd.f32 %v942, %v1428
    %v1562 = vadd.f32 %v1040, %v1526
    %v1563 = vadd.f32 %v945, %v1431
    %v1564 = vadd.f32 %v1043, %v1529
    %v1565 = vadd.f32 %v947, %v1433
    %v1566 = vadd.f32 %v1045, %v1531
    %v1567 = vadd.f32 %v950, %v1436
    %v1568 = vadd.f32 %v1048, %v1534
    %v1569 = vadd.f32 %v952, %v1438
    %v1570 = vadd.f32 %v1050, %v1536
    %v1571 = vadd.f32 %v955, %v1441
    %v1572 = vadd.f32 %v1053, %v1539
    %v1573 = vadd.f32 %v957, %v1443
    %v1574 = vadd.f32 %v1055, %v1541
    %s1575 = scalar_lea.vmem [#allocation3], 24
    %v1576 = vld [vmem:[%s1575] sm:$0xff]
    %v1577 = vld [vmem:[%s1575 + $0x8] sm:$0xff]
    %v1578 = vld [vmem:[%s1575 + $0x10] sm:$0xff]
    %v1579 = vld [vmem:[%s1575 + $0x18] sm:$0xff]
    %v1580 = vld [vmem:[%s1575 + $0x20] sm:$0xff]
    %v1581 = vld [vmem:[%s1575 + $0x28] sm:$0xff]
    %v1582 = vld [vmem:[%s1575 + $0x30] sm:$0xff]
    %v1583 = vld [vmem:[%s1575 + $0x38] sm:$0xff]
    %v1584 = vld [vmem:[%s1575 + $0x40] sm:$0xff]
    %v1585 = vld [vmem:[%s1575 + $0x48] sm:$0xff]
    %v1586 = vld [vmem:[%s1575 + $0x50] sm:$0xff]
    %v1587 = vld [vmem:[%s1575 + $0x58] sm:$0xff]
    %v1588 = vld [vmem:[%s1575 + $0x60] sm:$0xff]
    %v1589 = vld [vmem:[%s1575 + $0x68] sm:$0xff]
    %v1590 = vld [vmem:[%s1575 + $0x70] sm:$0xff]
    %v1591 = vld [vmem:[%s1575 + $0x78] sm:$0xff]
    %s1592 = scalar_lea.vmem [#allocation6], 768
    %v1593 = vld [vmem:[%s1592] sm:$0xff]
    %v1594 = vld [vmem:[%s1592 + $0x8] sm:$0xff]
    %v1595 = vld [vmem:[%s1592 + $0x10] sm:$0xff]
    %v1596 = vld [vmem:[%s1592 + $0x18] sm:$0xff]
    %v1597 = vld [vmem:[%s1592 + $0x20] sm:$0xff]
    %v1598 = vld [vmem:[%s1592 + $0x28] sm:$0xff]
    %v1599 = vld [vmem:[%s1592 + $0x30] sm:$0xff]
    %v1600 = vld [vmem:[%s1592 + $0x38] sm:$0xff]
    %v1601 = vld [vmem:[%s1592 + $0x40] sm:$0xff]
    %v1602 = vld [vmem:[%s1592 + $0x48] sm:$0xff]
    %v1603 = vld [vmem:[%s1592 + $0x50] sm:$0xff]
    %v1604 = vld [vmem:[%s1592 + $0x58] sm:$0xff]
    %v1605 = vld [vmem:[%s1592 + $0x60] sm:$0xff]
    %v1606 = vld [vmem:[%s1592 + $0x68] sm:$0xff]
    %v1607 = vld [vmem:[%s1592 + $0x70] sm:$0xff]
    %v1608 = vld [vmem:[%s1592 + $0x78] sm:$0xff]
    %v1609 = vld [vmem:[%s1592 + $0x80] sm:$0xff]
    %v1610 = vld [vmem:[%s1592 + $0x88] sm:$0xff]
    %v1611 = vld [vmem:[%s1592 + $0x90] sm:$0xff]
    %v1612 = vld [vmem:[%s1592 + $0x98] sm:$0xff]
    %v1613 = vld [vmem:[%s1592 + $0xa0] sm:$0xff]
    %v1614 = vld [vmem:[%s1592 + $0xa8] sm:$0xff]
    %v1615 = vld [vmem:[%s1592 + $0xb0] sm:$0xff]
    %v1616 = vld [vmem:[%s1592 + $0xb8] sm:$0xff]
    %v1617 = vld [vmem:[%s1592 + $0xc0] sm:$0xff]
    %v1618 = vld [vmem:[%s1592 + $0xc8] sm:$0xff]
    %v1619 = vld [vmem:[%s1592 + $0xd0] sm:$0xff]
    %v1620 = vld [vmem:[%s1592 + $0xd8] sm:$0xff]
    %v1621 = vld [vmem:[%s1592 + $0xe0] sm:$0xff]
    %v1622 = vld [vmem:[%s1592 + $0xe8] sm:$0xff]
    %v1623 = vld [vmem:[%s1592 + $0xf0] sm:$0xff]
    %v1624 = vld [vmem:[%s1592 + $0xf8] sm:$0xff]
    %v1641 = vunpack.c.l.b16 %v1576
    %v1642 = vunpack.c.h.b16 %v1576
    %v1643 = vunpack.c.l.b16 %v1577
    %v1644 = vunpack.c.h.b16 %v1577
    %v1645 = vunpack.c.l.b16 %v1578
    %v1646 = vunpack.c.h.b16 %v1578
    %v1647 = vunpack.c.l.b16 %v1579
    %v1648 = vunpack.c.h.b16 %v1579
    %v1649 = vunpack.c.l.b16 %v1580
    %v1650 = vunpack.c.h.b16 %v1580
    %v1651 = vunpack.c.l.b16 %v1581
    %v1652 = vunpack.c.h.b16 %v1581
    %v1653 = vunpack.c.l.b16 %v1582
    %v1654 = vunpack.c.h.b16 %v1582
    %v1655 = vunpack.c.l.b16 %v1583
    %v1656 = vunpack.c.h.b16 %v1583
    %v1657 = vunpack.c.l.b16 %v1584
    %v1658 = vunpack.c.h.b16 %v1584
    %v1659 = vunpack.c.l.b16 %v1585
    %v1660 = vunpack.c.h.b16 %v1585
    %v1661 = vunpack.c.l.b16 %v1586
    %v1662 = vunpack.c.h.b16 %v1586
    %v1663 = vunpack.c.l.b16 %v1587
    %v1664 = vunpack.c.h.b16 %v1587
    %v1665 = vunpack.c.l.b16 %v1588
    %v1666 = vunpack.c.h.b16 %v1588
    %v1667 = vunpack.c.l.b16 %v1589
    %v1668 = vunpack.c.h.b16 %v1589
    %v1669 = vunpack.c.l.b16 %v1590
    %v1670 = vunpack.c.h.b16 %v1590
    %v1671 = vunpack.c.l.b16 %v1591
    %v1672 = vunpack.c.h.b16 %v1591
    %v1673 = vpack.c.b16 %v1643, %v1641
    %v1674 = vpack.c.b16 %v1644, %v1642
    %v1675 = vpack.c.b16 %v1647, %v1645
    %v1676 = vpack.c.b16 %v1648, %v1646
    %v1677 = vpack.c.b16 %v1651, %v1649
    %v1678 = vpack.c.b16 %v1652, %v1650
    %v1679 = vpack.c.b16 %v1655, %v1653
    %v1680 = vpack.c.b16 %v1656, %v1654
    %v1681 = vpack.c.b16 %v1659, %v1657
    %v1682 = vpack.c.b16 %v1660, %v1658
    %v1683 = vpack.c.b16 %v1663, %v1661
    %v1684 = vpack.c.b16 %v1664, %v1662
    %v1685 = vpack.c.b16 %v1667, %v1665
    %v1686 = vpack.c.b16 %v1668, %v1666
    %v1687 = vpack.c.b16 %v1671, %v1669
    %v1688 = vpack.c.b16 %v1672, %v1670
    %v1737 = vunpack.c.l.b16 %v1593
    %v1738 = vunpack.c.h.b16 %v1593
    %v1739 = vunpack.c.l.b16 %v1594
    %v1740 = vunpack.c.h.b16 %v1594
    %v1741 = vunpack.c.l.b16 %v1595
    %v1742 = vunpack.c.h.b16 %v1595
    %v1743 = vunpack.c.l.b16 %v1596
    %v1744 = vunpack.c.h.b16 %v1596
    %v1745 = vunpack.c.l.b16 %v1597
    %v1746 = vunpack.c.h.b16 %v1597
    %v1747 = vunpack.c.l.b16 %v1598
    %v1748 = vunpack.c.h.b16 %v1598
    %v1749 = vunpack.c.l.b16 %v1599
    %v1750 = vunpack.c.h.b16 %v1599
    %v1751 = vunpack.c.l.b16 %v1600
    %v1752 = vunpack.c.h.b16 %v1600
    %v1753 = vunpack.c.l.b16 %v1601
    %v1754 = vunpack.c.h.b16 %v1601
    %v1755 = vunpack.c.l.b16 %v1602
    %v1756 = vunpack.c.h.b16 %v1602
    %v1757 = vunpack.c.l.b16 %v1603
    %v1758 = vunpack.c.h.b16 %v1603
    %v1759 = vunpack.c.l.b16 %v1604
    %v1760 = vunpack.c.h.b16 %v1604
    %v1761 = vunpack.c.l.b16 %v1605
    %v1762 = vunpack.c.h.b16 %v1605
    %v1763 = vunpack.c.l.b16 %v1606
    %v1764 = vunpack.c.h.b16 %v1606
    %v1765 = vunpack.c.l.b16 %v1607
    %v1766 = vunpack.c.h.b16 %v1607
    %v1767 = vunpack.c.l.b16 %v1608
    %v1768 = vunpack.c.h.b16 %v1608
    %v1769 = vunpack.c.l.b16 %v1609
    %v1770 = vunpack.c.h.b16 %v1609
    %v1771 = vunpack.c.l.b16 %v1610
    %v1772 = vunpack.c.h.b16 %v1610
    %v1773 = vunpack.c.l.b16 %v1611
    %v1774 = vunpack.c.h.b16 %v1611
    %v1775 = vunpack.c.l.b16 %v1612
    %v1776 = vunpack.c.h.b16 %v1612
    %v1777 = vunpack.c.l.b16 %v1613
    %v1778 = vunpack.c.h.b16 %v1613
    %v1779 = vunpack.c.l.b16 %v1614
    %v1780 = vunpack.c.h.b16 %v1614
    %v1781 = vunpack.c.l.b16 %v1615
    %v1782 = vunpack.c.h.b16 %v1615
    %v1783 = vunpack.c.l.b16 %v1616
    %v1784 = vunpack.c.h.b16 %v1616
    %v1785 = vunpack.c.l.b16 %v1617
    %v1786 = vunpack.c.h.b16 %v1617
    %v1787 = vunpack.c.l.b16 %v1618
    %v1788 = vunpack.c.h.b16 %v1618
    %v1789 = vunpack.c.l.b16 %v1619
    %v1790 = vunpack.c.h.b16 %v1619
    %v1791 = vunpack.c.l.b16 %v1620
    %v1792 = vunpack.c.h.b16 %v1620
    %v1793 = vunpack.c.l.b16 %v1621
    %v1794 = vunpack.c.h.b16 %v1621
    %v1795 = vunpack.c.l.b16 %v1622
    %v1796 = vunpack.c.h.b16 %v1622
    %v1797 = vunpack.c.l.b16 %v1623
    %v1798 = vunpack.c.h.b16 %v1623
    %v1799 = vunpack.c.l.b16 %v1624
    %v1800 = vunpack.c.h.b16 %v1624
    %v1801 = vpack.c.b16 %v1739, %v1737
    %v1802 = vpack.c.b16 %v1740, %v1738
    %v1803 = vpack.c.b16 %v1743, %v1741
    %v1804 = vpack.c.b16 %v1744, %v1742
    %v1805 = vpack.c.b16 %v1747, %v1745
    %v1806 = vpack.c.b16 %v1748, %v1746
    %v1807 = vpack.c.b16 %v1751, %v1749
    %v1808 = vpack.c.b16 %v1752, %v1750
    %v1809 = vpack.c.b16 %v1755, %v1753
    %v1810 = vpack.c.b16 %v1756, %v1754
    %v1811 = vpack.c.b16 %v1759, %v1757
    %v1812 = vpack.c.b16 %v1760, %v1758
    %v1813 = vpack.c.b16 %v1763, %v1761
    %v1814 = vpack.c.b16 %v1764, %v1762
    %v1815 = vpack.c.b16 %v1767, %v1765
    %v1816 = vpack.c.b16 %v1768, %v1766
    %v1817 = vpack.c.b16 %v1771, %v1769
    %v1818 = vpack.c.b16 %v1772, %v1770
    %v1819 = vpack.c.b16 %v1775, %v1773
    %v1820 = vpack.c.b16 %v1776, %v1774
    %v1821 = vpack.c.b16 %v1779, %v1777
    %v1822 = vpack.c.b16 %v1780, %v1778
    %v1823 = vpack.c.b16 %v1783, %v1781
    %v1824 = vpack.c.b16 %v1784, %v1782
    %v1825 = vpack.c.b16 %v1787, %v1785
    %v1826 = vpack.c.b16 %v1788, %v1786
    %v1827 = vpack.c.b16 %v1791, %v1789
    %v1828 = vpack.c.b16 %v1792, %v1790
    %v1829 = vpack.c.b16 %v1795, %v1793
    %v1830 = vpack.c.b16 %v1796, %v1794
    %v1831 = vpack.c.b16 %v1799, %v1797
    %v1832 = vpack.c.b16 %v1800, %v1798
    %1865 = vmatpush.bf16.msra.mxu0 %v1815
    %1866 = vmatpush.bf16.msra.mxu0 %v1813
    %1867 = vmatpush.bf16.msra.mxu0 %v1811
    %1868 = vmatpush.bf16.msra.mxu0 %v1809
    %1869 = vmatpush.bf16.msra.mxu0 %v1807
    %1870 = vmatpush.bf16.msra.mxu0 %v1805
    %1871 = vmatpush.bf16.msra.mxu0 %v1803
    %1872 = vmatpush.bf16.msra.mxu0 %v1801
    %1873 = vmatmul.bf16.gmra.mxu0 %v1673
    %v1874 = vpop.f32.mrf.mxu0
    %v1875 = vadd.f32 0.0, %v1874
    %v1876 = vpop.f32.mrf.mxu0
    %v1877 = vadd.f32 0.0, %v1876
    %1878 = vmatmul.bf16.gmra.mxu0 %v1675
    %v1879 = vpop.f32.mrf.mxu0
    %v1880 = vadd.f32 0.0, %v1879
    %v1881 = vpop.f32.mrf.mxu0
    %v1882 = vadd.f32 0.0, %v1881
    %1883 = vmatmul.bf16.gmra.mxu0 %v1677
    %v1884 = vpop.f32.mrf.mxu0
    %v1885 = vadd.f32 0.0, %v1884
    %v1886 = vpop.f32.mrf.mxu0
    %v1887 = vadd.f32 0.0, %v1886
    %1888 = vmatmul.bf16.gmra.mxu0 %v1679
    %v1889 = vpop.f32.mrf.mxu0
    %v1890 = vadd.f32 0.0, %v1889
    %v1891 = vpop.f32.mrf.mxu0
    %v1892 = vadd.f32 0.0, %v1891
    %1893 = vmatmul.bf16.gmra.mxu0 %v1681
    %v1894 = vpop.f32.mrf.mxu0
    %v1895 = vadd.f32 0.0, %v1894
    %v1896 = vpop.f32.mrf.mxu0
    %v1897 = vadd.f32 0.0, %v1896
    %1898 = vmatmul.bf16.gmra.mxu0 %v1683
    %v1899 = vpop.f32.mrf.mxu0
    %v1900 = vadd.f32 0.0, %v1899
    %v1901 = vpop.f32.mrf.mxu0
    %v1902 = vadd.f32 0.0, %v1901
    %1903 = vmatmul.bf16.gmra.mxu0 %v1685
    %v1904 = vpop.f32.mrf.mxu0
    %v1905 = vadd.f32 0.0, %v1904
    %v1906 = vpop.f32.mrf.mxu0
    %v1907 = vadd.f32 0.0, %v1906
    %1908 = vmatmul.bf16.gmra.mxu0 %v1687
    %v1909 = vpop.f32.mrf.mxu0
    %v1910 = vadd.f32 0.0, %v1909
    %v1911 = vpop.f32.mrf.mxu0
    %v1912 = vadd.f32 0.0, %v1911
    %1913 = vdwg.mxu0
    %1914 = vmatpush.bf16.msra.mxu0 %v1831
    %1915 = vmatpush.bf16.msra.mxu0 %v1829
    %1916 = vmatpush.bf16.msra.mxu0 %v1827
    %1917 = vmatpush.bf16.msra.mxu0 %v1825
    %1918 = vmatpush.bf16.msra.mxu0 %v1823
    %1919 = vmatpush.bf16.msra.mxu0 %v1821
    %1920 = vmatpush.bf16.msra.mxu0 %v1819
    %1921 = vmatpush.bf16.msra.mxu0 %v1817
    %1922 = vmatmul.bf16.gmra.mxu0 %v1674
    %v1923 = vpop.f32.mrf.mxu0
    %v1924 = vadd.f32 %v1875, %v1923
    %v1925 = vpop.f32.mrf.mxu0
    %v1926 = vadd.f32 %v1877, %v1925
    %1927 = vmatmul.bf16.gmra.mxu0 %v1676
    %v1928 = vpop.f32.mrf.mxu0
    %v1929 = vadd.f32 %v1880, %v1928
    %v1930 = vpop.f32.mrf.mxu0
    %v1931 = vadd.f32 %v1882, %v1930
    %1932 = vmatmul.bf16.gmra.mxu0 %v1678
    %v1933 = vpop.f32.mrf.mxu0
    %v1934 = vadd.f32 %v1885, %v1933
    %v1935 = vpop.f32.mrf.mxu0
    %v1936 = vadd.f32 %v1887, %v1935
    %1937 = vmatmul.bf16.gmra.mxu0 %v1680
    %v1938 = vpop.f32.mrf.mxu0
    %v1939 = vadd.f32 %v1890, %v1938
    %v1940 = vpop.f32.mrf.mxu0
    %v1941 = vadd.f32 %v1892, %v1940
    %1942 = vmatmul.bf16.gmra.mxu0 %v1682
    %v1943 = vpop.f32.mrf.mxu0
    %v1944 = vadd.f32 %v1895, %v1943
    %v1945 = vpop.f32.mrf.mxu0
    %v1946 = vadd.f32 %v1897, %v1945
    %1947 = vmatmul.bf16.gmra.mxu0 %v1684
    %v1948 = vpop.f32.mrf.mxu0
    %v1949 = vadd.f32 %v1900, %v1948
    %v1950 = vpop.f32.mrf.mxu0
    %v1951 = vadd.f32 %v1902, %v1950
    %1952 = vmatmul.bf16.gmra.mxu0 %v1686
    %v1953 = vpop.f32.mrf.mxu0
    %v1954 = vadd.f32 %v1905, %v1953
    %v1955 = vpop.f32.mrf.mxu0
    %v1956 = vadd.f32 %v1907, %v1955
    %1957 = vmatmul.bf16.gmra.mxu0 %v1688
    %v1958 = vpop.f32.mrf.mxu0
    %v1959 = vadd.f32 %v1910, %v1958
    %v1960 = vpop.f32.mrf.mxu0
    %v1961 = vadd.f32 %v1912, %v1960
    %1962 = vdwg.mxu0
    %1963 = vmatpush.bf16.msra.mxu0 %v1816
    %1964 = vmatpush.bf16.msra.mxu0 %v1814
    %1965 = vmatpush.bf16.msra.mxu0 %v1812
    %1966 = vmatpush.bf16.msra.mxu0 %v1810
    %1967 = vmatpush.bf16.msra.mxu0 %v1808
    %1968 = vmatpush.bf16.msra.mxu0 %v1806
    %1969 = vmatpush.bf16.msra.mxu0 %v1804
    %1970 = vmatpush.bf16.msra.mxu0 %v1802
    %1971 = vmatmul.bf16.gmra.mxu0 %v1673
    %v1972 = vpop.f32.mrf.mxu0
    %v1973 = vadd.f32 0.0, %v1972
    %v1974 = vpop.f32.mrf.mxu0
    %v1975 = vadd.f32 0.0, %v1974
    %1976 = vmatmul.bf16.gmra.mxu0 %v1675
    %v1977 = vpop.f32.mrf.mxu0
    %v1978 = vadd.f32 0.0, %v1977
    %v1979 = vpop.f32.mrf.mxu0
    %v1980 = vadd.f32 0.0, %v1979
    %1981 = vmatmul.bf16.gmra.mxu0 %v1677
    %v1982 = vpop.f32.mrf.mxu0
    %v1983 = vadd.f32 0.0, %v1982
    %v1984 = vpop.f32.mrf.mxu0
    %v1985 = vadd.f32 0.0, %v1984
    %1986 = vmatmul.bf16.gmra.mxu0 %v1679
    %v1987 = vpop.f32.mrf.mxu0
    %v1988 = vadd.f32 0.0, %v1987
    %v1989 = vpop.f32.mrf.mxu0
    %v1990 = vadd.f32 0.0, %v1989
    %1991 = vmatmul.bf16.gmra.mxu0 %v1681
    %v1992 = vpop.f32.mrf.mxu0
    %v1993 = vadd.f32 0.0, %v1992
    %v1994 = vpop.f32.mrf.mxu0
    %v1995 = vadd.f32 0.0, %v1994
    %1996 = vmatmul.bf16.gmra.mxu0 %v1683
    %v1997 = vpop.f32.mrf.mxu0
    %v1998 = vadd.f32 0.0, %v1997
    %v1999 = vpop.f32.mrf.mxu0
    %v2000 = vadd.f32 0.0, %v1999
    %2001 = vmatmul.bf16.gmra.mxu0 %v1685
    %v2002 = vpop.f32.mrf.mxu0
    %v2003 = vadd.f32 0.0, %v2002
    %v2004 = vpop.f32.mrf.mxu0
    %v2005 = vadd.f32 0.0, %v2004
    %2006 = vmatmul.bf16.gmra.mxu0 %v1687
    %v2007 = vpop.f32.mrf.mxu0
    %v2008 = vadd.f32 0.0, %v2007
    %v2009 = vpop.f32.mrf.mxu0
    %v2010 = vadd.f32 0.0, %v2009
    %2011 = vdwg.mxu0
    %2012 = vmatpush.bf16.msra.mxu0 %v1832
    %2013 = vmatpush.bf16.msra.mxu0 %v1830
    %2014 = vmatpush.bf16.msra.mxu0 %v1828
    %2015 = vmatpush.bf16.msra.mxu0 %v1826
    %2016 = vmatpush.bf16.msra.mxu0 %v1824
    %2017 = vmatpush.bf16.msra.mxu0 %v1822
    %2018 = vmatpush.bf16.msra.mxu0 %v1820
    %2019 = vmatpush.bf16.msra.mxu0 %v1818
    %2020 = vmatmul.bf16.gmra.mxu0 %v1674
    %v2021 = vpop.f32.mrf.mxu0
    %v2022 = vadd.f32 %v1973, %v2021
    %v2023 = vpop.f32.mrf.mxu0
    %v2024 = vadd.f32 %v1975, %v2023
    %2025 = vmatmul.bf16.gmra.mxu0 %v1676
    %v2026 = vpop.f32.mrf.mxu0
    %v2027 = vadd.f32 %v1978, %v2026
    %v2028 = vpop.f32.mrf.mxu0
    %v2029 = vadd.f32 %v1980, %v2028
    %2030 = vmatmul.bf16.gmra.mxu0 %v1678
    %v2031 = vpop.f32.mrf.mxu0
    %v2032 = vadd.f32 %v1983, %v2031
    %v2033 = vpop.f32.mrf.mxu0
    %v2034 = vadd.f32 %v1985, %v2033
    %2035 = vmatmul.bf16.gmra.mxu0 %v1680
    %v2036 = vpop.f32.mrf.mxu0
    %v2037 = vadd.f32 %v1988, %v2036
    %v2038 = vpop.f32.mrf.mxu0
    %v2039 = vadd.f32 %v1990, %v2038
    %2040 = vmatmul.bf16.gmra.mxu0 %v1682
    %v2041 = vpop.f32.mrf.mxu0
    %v2042 = vadd.f32 %v1993, %v2041
    %v2043 = vpop.f32.mrf.mxu0
    %v2044 = vadd.f32 %v1995, %v2043
    %2045 = vmatmul.bf16.gmra.mxu0 %v1684
    %v2046 = vpop.f32.mrf.mxu0
    %v2047 = vadd.f32 %v1998, %v2046
    %v2048 = vpop.f32.mrf.mxu0
    %v2049 = vadd.f32 %v2000, %v2048
    %2050 = vmatmul.bf16.gmra.mxu0 %v1686
    %v2051 = vpop.f32.mrf.mxu0
    %v2052 = vadd.f32 %v2003, %v2051
    %v2053 = vpop.f32.mrf.mxu0
    %v2054 = vadd.f32 %v2005, %v2053
    %2055 = vmatmul.bf16.gmra.mxu0 %v1688
    %v2056 = vpop.f32.mrf.mxu0
    %v2057 = vadd.f32 %v2008, %v2056
    %v2058 = vpop.f32.mrf.mxu0
    %v2059 = vadd.f32 %v2010, %v2058
    %2060 = vdwg.mxu0
    %v2061 = vadd.f32 %v1543, %v1924
    %v2062 = vadd.f32 %v1544, %v2022
    %v2063 = vadd.f32 %v1545, %v1926
    %v2064 = vadd.f32 %v1546, %v2024
    %v2065 = vadd.f32 %v1547, %v1929
    %v2066 = vadd.f32 %v1548, %v2027
    %v2067 = vadd.f32 %v1549, %v1931
    %v2068 = vadd.f32 %v1550, %v2029
    %v2069 = vadd.f32 %v1551, %v1934
    %v2070 = vadd.f32 %v1552, %v2032
    %v2071 = vadd.f32 %v1553, %v1936
    %v2072 = vadd.f32 %v1554, %v2034
    %v2073 = vadd.f32 %v1555, %v1939
    %v2074 = vadd.f32 %v1556, %v2037
    %v2075 = vadd.f32 %v1557, %v1941
    %v2076 = vadd.f32 %v1558, %v2039
    %v2077 = vadd.f32 %v1559, %v1944
    %v2078 = vadd.f32 %v1560, %v2042
    %v2079 = vadd.f32 %v1561, %v1946
    %v2080 = vadd.f32 %v1562, %v2044
    %v2081 = vadd.f32 %v1563, %v1949
    %v2082 = vadd.f32 %v1564, %v2047
    %v2083 = vadd.f32 %v1565, %v1951
    %v2084 = vadd.f32 %v1566, %v2049
    %v2085 = vadd.f32 %v1567, %v1954
    %v2086 = vadd.f32 %v1568, %v2052
    %v2087 = vadd.f32 %v1569, %v1956
    %v2088 = vadd.f32 %v1570, %v2054
    %v2089 = vadd.f32 %v1571, %v1959
    %v2090 = vadd.f32 %v1572, %v2057
    %v2091 = vadd.f32 %v1573, %v1961
    %v2092 = vadd.f32 %v1574, %v2059
    %s2093 = scalar_lea.vmem [#allocation3], 32
    %v2094 = vld [vmem:[%s2093] sm:$0xff]
    %v2095 = vld [vmem:[%s2093 + $0x8] sm:$0xff]
    %v2096 = vld [vmem:[%s2093 + $0x10] sm:$0xff]
    %v2097 = vld [vmem:[%s2093 + $0x18] sm:$0xff]
    %v2098 = vld [vmem:[%s2093 + $0x20] sm:$0xff]
    %v2099 = vld [vmem:[%s2093 + $0x28] sm:$0xff]
    %v2100 = vld [vmem:[%s2093 + $0x30] sm:$0xff]
    %v2101 = vld [vmem:[%s2093 + $0x38] sm:$0xff]
    %v2102 = vld [vmem:[%s2093 + $0x40] sm:$0xff]
    %v2103 = vld [vmem:[%s2093 + $0x48] sm:$0xff]
    %v2104 = vld [vmem:[%s2093 + $0x50] sm:$0xff]
    %v2105 = vld [vmem:[%s2093 + $0x58] sm:$0xff]
    %v2106 = vld [vmem:[%s2093 + $0x60] sm:$0xff]
    %v2107 = vld [vmem:[%s2093 + $0x68] sm:$0xff]
    %v2108 = vld [vmem:[%s2093 + $0x70] sm:$0xff]
    %v2109 = vld [vmem:[%s2093 + $0x78] sm:$0xff]
    %s2110 = scalar_lea.vmem [#allocation6], 1024
    %v2111 = vld [vmem:[%s2110] sm:$0xff]
    %v2112 = vld [vmem:[%s2110 + $0x8] sm:$0xff]
    %v2113 = vld [vmem:[%s2110 + $0x10] sm:$0xff]
    %v2114 = vld [vmem:[%s2110 + $0x18] sm:$0xff]
    %v2115 = vld [vmem:[%s2110 + $0x20] sm:$0xff]
    %v2116 = vld [vmem:[%s2110 + $0x28] sm:$0xff]
    %v2117 = vld [vmem:[%s2110 + $0x30] sm:$0xff]
    %v2118 = vld [vmem:[%s2110 + $0x38] sm:$0xff]
    %v2119 = vld [vmem:[%s2110 + $0x40] sm:$0xff]
    %v2120 = vld [vmem:[%s2110 + $0x48] sm:$0xff]
    %v2121 = vld [vmem:[%s2110 + $0x50] sm:$0xff]
    %v2122 = vld [vmem:[%s2110 + $0x58] sm:$0xff]
    %v2123 = vld [vmem:[%s2110 + $0x60] sm:$0xff]
    %v2124 = vld [vmem:[%s2110 + $0x68] sm:$0xff]
    %v2125 = vld [vmem:[%s2110 + $0x70] sm:$0xff]
    %v2126 = vld [vmem:[%s2110 + $0x78] sm:$0xff]
    %v2127 = vld [vmem:[%s2110 + $0x80] sm:$0xff]
    %v2128 = vld [vmem:[%s2110 + $0x88] sm:$0xff]
    %v2129 = vld [vmem:[%s2110 + $0x90] sm:$0xff]
    %v2130 = vld [vmem:[%s2110 + $0x98] sm:$0xff]
    %v2131 = vld [vmem:[%s2110 + $0xa0] sm:$0xff]
    %v2132 = vld [vmem:[%s2110 + $0xa8] sm:$0xff]
    %v2133 = vld [vmem:[%s2110 + $0xb0] sm:$0xff]
    %v2134 = vld [vmem:[%s2110 + $0xb8] sm:$0xff]
    %v2135 = vld [vmem:[%s2110 + $0xc0] sm:$0xff]
    %v2136 = vld [vmem:[%s2110 + $0xc8] sm:$0xff]
    %v2137 = vld [vmem:[%s2110 + $0xd0] sm:$0xff]
    %v2138 = vld [vmem:[%s2110 + $0xd8] sm:$0xff]
    %v2139 = vld [vmem:[%s2110 + $0xe0] sm:$0xff]
    %v2140 = vld [vmem:[%s2110 + $0xe8] sm:$0xff]
    %v2141 = vld [vmem:[%s2110 + $0xf0] sm:$0xff]
    %v2142 = vld [vmem:[%s2110 + $0xf8] sm:$0xff]
    %v2159 = vunpack.c.l.b16 %v2094
    %v2160 = vunpack.c.h.b16 %v2094
    %v2161 = vunpack.c.l.b16 %v2095
    %v2162 = vunpack.c.h.b16 %v2095
    %v2163 = vunpack.c.l.b16 %v2096
    %v2164 = vunpack.c.h.b16 %v2096
    %v2165 = vunpack.c.l.b16 %v2097
    %v2166 = vunpack.c.h.b16 %v2097
    %v2167 = vunpack.c.l.b16 %v2098
    %v2168 = vunpack.c.h.b16 %v2098
    %v2169 = vunpack.c.l.b16 %v2099
    %v2170 = vunpack.c.h.b16 %v2099
    %v2171 = vunpack.c.l.b16 %v2100
    %v2172 = vunpack.c.h.b16 %v2100
    %v2173 = vunpack.c.l.b16 %v2101
    %v2174 = vunpack.c.h.b16 %v2101
    %v2175 = vunpack.c.l.b16 %v2102
    %v2176 = vunpack.c.h.b16 %v2102
    %v2177 = vunpack.c.l.b16 %v2103
    %v2178 = vunpack.c.h.b16 %v2103
    %v2179 = vunpack.c.l.b16 %v2104
    %v2180 = vunpack.c.h.b16 %v2104
    %v2181 = vunpack.c.l.b16 %v2105
    %v2182 = vunpack.c.h.b16 %v2105
    %v2183 = vunpack.c.l.b16 %v2106
    %v2184 = vunpack.c.h.b16 %v2106
    %v2185 = vunpack.c.l.b16 %v2107
    %v2186 = vunpack.c.h.b16 %v2107
    %v2187 = vunpack.c.l.b16 %v2108
    %v2188 = vunpack.c.h.b16 %v2108
    %v2189 = vunpack.c.l.b16 %v2109
    %v2190 = vunpack.c.h.b16 %v2109
    %v2191 = vpack.c.b16 %v2161, %v2159
    %v2192 = vpack.c.b16 %v2162, %v2160
    %v2193 = vpack.c.b16 %v2165, %v2163
    %v2194 = vpack.c.b16 %v2166, %v2164
    %v2195 = vpack.c.b16 %v2169, %v2167
    %v2196 = vpack.c.b16 %v2170, %v2168
    %v2197 = vpack.c.b16 %v2173, %v2171
    %v2198 = vpack.c.b16 %v2174, %v2172
    %v2199 = vpack.c.b16 %v2177, %v2175
    %v2200 = vpack.c.b16 %v2178, %v2176
    %v2201 = vpack.c.b16 %v2181, %v2179
    %v2202 = vpack.c.b16 %v2182, %v2180
    %v2203 = vpack.c.b16 %v2185, %v2183
    %v2204 = vpack.c.b16 %v2186, %v2184
    %v2205 = vpack.c.b16 %v2189, %v2187
    %v2206 = vpack.c.b16 %v2190, %v2188
    %v2255 = vunpack.c.l.b16 %v2111
    %v2256 = vunpack.c.h.b16 %v2111
    %v2257 = vunpack.c.l.b16 %v2112
    %v2258 = vunpack.c.h.b16 %v2112
    %v2259 = vunpack.c.l.b16 %v2113
    %v2260 = vunpack.c.h.b16 %v2113
    %v2261 = vunpack.c.l.b16 %v2114
    %v2262 = vunpack.c.h.b16 %v2114
    %v2263 = vunpack.c.l.b16 %v2115
    %v2264 = vunpack.c.h.b16 %v2115
    %v2265 = vunpack.c.l.b16 %v2116
    %v2266 = vunpack.c.h.b16 %v2116
    %v2267 = vunpack.c.l.b16 %v2117
    %v2268 = vunpack.c.h.b16 %v2117
    %v2269 = vunpack.c.l.b16 %v2118
    %v2270 = vunpack.c.h.b16 %v2118
    %v2271 = vunpack.c.l.b16 %v2119
    %v2272 = vunpack.c.h.b16 %v2119
    %v2273 = vunpack.c.l.b16 %v2120
    %v2274 = vunpack.c.h.b16 %v2120
    %v2275 = vunpack.c.l.b16 %v2121
    %v2276 = vunpack.c.h.b16 %v2121
    %v2277 = vunpack.c.l.b16 %v2122
    %v2278 = vunpack.c.h.b16 %v2122
    %v2279 = vunpack.c.l.b16 %v2123
    %v2280 = vunpack.c.h.b16 %v2123
    %v2281 = vunpack.c.l.b16 %v2124
    %v2282 = vunpack.c.h.b16 %v2124
    %v2283 = vunpack.c.l.b16 %v2125
    %v2284 = vunpack.c.h.b16 %v2125
    %v2285 = vunpack.c.l.b16 %v2126
    %v2286 = vunpack.c.h.b16 %v2126
    %v2287 = vunpack.c.l.b16 %v2127
    %v2288 = vunpack.c.h.b16 %v2127
    %v2289 = vunpack.c.l.b16 %v2128
    %v2290 = vunpack.c.h.b16 %v2128
    %v2291 = vunpack.c.l.b16 %v2129
    %v2292 = vunpack.c.h.b16 %v2129
    %v2293 = vunpack.c.l.b16 %v2130
    %v2294 = vunpack.c.h.b16 %v2130
    %v2295 = vunpack.c.l.b16 %v2131
    %v2296 = vunpack.c.h.b16 %v2131
    %v2297 = vunpack.c.l.b16 %v2132
    %v2298 = vunpack.c.h.b16 %v2132
    %v2299 = vunpack.c.l.b16 %v2133
    %v2300 = vunpack.c.h.b16 %v2133
    %v2301 = vunpack.c.l.b16 %v2134
    %v2302 = vunpack.c.h.b16 %v2134
    %v2303 = vunpack.c.l.b16 %v2135
    %v2304 = vunpack.c.h.b16 %v2135
    %v2305 = vunpack.c.l.b16 %v2136
    %v2306 = vunpack.c.h.b16 %v2136
    %v2307 = vunpack.c.l.b16 %v2137
    %v2308 = vunpack.c.h.b16 %v2137
    %v2309 = vunpack.c.l.b16 %v2138
    %v2310 = vunpack.c.h.b16 %v2138
    %v2311 = vunpack.c.l.b16 %v2139
    %v2312 = vunpack.c.h.b16 %v2139
    %v2313 = vunpack.c.l.b16 %v2140
    %v2314 = vunpack.c.h.b16 %v2140
    %v2315 = vunpack.c.l.b16 %v2141
    %v2316 = vunpack.c.h.b16 %v2141
    %v2317 = vunpack.c.l.b16 %v2142
    %v2318 = vunpack.c.h.b16 %v2142
    %v2319 = vpack.c.b16 %v2257, %v2255
    %v2320 = vpack.c.b16 %v2258, %v2256
    %v2321 = vpack.c.b16 %v2261, %v2259
    %v2322 = vpack.c.b16 %v2262, %v2260
    %v2323 = vpack.c.b16 %v2265, %v2263
    %v2324 = vpack.c.b16 %v2266, %v2264
    %v2325 = vpack.c.b16 %v2269, %v2267
    %v2326 = vpack.c.b16 %v2270, %v2268
    %v2327 = vpack.c.b16 %v2273, %v2271
    %v2328 = vpack.c.b16 %v2274, %v2272
    %v2329 = vpack.c.b16 %v2277, %v2275
    %v2330 = vpack.c.b16 %v2278, %v2276
    %v2331 = vpack.c.b16 %v2281, %v2279
    %v2332 = vpack.c.b16 %v2282, %v2280
    %v2333 = vpack.c.b16 %v2285, %v2283
    %v2334 = vpack.c.b16 %v2286, %v2284
    %v2335 = vpack.c.b16 %v2289, %v2287
    %v2336 = vpack.c.b16 %v2290, %v2288
    %v2337 = vpack.c.b16 %v2293, %v2291
    %v2338 = vpack.c.b16 %v2294, %v2292
    %v2339 = vpack.c.b16 %v2297, %v2295
    %v2340 = vpack.c.b16 %v2298, %v2296
    %v2341 = vpack.c.b16 %v2301, %v2299
    %v2342 = vpack.c.b16 %v2302, %v2300
    %v2343 = vpack.c.b16 %v2305, %v2303
    %v2344 = vpack.c.b16 %v2306, %v2304
    %v2345 = vpack.c.b16 %v2309, %v2307
    %v2346 = vpack.c.b16 %v2310, %v2308
    %v2347 = vpack.c.b16 %v2313, %v2311
    %v2348 = vpack.c.b16 %v2314, %v2312
    %v2349 = vpack.c.b16 %v2317, %v2315
    %v2350 = vpack.c.b16 %v2318, %v2316
    %2383 = vmatpush.bf16.msra.mxu0 %v2333
    %2384 = vmatpush.bf16.msra.mxu0 %v2331
    %2385 = vmatpush.bf16.msra.mxu0 %v2329
    %2386 = vmatpush.bf16.msra.mxu0 %v2327
    %2387 = vmatpush.bf16.msra.mxu0 %v2325
    %2388 = vmatpush.bf16.msra.mxu0 %v2323
    %2389 = vmatpush.bf16.msra.mxu0 %v2321
    %2390 = vmatpush.bf16.msra.mxu0 %v2319
    %2391 = vmatmul.bf16.gmra.mxu0 %v2191
    %v2392 = vpop.f32.mrf.mxu0
    %v2393 = vadd.f32 0.0, %v2392
    %v2394 = vpop.f32.mrf.mxu0
    %v2395 = vadd.f32 0.0, %v2394
    %2396 = vmatmul.bf16.gmra.mxu0 %v2193
    %v2397 = vpop.f32.mrf.mxu0
    %v2398 = vadd.f32 0.0, %v2397
    %v2399 = vpop.f32.mrf.mxu0
    %v2400 = vadd.f32 0.0, %v2399
    %2401 = vmatmul.bf16.gmra.mxu0 %v2195
    %v2402 = vpop.f32.mrf.mxu0
    %v2403 = vadd.f32 0.0, %v2402
    %v2404 = vpop.f32.mrf.mxu0
    %v2405 = vadd.f32 0.0, %v2404
    %2406 = vmatmul.bf16.gmra.mxu0 %v2197
    %v2407 = vpop.f32.mrf.mxu0
    %v2408 = vadd.f32 0.0, %v2407
    %v2409 = vpop.f32.mrf.mxu0
    %v2410 = vadd.f32 0.0, %v2409
    %2411 = vmatmul.bf16.gmra.mxu0 %v2199
    %v2412 = vpop.f32.mrf.mxu0
    %v2413 = vadd.f32 0.0, %v2412
    %v2414 = vpop.f32.mrf.mxu0
    %v2415 = vadd.f32 0.0, %v2414
    %2416 = vmatmul.bf16.gmra.mxu0 %v2201
    %v2417 = vpop.f32.mrf.mxu0
    %v2418 = vadd.f32 0.0, %v2417
    %v2419 = vpop.f32.mrf.mxu0
    %v2420 = vadd.f32 0.0, %v2419
    %2421 = vmatmul.bf16.gmra.mxu0 %v2203
    %v2422 = vpop.f32.mrf.mxu0
    %v2423 = vadd.f32 0.0, %v2422
    %v2424 = vpop.f32.mrf.mxu0
    %v2425 = vadd.f32 0.0, %v2424
    %2426 = vmatmul.bf16.gmra.mxu0 %v2205
    %v2427 = vpop.f32.mrf.mxu0
    %v2428 = vadd.f32 0.0, %v2427
    %v2429 = vpop.f32.mrf.mxu0
    %v2430 = vadd.f32 0.0, %v2429
    %2431 = vdwg.mxu0
    %2432 = vmatpush.bf16.msra.mxu0 %v2349
    %2433 = vmatpush.bf16.msra.mxu0 %v2347
    %2434 = vmatpush.bf16.msra.mxu0 %v2345
    %2435 = vmatpush.bf16.msra.mxu0 %v2343
    %2436 = vmatpush.bf16.msra.mxu0 %v2341
    %2437 = vmatpush.bf16.msra.mxu0 %v2339
    %2438 = vmatpush.bf16.msra.mxu0 %v2337
    %2439 = vmatpush.bf16.msra.mxu0 %v2335
    %2440 = vmatmul.bf16.gmra.mxu0 %v2192
    %v2441 = vpop.f32.mrf.mxu0
    %v2442 = vadd.f32 %v2393, %v2441
    %v2443 = vpop.f32.mrf.mxu0
    %v2444 = vadd.f32 %v2395, %v2443
    %2445 = vmatmul.bf16.gmra.mxu0 %v2194
    %v2446 = vpop.f32.mrf.mxu0
    %v2447 = vadd.f32 %v2398, %v2446
    %v2448 = vpop.f32.mrf.mxu0
    %v2449 = vadd.f32 %v2400, %v2448
    %2450 = vmatmul.bf16.gmra.mxu0 %v2196
    %v2451 = vpop.f32.mrf.mxu0
    %v2452 = vadd.f32 %v2403, %v2451
    %v2453 = vpop.f32.mrf.mxu0
    %v2454 = vadd.f32 %v2405, %v2453
    %2455 = vmatmul.bf16.gmra.mxu0 %v2198
    %v2456 = vpop.f32.mrf.mxu0
    %v2457 = vadd.f32 %v2408, %v2456
    %v2458 = vpop.f32.mrf.mxu0
    %v2459 = vadd.f32 %v2410, %v2458
    %2460 = vmatmul.bf16.gmra.mxu0 %v2200
    %v2461 = vpop.f32.mrf.mxu0
    %v2462 = vadd.f32 %v2413, %v2461
    %v2463 = vpop.f32.mrf.mxu0
    %v2464 = vadd.f32 %v2415, %v2463
    %2465 = vmatmul.bf16.gmra.mxu0 %v2202
    %v2466 = vpop.f32.mrf.mxu0
    %v2467 = vadd.f32 %v2418, %v2466
    %v2468 = vpop.f32.mrf.mxu0
    %v2469 = vadd.f32 %v2420, %v2468
    %2470 = vmatmul.bf16.gmra.mxu0 %v2204
    %v2471 = vpop.f32.mrf.mxu0
    %v2472 = vadd.f32 %v2423, %v2471
    %v2473 = vpop.f32.mrf.mxu0
    %v2474 = vadd.f32 %v2425, %v2473
    %2475 = vmatmul.bf16.gmra.mxu0 %v2206
    %v2476 = vpop.f32.mrf.mxu0
    %v2477 = vadd.f32 %v2428, %v2476
    %v2478 = vpop.f32.mrf.mxu0
    %v2479 = vadd.f32 %v2430, %v2478
    %2480 = vdwg.mxu0
    %2481 = vmatpush.bf16.msra.mxu0 %v2334
    %2482 = vmatpush.bf16.msra.mxu0 %v2332
    %2483 = vmatpush.bf16.msra.mxu0 %v2330
    %2484 = vmatpush.bf16.msra.mxu0 %v2328
    %2485 = vmatpush.bf16.msra.mxu0 %v2326
    %2486 = vmatpush.bf16.msra.mxu0 %v2324
    %2487 = vmatpush.bf16.msra.mxu0 %v2322
    %2488 = vmatpush.bf16.msra.mxu0 %v2320
    %2489 = vmatmul.bf16.gmra.mxu0 %v2191
    %v2490 = vpop.f32.mrf.mxu0
    %v2491 = vadd.f32 0.0, %v2490
    %v2492 = vpop.f32.mrf.mxu0
    %v2493 = vadd.f32 0.0, %v2492
    %2494 = vmatmul.bf16.gmra.mxu0 %v2193
    %v2495 = vpop.f32.mrf.mxu0
    %v2496 = vadd.f32 0.0, %v2495
    %v2497 = vpop.f32.mrf.mxu0
    %v2498 = vadd.f32 0.0, %v2497
    %2499 = vmatmul.bf16.gmra.mxu0 %v2195
    %v2500 = vpop.f32.mrf.mxu0
    %v2501 = vadd.f32 0.0, %v2500
    %v2502 = vpop.f32.mrf.mxu0
    %v2503 = vadd.f32 0.0, %v2502
    %2504 = vmatmul.bf16.gmra.mxu0 %v2197
    %v2505 = vpop.f32.mrf.mxu0
    %v2506 = vadd.f32 0.0, %v2505
    %v2507 = vpop.f32.mrf.mxu0
    %v2508 = vadd.f32 0.0, %v2507
    %2509 = vmatmul.bf16.gmra.mxu0 %v2199
    %v2510 = vpop.f32.mrf.mxu0
    %v2511 = vadd.f32 0.0, %v2510
    %v2512 = vpop.f32.mrf.mxu0
    %v2513 = vadd.f32 0.0, %v2512
    %2514 = vmatmul.bf16.gmra.mxu0 %v2201
    %v2515 = vpop.f32.mrf.mxu0
    %v2516 = vadd.f32 0.0, %v2515
    %v2517 = vpop.f32.mrf.mxu0
    %v2518 = vadd.f32 0.0, %v2517
    %2519 = vmatmul.bf16.gmra.mxu0 %v2203
    %v2520 = vpop.f32.mrf.mxu0
    %v2521 = vadd.f32 0.0, %v2520
    %v2522 = vpop.f32.mrf.mxu0
    %v2523 = vadd.f32 0.0, %v2522
    %2524 = vmatmul.bf16.gmra.mxu0 %v2205
    %v2525 = vpop.f32.mrf.mxu0
    %v2526 = vadd.f32 0.0, %v2525
    %v2527 = vpop.f32.mrf.mxu0
    %v2528 = vadd.f32 0.0, %v2527
    %2529 = vdwg.mxu0
    %2530 = vmatpush.bf16.msra.mxu0 %v2350
    %2531 = vmatpush.bf16.msra.mxu0 %v2348
    %2532 = vmatpush.bf16.msra.mxu0 %v2346
    %2533 = vmatpush.bf16.msra.mxu0 %v2344
    %2534 = vmatpush.bf16.msra.mxu0 %v2342
    %2535 = vmatpush.bf16.msra.mxu0 %v2340
    %2536 = vmatpush.bf16.msra.mxu0 %v2338
    %2537 = vmatpush.bf16.msra.mxu0 %v2336
    %2538 = vmatmul.bf16.gmra.mxu0 %v2192
    %v2539 = vpop.f32.mrf.mxu0
    %v2540 = vadd.f32 %v2491, %v2539
    %v2541 = vpop.f32.mrf.mxu0
    %v2542 = vadd.f32 %v2493, %v2541
    %2543 = vmatmul.bf16.gmra.mxu0 %v2194
    %v2544 = vpop.f32.mrf.mxu0
    %v2545 = vadd.f32 %v2496, %v2544
    %v2546 = vpop.f32.mrf.mxu0
    %v2547 = vadd.f32 %v2498, %v2546
    %2548 = vmatmul.bf16.gmra.mxu0 %v2196
    %v2549 = vpop.f32.mrf.mxu0
    %v2550 = vadd.f32 %v2501, %v2549
    %v2551 = vpop.f32.mrf.mxu0
    %v2552 = vadd.f32 %v2503, %v2551
    %2553 = vmatmul.bf16.gmra.mxu0 %v2198
    %v2554 = vpop.f32.mrf.mxu0
    %v2555 = vadd.f32 %v2506, %v2554
    %v2556 = vpop.f32.mrf.mxu0
    %v2557 = vadd.f32 %v2508, %v2556
    %2558 = vmatmul.bf16.gmra.mxu0 %v2200
    %v2559 = vpop.f32.mrf.mxu0
    %v2560 = vadd.f32 %v2511, %v2559
    %v2561 = vpop.f32.mrf.mxu0
    %v2562 = vadd.f32 %v2513, %v2561
    %2563 = vmatmul.bf16.gmra.mxu0 %v2202
    %v2564 = vpop.f32.mrf.mxu0
    %v2565 = vadd.f32 %v2516, %v2564
    %v2566 = vpop.f32.mrf.mxu0
    %v2567 = vadd.f32 %v2518, %v2566
    %2568 = vmatmul.bf16.gmra.mxu0 %v2204
    %v2569 = vpop.f32.mrf.mxu0
    %v2570 = vadd.f32 %v2521, %v2569
    %v2571 = vpop.f32.mrf.mxu0
    %v2572 = vadd.f32 %v2523, %v2571
    %2573 = vmatmul.bf16.gmra.mxu0 %v2206
    %v2574 = vpop.f32.mrf.mxu0
    %v2575 = vadd.f32 %v2526, %v2574
    %v2576 = vpop.f32.mrf.mxu0
    %v2577 = vadd.f32 %v2528, %v2576
    %2578 = vdwg.mxu0
    %v2579 = vadd.f32 %v2061, %v2442
    %v2580 = vadd.f32 %v2062, %v2540
    %v2581 = vadd.f32 %v2063, %v2444
    %v2582 = vadd.f32 %v2064, %v2542
    %v2583 = vadd.f32 %v2065, %v2447
    %v2584 = vadd.f32 %v2066, %v2545
    %v2585 = vadd.f32 %v2067, %v2449
    %v2586 = vadd.f32 %v2068, %v2547
    %v2587 = vadd.f32 %v2069, %v2452
    %v2588 = vadd.f32 %v2070, %v2550
    %v2589 = vadd.f32 %v2071, %v2454
    %v2590 = vadd.f32 %v2072, %v2552
    %v2591 = vadd.f32 %v2073, %v2457
    %v2592 = vadd.f32 %v2074, %v2555
    %v2593 = vadd.f32 %v2075, %v2459
    %v2594 = vadd.f32 %v2076, %v2557
    %v2595 = vadd.f32 %v2077, %v2462
    %v2596 = vadd.f32 %v2078, %v2560
    %v2597 = vadd.f32 %v2079, %v2464
    %v2598 = vadd.f32 %v2080, %v2562
    %v2599 = vadd.f32 %v2081, %v2467
    %v2600 = vadd.f32 %v2082, %v2565
    %v2601 = vadd.f32 %v2083, %v2469
    %v2602 = vadd.f32 %v2084, %v2567
    %v2603 = vadd.f32 %v2085, %v2472
    %v2604 = vadd.f32 %v2086, %v2570
    %v2605 = vadd.f32 %v2087, %v2474
    %v2606 = vadd.f32 %v2088, %v2572
    %v2607 = vadd.f32 %v2089, %v2477
    %v2608 = vadd.f32 %v2090, %v2575
    %v2609 = vadd.f32 %v2091, %v2479
    %v2610 = vadd.f32 %v2092, %v2577
    %v2611 = vld [vmem:[#allocation8] sm:$0x3]
    %v2613 = vperm.slane %v2611, 0
    %v2614 = vperm.slane %v2611, 1
    %v2617 = vmul.f32 %v2579, %v2613
    %v2618 = vmul.f32 %v2580, %v2614
    %v2619 = vmul.f32 %v2581, %v2613
    %v2620 = vmul.f32 %v2582, %v2614
    %v2621 = vmul.f32 %v2583, %v2613
    %v2622 = vmul.f32 %v2584, %v2614
    %v2623 = vmul.f32 %v2585, %v2613
    %v2624 = vmul.f32 %v2586, %v2614
    %v2625 = vmul.f32 %v2587, %v2613
    %v2626 = vmul.f32 %v2588, %v2614
    %v2627 = vmul.f32 %v2589, %v2613
    %v2628 = vmul.f32 %v2590, %v2614
    %v2629 = vmul.f32 %v2591, %v2613
    %v2630 = vmul.f32 %v2592, %v2614
    %v2631 = vmul.f32 %v2593, %v2613
    %v2632 = vmul.f32 %v2594, %v2614
    %v2633 = vmul.f32 %v2595, %v2613
    %v2634 = vmul.f32 %v2596, %v2614
    %v2635 = vmul.f32 %v2597, %v2613
    %v2636 = vmul.f32 %v2598, %v2614
    %v2637 = vmul.f32 %v2599, %v2613
    %v2638 = vmul.f32 %v2600, %v2614
    %v2639 = vmul.f32 %v2601, %v2613
    %v2640 = vmul.f32 %v2602, %v2614
    %v2641 = vmul.f32 %v2603, %v2613
    %v2642 = vmul.f32 %v2604, %v2614
    %v2643 = vmul.f32 %v2605, %v2613
    %v2644 = vmul.f32 %v2606, %v2614
    %v2645 = vmul.f32 %v2607, %v2613
    %v2646 = vmul.f32 %v2608, %v2614
    %v2647 = vmul.f32 %v2609, %v2613
    %v2648 = vmul.f32 %v2610, %v2614
    %v2649 = vld [vmem:[#allocation9] sm:$0x3]
    %v2651 = vperm.slane %v2649, 0
    %v2652 = vperm.slane %v2649, 1
    %v2655 = vadd.f32 %v2617, %v2651
    %v2656 = vadd.f32 %v2618, %v2652
    %v2657 = vadd.f32 %v2619, %v2651
    %v2658 = vadd.f32 %v2620, %v2652
    %v2659 = vadd.f32 %v2621, %v2651
    %v2660 = vadd.f32 %v2622, %v2652
    %v2661 = vadd.f32 %v2623, %v2651
    %v2662 = vadd.f32 %v2624, %v2652
    %v2663 = vadd.f32 %v2625, %v2651
    %v2664 = vadd.f32 %v2626, %v2652
    %v2665 = vadd.f32 %v2627, %v2651
    %v2666 = vadd.f32 %v2628, %v2652
    %v2667 = vadd.f32 %v2629, %v2651
    %v2668 = vadd.f32 %v2630, %v2652
    %v2669 = vadd.f32 %v2631, %v2651
    %v2670 = vadd.f32 %v2632, %v2652
    %v2671 = vadd.f32 %v2633, %v2651
    %v2672 = vadd.f32 %v2634, %v2652
    %v2673 = vadd.f32 %v2635, %v2651
    %v2674 = vadd.f32 %v2636, %v2652
    %v2675 = vadd.f32 %v2637, %v2651
    %v2676 = vadd.f32 %v2638, %v2652
    %v2677 = vadd.f32 %v2639, %v2651
    %v2678 = vadd.f32 %v2640, %v2652
    %v2679 = vadd.f32 %v2641, %v2651
    %v2680 = vadd.f32 %v2642, %v2652
    %v2681 = vadd.f32 %v2643, %v2651
    %v2682 = vadd.f32 %v2644, %v2652
    %v2683 = vadd.f32 %v2645, %v2651
    %v2684 = vadd.f32 %v2646, %v2652
    %v2685 = vadd.f32 %v2647, %v2651
    %v2686 = vadd.f32 %v2648, %v2652
    %v2687 = vmax.f32 %v2655, 0.0
    %v2688 = vmax.f32 %v2656, 0.0
    %v2689 = vmax.f32 %v2657, 0.0
    %v2690 = vmax.f32 %v2658, 0.0
    %v2691 = vmax.f32 %v2659, 0.0
    %v2692 = vmax.f32 %v2660, 0.0
    %v2693 = vmax.f32 %v2661, 0.0
    %v2694 = vmax.f32 %v2662, 0.0
    %v2695 = vmax.f32 %v2663, 0.0
    %v2696 = vmax.f32 %v2664, 0.0
    %v2697 = vmax.f32 %v2665, 0.0
    %v2698 = vmax.f32 %v2666, 0.0
    %v2699 = vmax.f32 %v2667, 0.0
    %v2700 = vmax.f32 %v2668, 0.0
    %v2701 = vmax.f32 %v2669, 0.0
    %v2702 = vmax.f32 %v2670, 0.0
    %v2703 = vmax.f32 %v2671, 0.0
    %v2704 = vmax.f32 %v2672, 0.0
    %v2705 = vmax.f32 %v2673, 0.0
    %v2706 = vmax.f32 %v2674, 0.0
    %v2707 = vmax.f32 %v2675, 0.0
    %v2708 = vmax.f32 %v2676, 0.0
    %v2709 = vmax.f32 %v2677, 0.0
    %v2710 = vmax.f32 %v2678, 0.0
    %v2711 = vmax.f32 %v2679, 0.0
    %v2712 = vmax.f32 %v2680, 0.0
    %v2713 = vmax.f32 %v2681, 0.0
    %v2714 = vmax.f32 %v2682, 0.0
    %v2715 = vmax.f32 %v2683, 0.0
    %v2716 = vmax.f32 %v2684, 0.0
    %v2717 = vmax.f32 %v2685, 0.0
    %v2718 = vmax.f32 %v2686, 0.0
    %v2719 = vpack.c.bf16 %v2688, %v2687
    %v2720 = vpack.c.bf16 %v2690, %v2689
    %v2721 = vpack.c.bf16 %v2692, %v2691
    %v2722 = vpack.c.bf16 %v2694, %v2693
    %v2723 = vpack.c.bf16 %v2696, %v2695
    %v2724 = vpack.c.bf16 %v2698, %v2697
    %v2725 = vpack.c.bf16 %v2700, %v2699
    %v2726 = vpack.c.bf16 %v2702, %v2701
    %v2727 = vpack.c.bf16 %v2704, %v2703
    %v2728 = vpack.c.bf16 %v2706, %v2705
    %v2729 = vpack.c.bf16 %v2708, %v2707
    %v2730 = vpack.c.bf16 %v2710, %v2709
    %v2731 = vpack.c.bf16 %v2712, %v2711
    %v2732 = vpack.c.bf16 %v2714, %v2713
    %v2733 = vpack.c.bf16 %v2716, %v2715
    %v2734 = vpack.c.bf16 %v2718, %v2717
    %s2735 = scalar_lea.vmem [#allocation2], 16
    %2736 = vst [vmem:[%s2735] sm:$0xff] %v2719
    %2737 = vst [vmem:[%s2735 + $0x8] sm:$0xff] %v2720
    %2738 = vst [vmem:[%s2735 + $0x10] sm:$0xff] %v2721
    %2739 = vst [vmem:[%s2735 + $0x18] sm:$0xff] %v2722
    %2740 = vst [vmem:[%s2735 + $0x20] sm:$0xff] %v2723
    %2741 = vst [vmem:[%s2735 + $0x28] sm:$0xff] %v2724
    %2742 = vst [vmem:[%s2735 + $0x30] sm:$0xff] %v2725
    %2743 = vst [vmem:[%s2735 + $0x38] sm:$0xff] %v2726
    %2744 = vst [vmem:[%s2735 + $0x40] sm:$0xff] %v2727
    %2745 = vst [vmem:[%s2735 + $0x48] sm:$0xff] %v2728
    %2746 = vst [vmem:[%s2735 + $0x50] sm:$0xff] %v2729
    %2747 = vst [vmem:[%s2735 + $0x58] sm:$0xff] %v2730
    %2748 = vst [vmem:[%s2735 + $0x60] sm:$0xff] %v2731
    %2749 = vst [vmem:[%s2735 + $0x68] sm:$0xff] %v2732
    %2750 = vst [vmem:[%s2735 + $0x70] sm:$0xff] %v2733
    %2751 = vst [vmem:[%s2735 + $0x78] sm:$0xff] %v2734
    %v2752 = vld [vmem:[#allocation2] sm:$0xff]
    %v2753 = vld [vmem:[#allocation2 + $0x8] sm:$0xff]
    %v2754 = vld [vmem:[#allocation2 + $0x10] sm:$0xff]
    %v2755 = vld [vmem:[#allocation2 + $0x18] sm:$0xff]
    %v2756 = vld [vmem:[#allocation2 + $0x20] sm:$0xff]
    %v2757 = vld [vmem:[#allocation2 + $0x28] sm:$0xff]
    %v2758 = vld [vmem:[#allocation2 + $0x30] sm:$0xff]
    %v2759 = vld [vmem:[#allocation2 + $0x38] sm:$0xff]
    %v2760 = vld [vmem:[#allocation2 + $0x40] sm:$0xff]
    %v2761 = vld [vmem:[#allocation2 + $0x48] sm:$0xff]
    %v2762 = vld [vmem:[#allocation2 + $0x50] sm:$0xff]
    %v2763 = vld [vmem:[#allocation2 + $0x58] sm:$0xff]
    %v2764 = vld [vmem:[#allocation2 + $0x60] sm:$0xff]
    %v2765 = vld [vmem:[#allocation2 + $0x68] sm:$0xff]
    %v2766 = vld [vmem:[#allocation2 + $0x70] sm:$0xff]
    %v2767 = vld [vmem:[#allocation2 + $0x78] sm:$0xff]
    %s2768 = scalar_lea.vmem [#allocation6], 1280
    %v2769 = vld [vmem:[%s2768] sm:$0xff]
    %v2770 = vld [vmem:[%s2768 + $0x8] sm:$0xff]
    %v2771 = vld [vmem:[%s2768 + $0x10] sm:$0xff]
    %v2772 = vld [vmem:[%s2768 + $0x18] sm:$0xff]
    %v2773 = vld [vmem:[%s2768 + $0x20] sm:$0xff]
    %v2774 = vld [vmem:[%s2768 + $0x28] sm:$0xff]
    %v2775 = vld [vmem:[%s2768 + $0x30] sm:$0xff]
    %v2776 = vld [vmem:[%s2768 + $0x38] sm:$0xff]
    %v2777 = vld [vmem:[%s2768 + $0x40] sm:$0xff]
    %v2778 = vld [vmem:[%s2768 + $0x48] sm:$0xff]
    %v2779 = vld [vmem:[%s2768 + $0x50] sm:$0xff]
    %v2780 = vld [vmem:[%s2768 + $0x58] sm:$0xff]
    %v2781 = vld [vmem:[%s2768 + $0x60] sm:$0xff]
    %v2782 = vld [vmem:[%s2768 + $0x68] sm:$0xff]
    %v2783 = vld [vmem:[%s2768 + $0x70] sm:$0xff]
    %v2784 = vld [vmem:[%s2768 + $0x78] sm:$0xff]
    %v2785 = vld [vmem:[%s2768 + $0x80] sm:$0xff]
    %v2786 = vld [vmem:[%s2768 + $0x88] sm:$0xff]
    %v2787 = vld [vmem:[%s2768 + $0x90] sm:$0xff]
    %v2788 = vld [vmem:[%s2768 + $0x98] sm:$0xff]
    %v2789 = vld [vmem:[%s2768 + $0xa0] sm:$0xff]
    %v2790 = vld [vmem:[%s2768 + $0xa8] sm:$0xff]
    %v2791 = vld [vmem:[%s2768 + $0xb0] sm:$0xff]
    %v2792 = vld [vmem:[%s2768 + $0xb8] sm:$0xff]
    %v2793 = vld [vmem:[%s2768 + $0xc0] sm:$0xff]
    %v2794 = vld [vmem:[%s2768 + $0xc8] sm:$0xff]
    %v2795 = vld [vmem:[%s2768 + $0xd0] sm:$0xff]
    %v2796 = vld [vmem:[%s2768 + $0xd8] sm:$0xff]
    %v2797 = vld [vmem:[%s2768 + $0xe0] sm:$0xff]
    %v2798 = vld [vmem:[%s2768 + $0xe8] sm:$0xff]
    %v2799 = vld [vmem:[%s2768 + $0xf0] sm:$0xff]
    %v2800 = vld [vmem:[%s2768 + $0xf8] sm:$0xff]
    %s2801 = scalar_lea.vmem [#allocation2], 8
    %v2802 = vld [vmem:[%s2801] sm:$0xff]
    %v2803 = vld [vmem:[%s2801 + $0x8] sm:$0xff]
    %v2804 = vld [vmem:[%s2801 + $0x10] sm:$0xff]
    %v2805 = vld [vmem:[%s2801 + $0x18] sm:$0xff]
    %v2806 = vld [vmem:[%s2801 + $0x20] sm:$0xff]
    %v2807 = vld [vmem:[%s2801 + $0x28] sm:$0xff]
    %v2808 = vld [vmem:[%s2801 + $0x30] sm:$0xff]
    %v2809 = vld [vmem:[%s2801 + $0x38] sm:$0xff]
    %v2810 = vld [vmem:[%s2801 + $0x40] sm:$0xff]
    %v2811 = vld [vmem:[%s2801 + $0x48] sm:$0xff]
    %v2812 = vld [vmem:[%s2801 + $0x50] sm:$0xff]
    %v2813 = vld [vmem:[%s2801 + $0x58] sm:$0xff]
    %v2814 = vld [vmem:[%s2801 + $0x60] sm:$0xff]
    %v2815 = vld [vmem:[%s2801 + $0x68] sm:$0xff]
    %v2816 = vld [vmem:[%s2801 + $0x70] sm:$0xff]
    %v2817 = vld [vmem:[%s2801 + $0x78] sm:$0xff]
    %s2818 = scalar_lea.vmem [#allocation6], 1536
    %v2819 = vld [vmem:[%s2818] sm:$0xff]
    %v2820 = vld [vmem:[%s2818 + $0x8] sm:$0xff]
    %v2821 = vld [vmem:[%s2818 + $0x10] sm:$0xff]
    %v2822 = vld [vmem:[%s2818 + $0x18] sm:$0xff]
    %v2823 = vld [vmem:[%s2818 + $0x20] sm:$0xff]
    %v2824 = vld [vmem:[%s2818 + $0x28] sm:$0xff]
    %v2825 = vld [vmem:[%s2818 + $0x30] sm:$0xff]
    %v2826 = vld [vmem:[%s2818 + $0x38] sm:$0xff]
    %v2827 = vld [vmem:[%s2818 + $0x40] sm:$0xff]
    %v2828 = vld [vmem:[%s2818 + $0x48] sm:$0xff]
    %v2829 = vld [vmem:[%s2818 + $0x50] sm:$0xff]
    %v2830 = vld [vmem:[%s2818 + $0x58] sm:$0xff]
    %v2831 = vld [vmem:[%s2818 + $0x60] sm:$0xff]
    %v2832 = vld [vmem:[%s2818 + $0x68] sm:$0xff]
    %v2833 = vld [vmem:[%s2818 + $0x70] sm:$0xff]
    %v2834 = vld [vmem:[%s2818 + $0x78] sm:$0xff]
    %v2835 = vld [vmem:[%s2818 + $0x80] sm:$0xff]
    %v2836 = vld [vmem:[%s2818 + $0x88] sm:$0xff]
    %v2837 = vld [vmem:[%s2818 + $0x90] sm:$0xff]
    %v2838 = vld [vmem:[%s2818 + $0x98] sm:$0xff]
    %v2839 = vld [vmem:[%s2818 + $0xa0] sm:$0xff]
    %v2840 = vld [vmem:[%s2818 + $0xa8] sm:$0xff]
    %v2841 = vld [vmem:[%s2818 + $0xb0] sm:$0xff]
    %v2842 = vld [vmem:[%s2818 + $0xb8] sm:$0xff]
    %v2843 = vld [vmem:[%s2818 + $0xc0] sm:$0xff]
    %v2844 = vld [vmem:[%s2818 + $0xc8] sm:$0xff]
    %v2845 = vld [vmem:[%s2818 + $0xd0] sm:$0xff]
    %v2846 = vld [vmem:[%s2818 + $0xd8] sm:$0xff]
    %v2847 = vld [vmem:[%s2818 + $0xe0] sm:$0xff]
    %v2848 = vld [vmem:[%s2818 + $0xe8] sm:$0xff]
    %v2849 = vld [vmem:[%s2818 + $0xf0] sm:$0xff]
    %v2850 = vld [vmem:[%s2818 + $0xf8] sm:$0xff]
    %v2867 = vunpack.c.l.b16 %v2802
    %v2868 = vunpack.c.h.b16 %v2802
    %v2869 = vunpack.c.l.b16 %v2803
    %v2870 = vunpack.c.h.b16 %v2803
    %v2871 = vunpack.c.l.b16 %v2804
    %v2872 = vunpack.c.h.b16 %v2804
    %v2873 = vunpack.c.l.b16 %v2805
    %v2874 = vunpack.c.h.b16 %v2805
    %v2875 = vunpack.c.l.b16 %v2806
    %v2876 = vunpack.c.h.b16 %v2806
    %v2877 = vunpack.c.l.b16 %v2807
    %v2878 = vunpack.c.h.b16 %v2807
    %v2879 = vunpack.c.l.b16 %v2808
    %v2880 = vunpack.c.h.b16 %v2808
    %v2881 = vunpack.c.l.b16 %v2809
    %v2882 = vunpack.c.h.b16 %v2809
    %v2883 = vunpack.c.l.b16 %v2810
    %v2884 = vunpack.c.h.b16 %v2810
    %v2885 = vunpack.c.l.b16 %v2811
    %v2886 = vunpack.c.h.b16 %v2811
    %v2887 = vunpack.c.l.b16 %v2812
    %v2888 = vunpack.c.h.b16 %v2812
    %v2889 = vunpack.c.l.b16 %v2813
    %v2890 = vunpack.c.h.b16 %v2813
    %v2891 = vunpack.c.l.b16 %v2814
    %v2892 = vunpack.c.h.b16 %v2814
    %v2893 = vunpack.c.l.b16 %v2815
    %v2894 = vunpack.c.h.b16 %v2815
    %v2895 = vunpack.c.l.b16 %v2816
    %v2896 = vunpack.c.h.b16 %v2816
    %v2897 = vunpack.c.l.b16 %v2817
    %v2898 = vunpack.c.h.b16 %v2817
    %v2899 = vpack.c.b16 %v2869, %v2867
    %v2900 = vpack.c.b16 %v2870, %v2868
    %v2901 = vpack.c.b16 %v2873, %v2871
    %v2902 = vpack.c.b16 %v2874, %v2872
    %v2903 = vpack.c.b16 %v2877, %v2875
    %v2904 = vpack.c.b16 %v2878, %v2876
    %v2905 = vpack.c.b16 %v2881, %v2879
    %v2906 = vpack.c.b16 %v2882, %v2880
    %v2907 = vpack.c.b16 %v2885, %v2883
    %v2908 = vpack.c.b16 %v2886, %v2884
    %v2909 = vpack.c.b16 %v2889, %v2887
    %v2910 = vpack.c.b16 %v2890, %v2888
    %v2911 = vpack.c.b16 %v2893, %v2891
    %v2912 = vpack.c.b16 %v2894, %v2892
    %v2913 = vpack.c.b16 %v2897, %v2895
    %v2914 = vpack.c.b16 %v2898, %v2896
    %v2963 = vunpack.c.l.b16 %v2819
    %v2964 = vunpack.c.h.b16 %v2819
    %v2965 = vunpack.c.l.b16 %v2820
    %v2966 = vunpack.c.h.b16 %v2820
    %v2967 = vunpack.c.l.b16 %v2821
    %v2968 = vunpack.c.h.b16 %v2821
    %v2969 = vunpack.c.l.b16 %v2822
    %v2970 = vunpack.c.h.b16 %v2822
    %v2971 = vunpack.c.l.b16 %v2823
    %v2972 = vunpack.c.h.b16 %v2823
    %v2973 = vunpack.c.l.b16 %v2824
    %v2974 = vunpack.c.h.b16 %v2824
    %v2975 = vunpack.c.l.b16 %v2825
    %v2976 = vunpack.c.h.b16 %v2825
    %v2977 = vunpack.c.l.b16 %v2826
    %v2978 = vunpack.c.h.b16 %v2826
    %v2979 = vunpack.c.l.b16 %v2827
    %v2980 = vunpack.c.h.b16 %v2827
    %v2981 = vunpack.c.l.b16 %v2828
    %v2982 = vunpack.c.h.b16 %v2828
    %v2983 = vunpack.c.l.b16 %v2829
    %v2984 = vunpack.c.h.b16 %v2829
    %v2985 = vunpack.c.l.b16 %v2830
    %v2986 = vunpack.c.h.b16 %v2830
    %v2987 = vunpack.c.l.b16 %v2831
    %v2988 = vunpack.c.h.b16 %v2831
    %v2989 = vunpack.c.l.b16 %v2832
    %v2990 = vunpack.c.h.b16 %v2832
    %v2991 = vunpack.c.l.b16 %v2833
    %v2992 = vunpack.c.h.b16 %v2833
    %v2993 = vunpack.c.l.b16 %v2834
    %v2994 = vunpack.c.h.b16 %v2834
    %v2995 = vunpack.c.l.b16 %v2835
    %v2996 = vunpack.c.h.b16 %v2835
    %v2997 = vunpack.c.l.b16 %v2836
    %v2998 = vunpack.c.h.b16 %v2836
    %v2999 = vunpack.c.l.b16 %v2837
    %v3000 = vunpack.c.h.b16 %v2837
    %v3001 = vunpack.c.l.b16 %v2838
    %v3002 = vunpack.c.h.b16 %v2838
    %v3003 = vunpack.c.l.b16 %v2839
    %v3004 = vunpack.c.h.b16 %v2839
    %v3005 = vunpack.c.l.b16 %v2840
    %v3006 = vunpack.c.h.b16 %v2840
    %v3007 = vunpack.c.l.b16 %v2841
    %v3008 = vunpack.c.h.b16 %v2841
    %v3009 = vunpack.c.l.b16 %v2842
    %v3010 = vunpack.c.h.b16 %v2842
    %v3011 = vunpack.c.l.b16 %v2843
    %v3012 = vunpack.c.h.b16 %v2843
    %v3013 = vunpack.c.l.b16 %v2844
    %v3014 = vunpack.c.h.b16 %v2844
    %v3015 = vunpack.c.l.b16 %v2845
    %v3016 = vunpack.c.h.b16 %v2845
    %v3017 = vunpack.c.l.b16 %v2846
    %v3018 = vunpack.c.h.b16 %v2846
    %v3019 = vunpack.c.l.b16 %v2847
    %v3020 = vunpack.c.h.b16 %v2847
    %v3021 = vunpack.c.l.b16 %v2848
    %v3022 = vunpack.c.h.b16 %v2848
    %v3023 = vunpack.c.l.b16 %v2849
    %v3024 = vunpack.c.h.b16 %v2849
    %v3025 = vunpack.c.l.b16 %v2850
    %v3026 = vunpack.c.h.b16 %v2850
    %v3027 = vpack.c.b16 %v2965, %v2963
    %v3028 = vpack.c.b16 %v2966, %v2964
    %v3029 = vpack.c.b16 %v2969, %v2967
    %v3030 = vpack.c.b16 %v2970, %v2968
    %v3031 = vpack.c.b16 %v2973, %v2971
    %v3032 = vpack.c.b16 %v2974, %v2972
    %v3033 = vpack.c.b16 %v2977, %v2975
    %v3034 = vpack.c.b16 %v2978, %v2976
    %v3035 = vpack.c.b16 %v2981, %v2979
    %v3036 = vpack.c.b16 %v2982, %v2980
    %v3037 = vpack.c.b16 %v2985, %v2983
    %v3038 = vpack.c.b16 %v2986, %v2984
    %v3039 = vpack.c.b16 %v2989, %v2987
    %v3040 = vpack.c.b16 %v2990, %v2988
    %v3041 = vpack.c.b16 %v2993, %v2991
    %v3042 = vpack.c.b16 %v2994, %v2992
    %v3043 = vpack.c.b16 %v2997, %v2995
    %v3044 = vpack.c.b16 %v2998, %v2996
    %v3045 = vpack.c.b16 %v3001, %v2999
    %v3046 = vpack.c.b16 %v3002, %v3000
    %v3047 = vpack.c.b16 %v3005, %v3003
    %v3048 = vpack.c.b16 %v3006, %v3004
    %v3049 = vpack.c.b16 %v3009, %v3007
    %v3050 = vpack.c.b16 %v3010, %v3008
    %v3051 = vpack.c.b16 %v3013, %v3011
    %v3052 = vpack.c.b16 %v3014, %v3012
    %v3053 = vpack.c.b16 %v3017, %v3015
    %v3054 = vpack.c.b16 %v3018, %v3016
    %v3055 = vpack.c.b16 %v3021, %v3019
    %v3056 = vpack.c.b16 %v3022, %v3020
    %v3057 = vpack.c.b16 %v3025, %v3023
    %v3058 = vpack.c.b16 %v3026, %v3024
    %3091 = vmatpush.bf16.msra.mxu0 %v3041
    %3092 = vmatpush.bf16.msra.mxu0 %v3039
    %3093 = vmatpush.bf16.msra.mxu0 %v3037
    %3094 = vmatpush.bf16.msra.mxu0 %v3035
    %3095 = vmatpush.bf16.msra.mxu0 %v3033
    %3096 = vmatpush.bf16.msra.mxu0 %v3031
    %3097 = vmatpush.bf16.msra.mxu0 %v3029
    %3098 = vmatpush.bf16.msra.mxu0 %v3027
    %3099 = vmatmul.bf16.gmra.mxu0 %v2899
    %v3100 = vpop.f32.mrf.mxu0
    %v3101 = vadd.f32 0.0, %v3100
    %v3102 = vpop.f32.mrf.mxu0
    %v3103 = vadd.f32 0.0, %v3102
    %3104 = vmatmul.bf16.gmra.mxu0 %v2901
    %v3105 = vpop.f32.mrf.mxu0
    %v3106 = vadd.f32 0.0, %v3105
    %v3107 = vpop.f32.mrf.mxu0
    %v3108 = vadd.f32 0.0, %v3107
    %3109 = vmatmul.bf16.gmra.mxu0 %v2903
    %v3110 = vpop.f32.mrf.mxu0
    %v3111 = vadd.f32 0.0, %v3110
    %v3112 = vpop.f32.mrf.mxu0
    %v3113 = vadd.f32 0.0, %v3112
    %3114 = vmatmul.bf16.gmra.mxu0 %v2905
    %v3115 = vpop.f32.mrf.mxu0
    %v3116 = vadd.f32 0.0, %v3115
    %v3117 = vpop.f32.mrf.mxu0
    %v3118 = vadd.f32 0.0, %v3117
    %3119 = vmatmul.bf16.gmra.mxu0 %v2907
    %v3120 = vpop.f32.mrf.mxu0
    %v3121 = vadd.f32 0.0, %v3120
    %v3122 = vpop.f32.mrf.mxu0
    %v3123 = vadd.f32 0.0, %v3122
    %3124 = vmatmul.bf16.gmra.mxu0 %v2909
    %v3125 = vpop.f32.mrf.mxu0
    %v3126 = vadd.f32 0.0, %v3125
    %v3127 = vpop.f32.mrf.mxu0
    %v3128 = vadd.f32 0.0, %v3127
    %3129 = vmatmul.bf16.gmra.mxu0 %v2911
    %v3130 = vpop.f32.mrf.mxu0
    %v3131 = vadd.f32 0.0, %v3130
    %v3132 = vpop.f32.mrf.mxu0
    %v3133 = vadd.f32 0.0, %v3132
    %3134 = vmatmul.bf16.gmra.mxu0 %v2913
    %v3135 = vpop.f32.mrf.mxu0
    %v3136 = vadd.f32 0.0, %v3135
    %v3137 = vpop.f32.mrf.mxu0
    %v3138 = vadd.f32 0.0, %v3137
    %3139 = vdwg.mxu0
    %3140 = vmatpush.bf16.msra.mxu0 %v3057
    %3141 = vmatpush.bf16.msra.mxu0 %v3055
    %3142 = vmatpush.bf16.msra.mxu0 %v3053
    %3143 = vmatpush.bf16.msra.mxu0 %v3051
    %3144 = vmatpush.bf16.msra.mxu0 %v3049
    %3145 = vmatpush.bf16.msra.mxu0 %v3047
    %3146 = vmatpush.bf16.msra.mxu0 %v3045
    %3147 = vmatpush.bf16.msra.mxu0 %v3043
    %3148 = vmatmul.bf16.gmra.mxu0 %v2900
    %v3149 = vpop.f32.mrf.mxu0
    %v3150 = vadd.f32 %v3101, %v3149
    %v3151 = vpop.f32.mrf.mxu0
    %v3152 = vadd.f32 %v3103, %v3151
    %3153 = vmatmul.bf16.gmra.mxu0 %v2902
    %v3154 = vpop.f32.mrf.mxu0
    %v3155 = vadd.f32 %v3106, %v3154
    %v3156 = vpop.f32.mrf.mxu0
    %v3157 = vadd.f32 %v3108, %v3156
    %3158 = vmatmul.bf16.gmra.mxu0 %v2904
    %v3159 = vpop.f32.mrf.mxu0
    %v3160 = vadd.f32 %v3111, %v3159
    %v3161 = vpop.f32.mrf.mxu0
    %v3162 = vadd.f32 %v3113, %v3161
    %3163 = vmatmul.bf16.gmra.mxu0 %v2906
    %v3164 = vpop.f32.mrf.mxu0
    %v3165 = vadd.f32 %v3116, %v3164
    %v3166 = vpop.f32.mrf.mxu0
    %v3167 = vadd.f32 %v3118, %v3166
    %3168 = vmatmul.bf16.gmra.mxu0 %v2908
    %v3169 = vpop.f32.mrf.mxu0
    %v3170 = vadd.f32 %v3121, %v3169
    %v3171 = vpop.f32.mrf.mxu0
    %v3172 = vadd.f32 %v3123, %v3171
    %3173 = vmatmul.bf16.gmra.mxu0 %v2910
    %v3174 = vpop.f32.mrf.mxu0
    %v3175 = vadd.f32 %v3126, %v3174
    %v3176 = vpop.f32.mrf.mxu0
    %v3177 = vadd.f32 %v3128, %v3176
    %3178 = vmatmul.bf16.gmra.mxu0 %v2912
    %v3179 = vpop.f32.mrf.mxu0
    %v3180 = vadd.f32 %v3131, %v3179
    %v3181 = vpop.f32.mrf.mxu0
    %v3182 = vadd.f32 %v3133, %v3181
    %3183 = vmatmul.bf16.gmra.mxu0 %v2914
    %v3184 = vpop.f32.mrf.mxu0
    %v3185 = vadd.f32 %v3136, %v3184
    %v3186 = vpop.f32.mrf.mxu0
    %v3187 = vadd.f32 %v3138, %v3186
    %3188 = vdwg.mxu0
    %3189 = vmatpush.bf16.msra.mxu0 %v3042
    %3190 = vmatpush.bf16.msra.mxu0 %v3040
    %3191 = vmatpush.bf16.msra.mxu0 %v3038
    %3192 = vmatpush.bf16.msra.mxu0 %v3036
    %3193 = vmatpush.bf16.msra.mxu0 %v3034
    %3194 = vmatpush.bf16.msra.mxu0 %v3032
    %3195 = vmatpush.bf16.msra.mxu0 %v3030
    %3196 = vmatpush.bf16.msra.mxu0 %v3028
    %3197 = vmatmul.bf16.gmra.mxu0 %v2899
    %v3198 = vpop.f32.mrf.mxu0
    %v3199 = vadd.f32 0.0, %v3198
    %v3200 = vpop.f32.mrf.mxu0
    %v3201 = vadd.f32 0.0, %v3200
    %3202 = vmatmul.bf16.gmra.mxu0 %v2901
    %v3203 = vpop.f32.mrf.mxu0
    %v3204 = vadd.f32 0.0, %v3203
    %v3205 = vpop.f32.mrf.mxu0
    %v3206 = vadd.f32 0.0, %v3205
    %3207 = vmatmul.bf16.gmra.mxu0 %v2903
    %v3208 = vpop.f32.mrf.mxu0
    %v3209 = vadd.f32 0.0, %v3208
    %v3210 = vpop.f32.mrf.mxu0
    %v3211 = vadd.f32 0.0, %v3210
    %3212 = vmatmul.bf16.gmra.mxu0 %v2905
    %v3213 = vpop.f32.mrf.mxu0
    %v3214 = vadd.f32 0.0, %v3213
    %v3215 = vpop.f32.mrf.mxu0
    %v3216 = vadd.f32 0.0, %v3215
    %3217 = vmatmul.bf16.gmra.mxu0 %v2907
    %v3218 = vpop.f32.mrf.mxu0
    %v3219 = vadd.f32 0.0, %v3218
    %v3220 = vpop.f32.mrf.mxu0
    %v3221 = vadd.f32 0.0, %v3220
    %3222 = vmatmul.bf16.gmra.mxu0 %v2909
    %v3223 = vpop.f32.mrf.mxu0
    %v3224 = vadd.f32 0.0, %v3223
    %v3225 = vpop.f32.mrf.mxu0
    %v3226 = vadd.f32 0.0, %v3225
    %3227 = vmatmul.bf16.gmra.mxu0 %v2911
    %v3228 = vpop.f32.mrf.mxu0
    %v3229 = vadd.f32 0.0, %v3228
    %v3230 = vpop.f32.mrf.mxu0
    %v3231 = vadd.f32 0.0, %v3230
    %3232 = vmatmul.bf16.gmra.mxu0 %v2913
    %v3233 = vpop.f32.mrf.mxu0
    %v3234 = vadd.f32 0.0, %v3233
    %v3235 = vpop.f32.mrf.mxu0
    %v3236 = vadd.f32 0.0, %v3235
    %3237 = vdwg.mxu0
    %3238 = vmatpush.bf16.msra.mxu0 %v3058
    %3239 = vmatpush.bf16.msra.mxu0 %v3056
    %3240 = vmatpush.bf16.msra.mxu0 %v3054
    %3241 = vmatpush.bf16.msra.mxu0 %v3052
    %3242 = vmatpush.bf16.msra.mxu0 %v3050
    %3243 = vmatpush.bf16.msra.mxu0 %v3048
    %3244 = vmatpush.bf16.msra.mxu0 %v3046
    %3245 = vmatpush.bf16.msra.mxu0 %v3044
    %3246 = vmatmul.bf16.gmra.mxu0 %v2900
    %v3247 = vpop.f32.mrf.mxu0
    %v3248 = vadd.f32 %v3199, %v3247
    %v3249 = vpop.f32.mrf.mxu0
    %v3250 = vadd.f32 %v3201, %v3249
    %3251 = vmatmul.bf16.gmra.mxu0 %v2902
    %v3252 = vpop.f32.mrf.mxu0
    %v3253 = vadd.f32 %v3204, %v3252
    %v3254 = vpop.f32.mrf.mxu0
    %v3255 = vadd.f32 %v3206, %v3254
    %3256 = vmatmul.bf16.gmra.mxu0 %v2904
    %v3257 = vpop.f32.mrf.mxu0
    %v3258 = vadd.f32 %v3209, %v3257
    %v3259 = vpop.f32.mrf.mxu0
    %v3260 = vadd.f32 %v3211, %v3259
    %3261 = vmatmul.bf16.gmra.mxu0 %v2906
    %v3262 = vpop.f32.mrf.mxu0
    %v3263 = vadd.f32 %v3214, %v3262
    %v3264 = vpop.f32.mrf.mxu0
    %v3265 = vadd.f32 %v3216, %v3264
    %3266 = vmatmul.bf16.gmra.mxu0 %v2908
    %v3267 = vpop.f32.mrf.mxu0
    %v3268 = vadd.f32 %v3219, %v3267
    %v3269 = vpop.f32.mrf.mxu0
    %v3270 = vadd.f32 %v3221, %v3269
    %3271 = vmatmul.bf16.gmra.mxu0 %v2910
    %v3272 = vpop.f32.mrf.mxu0
    %v3273 = vadd.f32 %v3224, %v3272
    %v3274 = vpop.f32.mrf.mxu0
    %v3275 = vadd.f32 %v3226, %v3274
    %3276 = vmatmul.bf16.gmra.mxu0 %v2912
    %v3277 = vpop.f32.mrf.mxu0
    %v3278 = vadd.f32 %v3229, %v3277
    %v3279 = vpop.f32.mrf.mxu0
    %v3280 = vadd.f32 %v3231, %v3279
    %3281 = vmatmul.bf16.gmra.mxu0 %v2914
    %v3282 = vpop.f32.mrf.mxu0
    %v3283 = vadd.f32 %v3234, %v3282
    %v3284 = vpop.f32.mrf.mxu0
    %v3285 = vadd.f32 %v3236, %v3284
    %3286 = vdwg.mxu0
    %v3303 = vunpack.c.l.b16 %v2752
    %v3304 = vunpack.c.h.b16 %v2752
    %v3305 = vunpack.c.l.b16 %v2753
    %v3306 = vunpack.c.h.b16 %v2753
    %v3307 = vunpack.c.l.b16 %v2754
    %v3308 = vunpack.c.h.b16 %v2754
    %v3309 = vunpack.c.l.b16 %v2755
    %v3310 = vunpack.c.h.b16 %v2755
    %v3311 = vunpack.c.l.b16 %v2756
    %v3312 = vunpack.c.h.b16 %v2756
    %v3313 = vunpack.c.l.b16 %v2757
    %v3314 = vunpack.c.h.b16 %v2757
    %v3315 = vunpack.c.l.b16 %v2758
    %v3316 = vunpack.c.h.b16 %v2758
    %v3317 = vunpack.c.l.b16 %v2759
    %v3318 = vunpack.c.h.b16 %v2759
    %v3319 = vunpack.c.l.b16 %v2760
    %v3320 = vunpack.c.h.b16 %v2760
    %v3321 = vunpack.c.l.b16 %v2761
    %v3322 = vunpack.c.h.b16 %v2761
    %v3323 = vunpack.c.l.b16 %v2762
    %v3324 = vunpack.c.h.b16 %v2762
    %v3325 = vunpack.c.l.b16 %v2763
    %v3326 = vunpack.c.h.b16 %v2763
    %v3327 = vunpack.c.l.b16 %v2764
    %v3328 = vunpack.c.h.b16 %v2764
    %v3329 = vunpack.c.l.b16 %v2765
    %v3330 = vunpack.c.h.b16 %v2765
    %v3331 = vunpack.c.l.b16 %v2766
    %v3332 = vunpack.c.h.b16 %v2766
    %v3333 = vunpack.c.l.b16 %v2767
    %v3334 = vunpack.c.h.b16 %v2767
    %v3335 = vpack.c.b16 %v3305, %v3303
    %v3336 = vpack.c.b16 %v3306, %v3304
    %v3337 = vpack.c.b16 %v3309, %v3307
    %v3338 = vpack.c.b16 %v3310, %v3308
    %v3339 = vpack.c.b16 %v3313, %v3311
    %v3340 = vpack.c.b16 %v3314, %v3312
    %v3341 = vpack.c.b16 %v3317, %v3315
    %v3342 = vpack.c.b16 %v3318, %v3316
    %v3343 = vpack.c.b16 %v3321, %v3319
    %v3344 = vpack.c.b16 %v3322, %v3320
    %v3345 = vpack.c.b16 %v3325, %v3323
    %v3346 = vpack.c.b16 %v3326, %v3324
    %v3347 = vpack.c.b16 %v3329, %v3327
    %v3348 = vpack.c.b16 %v3330, %v3328
    %v3349 = vpack.c.b16 %v3333, %v3331
    %v3350 = vpack.c.b16 %v3334, %v3332
    %v3399 = vunpack.c.l.b16 %v2769
    %v3400 = vunpack.c.h.b16 %v2769
    %v3401 = vunpack.c.l.b16 %v2770
    %v3402 = vunpack.c.h.b16 %v2770
    %v3403 = vunpack.c.l.b16 %v2771
    %v3404 = vunpack.c.h.b16 %v2771
    %v3405 = vunpack.c.l.b16 %v2772
    %v3406 = vunpack.c.h.b16 %v2772
    %v3407 = vunpack.c.l.b16 %v2773
    %v3408 = vunpack.c.h.b16 %v2773
    %v3409 = vunpack.c.l.b16 %v2774
    %v3410 = vunpack.c.h.b16 %v2774
    %v3411 = vunpack.c.l.b16 %v2775
    %v3412 = vunpack.c.h.b16 %v2775
    %v3413 = vunpack.c.l.b16 %v2776
    %v3414 = vunpack.c.h.b16 %v2776
    %v3415 = vunpack.c.l.b16 %v2777
    %v3416 = vunpack.c.h.b16 %v2777
    %v3417 = vunpack.c.l.b16 %v2778
    %v3418 = vunpack.c.h.b16 %v2778
    %v3419 = vunpack.c.l.b16 %v2779
    %v3420 = vunpack.c.h.b16 %v2779
    %v3421 = vunpack.c.l.b16 %v2780
    %v3422 = vunpack.c.h.b16 %v2780
    %v3423 = vunpack.c.l.b16 %v2781
    %v3424 = vunpack.c.h.b16 %v2781
    %v3425 = vunpack.c.l.b16 %v2782
    %v3426 = vunpack.c.h.b16 %v2782
    %v3427 = vunpack.c.l.b16 %v2783
    %v3428 = vunpack.c.h.b16 %v2783
    %v3429 = vunpack.c.l.b16 %v2784
    %v3430 = vunpack.c.h.b16 %v2784
    %v3431 = vunpack.c.l.b16 %v2785
    %v3432 = vunpack.c.h.b16 %v2785
    %v3433 = vunpack.c.l.b16 %v2786
    %v3434 = vunpack.c.h.b16 %v2786
    %v3435 = vunpack.c.l.b16 %v2787
    %v3436 = vunpack.c.h.b16 %v2787
    %v3437 = vunpack.c.l.b16 %v2788
    %v3438 = vunpack.c.h.b16 %v2788
    %v3439 = vunpack.c.l.b16 %v2789
    %v3440 = vunpack.c.h.b16 %v2789
    %v3441 = vunpack.c.l.b16 %v2790
    %v3442 = vunpack.c.h.b16 %v2790
    %v3443 = vunpack.c.l.b16 %v2791
    %v3444 = vunpack.c.h.b16 %v2791
    %v3445 = vunpack.c.l.b16 %v2792
    %v3446 = vunpack.c.h.b16 %v2792
    %v3447 = vunpack.c.l.b16 %v2793
    %v3448 = vunpack.c.h.b16 %v2793
    %v3449 = vunpack.c.l.b16 %v2794
    %v3450 = vunpack.c.h.b16 %v2794
    %v3451 = vunpack.c.l.b16 %v2795
    %v3452 = vunpack.c.h.b16 %v2795
    %v3453 = vunpack.c.l.b16 %v2796
    %v3454 = vunpack.c.h.b16 %v2796
    %v3455 = vunpack.c.l.b16 %v2797
    %v3456 = vunpack.c.h.b16 %v2797
    %v3457 = vunpack.c.l.b16 %v2798
    %v3458 = vunpack.c.h.b16 %v2798
    %v3459 = vunpack.c.l.b16 %v2799
    %v3460 = vunpack.c.h.b16 %v2799
    %v3461 = vunpack.c.l.b16 %v2800
    %v3462 = vunpack.c.h.b16 %v2800
    %v3463 = vpack.c.b16 %v3401, %v3399
    %v3464 = vpack.c.b16 %v3402, %v3400
    %v3465 = vpack.c.b16 %v3405, %v3403
    %v3466 = vpack.c.b16 %v3406, %v3404
    %v3467 = vpack.c.b16 %v3409, %v3407
    %v3468 = vpack.c.b16 %v3410, %v3408
    %v3469 = vpack.c.b16 %v3413, %v3411
    %v3470 = vpack.c.b16 %v3414, %v3412
    %v3471 = vpack.c.b16 %v3417, %v3415
    %v3472 = vpack.c.b16 %v3418, %v3416
    %v3473 = vpack.c.b16 %v3421, %v3419
    %v3474 = vpack.c.b16 %v3422, %v3420
    %v3475 = vpack.c.b16 %v3425, %v3423
    %v3476 = vpack.c.b16 %v3426, %v3424
    %v3477 = vpack.c.b16 %v3429, %v3427
    %v3478 = vpack.c.b16 %v3430, %v3428
    %v3479 = vpack.c.b16 %v3433, %v3431
    %v3480 = vpack.c.b16 %v3434, %v3432
    %v3481 = vpack.c.b16 %v3437, %v3435
    %v3482 = vpack.c.b16 %v3438, %v3436
    %v3483 = vpack.c.b16 %v3441, %v3439
    %v3484 = vpack.c.b16 %v3442, %v3440
    %v3485 = vpack.c.b16 %v3445, %v3443
    %v3486 = vpack.c.b16 %v3446, %v3444
    %v3487 = vpack.c.b16 %v3449, %v3447
    %v3488 = vpack.c.b16 %v3450, %v3448
    %v3489 = vpack.c.b16 %v3453, %v3451
    %v3490 = vpack.c.b16 %v3454, %v3452
    %v3491 = vpack.c.b16 %v3457, %v3455
    %v3492 = vpack.c.b16 %v3458, %v3456
    %v3493 = vpack.c.b16 %v3461, %v3459
    %v3494 = vpack.c.b16 %v3462, %v3460
    %3527 = vmatpush.bf16.msra.mxu0 %v3477
    %3528 = vmatpush.bf16.msra.mxu0 %v3475
    %3529 = vmatpush.bf16.msra.mxu0 %v3473
    %3530 = vmatpush.bf16.msra.mxu0 %v3471
    %3531 = vmatpush.bf16.msra.mxu0 %v3469
    %3532 = vmatpush.bf16.msra.mxu0 %v3467
    %3533 = vmatpush.bf16.msra.mxu0 %v3465
    %3534 = vmatpush.bf16.msra.mxu0 %v3463
    %3535 = vmatmul.bf16.gmra.mxu0 %v3335
    %v3536 = vpop.f32.mrf.mxu0
    %v3537 = vadd.f32 %v3150, %v3536
    %v3538 = vpop.f32.mrf.mxu0
    %v3539 = vadd.f32 %v3152, %v3538
    %3540 = vmatmul.bf16.gmra.mxu0 %v3337
    %v3541 = vpop.f32.mrf.mxu0
    %v3542 = vadd.f32 %v3155, %v3541
    %v3543 = vpop.f32.mrf.mxu0
    %v3544 = vadd.f32 %v3157, %v3543
    %3545 = vmatmul.bf16.gmra.mxu0 %v3339
    %v3546 = vpop.f32.mrf.mxu0
    %v3547 = vadd.f32 %v3160, %v3546
    %v3548 = vpop.f32.mrf.mxu0
    %v3549 = vadd.f32 %v3162, %v3548
    %3550 = vmatmul.bf16.gmra.mxu0 %v3341
    %v3551 = vpop.f32.mrf.mxu0
    %v3552 = vadd.f32 %v3165, %v3551
    %v3553 = vpop.f32.mrf.mxu0
    %v3554 = vadd.f32 %v3167, %v3553
    %3555 = vmatmul.bf16.gmra.mxu0 %v3343
    %v3556 = vpop.f32.mrf.mxu0
    %v3557 = vadd.f32 %v3170, %v3556
    %v3558 = vpop.f32.mrf.mxu0
    %v3559 = vadd.f32 %v3172, %v3558
    %3560 = vmatmul.bf16.gmra.mxu0 %v3345
    %v3561 = vpop.f32.mrf.mxu0
    %v3562 = vadd.f32 %v3175, %v3561
    %v3563 = vpop.f32.mrf.mxu0
    %v3564 = vadd.f32 %v3177, %v3563
    %3565 = vmatmul.bf16.gmra.mxu0 %v3347
    %v3566 = vpop.f32.mrf.mxu0
    %v3567 = vadd.f32 %v3180, %v3566
    %v3568 = vpop.f32.mrf.mxu0
    %v3569 = vadd.f32 %v3182, %v3568
    %3570 = vmatmul.bf16.gmra.mxu0 %v3349
    %v3571 = vpop.f32.mrf.mxu0
    %v3572 = vadd.f32 %v3185, %v3571
    %v3573 = vpop.f32.mrf.mxu0
    %v3574 = vadd.f32 %v3187, %v3573
    %3575 = vdwg.mxu0
    %3576 = vmatpush.bf16.msra.mxu0 %v3493
    %3577 = vmatpush.bf16.msra.mxu0 %v3491
    %3578 = vmatpush.bf16.msra.mxu0 %v3489
    %3579 = vmatpush.bf16.msra.mxu0 %v3487
    %3580 = vmatpush.bf16.msra.mxu0 %v3485
    %3581 = vmatpush.bf16.msra.mxu0 %v3483
    %3582 = vmatpush.bf16.msra.mxu0 %v3481
    %3583 = vmatpush.bf16.msra.mxu0 %v3479
    %3584 = vmatmul.bf16.gmra.mxu0 %v3336
    %v3585 = vpop.f32.mrf.mxu0
    %v3586 = vadd.f32 %v3537, %v3585
    %v3587 = vpop.f32.mrf.mxu0
    %v3588 = vadd.f32 %v3539, %v3587
    %3589 = vmatmul.bf16.gmra.mxu0 %v3338
    %v3590 = vpop.f32.mrf.mxu0
    %v3591 = vadd.f32 %v3542, %v3590
    %v3592 = vpop.f32.mrf.mxu0
    %v3593 = vadd.f32 %v3544, %v3592
    %3594 = vmatmul.bf16.gmra.mxu0 %v3340
    %v3595 = vpop.f32.mrf.mxu0
    %v3596 = vadd.f32 %v3547, %v3595
    %v3597 = vpop.f32.mrf.mxu0
    %v3598 = vadd.f32 %v3549, %v3597
    %3599 = vmatmul.bf16.gmra.mxu0 %v3342
    %v3600 = vpop.f32.mrf.mxu0
    %v3601 = vadd.f32 %v3552, %v3600
    %v3602 = vpop.f32.mrf.mxu0
    %v3603 = vadd.f32 %v3554, %v3602
    %3604 = vmatmul.bf16.gmra.mxu0 %v3344
    %v3605 = vpop.f32.mrf.mxu0
    %v3606 = vadd.f32 %v3557, %v3605
    %v3607 = vpop.f32.mrf.mxu0
    %v3608 = vadd.f32 %v3559, %v3607
    %3609 = vmatmul.bf16.gmra.mxu0 %v3346
    %v3610 = vpop.f32.mrf.mxu0
    %v3611 = vadd.f32 %v3562, %v3610
    %v3612 = vpop.f32.mrf.mxu0
    %v3613 = vadd.f32 %v3564, %v3612
    %3614 = vmatmul.bf16.gmra.mxu0 %v3348
    %v3615 = vpop.f32.mrf.mxu0
    %v3616 = vadd.f32 %v3567, %v3615
    %v3617 = vpop.f32.mrf.mxu0
    %v3618 = vadd.f32 %v3569, %v3617
    %3619 = vmatmul.bf16.gmra.mxu0 %v3350
    %v3620 = vpop.f32.mrf.mxu0
    %v3621 = vadd.f32 %v3572, %v3620
    %v3622 = vpop.f32.mrf.mxu0
    %v3623 = vadd.f32 %v3574, %v3622
    %3624 = vdwg.mxu0
    %3625 = vmatpush.bf16.msra.mxu0 %v3478
    %3626 = vmatpush.bf16.msra.mxu0 %v3476
    %3627 = vmatpush.bf16.msra.mxu0 %v3474
    %3628 = vmatpush.bf16.msra.mxu0 %v3472
    %3629 = vmatpush.bf16.msra.mxu0 %v3470
    %3630 = vmatpush.bf16.msra.mxu0 %v3468
    %3631 = vmatpush.bf16.msra.mxu0 %v3466
    %3632 = vmatpush.bf16.msra.mxu0 %v3464
    %3633 = vmatmul.bf16.gmra.mxu0 %v3335
    %v3634 = vpop.f32.mrf.mxu0
    %v3635 = vadd.f32 %v3248, %v3634
    %v3636 = vpop.f32.mrf.mxu0
    %v3637 = vadd.f32 %v3250, %v3636
    %3638 = vmatmul.bf16.gmra.mxu0 %v3337
    %v3639 = vpop.f32.mrf.mxu0
    %v3640 = vadd.f32 %v3253, %v3639
    %v3641 = vpop.f32.mrf.mxu0
    %v3642 = vadd.f32 %v3255, %v3641
    %3643 = vmatmul.bf16.gmra.mxu0 %v3339
    %v3644 = vpop.f32.mrf.mxu0
    %v3645 = vadd.f32 %v3258, %v3644
    %v3646 = vpop.f32.mrf.mxu0
    %v3647 = vadd.f32 %v3260, %v3646
    %3648 = vmatmul.bf16.gmra.mxu0 %v3341
    %v3649 = vpop.f32.mrf.mxu0
    %v3650 = vadd.f32 %v3263, %v3649
    %v3651 = vpop.f32.mrf.mxu0
    %v3652 = vadd.f32 %v3265, %v3651
    %3653 = vmatmul.bf16.gmra.mxu0 %v3343
    %v3654 = vpop.f32.mrf.mxu0
    %v3655 = vadd.f32 %v3268, %v3654
    %v3656 = vpop.f32.mrf.mxu0
    %v3657 = vadd.f32 %v3270, %v3656
    %3658 = vmatmul.bf16.gmra.mxu0 %v3345
    %v3659 = vpop.f32.mrf.mxu0
    %v3660 = vadd.f32 %v3273, %v3659
    %v3661 = vpop.f32.mrf.mxu0
    %v3662 = vadd.f32 %v3275, %v3661
    %3663 = vmatmul.bf16.gmra.mxu0 %v3347
    %v3664 = vpop.f32.mrf.mxu0
    %v3665 = vadd.f32 %v3278, %v3664
    %v3666 = vpop.f32.mrf.mxu0
    %v3667 = vadd.f32 %v3280, %v3666
    %3668 = vmatmul.bf16.gmra.mxu0 %v3349
    %v3669 = vpop.f32.mrf.mxu0
    %v3670 = vadd.f32 %v3283, %v3669
    %v3671 = vpop.f32.mrf.mxu0
    %v3672 = vadd.f32 %v3285, %v3671
    %3673 = vdwg.mxu0
    %3674 = vmatpush.bf16.msra.mxu0 %v3494
    %3675 = vmatpush.bf16.msra.mxu0 %v3492
    %3676 = vmatpush.bf16.msra.mxu0 %v3490
    %3677 = vmatpush.bf16.msra.mxu0 %v3488
    %3678 = vmatpush.bf16.msra.mxu0 %v3486
    %3679 = vmatpush.bf16.msra.mxu0 %v3484
    %3680 = vmatpush.bf16.msra.mxu0 %v3482
    %3681 = vmatpush.bf16.msra.mxu0 %v3480
    %3682 = vmatmul.bf16.gmra.mxu0 %v3336
    %v3683 = vpop.f32.mrf.mxu0
    %v3684 = vadd.f32 %v3635, %v3683
    %v3685 = vpop.f32.mrf.mxu0
    %v3686 = vadd.f32 %v3637, %v3685
    %3687 = vmatmul.bf16.gmra.mxu0 %v3338
    %v3688 = vpop.f32.mrf.mxu0
    %v3689 = vadd.f32 %v3640, %v3688
    %v3690 = vpop.f32.mrf.mxu0
    %v3691 = vadd.f32 %v3642, %v3690
    %3692 = vmatmul.bf16.gmra.mxu0 %v3340
    %v3693 = vpop.f32.mrf.mxu0
    %v3694 = vadd.f32 %v3645, %v3693
    %v3695 = vpop.f32.mrf.mxu0
    %v3696 = vadd.f32 %v3647, %v3695
    %3697 = vmatmul.bf16.gmra.mxu0 %v3342
    %v3698 = vpop.f32.mrf.mxu0
    %v3699 = vadd.f32 %v3650, %v3698
    %v3700 = vpop.f32.mrf.mxu0
    %v3701 = vadd.f32 %v3652, %v3700
    %3702 = vmatmul.bf16.gmra.mxu0 %v3344
    %v3703 = vpop.f32.mrf.mxu0
    %v3704 = vadd.f32 %v3655, %v3703
    %v3705 = vpop.f32.mrf.mxu0
    %v3706 = vadd.f32 %v3657, %v3705
    %3707 = vmatmul.bf16.gmra.mxu0 %v3346
    %v3708 = vpop.f32.mrf.mxu0
    %v3709 = vadd.f32 %v3660, %v3708
    %v3710 = vpop.f32.mrf.mxu0
    %v3711 = vadd.f32 %v3662, %v3710
    %3712 = vmatmul.bf16.gmra.mxu0 %v3348
    %v3713 = vpop.f32.mrf.mxu0
    %v3714 = vadd.f32 %v3665, %v3713
    %v3715 = vpop.f32.mrf.mxu0
    %v3716 = vadd.f32 %v3667, %v3715
    %3717 = vmatmul.bf16.gmra.mxu0 %v3350
    %v3718 = vpop.f32.mrf.mxu0
    %v3719 = vadd.f32 %v3670, %v3718
    %v3720 = vpop.f32.mrf.mxu0
    %v3721 = vadd.f32 %v3672, %v3720
    %3722 = vdwg.mxu0
    %v3723 = vld [vmem:[%s2735] sm:$0xff]
    %v3724 = vld [vmem:[%s2735 + $0x8] sm:$0xff]
    %v3725 = vld [vmem:[%s2735 + $0x10] sm:$0xff]
    %v3726 = vld [vmem:[%s2735 + $0x18] sm:$0xff]
    %v3727 = vld [vmem:[%s2735 + $0x20] sm:$0xff]
    %v3728 = vld [vmem:[%s2735 + $0x28] sm:$0xff]
    %v3729 = vld [vmem:[%s2735 + $0x30] sm:$0xff]
    %v3730 = vld [vmem:[%s2735 + $0x38] sm:$0xff]
    %v3731 = vld [vmem:[%s2735 + $0x40] sm:$0xff]
    %v3732 = vld [vmem:[%s2735 + $0x48] sm:$0xff]
    %v3733 = vld [vmem:[%s2735 + $0x50] sm:$0xff]
    %v3734 = vld [vmem:[%s2735 + $0x58] sm:$0xff]
    %v3735 = vld [vmem:[%s2735 + $0x60] sm:$0xff]
    %v3736 = vld [vmem:[%s2735 + $0x68] sm:$0xff]
    %v3737 = vld [vmem:[%s2735 + $0x70] sm:$0xff]
    %v3738 = vld [vmem:[%s2735 + $0x78] sm:$0xff]
    %s3739 = scalar_lea.vmem [#allocation6], 1792
    %v3740 = vld [vmem:[%s3739] sm:$0xff]
    %v3741 = vld [vmem:[%s3739 + $0x8] sm:$0xff]
    %v3742 = vld [vmem:[%s3739 + $0x10] sm:$0xff]
    %v3743 = vld [vmem:[%s3739 + $0x18] sm:$0xff]
    %v3744 = vld [vmem:[%s3739 + $0x20] sm:$0xff]
    %v3745 = vld [vmem:[%s3739 + $0x28] sm:$0xff]
    %v3746 = vld [vmem:[%s3739 + $0x30] sm:$0xff]
    %v3747 = vld [vmem:[%s3739 + $0x38] sm:$0xff]
    %v3748 = vld [vmem:[%s3739 + $0x40] sm:$0xff]
    %v3749 = vld [vmem:[%s3739 + $0x48] sm:$0xff]
    %v3750 = vld [vmem:[%s3739 + $0x50] sm:$0xff]
    %v3751 = vld [vmem:[%s3739 + $0x58] sm:$0xff]
    %v3752 = vld [vmem:[%s3739 + $0x60] sm:$0xff]
    %v3753 = vld [vmem:[%s3739 + $0x68] sm:$0xff]
    %v3754 = vld [vmem:[%s3739 + $0x70] sm:$0xff]
    %v3755 = vld [vmem:[%s3739 + $0x78] sm:$0xff]
    %v3756 = vld [vmem:[%s3739 + $0x80] sm:$0xff]
    %v3757 = vld [vmem:[%s3739 + $0x88] sm:$0xff]
    %v3758 = vld [vmem:[%s3739 + $0x90] sm:$0xff]
    %v3759 = vld [vmem:[%s3739 + $0x98] sm:$0xff]
    %v3760 = vld [vmem:[%s3739 + $0xa0] sm:$0xff]
    %v3761 = vld [vmem:[%s3739 + $0xa8] sm:$0xff]
    %v3762 = vld [vmem:[%s3739 + $0xb0] sm:$0xff]
    %v3763 = vld [vmem:[%s3739 + $0xb8] sm:$0xff]
    %v3764 = vld [vmem:[%s3739 + $0xc0] sm:$0xff]
    %v3765 = vld [vmem:[%s3739 + $0xc8] sm:$0xff]
    %v3766 = vld [vmem:[%s3739 + $0xd0] sm:$0xff]
    %v3767 = vld [vmem:[%s3739 + $0xd8] sm:$0xff]
    %v3768 = vld [vmem:[%s3739 + $0xe0] sm:$0xff]
    %v3769 = vld [vmem:[%s3739 + $0xe8] sm:$0xff]
    %v3770 = vld [vmem:[%s3739 + $0xf0] sm:$0xff]
    %v3771 = vld [vmem:[%s3739 + $0xf8] sm:$0xff]
    %v3788 = vunpack.c.l.b16 %v3723
    %v3789 = vunpack.c.h.b16 %v3723
    %v3790 = vunpack.c.l.b16 %v3724
    %v3791 = vunpack.c.h.b16 %v3724
    %v3792 = vunpack.c.l.b16 %v3725
    %v3793 = vunpack.c.h.b16 %v3725
    %v3794 = vunpack.c.l.b16 %v3726
    %v3795 = vunpack.c.h.b16 %v3726
    %v3796 = vunpack.c.l.b16 %v3727
    %v3797 = vunpack.c.h.b16 %v3727
    %v3798 = vunpack.c.l.b16 %v3728
    %v3799 = vunpack.c.h.b16 %v3728
    %v3800 = vunpack.c.l.b16 %v3729
    %v3801 = vunpack.c.h.b16 %v3729
    %v3802 = vunpack.c.l.b16 %v3730
    %v3803 = vunpack.c.h.b16 %v3730
    %v3804 = vunpack.c.l.b16 %v3731
    %v3805 = vunpack.c.h.b16 %v3731
    %v3806 = vunpack.c.l.b16 %v3732
    %v3807 = vunpack.c.h.b16 %v3732
    %v3808 = vunpack.c.l.b16 %v3733
    %v3809 = vunpack.c.h.b16 %v3733
    %v3810 = vunpack.c.l.b16 %v3734
    %v3811 = vunpack.c.h.b16 %v3734
    %v3812 = vunpack.c.l.b16 %v3735
    %v3813 = vunpack.c.h.b16 %v3735
    %v3814 = vunpack.c.l.b16 %v3736
    %v3815 = vunpack.c.h.b16 %v3736
    %v3816 = vunpack.c.l.b16 %v3737
    %v3817 = vunpack.c.h.b16 %v3737
    %v3818 = vunpack.c.l.b16 %v3738
    %v3819 = vunpack.c.h.b16 %v3738
    %v3820 = vpack.c.b16 %v3790, %v3788
    %v3821 = vpack.c.b16 %v3791, %v3789
    %v3822 = vpack.c.b16 %v3794, %v3792
    %v3823 = vpack.c.b16 %v3795, %v3793
    %v3824 = vpack.c.b16 %v3798, %v3796
    %v3825 = vpack.c.b16 %v3799, %v3797
    %v3826 = vpack.c.b16 %v3802, %v3800
    %v3827 = vpack.c.b16 %v3803, %v3801
    %v3828 = vpack.c.b16 %v3806, %v3804
    %v3829 = vpack.c.b16 %v3807, %v3805
    %v3830 = vpack.c.b16 %v3810, %v3808
    %v3831 = vpack.c.b16 %v3811, %v3809
    %v3832 = vpack.c.b16 %v3814, %v3812
    %v3833 = vpack.c.b16 %v3815, %v3813
    %v3834 = vpack.c.b16 %v3818, %v3816
    %v3835 = vpack.c.b16 %v3819, %v3817
    %v3884 = vunpack.c.l.b16 %v3740
    %v3885 = vunpack.c.h.b16 %v3740
    %v3886 = vunpack.c.l.b16 %v3741
    %v3887 = vunpack.c.h.b16 %v3741
    %v3888 = vunpack.c.l.b16 %v3742
    %v3889 = vunpack.c.h.b16 %v3742
    %v3890 = vunpack.c.l.b16 %v3743
    %v3891 = vunpack.c.h.b16 %v3743
    %v3892 = vunpack.c.l.b16 %v3744
    %v3893 = vunpack.c.h.b16 %v3744
    %v3894 = vunpack.c.l.b16 %v3745
    %v3895 = vunpack.c.h.b16 %v3745
    %v3896 = vunpack.c.l.b16 %v3746
    %v3897 = vunpack.c.h.b16 %v3746
    %v3898 = vunpack.c.l.b16 %v3747
    %v3899 = vunpack.c.h.b16 %v3747
    %v3900 = vunpack.c.l.b16 %v3748
    %v3901 = vunpack.c.h.b16 %v3748
    %v3902 = vunpack.c.l.b16 %v3749
    %v3903 = vunpack.c.h.b16 %v3749
    %v3904 = vunpack.c.l.b16 %v3750
    %v3905 = vunpack.c.h.b16 %v3750
    %v3906 = vunpack.c.l.b16 %v3751
    %v3907 = vunpack.c.h.b16 %v3751
    %v3908 = vunpack.c.l.b16 %v3752
    %v3909 = vunpack.c.h.b16 %v3752
    %v3910 = vunpack.c.l.b16 %v3753
    %v3911 = vunpack.c.h.b16 %v3753
    %v3912 = vunpack.c.l.b16 %v3754
    %v3913 = vunpack.c.h.b16 %v3754
    %v3914 = vunpack.c.l.b16 %v3755
    %v3915 = vunpack.c.h.b16 %v3755
    %v3916 = vunpack.c.l.b16 %v3756
    %v3917 = vunpack.c.h.b16 %v3756
    %v3918 = vunpack.c.l.b16 %v3757
    %v3919 = vunpack.c.h.b16 %v3757
    %v3920 = vunpack.c.l.b16 %v3758
    %v3921 = vunpack.c.h.b16 %v3758
    %v3922 = vunpack.c.l.b16 %v3759
    %v3923 = vunpack.c.h.b16 %v3759
    %v3924 = vunpack.c.l.b16 %v3760
    %v3925 = vunpack.c.h.b16 %v3760
    %v3926 = vunpack.c.l.b16 %v3761
    %v3927 = vunpack.c.h.b16 %v3761
    %v3928 = vunpack.c.l.b16 %v3762
    %v3929 = vunpack.c.h.b16 %v3762
    %v3930 = vunpack.c.l.b16 %v3763
    %v3931 = vunpack.c.h.b16 %v3763
    %v3932 = vunpack.c.l.b16 %v3764
    %v3933 = vunpack.c.h.b16 %v3764
    %v3934 = vunpack.c.l.b16 %v3765
    %v3935 = vunpack.c.h.b16 %v3765
    %v3936 = vunpack.c.l.b16 %v3766
    %v3937 = vunpack.c.h.b16 %v3766
    %v3938 = vunpack.c.l.b16 %v3767
    %v3939 = vunpack.c.h.b16 %v3767
    %v3940 = vunpack.c.l.b16 %v3768
    %v3941 = vunpack.c.h.b16 %v3768
    %v3942 = vunpack.c.l.b16 %v3769
    %v3943 = vunpack.c.h.b16 %v3769
    %v3944 = vunpack.c.l.b16 %v3770
    %v3945 = vunpack.c.h.b16 %v3770
    %v3946 = vunpack.c.l.b16 %v3771
    %v3947 = vunpack.c.h.b16 %v3771
    %v3948 = vpack.c.b16 %v3886, %v3884
    %v3949 = vpack.c.b16 %v3887, %v3885
    %v3950 = vpack.c.b16 %v3890, %v3888
    %v3951 = vpack.c.b16 %v3891, %v3889
    %v3952 = vpack.c.b16 %v3894, %v3892
    %v3953 = vpack.c.b16 %v3895, %v3893
    %v3954 = vpack.c.b16 %v3898, %v3896
    %v3955 = vpack.c.b16 %v3899, %v3897
    %v3956 = vpack.c.b16 %v3902, %v3900
    %v3957 = vpack.c.b16 %v3903, %v3901
    %v3958 = vpack.c.b16 %v3906, %v3904
    %v3959 = vpack.c.b16 %v3907, %v3905
    %v3960 = vpack.c.b16 %v3910, %v3908
    %v3961 = vpack.c.b16 %v3911, %v3909
    %v3962 = vpack.c.b16 %v3914, %v3912
    %v3963 = vpack.c.b16 %v3915, %v3913
    %v3964 = vpack.c.b16 %v3918, %v3916
    %v3965 = vpack.c.b16 %v3919, %v3917
    %v3966 = vpack.c.b16 %v3922, %v3920
    %v3967 = vpack.c.b16 %v3923, %v3921
    %v3968 = vpack.c.b16 %v3926, %v3924
    %v3969 = vpack.c.b16 %v3927, %v3925
    %v3970 = vpack.c.b16 %v3930, %v3928
    %v3971 = vpack.c.b16 %v3931, %v3929
    %v3972 = vpack.c.b16 %v3934, %v3932
    %v3973 = vpack.c.b16 %v3935, %v3933
    %v3974 = vpack.c.b16 %v3938, %v3936
    %v3975 = vpack.c.b16 %v3939, %v3937
    %v3976 = vpack.c.b16 %v3942, %v3940
    %v3977 = vpack.c.b16 %v3943, %v3941
    %v3978 = vpack.c.b16 %v3946, %v3944
    %v3979 = vpack.c.b16 %v3947, %v3945
    %4012 = vmatpush.bf16.msra.mxu0 %v3962
    %4013 = vmatpush.bf16.msra.mxu0 %v3960
    %4014 = vmatpush.bf16.msra.mxu0 %v3958
    %4015 = vmatpush.bf16.msra.mxu0 %v3956
    %4016 = vmatpush.bf16.msra.mxu0 %v3954
    %4017 = vmatpush.bf16.msra.mxu0 %v3952
    %4018 = vmatpush.bf16.msra.mxu0 %v3950
    %4019 = vmatpush.bf16.msra.mxu0 %v3948
    %4020 = vmatmul.bf16.gmra.mxu0 %v3820
    %v4021 = vpop.f32.mrf.mxu0
    %v4022 = vadd.f32 0.0, %v4021
    %v4023 = vpop.f32.mrf.mxu0
    %v4024 = vadd.f32 0.0, %v4023
    %4025 = vmatmul.bf16.gmra.mxu0 %v3822
    %v4026 = vpop.f32.mrf.mxu0
    %v4027 = vadd.f32 0.0, %v4026
    %v4028 = vpop.f32.mrf.mxu0
    %v4029 = vadd.f32 0.0, %v4028
    %4030 = vmatmul.bf16.gmra.mxu0 %v3824
    %v4031 = vpop.f32.mrf.mxu0
    %v4032 = vadd.f32 0.0, %v4031
    %v4033 = vpop.f32.mrf.mxu0
    %v4034 = vadd.f32 0.0, %v4033
    %4035 = vmatmul.bf16.gmra.mxu0 %v3826
    %v4036 = vpop.f32.mrf.mxu0
    %v4037 = vadd.f32 0.0, %v4036
    %v4038 = vpop.f32.mrf.mxu0
    %v4039 = vadd.f32 0.0, %v4038
    %4040 = vmatmul.bf16.gmra.mxu0 %v3828
    %v4041 = vpop.f32.mrf.mxu0
    %v4042 = vadd.f32 0.0, %v4041
    %v4043 = vpop.f32.mrf.mxu0
    %v4044 = vadd.f32 0.0, %v4043
    %4045 = vmatmul.bf16.gmra.mxu0 %v3830
    %v4046 = vpop.f32.mrf.mxu0
    %v4047 = vadd.f32 0.0, %v4046
    %v4048 = vpop.f32.mrf.mxu0
    %v4049 = vadd.f32 0.0, %v4048
    %4050 = vmatmul.bf16.gmra.mxu0 %v3832
    %v4051 = vpop.f32.mrf.mxu0
    %v4052 = vadd.f32 0.0, %v4051
    %v4053 = vpop.f32.mrf.mxu0
    %v4054 = vadd.f32 0.0, %v4053
    %4055 = vmatmul.bf16.gmra.mxu0 %v3834
    %v4056 = vpop.f32.mrf.mxu0
    %v4057 = vadd.f32 0.0, %v4056
    %v4058 = vpop.f32.mrf.mxu0
    %v4059 = vadd.f32 0.0, %v4058
    %4060 = vdwg.mxu0
    %4061 = vmatpush.bf16.msra.mxu0 %v3978
    %4062 = vmatpush.bf16.msra.mxu0 %v3976
    %4063 = vmatpush.bf16.msra.mxu0 %v3974
    %4064 = vmatpush.bf16.msra.mxu0 %v3972
    %4065 = vmatpush.bf16.msra.mxu0 %v3970
    %4066 = vmatpush.bf16.msra.mxu0 %v3968
    %4067 = vmatpush.bf16.msra.mxu0 %v3966
    %4068 = vmatpush.bf16.msra.mxu0 %v3964
    %4069 = vmatmul.bf16.gmra.mxu0 %v3821
    %v4070 = vpop.f32.mrf.mxu0
    %v4071 = vadd.f32 %v4022, %v4070
    %v4072 = vpop.f32.mrf.mxu0
    %v4073 = vadd.f32 %v4024, %v4072
    %4074 = vmatmul.bf16.gmra.mxu0 %v3823
    %v4075 = vpop.f32.mrf.mxu0
    %v4076 = vadd.f32 %v4027, %v4075
    %v4077 = vpop.f32.mrf.mxu0
    %v4078 = vadd.f32 %v4029, %v4077
    %4079 = vmatmul.bf16.gmra.mxu0 %v3825
    %v4080 = vpop.f32.mrf.mxu0
    %v4081 = vadd.f32 %v4032, %v4080
    %v4082 = vpop.f32.mrf.mxu0
    %v4083 = vadd.f32 %v4034, %v4082
    %4084 = vmatmul.bf16.gmra.mxu0 %v3827
    %v4085 = vpop.f32.mrf.mxu0
    %v4086 = vadd.f32 %v4037, %v4085
    %v4087 = vpop.f32.mrf.mxu0
    %v4088 = vadd.f32 %v4039, %v4087
    %4089 = vmatmul.bf16.gmra.mxu0 %v3829
    %v4090 = vpop.f32.mrf.mxu0
    %v4091 = vadd.f32 %v4042, %v4090
    %v4092 = vpop.f32.mrf.mxu0
    %v4093 = vadd.f32 %v4044, %v4092
    %4094 = vmatmul.bf16.gmra.mxu0 %v3831
    %v4095 = vpop.f32.mrf.mxu0
    %v4096 = vadd.f32 %v4047, %v4095
    %v4097 = vpop.f32.mrf.mxu0
    %v4098 = vadd.f32 %v4049, %v4097
    %4099 = vmatmul.bf16.gmra.mxu0 %v3833
    %v4100 = vpop.f32.mrf.mxu0
    %v4101 = vadd.f32 %v4052, %v4100
    %v4102 = vpop.f32.mrf.mxu0
    %v4103 = vadd.f32 %v4054, %v4102
    %4104 = vmatmul.bf16.gmra.mxu0 %v3835
    %v4105 = vpop.f32.mrf.mxu0
    %v4106 = vadd.f32 %v4057, %v4105
    %v4107 = vpop.f32.mrf.mxu0
    %v4108 = vadd.f32 %v4059, %v4107
    %4109 = vdwg.mxu0
    %4110 = vmatpush.bf16.msra.mxu0 %v3963
    %4111 = vmatpush.bf16.msra.mxu0 %v3961
    %4112 = vmatpush.bf16.msra.mxu0 %v3959
    %4113 = vmatpush.bf16.msra.mxu0 %v3957
    %4114 = vmatpush.bf16.msra.mxu0 %v3955
    %4115 = vmatpush.bf16.msra.mxu0 %v3953
    %4116 = vmatpush.bf16.msra.mxu0 %v3951
    %4117 = vmatpush.bf16.msra.mxu0 %v3949
    %4118 = vmatmul.bf16.gmra.mxu0 %v3820
    %v4119 = vpop.f32.mrf.mxu0
    %v4120 = vadd.f32 0.0, %v4119
    %v4121 = vpop.f32.mrf.mxu0
    %v4122 = vadd.f32 0.0, %v4121
    %4123 = vmatmul.bf16.gmra.mxu0 %v3822
    %v4124 = vpop.f32.mrf.mxu0
    %v4125 = vadd.f32 0.0, %v4124
    %v4126 = vpop.f32.mrf.mxu0
    %v4127 = vadd.f32 0.0, %v4126
    %4128 = vmatmul.bf16.gmra.mxu0 %v3824
    %v4129 = vpop.f32.mrf.mxu0
    %v4130 = vadd.f32 0.0, %v4129
    %v4131 = vpop.f32.mrf.mxu0
    %v4132 = vadd.f32 0.0, %v4131
    %4133 = vmatmul.bf16.gmra.mxu0 %v3826
    %v4134 = vpop.f32.mrf.mxu0
    %v4135 = vadd.f32 0.0, %v4134
    %v4136 = vpop.f32.mrf.mxu0
    %v4137 = vadd.f32 0.0, %v4136
    %4138 = vmatmul.bf16.gmra.mxu0 %v3828
    %v4139 = vpop.f32.mrf.mxu0
    %v4140 = vadd.f32 0.0, %v4139
    %v4141 = vpop.f32.mrf.mxu0
    %v4142 = vadd.f32 0.0, %v4141
    %4143 = vmatmul.bf16.gmra.mxu0 %v3830
    %v4144 = vpop.f32.mrf.mxu0
    %v4145 = vadd.f32 0.0, %v4144
    %v4146 = vpop.f32.mrf.mxu0
    %v4147 = vadd.f32 0.0, %v4146
    %4148 = vmatmul.bf16.gmra.mxu0 %v3832
    %v4149 = vpop.f32.mrf.mxu0
    %v4150 = vadd.f32 0.0, %v4149
    %v4151 = vpop.f32.mrf.mxu0
    %v4152 = vadd.f32 0.0, %v4151
    %4153 = vmatmul.bf16.gmra.mxu0 %v3834
    %v4154 = vpop.f32.mrf.mxu0
    %v4155 = vadd.f32 0.0, %v4154
    %v4156 = vpop.f32.mrf.mxu0
    %v4157 = vadd.f32 0.0, %v4156
    %4158 = vdwg.mxu0
    %4159 = vmatpush.bf16.msra.mxu0 %v3979
    %4160 = vmatpush.bf16.msra.mxu0 %v3977
    %4161 = vmatpush.bf16.msra.mxu0 %v3975
    %4162 = vmatpush.bf16.msra.mxu0 %v3973
    %4163 = vmatpush.bf16.msra.mxu0 %v3971
    %4164 = vmatpush.bf16.msra.mxu0 %v3969
    %4165 = vmatpush.bf16.msra.mxu0 %v3967
    %4166 = vmatpush.bf16.msra.mxu0 %v3965
    %4167 = vmatmul.bf16.gmra.mxu0 %v3821
    %v4168 = vpop.f32.mrf.mxu0
    %v4169 = vadd.f32 %v4120, %v4168
    %v4170 = vpop.f32.mrf.mxu0
    %v4171 = vadd.f32 %v4122, %v4170
    %4172 = vmatmul.bf16.gmra.mxu0 %v3823
    %v4173 = vpop.f32.mrf.mxu0
    %v4174 = vadd.f32 %v4125, %v4173
    %v4175 = vpop.f32.mrf.mxu0
    %v4176 = vadd.f32 %v4127, %v4175
    %4177 = vmatmul.bf16.gmra.mxu0 %v3825
    %v4178 = vpop.f32.mrf.mxu0
    %v4179 = vadd.f32 %v4130, %v4178
    %v4180 = vpop.f32.mrf.mxu0
    %v4181 = vadd.f32 %v4132, %v4180
    %4182 = vmatmul.bf16.gmra.mxu0 %v3827
    %v4183 = vpop.f32.mrf.mxu0
    %v4184 = vadd.f32 %v4135, %v4183
    %v4185 = vpop.f32.mrf.mxu0
    %v4186 = vadd.f32 %v4137, %v4185
    %4187 = vmatmul.bf16.gmra.mxu0 %v3829
    %v4188 = vpop.f32.mrf.mxu0
    %v4189 = vadd.f32 %v4140, %v4188
    %v4190 = vpop.f32.mrf.mxu0
    %v4191 = vadd.f32 %v4142, %v4190
    %4192 = vmatmul.bf16.gmra.mxu0 %v3831
    %v4193 = vpop.f32.mrf.mxu0
    %v4194 = vadd.f32 %v4145, %v4193
    %v4195 = vpop.f32.mrf.mxu0
    %v4196 = vadd.f32 %v4147, %v4195
    %4197 = vmatmul.bf16.gmra.mxu0 %v3833
    %v4198 = vpop.f32.mrf.mxu0
    %v4199 = vadd.f32 %v4150, %v4198
    %v4200 = vpop.f32.mrf.mxu0
    %v4201 = vadd.f32 %v4152, %v4200
    %4202 = vmatmul.bf16.gmra.mxu0 %v3835
    %v4203 = vpop.f32.mrf.mxu0
    %v4204 = vadd.f32 %v4155, %v4203
    %v4205 = vpop.f32.mrf.mxu0
    %v4206 = vadd.f32 %v4157, %v4205
    %4207 = vdwg.mxu0
    %v4208 = vadd.f32 %v3586, %v4071
    %v4209 = vadd.f32 %v3684, %v4169
    %v4210 = vadd.f32 %v3588, %v4073
    %v4211 = vadd.f32 %v3686, %v4171
    %v4212 = vadd.f32 %v3591, %v4076
    %v4213 = vadd.f32 %v3689, %v4174
    %v4214 = vadd.f32 %v3593, %v4078
    %v4215 = vadd.f32 %v3691, %v4176
    %v4216 = vadd.f32 %v3596, %v4081
    %v4217 = vadd.f32 %v3694, %v4179
    %v4218 = vadd.f32 %v3598, %v4083
    %v4219 = vadd.f32 %v3696, %v4181
    %v4220 = vadd.f32 %v3601, %v4086
    %v4221 = vadd.f32 %v3699, %v4184
    %v4222 = vadd.f32 %v3603, %v4088
    %v4223 = vadd.f32 %v3701, %v4186
    %v4224 = vadd.f32 %v3606, %v4091
    %v4225 = vadd.f32 %v3704, %v4189
    %v4226 = vadd.f32 %v3608, %v4093
    %v4227 = vadd.f32 %v3706, %v4191
    %v4228 = vadd.f32 %v3611, %v4096
    %v4229 = vadd.f32 %v3709, %v4194
    %v4230 = vadd.f32 %v3613, %v4098
    %v4231 = vadd.f32 %v3711, %v4196
    %v4232 = vadd.f32 %v3616, %v4101
    %v4233 = vadd.f32 %v3714, %v4199
    %v4234 = vadd.f32 %v3618, %v4103
    %v4235 = vadd.f32 %v3716, %v4201
    %v4236 = vadd.f32 %v3621, %v4106
    %v4237 = vadd.f32 %v3719, %v4204
    %v4238 = vadd.f32 %v3623, %v4108
    %v4239 = vadd.f32 %v3721, %v4206
    %s4240 = scalar_lea.vmem [#allocation2], 24
    %v4241 = vld [vmem:[%s4240] sm:$0xff]
    %v4242 = vld [vmem:[%s4240 + $0x8] sm:$0xff]
    %v4243 = vld [vmem:[%s4240 + $0x10] sm:$0xff]
    %v4244 = vld [vmem:[%s4240 + $0x18] sm:$0xff]
    %v4245 = vld [vmem:[%s4240 + $0x20] sm:$0xff]
    %v4246 = vld [vmem:[%s4240 + $0x28] sm:$0xff]
    %v4247 = vld [vmem:[%s4240 + $0x30] sm:$0xff]
    %v4248 = vld [vmem:[%s4240 + $0x38] sm:$0xff]
    %v4249 = vld [vmem:[%s4240 + $0x40] sm:$0xff]
    %v4250 = vld [vmem:[%s4240 + $0x48] sm:$0xff]
    %v4251 = vld [vmem:[%s4240 + $0x50] sm:$0xff]
    %v4252 = vld [vmem:[%s4240 + $0x58] sm:$0xff]
    %v4253 = vld [vmem:[%s4240 + $0x60] sm:$0xff]
    %v4254 = vld [vmem:[%s4240 + $0x68] sm:$0xff]
    %v4255 = vld [vmem:[%s4240 + $0x70] sm:$0xff]
    %v4256 = vld [vmem:[%s4240 + $0x78] sm:$0xff]
    %s4257 = scalar_lea.vmem [#allocation6], 2048
    %v4258 = vld [vmem:[%s4257] sm:$0xff]
    %v4259 = vld [vmem:[%s4257 + $0x8] sm:$0xff]
    %v4260 = vld [vmem:[%s4257 + $0x10] sm:$0xff]
    %v4261 = vld [vmem:[%s4257 + $0x18] sm:$0xff]
    %v4262 = vld [vmem:[%s4257 + $0x20] sm:$0xff]
    %v4263 = vld [vmem:[%s4257 + $0x28] sm:$0xff]
    %v4264 = vld [vmem:[%s4257 + $0x30] sm:$0xff]
    %v4265 = vld [vmem:[%s4257 + $0x38] sm:$0xff]
    %v4266 = vld [vmem:[%s4257 + $0x40] sm:$0xff]
    %v4267 = vld [vmem:[%s4257 + $0x48] sm:$0xff]
    %v4268 = vld [vmem:[%s4257 + $0x50] sm:$0xff]
    %v4269 = vld [vmem:[%s4257 + $0x58] sm:$0xff]
    %v4270 = vld [vmem:[%s4257 + $0x60] sm:$0xff]
    %v4271 = vld [vmem:[%s4257 + $0x68] sm:$0xff]
    %v4272 = vld [vmem:[%s4257 + $0x70] sm:$0xff]
    %v4273 = vld [vmem:[%s4257 + $0x78] sm:$0xff]
    %v4274 = vld [vmem:[%s4257 + $0x80] sm:$0xff]
    %v4275 = vld [vmem:[%s4257 + $0x88] sm:$0xff]
    %v4276 = vld [vmem:[%s4257 + $0x90] sm:$0xff]
    %v4277 = vld [vmem:[%s4257 + $0x98] sm:$0xff]
    %v4278 = vld [vmem:[%s4257 + $0xa0] sm:$0xff]
    %v4279 = vld [vmem:[%s4257 + $0xa8] sm:$0xff]
    %v4280 = vld [vmem:[%s4257 + $0xb0] sm:$0xff]
    %v4281 = vld [vmem:[%s4257 + $0xb8] sm:$0xff]
    %v4282 = vld [vmem:[%s4257 + $0xc0] sm:$0xff]
    %v4283 = vld [vmem:[%s4257 + $0xc8] sm:$0xff]
    %v4284 = vld [vmem:[%s4257 + $0xd0] sm:$0xff]
    %v4285 = vld [vmem:[%s4257 + $0xd8] sm:$0xff]
    %v4286 = vld [vmem:[%s4257 + $0xe0] sm:$0xff]
    %v4287 = vld [vmem:[%s4257 + $0xe8] sm:$0xff]
    %v4288 = vld [vmem:[%s4257 + $0xf0] sm:$0xff]
    %v4289 = vld [vmem:[%s4257 + $0xf8] sm:$0xff]
    %v4306 = vunpack.c.l.b16 %v4241
    %v4307 = vunpack.c.h.b16 %v4241
    %v4308 = vunpack.c.l.b16 %v4242
    %v4309 = vunpack.c.h.b16 %v4242
    %v4310 = vunpack.c.l.b16 %v4243
    %v4311 = vunpack.c.h.b16 %v4243
    %v4312 = vunpack.c.l.b16 %v4244
    %v4313 = vunpack.c.h.b16 %v4244
    %v4314 = vunpack.c.l.b16 %v4245
    %v4315 = vunpack.c.h.b16 %v4245
    %v4316 = vunpack.c.l.b16 %v4246
    %v4317 = vunpack.c.h.b16 %v4246
    %v4318 = vunpack.c.l.b16 %v4247
    %v4319 = vunpack.c.h.b16 %v4247
    %v4320 = vunpack.c.l.b16 %v4248
    %v4321 = vunpack.c.h.b16 %v4248
    %v4322 = vunpack.c.l.b16 %v4249
    %v4323 = vunpack.c.h.b16 %v4249
    %v4324 = vunpack.c.l.b16 %v4250
    %v4325 = vunpack.c.h.b16 %v4250
    %v4326 = vunpack.c.l.b16 %v4251
    %v4327 = vunpack.c.h.b16 %v4251
    %v4328 = vunpack.c.l.b16 %v4252
    %v4329 = vunpack.c.h.b16 %v4252
    %v4330 = vunpack.c.l.b16 %v4253
    %v4331 = vunpack.c.h.b16 %v4253
    %v4332 = vunpack.c.l.b16 %v4254
    %v4333 = vunpack.c.h.b16 %v4254
    %v4334 = vunpack.c.l.b16 %v4255
    %v4335 = vunpack.c.h.b16 %v4255
    %v4336 = vunpack.c.l.b16 %v4256
    %v4337 = vunpack.c.h.b16 %v4256
    %v4338 = vpack.c.b16 %v4308, %v4306
    %v4339 = vpack.c.b16 %v4309, %v4307
    %v4340 = vpack.c.b16 %v4312, %v4310
    %v4341 = vpack.c.b16 %v4313, %v4311
    %v4342 = vpack.c.b16 %v4316, %v4314
    %v4343 = vpack.c.b16 %v4317, %v4315
    %v4344 = vpack.c.b16 %v4320, %v4318
    %v4345 = vpack.c.b16 %v4321, %v4319
    %v4346 = vpack.c.b16 %v4324, %v4322
    %v4347 = vpack.c.b16 %v4325, %v4323
    %v4348 = vpack.c.b16 %v4328, %v4326
    %v4349 = vpack.c.b16 %v4329, %v4327
    %v4350 = vpack.c.b16 %v4332, %v4330
    %v4351 = vpack.c.b16 %v4333, %v4331
    %v4352 = vpack.c.b16 %v4336, %v4334
    %v4353 = vpack.c.b16 %v4337, %v4335
    %v4402 = vunpack.c.l.b16 %v4258
    %v4403 = vunpack.c.h.b16 %v4258
    %v4404 = vunpack.c.l.b16 %v4259
    %v4405 = vunpack.c.h.b16 %v4259
    %v4406 = vunpack.c.l.b16 %v4260
    %v4407 = vunpack.c.h.b16 %v4260
    %v4408 = vunpack.c.l.b16 %v4261
    %v4409 = vunpack.c.h.b16 %v4261
    %v4410 = vunpack.c.l.b16 %v4262
    %v4411 = vunpack.c.h.b16 %v4262
    %v4412 = vunpack.c.l.b16 %v4263
    %v4413 = vunpack.c.h.b16 %v4263
    %v4414 = vunpack.c.l.b16 %v4264
    %v4415 = vunpack.c.h.b16 %v4264
    %v4416 = vunpack.c.l.b16 %v4265
    %v4417 = vunpack.c.h.b16 %v4265
    %v4418 = vunpack.c.l.b16 %v4266
    %v4419 = vunpack.c.h.b16 %v4266
    %v4420 = vunpack.c.l.b16 %v4267
    %v4421 = vunpack.c.h.b16 %v4267
    %v4422 = vunpack.c.l.b16 %v4268
    %v4423 = vunpack.c.h.b16 %v4268
    %v4424 = vunpack.c.l.b16 %v4269
    %v4425 = vunpack.c.h.b16 %v4269
    %v4426 = vunpack.c.l.b16 %v4270
    %v4427 = vunpack.c.h.b16 %v4270
    %v4428 = vunpack.c.l.b16 %v4271
    %v4429 = vunpack.c.h.b16 %v4271
    %v4430 = vunpack.c.l.b16 %v4272
    %v4431 = vunpack.c.h.b16 %v4272
    %v4432 = vunpack.c.l.b16 %v4273
    %v4433 = vunpack.c.h.b16 %v4273
    %v4434 = vunpack.c.l.b16 %v4274
    %v4435 = vunpack.c.h.b16 %v4274
    %v4436 = vunpack.c.l.b16 %v4275
    %v4437 = vunpack.c.h.b16 %v4275
    %v4438 = vunpack.c.l.b16 %v4276
    %v4439 = vunpack.c.h.b16 %v4276
    %v4440 = vunpack.c.l.b16 %v4277
    %v4441 = vunpack.c.h.b16 %v4277
    %v4442 = vunpack.c.l.b16 %v4278
    %v4443 = vunpack.c.h.b16 %v4278
    %v4444 = vunpack.c.l.b16 %v4279
    %v4445 = vunpack.c.h.b16 %v4279
    %v4446 = vunpack.c.l.b16 %v4280
    %v4447 = vunpack.c.h.b16 %v4280
    %v4448 = vunpack.c.l.b16 %v4281
    %v4449 = vunpack.c.h.b16 %v4281
    %v4450 = vunpack.c.l.b16 %v4282
    %v4451 = vunpack.c.h.b16 %v4282
    %v4452 = vunpack.c.l.b16 %v4283
    %v4453 = vunpack.c.h.b16 %v4283
    %v4454 = vunpack.c.l.b16 %v4284
    %v4455 = vunpack.c.h.b16 %v4284
    %v4456 = vunpack.c.l.b16 %v4285
    %v4457 = vunpack.c.h.b16 %v4285
    %v4458 = vunpack.c.l.b16 %v4286
    %v4459 = vunpack.c.h.b16 %v4286
    %v4460 = vunpack.c.l.b16 %v4287
    %v4461 = vunpack.c.h.b16 %v4287
    %v4462 = vunpack.c.l.b16 %v4288
    %v4463 = vunpack.c.h.b16 %v4288
    %v4464 = vunpack.c.l.b16 %v4289
    %v4465 = vunpack.c.h.b16 %v4289
    %v4466 = vpack.c.b16 %v4404, %v4402
    %v4467 = vpack.c.b16 %v4405, %v4403
    %v4468 = vpack.c.b16 %v4408, %v4406
    %v4469 = vpack.c.b16 %v4409, %v4407
    %v4470 = vpack.c.b16 %v4412, %v4410
    %v4471 = vpack.c.b16 %v4413, %v4411
    %v4472 = vpack.c.b16 %v4416, %v4414
    %v4473 = vpack.c.b16 %v4417, %v4415
    %v4474 = vpack.c.b16 %v4420, %v4418
    %v4475 = vpack.c.b16 %v4421, %v4419
    %v4476 = vpack.c.b16 %v4424, %v4422
    %v4477 = vpack.c.b16 %v4425, %v4423
    %v4478 = vpack.c.b16 %v4428, %v4426
    %v4479 = vpack.c.b16 %v4429, %v4427
    %v4480 = vpack.c.b16 %v4432, %v4430
    %v4481 = vpack.c.b16 %v4433, %v4431
    %v4482 = vpack.c.b16 %v4436, %v4434
    %v4483 = vpack.c.b16 %v4437, %v4435
    %v4484 = vpack.c.b16 %v4440, %v4438
    %v4485 = vpack.c.b16 %v4441, %v4439
    %v4486 = vpack.c.b16 %v4444, %v4442
    %v4487 = vpack.c.b16 %v4445, %v4443
    %v4488 = vpack.c.b16 %v4448, %v4446
    %v4489 = vpack.c.b16 %v4449, %v4447
    %v4490 = vpack.c.b16 %v4452, %v4450
    %v4491 = vpack.c.b16 %v4453, %v4451
    %v4492 = vpack.c.b16 %v4456, %v4454
    %v4493 = vpack.c.b16 %v4457, %v4455
    %v4494 = vpack.c.b16 %v4460, %v4458
    %v4495 = vpack.c.b16 %v4461, %v4459
    %v4496 = vpack.c.b16 %v4464, %v4462
    %v4497 = vpack.c.b16 %v4465, %v4463
    %4530 = vmatpush.bf16.msra.mxu0 %v4480
    %4531 = vmatpush.bf16.msra.mxu0 %v4478
    %4532 = vmatpush.bf16.msra.mxu0 %v4476
    %4533 = vmatpush.bf16.msra.mxu0 %v4474
    %4534 = vmatpush.bf16.msra.mxu0 %v4472
    %4535 = vmatpush.bf16.msra.mxu0 %v4470
    %4536 = vmatpush.bf16.msra.mxu0 %v4468
    %4537 = vmatpush.bf16.msra.mxu0 %v4466
    %4538 = vmatmul.bf16.gmra.mxu0 %v4338
    %v4539 = vpop.f32.mrf.mxu0
    %v4540 = vadd.f32 0.0, %v4539
    %v4541 = vpop.f32.mrf.mxu0
    %v4542 = vadd.f32 0.0, %v4541
    %4543 = vmatmul.bf16.gmra.mxu0 %v4340
    %v4544 = vpop.f32.mrf.mxu0
    %v4545 = vadd.f32 0.0, %v4544
    %v4546 = vpop.f32.mrf.mxu0
    %v4547 = vadd.f32 0.0, %v4546
    %4548 = vmatmul.bf16.gmra.mxu0 %v4342
    %v4549 = vpop.f32.mrf.mxu0
    %v4550 = vadd.f32 0.0, %v4549
    %v4551 = vpop.f32.mrf.mxu0
    %v4552 = vadd.f32 0.0, %v4551
    %4553 = vmatmul.bf16.gmra.mxu0 %v4344
    %v4554 = vpop.f32.mrf.mxu0
    %v4555 = vadd.f32 0.0, %v4554
    %v4556 = vpop.f32.mrf.mxu0
    %v4557 = vadd.f32 0.0, %v4556
    %4558 = vmatmul.bf16.gmra.mxu0 %v4346
    %v4559 = vpop.f32.mrf.mxu0
    %v4560 = vadd.f32 0.0, %v4559
    %v4561 = vpop.f32.mrf.mxu0
    %v4562 = vadd.f32 0.0, %v4561
    %4563 = vmatmul.bf16.gmra.mxu0 %v4348
    %v4564 = vpop.f32.mrf.mxu0
    %v4565 = vadd.f32 0.0, %v4564
    %v4566 = vpop.f32.mrf.mxu0
    %v4567 = vadd.f32 0.0, %v4566
    %4568 = vmatmul.bf16.gmra.mxu0 %v4350
    %v4569 = vpop.f32.mrf.mxu0
    %v4570 = vadd.f32 0.0, %v4569
    %v4571 = vpop.f32.mrf.mxu0
    %v4572 = vadd.f32 0.0, %v4571
    %4573 = vmatmul.bf16.gmra.mxu0 %v4352
    %v4574 = vpop.f32.mrf.mxu0
    %v4575 = vadd.f32 0.0, %v4574
    %v4576 = vpop.f32.mrf.mxu0
    %v4577 = vadd.f32 0.0, %v4576
    %4578 = vdwg.mxu0
    %4579 = vmatpush.bf16.msra.mxu0 %v4496
    %4580 = vmatpush.bf16.msra.mxu0 %v4494
    %4581 = vmatpush.bf16.msra.mxu0 %v4492
    %4582 = vmatpush.bf16.msra.mxu0 %v4490
    %4583 = vmatpush.bf16.msra.mxu0 %v4488
    %4584 = vmatpush.bf16.msra.mxu0 %v4486
    %4585 = vmatpush.bf16.msra.mxu0 %v4484
    %4586 = vmatpush.bf16.msra.mxu0 %v4482
    %4587 = vmatmul.bf16.gmra.mxu0 %v4339
    %v4588 = vpop.f32.mrf.mxu0
    %v4589 = vadd.f32 %v4540, %v4588
    %v4590 = vpop.f32.mrf.mxu0
    %v4591 = vadd.f32 %v4542, %v4590
    %4592 = vmatmul.bf16.gmra.mxu0 %v4341
    %v4593 = vpop.f32.mrf.mxu0
    %v4594 = vadd.f32 %v4545, %v4593
    %v4595 = vpop.f32.mrf.mxu0
    %v4596 = vadd.f32 %v4547, %v4595
    %4597 = vmatmul.bf16.gmra.mxu0 %v4343
    %v4598 = vpop.f32.mrf.mxu0
    %v4599 = vadd.f32 %v4550, %v4598
    %v4600 = vpop.f32.mrf.mxu0
    %v4601 = vadd.f32 %v4552, %v4600
    %4602 = vmatmul.bf16.gmra.mxu0 %v4345
    %v4603 = vpop.f32.mrf.mxu0
    %v4604 = vadd.f32 %v4555, %v4603
    %v4605 = vpop.f32.mrf.mxu0
    %v4606 = vadd.f32 %v4557, %v4605
    %4607 = vmatmul.bf16.gmra.mxu0 %v4347
    %v4608 = vpop.f32.mrf.mxu0
    %v4609 = vadd.f32 %v4560, %v4608
    %v4610 = vpop.f32.mrf.mxu0
    %v4611 = vadd.f32 %v4562, %v4610
    %4612 = vmatmul.bf16.gmra.mxu0 %v4349
    %v4613 = vpop.f32.mrf.mxu0
    %v4614 = vadd.f32 %v4565, %v4613
    %v4615 = vpop.f32.mrf.mxu0
    %v4616 = vadd.f32 %v4567, %v4615
    %4617 = vmatmul.bf16.gmra.mxu0 %v4351
    %v4618 = vpop.f32.mrf.mxu0
    %v4619 = vadd.f32 %v4570, %v4618
    %v4620 = vpop.f32.mrf.mxu0
    %v4621 = vadd.f32 %v4572, %v4620
    %4622 = vmatmul.bf16.gmra.mxu0 %v4353
    %v4623 = vpop.f32.mrf.mxu0
    %v4624 = vadd.f32 %v4575, %v4623
    %v4625 = vpop.f32.mrf.mxu0
    %v4626 = vadd.f32 %v4577, %v4625
    %4627 = vdwg.mxu0
    %4628 = vmatpush.bf16.msra.mxu0 %v4481
    %4629 = vmatpush.bf16.msra.mxu0 %v4479
    %4630 = vmatpush.bf16.msra.mxu0 %v4477
    %4631 = vmatpush.bf16.msra.mxu0 %v4475
    %4632 = vmatpush.bf16.msra.mxu0 %v4473
    %4633 = vmatpush.bf16.msra.mxu0 %v4471
    %4634 = vmatpush.bf16.msra.mxu0 %v4469
    %4635 = vmatpush.bf16.msra.mxu0 %v4467
    %4636 = vmatmul.bf16.gmra.mxu0 %v4338
    %v4637 = vpop.f32.mrf.mxu0
    %v4638 = vadd.f32 0.0, %v4637
    %v4639 = vpop.f32.mrf.mxu0
    %v4640 = vadd.f32 0.0, %v4639
    %4641 = vmatmul.bf16.gmra.mxu0 %v4340
    %v4642 = vpop.f32.mrf.mxu0
    %v4643 = vadd.f32 0.0, %v4642
    %v4644 = vpop.f32.mrf.mxu0
    %v4645 = vadd.f32 0.0, %v4644
    %4646 = vmatmul.bf16.gmra.mxu0 %v4342
    %v4647 = vpop.f32.mrf.mxu0
    %v4648 = vadd.f32 0.0, %v4647
    %v4649 = vpop.f32.mrf.mxu0
    %v4650 = vadd.f32 0.0, %v4649
    %4651 = vmatmul.bf16.gmra.mxu0 %v4344
    %v4652 = vpop.f32.mrf.mxu0
    %v4653 = vadd.f32 0.0, %v4652
    %v4654 = vpop.f32.mrf.mxu0
    %v4655 = vadd.f32 0.0, %v4654
    %4656 = vmatmul.bf16.gmra.mxu0 %v4346
    %v4657 = vpop.f32.mrf.mxu0
    %v4658 = vadd.f32 0.0, %v4657
    %v4659 = vpop.f32.mrf.mxu0
    %v4660 = vadd.f32 0.0, %v4659
    %4661 = vmatmul.bf16.gmra.mxu0 %v4348
    %v4662 = vpop.f32.mrf.mxu0
    %v4663 = vadd.f32 0.0, %v4662
    %v4664 = vpop.f32.mrf.mxu0
    %v4665 = vadd.f32 0.0, %v4664
    %4666 = vmatmul.bf16.gmra.mxu0 %v4350
    %v4667 = vpop.f32.mrf.mxu0
    %v4668 = vadd.f32 0.0, %v4667
    %v4669 = vpop.f32.mrf.mxu0
    %v4670 = vadd.f32 0.0, %v4669
    %4671 = vmatmul.bf16.gmra.mxu0 %v4352
    %v4672 = vpop.f32.mrf.mxu0
    %v4673 = vadd.f32 0.0, %v4672
    %v4674 = vpop.f32.mrf.mxu0
    %v4675 = vadd.f32 0.0, %v4674
    %4676 = vdwg.mxu0
    %4677 = vmatpush.bf16.msra.mxu0 %v4497
    %4678 = vmatpush.bf16.msra.mxu0 %v4495
    %4679 = vmatpush.bf16.msra.mxu0 %v4493
    %4680 = vmatpush.bf16.msra.mxu0 %v4491
    %4681 = vmatpush.bf16.msra.mxu0 %v4489
    %4682 = vmatpush.bf16.msra.mxu0 %v4487
    %4683 = vmatpush.bf16.msra.mxu0 %v4485
    %4684 = vmatpush.bf16.msra.mxu0 %v4483
    %4685 = vmatmul.bf16.gmra.mxu0 %v4339
    %v4686 = vpop.f32.mrf.mxu0
    %v4687 = vadd.f32 %v4638, %v4686
    %v4688 = vpop.f32.mrf.mxu0
    %v4689 = vadd.f32 %v4640, %v4688
    %4690 = vmatmul.bf16.gmra.mxu0 %v4341
    %v4691 = vpop.f32.mrf.mxu0
    %v4692 = vadd.f32 %v4643, %v4691
    %v4693 = vpop.f32.mrf.mxu0
    %v4694 = vadd.f32 %v4645, %v4693
    %4695 = vmatmul.bf16.gmra.mxu0 %v4343
    %v4696 = vpop.f32.mrf.mxu0
    %v4697 = vadd.f32 %v4648, %v4696
    %v4698 = vpop.f32.mrf.mxu0
    %v4699 = vadd.f32 %v4650, %v4698
    %4700 = vmatmul.bf16.gmra.mxu0 %v4345
    %v4701 = vpop.f32.mrf.mxu0
    %v4702 = vadd.f32 %v4653, %v4701
    %v4703 = vpop.f32.mrf.mxu0
    %v4704 = vadd.f32 %v4655, %v4703
    %4705 = vmatmul.bf16.gmra.mxu0 %v4347
    %v4706 = vpop.f32.mrf.mxu0
    %v4707 = vadd.f32 %v4658, %v4706
    %v4708 = vpop.f32.mrf.mxu0
    %v4709 = vadd.f32 %v4660, %v4708
    %4710 = vmatmul.bf16.gmra.mxu0 %v4349
    %v4711 = vpop.f32.mrf.mxu0
    %v4712 = vadd.f32 %v4663, %v4711
    %v4713 = vpop.f32.mrf.mxu0
    %v4714 = vadd.f32 %v4665, %v4713
    %4715 = vmatmul.bf16.gmra.mxu0 %v4351
    %v4716 = vpop.f32.mrf.mxu0
    %v4717 = vadd.f32 %v4668, %v4716
    %v4718 = vpop.f32.mrf.mxu0
    %v4719 = vadd.f32 %v4670, %v4718
    %4720 = vmatmul.bf16.gmra.mxu0 %v4353
    %v4721 = vpop.f32.mrf.mxu0
    %v4722 = vadd.f32 %v4673, %v4721
    %v4723 = vpop.f32.mrf.mxu0
    %v4724 = vadd.f32 %v4675, %v4723
    %4725 = vdwg.mxu0
    %v4726 = vadd.f32 %v4208, %v4589
    %v4727 = vadd.f32 %v4209, %v4687
    %v4728 = vadd.f32 %v4210, %v4591
    %v4729 = vadd.f32 %v4211, %v4689
    %v4730 = vadd.f32 %v4212, %v4594
    %v4731 = vadd.f32 %v4213, %v4692
    %v4732 = vadd.f32 %v4214, %v4596
    %v4733 = vadd.f32 %v4215, %v4694
    %v4734 = vadd.f32 %v4216, %v4599
    %v4735 = vadd.f32 %v4217, %v4697
    %v4736 = vadd.f32 %v4218, %v4601
    %v4737 = vadd.f32 %v4219, %v4699
    %v4738 = vadd.f32 %v4220, %v4604
    %v4739 = vadd.f32 %v4221, %v4702
    %v4740 = vadd.f32 %v4222, %v4606
    %v4741 = vadd.f32 %v4223, %v4704
    %v4742 = vadd.f32 %v4224, %v4609
    %v4743 = vadd.f32 %v4225, %v4707
    %v4744 = vadd.f32 %v4226, %v4611
    %v4745 = vadd.f32 %v4227, %v4709
    %v4746 = vadd.f32 %v4228, %v4614
    %v4747 = vadd.f32 %v4229, %v4712
    %v4748 = vadd.f32 %v4230, %v4616
    %v4749 = vadd.f32 %v4231, %v4714
    %v4750 = vadd.f32 %v4232, %v4619
    %v4751 = vadd.f32 %v4233, %v4717
    %v4752 = vadd.f32 %v4234, %v4621
    %v4753 = vadd.f32 %v4235, %v4719
    %v4754 = vadd.f32 %v4236, %v4624
    %v4755 = vadd.f32 %v4237, %v4722
    %v4756 = vadd.f32 %v4238, %v4626
    %v4757 = vadd.f32 %v4239, %v4724
    %s4758 = scalar_lea.vmem [#allocation2], 32
    %v4759 = vld [vmem:[%s4758] sm:$0xff]
    %v4760 = vld [vmem:[%s4758 + $0x8] sm:$0xff]
    %v4761 = vld [vmem:[%s4758 + $0x10] sm:$0xff]
    %v4762 = vld [vmem:[%s4758 + $0x18] sm:$0xff]
    %v4763 = vld [vmem:[%s4758 + $0x20] sm:$0xff]
    %v4764 = vld [vmem:[%s4758 + $0x28] sm:$0xff]
    %v4765 = vld [vmem:[%s4758 + $0x30] sm:$0xff]
    %v4766 = vld [vmem:[%s4758 + $0x38] sm:$0xff]
    %v4767 = vld [vmem:[%s4758 + $0x40] sm:$0xff]
    %v4768 = vld [vmem:[%s4758 + $0x48] sm:$0xff]
    %v4769 = vld [vmem:[%s4758 + $0x50] sm:$0xff]
    %v4770 = vld [vmem:[%s4758 + $0x58] sm:$0xff]
    %v4771 = vld [vmem:[%s4758 + $0x60] sm:$0xff]
    %v4772 = vld [vmem:[%s4758 + $0x68] sm:$0xff]
    %v4773 = vld [vmem:[%s4758 + $0x70] sm:$0xff]
    %v4774 = vld [vmem:[%s4758 + $0x78] sm:$0xff]
    %s4775 = scalar_lea.vmem [#allocation6], 2304
    %v4776 = vld [vmem:[%s4775] sm:$0xff]
    %v4777 = vld [vmem:[%s4775 + $0x8] sm:$0xff]
    %v4778 = vld [vmem:[%s4775 + $0x10] sm:$0xff]
    %v4779 = vld [vmem:[%s4775 + $0x18] sm:$0xff]
    %v4780 = vld [vmem:[%s4775 + $0x20] sm:$0xff]
    %v4781 = vld [vmem:[%s4775 + $0x28] sm:$0xff]
    %v4782 = vld [vmem:[%s4775 + $0x30] sm:$0xff]
    %v4783 = vld [vmem:[%s4775 + $0x38] sm:$0xff]
    %v4784 = vld [vmem:[%s4775 + $0x40] sm:$0xff]
    %v4785 = vld [vmem:[%s4775 + $0x48] sm:$0xff]
    %v4786 = vld [vmem:[%s4775 + $0x50] sm:$0xff]
    %v4787 = vld [vmem:[%s4775 + $0x58] sm:$0xff]
    %v4788 = vld [vmem:[%s4775 + $0x60] sm:$0xff]
    %v4789 = vld [vmem:[%s4775 + $0x68] sm:$0xff]
    %v4790 = vld [vmem:[%s4775 + $0x70] sm:$0xff]
    %v4791 = vld [vmem:[%s4775 + $0x78] sm:$0xff]
    %v4792 = vld [vmem:[%s4775 + $0x80] sm:$0xff]
    %v4793 = vld [vmem:[%s4775 + $0x88] sm:$0xff]
    %v4794 = vld [vmem:[%s4775 + $0x90] sm:$0xff]
    %v4795 = vld [vmem:[%s4775 + $0x98] sm:$0xff]
    %v4796 = vld [vmem:[%s4775 + $0xa0] sm:$0xff]
    %v4797 = vld [vmem:[%s4775 + $0xa8] sm:$0xff]
    %v4798 = vld [vmem:[%s4775 + $0xb0] sm:$0xff]
    %v4799 = vld [vmem:[%s4775 + $0xb8] sm:$0xff]
    %v4800 = vld [vmem:[%s4775 + $0xc0] sm:$0xff]
    %v4801 = vld [vmem:[%s4775 + $0xc8] sm:$0xff]
    %v4802 = vld [vmem:[%s4775 + $0xd0] sm:$0xff]
    %v4803 = vld [vmem:[%s4775 + $0xd8] sm:$0xff]
    %v4804 = vld [vmem:[%s4775 + $0xe0] sm:$0xff]
    %v4805 = vld [vmem:[%s4775 + $0xe8] sm:$0xff]
    %v4806 = vld [vmem:[%s4775 + $0xf0] sm:$0xff]
    %v4807 = vld [vmem:[%s4775 + $0xf8] sm:$0xff]
    %v4824 = vunpack.c.l.b16 %v4759
    %v4825 = vunpack.c.h.b16 %v4759
    %v4826 = vunpack.c.l.b16 %v4760
    %v4827 = vunpack.c.h.b16 %v4760
    %v4828 = vunpack.c.l.b16 %v4761
    %v4829 = vunpack.c.h.b16 %v4761
    %v4830 = vunpack.c.l.b16 %v4762
    %v4831 = vunpack.c.h.b16 %v4762
    %v4832 = vunpack.c.l.b16 %v4763
    %v4833 = vunpack.c.h.b16 %v4763
    %v4834 = vunpack.c.l.b16 %v4764
    %v4835 = vunpack.c.h.b16 %v4764
    %v4836 = vunpack.c.l.b16 %v4765
    %v4837 = vunpack.c.h.b16 %v4765
    %v4838 = vunpack.c.l.b16 %v4766
    %v4839 = vunpack.c.h.b16 %v4766
    %v4840 = vunpack.c.l.b16 %v4767
    %v4841 = vunpack.c.h.b16 %v4767
    %v4842 = vunpack.c.l.b16 %v4768
    %v4843 = vunpack.c.h.b16 %v4768
    %v4844 = vunpack.c.l.b16 %v4769
    %v4845 = vunpack.c.h.b16 %v4769
    %v4846 = vunpack.c.l.b16 %v4770
    %v4847 = vunpack.c.h.b16 %v4770
    %v4848 = vunpack.c.l.b16 %v4771
    %v4849 = vunpack.c.h.b16 %v4771
    %v4850 = vunpack.c.l.b16 %v4772
    %v4851 = vunpack.c.h.b16 %v4772
    %v4852 = vunpack.c.l.b16 %v4773
    %v4853 = vunpack.c.h.b16 %v4773
    %v4854 = vunpack.c.l.b16 %v4774
    %v4855 = vunpack.c.h.b16 %v4774
    %v4856 = vpack.c.b16 %v4826, %v4824
    %v4857 = vpack.c.b16 %v4827, %v4825
    %v4858 = vpack.c.b16 %v4830, %v4828
    %v4859 = vpack.c.b16 %v4831, %v4829
    %v4860 = vpack.c.b16 %v4834, %v4832
    %v4861 = vpack.c.b16 %v4835, %v4833
    %v4862 = vpack.c.b16 %v4838, %v4836
    %v4863 = vpack.c.b16 %v4839, %v4837
    %v4864 = vpack.c.b16 %v4842, %v4840
    %v4865 = vpack.c.b16 %v4843, %v4841
    %v4866 = vpack.c.b16 %v4846, %v4844
    %v4867 = vpack.c.b16 %v4847, %v4845
    %v4868 = vpack.c.b16 %v4850, %v4848
    %v4869 = vpack.c.b16 %v4851, %v4849
    %v4870 = vpack.c.b16 %v4854, %v4852
    %v4871 = vpack.c.b16 %v4855, %v4853
    %v4920 = vunpack.c.l.b16 %v4776
    %v4921 = vunpack.c.h.b16 %v4776
    %v4922 = vunpack.c.l.b16 %v4777
    %v4923 = vunpack.c.h.b16 %v4777
    %v4924 = vunpack.c.l.b16 %v4778
    %v4925 = vunpack.c.h.b16 %v4778
    %v4926 = vunpack.c.l.b16 %v4779
    %v4927 = vunpack.c.h.b16 %v4779
    %v4928 = vunpack.c.l.b16 %v4780
    %v4929 = vunpack.c.h.b16 %v4780
    %v4930 = vunpack.c.l.b16 %v4781
    %v4931 = vunpack.c.h.b16 %v4781
    %v4932 = vunpack.c.l.b16 %v4782
    %v4933 = vunpack.c.h.b16 %v4782
    %v4934 = vunpack.c.l.b16 %v4783
    %v4935 = vunpack.c.h.b16 %v4783
    %v4936 = vunpack.c.l.b16 %v4784
    %v4937 = vunpack.c.h.b16 %v4784
    %v4938 = vunpack.c.l.b16 %v4785
    %v4939 = vunpack.c.h.b16 %v4785
    %v4940 = vunpack.c.l.b16 %v4786
    %v4941 = vunpack.c.h.b16 %v4786
    %v4942 = vunpack.c.l.b16 %v4787
    %v4943 = vunpack.c.h.b16 %v4787
    %v4944 = vunpack.c.l.b16 %v4788
    %v4945 = vunpack.c.h.b16 %v4788
    %v4946 = vunpack.c.l.b16 %v4789
    %v4947 = vunpack.c.h.b16 %v4789
    %v4948 = vunpack.c.l.b16 %v4790
    %v4949 = vunpack.c.h.b16 %v4790
    %v4950 = vunpack.c.l.b16 %v4791
    %v4951 = vunpack.c.h.b16 %v4791
    %v4952 = vunpack.c.l.b16 %v4792
    %v4953 = vunpack.c.h.b16 %v4792
    %v4954 = vunpack.c.l.b16 %v4793
    %v4955 = vunpack.c.h.b16 %v4793
    %v4956 = vunpack.c.l.b16 %v4794
    %v4957 = vunpack.c.h.b16 %v4794
    %v4958 = vunpack.c.l.b16 %v4795
    %v4959 = vunpack.c.h.b16 %v4795
    %v4960 = vunpack.c.l.b16 %v4796
    %v4961 = vunpack.c.h.b16 %v4796
    %v4962 = vunpack.c.l.b16 %v4797
    %v4963 = vunpack.c.h.b16 %v4797
    %v4964 = vunpack.c.l.b16 %v4798
    %v4965 = vunpack.c.h.b16 %v4798
    %v4966 = vunpack.c.l.b16 %v4799
    %v4967 = vunpack.c.h.b16 %v4799
    %v4968 = vunpack.c.l.b16 %v4800
    %v4969 = vunpack.c.h.b16 %v4800
    %v4970 = vunpack.c.l.b16 %v4801
    %v4971 = vunpack.c.h.b16 %v4801
    %v4972 = vunpack.c.l.b16 %v4802
    %v4973 = vunpack.c.h.b16 %v4802
    %v4974 = vunpack.c.l.b16 %v4803
    %v4975 = vunpack.c.h.b16 %v4803
    %v4976 = vunpack.c.l.b16 %v4804
    %v4977 = vunpack.c.h.b16 %v4804
    %v4978 = vunpack.c.l.b16 %v4805
    %v4979 = vunpack.c.h.b16 %v4805
    %v4980 = vunpack.c.l.b16 %v4806
    %v4981 = vunpack.c.h.b16 %v4806
    %v4982 = vunpack.c.l.b16 %v4807
    %v4983 = vunpack.c.h.b16 %v4807
    %v4984 = vpack.c.b16 %v4922, %v4920
    %v4985 = vpack.c.b16 %v4923, %v4921
    %v4986 = vpack.c.b16 %v4926, %v4924
    %v4987 = vpack.c.b16 %v4927, %v4925
    %v4988 = vpack.c.b16 %v4930, %v4928
    %v4989 = vpack.c.b16 %v4931, %v4929
    %v4990 = vpack.c.b16 %v4934, %v4932
    %v4991 = vpack.c.b16 %v4935, %v4933
    %v4992 = vpack.c.b16 %v4938, %v4936
    %v4993 = vpack.c.b16 %v4939, %v4937
    %v4994 = vpack.c.b16 %v4942, %v4940
    %v4995 = vpack.c.b16 %v4943, %v4941
    %v4996 = vpack.c.b16 %v4946, %v4944
    %v4997 = vpack.c.b16 %v4947, %v4945
    %v4998 = vpack.c.b16 %v4950, %v4948
    %v4999 = vpack.c.b16 %v4951, %v4949
    %v5000 = vpack.c.b16 %v4954, %v4952
    %v5001 = vpack.c.b16 %v4955, %v4953
    %v5002 = vpack.c.b16 %v4958, %v4956
    %v5003 = vpack.c.b16 %v4959, %v4957
    %v5004 = vpack.c.b16 %v4962, %v4960
    %v5005 = vpack.c.b16 %v4963, %v4961
    %v5006 = vpack.c.b16 %v4966, %v4964
    %v5007 = vpack.c.b16 %v4967, %v4965
    %v5008 = vpack.c.b16 %v4970, %v4968
    %v5009 = vpack.c.b16 %v4971, %v4969
    %v5010 = vpack.c.b16 %v4974, %v4972
    %v5011 = vpack.c.b16 %v4975, %v4973
    %v5012 = vpack.c.b16 %v4978, %v4976
    %v5013 = vpack.c.b16 %v4979, %v4977
    %v5014 = vpack.c.b16 %v4982, %v4980
    %v5015 = vpack.c.b16 %v4983, %v4981
    %5048 = vmatpush.bf16.msra.mxu0 %v4998
    %5049 = vmatpush.bf16.msra.mxu0 %v4996
    %5050 = vmatpush.bf16.msra.mxu0 %v4994
    %5051 = vmatpush.bf16.msra.mxu0 %v4992
    %5052 = vmatpush.bf16.msra.mxu0 %v4990
    %5053 = vmatpush.bf16.msra.mxu0 %v4988
    %5054 = vmatpush.bf16.msra.mxu0 %v4986
    %5055 = vmatpush.bf16.msra.mxu0 %v4984
    %5056 = vmatmul.bf16.gmra.mxu0 %v4856
    %v5057 = vpop.f32.mrf.mxu0
    %v5058 = vadd.f32 0.0, %v5057
    %v5059 = vpop.f32.mrf.mxu0
    %v5060 = vadd.f32 0.0, %v5059
    %5061 = vmatmul.bf16.gmra.mxu0 %v4858
    %v5062 = vpop.f32.mrf.mxu0
    %v5063 = vadd.f32 0.0, %v5062
    %v5064 = vpop.f32.mrf.mxu0
    %v5065 = vadd.f32 0.0, %v5064
    %5066 = vmatmul.bf16.gmra.mxu0 %v4860
    %v5067 = vpop.f32.mrf.mxu0
    %v5068 = vadd.f32 0.0, %v5067
    %v5069 = vpop.f32.mrf.mxu0
    %v5070 = vadd.f32 0.0, %v5069
    %5071 = vmatmul.bf16.gmra.mxu0 %v4862
    %v5072 = vpop.f32.mrf.mxu0
    %v5073 = vadd.f32 0.0, %v5072
    %v5074 = vpop.f32.mrf.mxu0
    %v5075 = vadd.f32 0.0, %v5074
    %5076 = vmatmul.bf16.gmra.mxu0 %v4864
    %v5077 = vpop.f32.mrf.mxu0
    %v5078 = vadd.f32 0.0, %v5077
    %v5079 = vpop.f32.mrf.mxu0
    %v5080 = vadd.f32 0.0, %v5079
    %5081 = vmatmul.bf16.gmra.mxu0 %v4866
    %v5082 = vpop.f32.mrf.mxu0
    %v5083 = vadd.f32 0.0, %v5082
    %v5084 = vpop.f32.mrf.mxu0
    %v5085 = vadd.f32 0.0, %v5084
    %5086 = vmatmul.bf16.gmra.mxu0 %v4868
    %v5087 = vpop.f32.mrf.mxu0
    %v5088 = vadd.f32 0.0, %v5087
    %v5089 = vpop.f32.mrf.mxu0
    %v5090 = vadd.f32 0.0, %v5089
    %5091 = vmatmul.bf16.gmra.mxu0 %v4870
    %v5092 = vpop.f32.mrf.mxu0
    %v5093 = vadd.f32 0.0, %v5092
    %v5094 = vpop.f32.mrf.mxu0
    %v5095 = vadd.f32 0.0, %v5094
    %5096 = vdwg.mxu0
    %5097 = vmatpush.bf16.msra.mxu0 %v5014
    %5098 = vmatpush.bf16.msra.mxu0 %v5012
    %5099 = vmatpush.bf16.msra.mxu0 %v5010
    %5100 = vmatpush.bf16.msra.mxu0 %v5008
    %5101 = vmatpush.bf16.msra.mxu0 %v5006
    %5102 = vmatpush.bf16.msra.mxu0 %v5004
    %5103 = vmatpush.bf16.msra.mxu0 %v5002
    %5104 = vmatpush.bf16.msra.mxu0 %v5000
    %5105 = vmatmul.bf16.gmra.mxu0 %v4857
    %v5106 = vpop.f32.mrf.mxu0
    %v5107 = vadd.f32 %v5058, %v5106
    %v5108 = vpop.f32.mrf.mxu0
    %v5109 = vadd.f32 %v5060, %v5108
    %5110 = vmatmul.bf16.gmra.mxu0 %v4859
    %v5111 = vpop.f32.mrf.mxu0
    %v5112 = vadd.f32 %v5063, %v5111
    %v5113 = vpop.f32.mrf.mxu0
    %v5114 = vadd.f32 %v5065, %v5113
    %5115 = vmatmul.bf16.gmra.mxu0 %v4861
    %v5116 = vpop.f32.mrf.mxu0
    %v5117 = vadd.f32 %v5068, %v5116
    %v5118 = vpop.f32.mrf.mxu0
    %v5119 = vadd.f32 %v5070, %v5118
    %5120 = vmatmul.bf16.gmra.mxu0 %v4863
    %v5121 = vpop.f32.mrf.mxu0
    %v5122 = vadd.f32 %v5073, %v5121
    %v5123 = vpop.f32.mrf.mxu0
    %v5124 = vadd.f32 %v5075, %v5123
    %5125 = vmatmul.bf16.gmra.mxu0 %v4865
    %v5126 = vpop.f32.mrf.mxu0
    %v5127 = vadd.f32 %v5078, %v5126
    %v5128 = vpop.f32.mrf.mxu0
    %v5129 = vadd.f32 %v5080, %v5128
    %5130 = vmatmul.bf16.gmra.mxu0 %v4867
    %v5131 = vpop.f32.mrf.mxu0
    %v5132 = vadd.f32 %v5083, %v5131
    %v5133 = vpop.f32.mrf.mxu0
    %v5134 = vadd.f32 %v5085, %v5133
    %5135 = vmatmul.bf16.gmra.mxu0 %v4869
    %v5136 = vpop.f32.mrf.mxu0
    %v5137 = vadd.f32 %v5088, %v5136
    %v5138 = vpop.f32.mrf.mxu0
    %v5139 = vadd.f32 %v5090, %v5138
    %5140 = vmatmul.bf16.gmra.mxu0 %v4871
    %v5141 = vpop.f32.mrf.mxu0
    %v5142 = vadd.f32 %v5093, %v5141
    %v5143 = vpop.f32.mrf.mxu0
    %v5144 = vadd.f32 %v5095, %v5143
    %5145 = vdwg.mxu0
    %5146 = vmatpush.bf16.msra.mxu0 %v4999
    %5147 = vmatpush.bf16.msra.mxu0 %v4997
    %5148 = vmatpush.bf16.msra.mxu0 %v4995
    %5149 = vmatpush.bf16.msra.mxu0 %v4993
    %5150 = vmatpush.bf16.msra.mxu0 %v4991
    %5151 = vmatpush.bf16.msra.mxu0 %v4989
    %5152 = vmatpush.bf16.msra.mxu0 %v4987
    %5153 = vmatpush.bf16.msra.mxu0 %v4985
    %5154 = vmatmul.bf16.gmra.mxu0 %v4856
    %v5155 = vpop.f32.mrf.mxu0
    %v5156 = vadd.f32 0.0, %v5155
    %v5157 = vpop.f32.mrf.mxu0
    %v5158 = vadd.f32 0.0, %v5157
    %5159 = vmatmul.bf16.gmra.mxu0 %v4858
    %v5160 = vpop.f32.mrf.mxu0
    %v5161 = vadd.f32 0.0, %v5160
    %v5162 = vpop.f32.mrf.mxu0
    %v5163 = vadd.f32 0.0, %v5162
    %5164 = vmatmul.bf16.gmra.mxu0 %v4860
    %v5165 = vpop.f32.mrf.mxu0
    %v5166 = vadd.f32 0.0, %v5165
    %v5167 = vpop.f32.mrf.mxu0
    %v5168 = vadd.f32 0.0, %v5167
    %5169 = vmatmul.bf16.gmra.mxu0 %v4862
    %v5170 = vpop.f32.mrf.mxu0
    %v5171 = vadd.f32 0.0, %v5170
    %v5172 = vpop.f32.mrf.mxu0
    %v5173 = vadd.f32 0.0, %v5172
    %5174 = vmatmul.bf16.gmra.mxu0 %v4864
    %v5175 = vpop.f32.mrf.mxu0
    %v5176 = vadd.f32 0.0, %v5175
    %v5177 = vpop.f32.mrf.mxu0
    %v5178 = vadd.f32 0.0, %v5177
    %5179 = vmatmul.bf16.gmra.mxu0 %v4866
    %v5180 = vpop.f32.mrf.mxu0
    %v5181 = vadd.f32 0.0, %v5180
    %v5182 = vpop.f32.mrf.mxu0
    %v5183 = vadd.f32 0.0, %v5182
    %5184 = vmatmul.bf16.gmra.mxu0 %v4868
    %v5185 = vpop.f32.mrf.mxu0
    %v5186 = vadd.f32 0.0, %v5185
    %v5187 = vpop.f32.mrf.mxu0
    %v5188 = vadd.f32 0.0, %v5187
    %5189 = vmatmul.bf16.gmra.mxu0 %v4870
    %v5190 = vpop.f32.mrf.mxu0
    %v5191 = vadd.f32 0.0, %v5190
    %v5192 = vpop.f32.mrf.mxu0
    %v5193 = vadd.f32 0.0, %v5192
    %5194 = vdwg.mxu0
    %5195 = vmatpush.bf16.msra.mxu0 %v5015
    %5196 = vmatpush.bf16.msra.mxu0 %v5013
    %5197 = vmatpush.bf16.msra.mxu0 %v5011
    %5198 = vmatpush.bf16.msra.mxu0 %v5009
    %5199 = vmatpush.bf16.msra.mxu0 %v5007
    %5200 = vmatpush.bf16.msra.mxu0 %v5005
    %5201 = vmatpush.bf16.msra.mxu0 %v5003
    %5202 = vmatpush.bf16.msra.mxu0 %v5001
    %5203 = vmatmul.bf16.gmra.mxu0 %v4857
    %v5204 = vpop.f32.mrf.mxu0
    %v5205 = vadd.f32 %v5156, %v5204
    %v5206 = vpop.f32.mrf.mxu0
    %v5207 = vadd.f32 %v5158, %v5206
    %5208 = vmatmul.bf16.gmra.mxu0 %v4859
    %v5209 = vpop.f32.mrf.mxu0
    %v5210 = vadd.f32 %v5161, %v5209
    %v5211 = vpop.f32.mrf.mxu0
    %v5212 = vadd.f32 %v5163, %v5211
    %5213 = vmatmul.bf16.gmra.mxu0 %v4861
    %v5214 = vpop.f32.mrf.mxu0
    %v5215 = vadd.f32 %v5166, %v5214
    %v5216 = vpop.f32.mrf.mxu0
    %v5217 = vadd.f32 %v5168, %v5216
    %5218 = vmatmul.bf16.gmra.mxu0 %v4863
    %v5219 = vpop.f32.mrf.mxu0
    %v5220 = vadd.f32 %v5171, %v5219
    %v5221 = vpop.f32.mrf.mxu0
    %v5222 = vadd.f32 %v5173, %v5221
    %5223 = vmatmul.bf16.gmra.mxu0 %v4865
    %v5224 = vpop.f32.mrf.mxu0
    %v5225 = vadd.f32 %v5176, %v5224
    %v5226 = vpop.f32.mrf.mxu0
    %v5227 = vadd.f32 %v5178, %v5226
    %5228 = vmatmul.bf16.gmra.mxu0 %v4867
    %v5229 = vpop.f32.mrf.mxu0
    %v5230 = vadd.f32 %v5181, %v5229
    %v5231 = vpop.f32.mrf.mxu0
    %v5232 = vadd.f32 %v5183, %v5231
    %5233 = vmatmul.bf16.gmra.mxu0 %v4869
    %v5234 = vpop.f32.mrf.mxu0
    %v5235 = vadd.f32 %v5186, %v5234
    %v5236 = vpop.f32.mrf.mxu0
    %v5237 = vadd.f32 %v5188, %v5236
    %5238 = vmatmul.bf16.gmra.mxu0 %v4871
    %v5239 = vpop.f32.mrf.mxu0
    %v5240 = vadd.f32 %v5191, %v5239
    %v5241 = vpop.f32.mrf.mxu0
    %v5242 = vadd.f32 %v5193, %v5241
    %5243 = vdwg.mxu0
    %v5244 = vadd.f32 %v4726, %v5107
    %v5245 = vadd.f32 %v4727, %v5205
    %v5246 = vadd.f32 %v4728, %v5109
    %v5247 = vadd.f32 %v4729, %v5207
    %v5248 = vadd.f32 %v4730, %v5112
    %v5249 = vadd.f32 %v4731, %v5210
    %v5250 = vadd.f32 %v4732, %v5114
    %v5251 = vadd.f32 %v4733, %v5212
    %v5252 = vadd.f32 %v4734, %v5117
    %v5253 = vadd.f32 %v4735, %v5215
    %v5254 = vadd.f32 %v4736, %v5119
    %v5255 = vadd.f32 %v4737, %v5217
    %v5256 = vadd.f32 %v4738, %v5122
    %v5257 = vadd.f32 %v4739, %v5220
    %v5258 = vadd.f32 %v4740, %v5124
    %v5259 = vadd.f32 %v4741, %v5222
    %v5260 = vadd.f32 %v4742, %v5127
    %v5261 = vadd.f32 %v4743, %v5225
    %v5262 = vadd.f32 %v4744, %v5129
    %v5263 = vadd.f32 %v4745, %v5227
    %v5264 = vadd.f32 %v4746, %v5132
    %v5265 = vadd.f32 %v4747, %v5230
    %v5266 = vadd.f32 %v4748, %v5134
    %v5267 = vadd.f32 %v4749, %v5232
    %v5268 = vadd.f32 %v4750, %v5137
    %v5269 = vadd.f32 %v4751, %v5235
    %v5270 = vadd.f32 %v4752, %v5139
    %v5271 = vadd.f32 %v4753, %v5237
    %v5272 = vadd.f32 %v4754, %v5142
    %v5273 = vadd.f32 %v4755, %v5240
    %v5274 = vadd.f32 %v4756, %v5144
    %v5275 = vadd.f32 %v4757, %v5242
    %s5276 = scalar_lea.vmem [#allocation8], 2
    %v5277 = vld [vmem:[%s5276] sm:$0x3]
    %v5279 = vperm.slane %v5277, 0
    %v5280 = vperm.slane %v5277, 1
    %v5283 = vmul.f32 %v5244, %v5279
    %v5284 = vmul.f32 %v5245, %v5280
    %v5285 = vmul.f32 %v5246, %v5279
    %v5286 = vmul.f32 %v5247, %v5280
    %v5287 = vmul.f32 %v5248, %v5279
    %v5288 = vmul.f32 %v5249, %v5280
    %v5289 = vmul.f32 %v5250, %v5279
    %v5290 = vmul.f32 %v5251, %v5280
    %v5291 = vmul.f32 %v5252, %v5279
    %v5292 = vmul.f32 %v5253, %v5280
    %v5293 = vmul.f32 %v5254, %v5279
    %v5294 = vmul.f32 %v5255, %v5280
    %v5295 = vmul.f32 %v5256, %v5279
    %v5296 = vmul.f32 %v5257, %v5280
    %v5297 = vmul.f32 %v5258, %v5279
    %v5298 = vmul.f32 %v5259, %v5280
    %v5299 = vmul.f32 %v5260, %v5279
    %v5300 = vmul.f32 %v5261, %v5280
    %v5301 = vmul.f32 %v5262, %v5279
    %v5302 = vmul.f32 %v5263, %v5280
    %v5303 = vmul.f32 %v5264, %v5279
    %v5304 = vmul.f32 %v5265, %v5280
    %v5305 = vmul.f32 %v5266, %v5279
    %v5306 = vmul.f32 %v5267, %v5280
    %v5307 = vmul.f32 %v5268, %v5279
    %v5308 = vmul.f32 %v5269, %v5280
    %v5309 = vmul.f32 %v5270, %v5279
    %v5310 = vmul.f32 %v5271, %v5280
    %v5311 = vmul.f32 %v5272, %v5279
    %v5312 = vmul.f32 %v5273, %v5280
    %v5313 = vmul.f32 %v5274, %v5279
    %v5314 = vmul.f32 %v5275, %v5280
    %s5315 = scalar_lea.vmem [#allocation9], 2
    %v5316 = vld [vmem:[%s5315] sm:$0x3]
    %v5318 = vperm.slane %v5316, 0
    %v5319 = vperm.slane %v5316, 1
    %v5322 = vadd.f32 %v5283, %v5318
    %v5323 = vadd.f32 %v5284, %v5319
    %v5324 = vadd.f32 %v5285, %v5318
    %v5325 = vadd.f32 %v5286, %v5319
    %v5326 = vadd.f32 %v5287, %v5318
    %v5327 = vadd.f32 %v5288, %v5319
    %v5328 = vadd.f32 %v5289, %v5318
    %v5329 = vadd.f32 %v5290, %v5319
    %v5330 = vadd.f32 %v5291, %v5318
    %v5331 = vadd.f32 %v5292, %v5319
    %v5332 = vadd.f32 %v5293, %v5318
    %v5333 = vadd.f32 %v5294, %v5319
    %v5334 = vadd.f32 %v5295, %v5318
    %v5335 = vadd.f32 %v5296, %v5319
    %v5336 = vadd.f32 %v5297, %v5318
    %v5337 = vadd.f32 %v5298, %v5319
    %v5338 = vadd.f32 %v5299, %v5318
    %v5339 = vadd.f32 %v5300, %v5319
    %v5340 = vadd.f32 %v5301, %v5318
    %v5341 = vadd.f32 %v5302, %v5319
    %v5342 = vadd.f32 %v5303, %v5318
    %v5343 = vadd.f32 %v5304, %v5319
    %v5344 = vadd.f32 %v5305, %v5318
    %v5345 = vadd.f32 %v5306, %v5319
    %v5346 = vadd.f32 %v5307, %v5318
    %v5347 = vadd.f32 %v5308, %v5319
    %v5348 = vadd.f32 %v5309, %v5318
    %v5349 = vadd.f32 %v5310, %v5319
    %v5350 = vadd.f32 %v5311, %v5318
    %v5351 = vadd.f32 %v5312, %v5319
    %v5352 = vadd.f32 %v5313, %v5318
    %v5353 = vadd.f32 %v5314, %v5319
    %v5354 = vmax.f32 %v5322, 0.0
    %v5355 = vmax.f32 %v5323, 0.0
    %v5356 = vmax.f32 %v5324, 0.0
    %v5357 = vmax.f32 %v5325, 0.0
    %v5358 = vmax.f32 %v5326, 0.0
    %v5359 = vmax.f32 %v5327, 0.0
    %v5360 = vmax.f32 %v5328, 0.0
    %v5361 = vmax.f32 %v5329, 0.0
    %v5362 = vmax.f32 %v5330, 0.0
    %v5363 = vmax.f32 %v5331, 0.0
    %v5364 = vmax.f32 %v5332, 0.0
    %v5365 = vmax.f32 %v5333, 0.0
    %v5366 = vmax.f32 %v5334, 0.0
    %v5367 = vmax.f32 %v5335, 0.0
    %v5368 = vmax.f32 %v5336, 0.0
    %v5369 = vmax.f32 %v5337, 0.0
    %v5370 = vmax.f32 %v5338, 0.0
    %v5371 = vmax.f32 %v5339, 0.0
    %v5372 = vmax.f32 %v5340, 0.0
    %v5373 = vmax.f32 %v5341, 0.0
    %v5374 = vmax.f32 %v5342, 0.0
    %v5375 = vmax.f32 %v5343, 0.0
    %v5376 = vmax.f32 %v5344, 0.0
    %v5377 = vmax.f32 %v5345, 0.0
    %v5378 = vmax.f32 %v5346, 0.0
    %v5379 = vmax.f32 %v5347, 0.0
    %v5380 = vmax.f32 %v5348, 0.0
    %v5381 = vmax.f32 %v5349, 0.0
    %v5382 = vmax.f32 %v5350, 0.0
    %v5383 = vmax.f32 %v5351, 0.0
    %v5384 = vmax.f32 %v5352, 0.0
    %v5385 = vmax.f32 %v5353, 0.0
    %v5386 = vpack.c.bf16 %v5355, %v5354
    %v5387 = vpack.c.bf16 %v5357, %v5356
    %v5388 = vpack.c.bf16 %v5359, %v5358
    %v5389 = vpack.c.bf16 %v5361, %v5360
    %v5390 = vpack.c.bf16 %v5363, %v5362
    %v5391 = vpack.c.bf16 %v5365, %v5364
    %v5392 = vpack.c.bf16 %v5367, %v5366
    %v5393 = vpack.c.bf16 %v5369, %v5368
    %v5394 = vpack.c.bf16 %v5371, %v5370
    %v5395 = vpack.c.bf16 %v5373, %v5372
    %v5396 = vpack.c.bf16 %v5375, %v5374
    %v5397 = vpack.c.bf16 %v5377, %v5376
    %v5398 = vpack.c.bf16 %v5379, %v5378
    %v5399 = vpack.c.bf16 %v5381, %v5380
    %v5400 = vpack.c.bf16 %v5383, %v5382
    %v5401 = vpack.c.bf16 %v5385, %v5384
    %5402 = vst [vmem:[%s2735] sm:$0xff] %v5386
    %5403 = vst [vmem:[%s2735 + $0x8] sm:$0xff] %v5387
    %5404 = vst [vmem:[%s2735 + $0x10] sm:$0xff] %v5388
    %5405 = vst [vmem:[%s2735 + $0x18] sm:$0xff] %v5389
    %5406 = vst [vmem:[%s2735 + $0x20] sm:$0xff] %v5390
    %5407 = vst [vmem:[%s2735 + $0x28] sm:$0xff] %v5391
    %5408 = vst [vmem:[%s2735 + $0x30] sm:$0xff] %v5392
    %5409 = vst [vmem:[%s2735 + $0x38] sm:$0xff] %v5393
    %5410 = vst [vmem:[%s2735 + $0x40] sm:$0xff] %v5394
    %5411 = vst [vmem:[%s2735 + $0x48] sm:$0xff] %v5395
    %5412 = vst [vmem:[%s2735 + $0x50] sm:$0xff] %v5396
    %5413 = vst [vmem:[%s2735 + $0x58] sm:$0xff] %v5397
    %5414 = vst [vmem:[%s2735 + $0x60] sm:$0xff] %v5398
    %5415 = vst [vmem:[%s2735 + $0x68] sm:$0xff] %v5399
    %5416 = vst [vmem:[%s2735 + $0x70] sm:$0xff] %v5400
    %5417 = vst [vmem:[%s2735 + $0x78] sm:$0xff] %v5401
    %v5418 = vld [vmem:[#allocation2] sm:$0xff]
    %v5419 = vld [vmem:[#allocation2 + $0x8] sm:$0xff]
    %v5420 = vld [vmem:[#allocation2 + $0x10] sm:$0xff]
    %v5421 = vld [vmem:[#allocation2 + $0x18] sm:$0xff]
    %v5422 = vld [vmem:[#allocation2 + $0x20] sm:$0xff]
    %v5423 = vld [vmem:[#allocation2 + $0x28] sm:$0xff]
    %v5424 = vld [vmem:[#allocation2 + $0x30] sm:$0xff]
    %v5425 = vld [vmem:[#allocation2 + $0x38] sm:$0xff]
    %v5426 = vld [vmem:[#allocation2 + $0x40] sm:$0xff]
    %v5427 = vld [vmem:[#allocation2 + $0x48] sm:$0xff]
    %v5428 = vld [vmem:[#allocation2 + $0x50] sm:$0xff]
    %v5429 = vld [vmem:[#allocation2 + $0x58] sm:$0xff]
    %v5430 = vld [vmem:[#allocation2 + $0x60] sm:$0xff]
    %v5431 = vld [vmem:[#allocation2 + $0x68] sm:$0xff]
    %v5432 = vld [vmem:[#allocation2 + $0x70] sm:$0xff]
    %v5433 = vld [vmem:[#allocation2 + $0x78] sm:$0xff]
    %s5434 = scalar_lea.vmem [#allocation6], 2560
    %v5435 = vld [vmem:[%s5434] sm:$0xff]
    %v5436 = vld [vmem:[%s5434 + $0x8] sm:$0xff]
    %v5437 = vld [vmem:[%s5434 + $0x10] sm:$0xff]
    %v5438 = vld [vmem:[%s5434 + $0x18] sm:$0xff]
    %v5439 = vld [vmem:[%s5434 + $0x20] sm:$0xff]
    %v5440 = vld [vmem:[%s5434 + $0x28] sm:$0xff]
    %v5441 = vld [vmem:[%s5434 + $0x30] sm:$0xff]
    %v5442 = vld [vmem:[%s5434 + $0x38] sm:$0xff]
    %v5443 = vld [vmem:[%s5434 + $0x40] sm:$0xff]
    %v5444 = vld [vmem:[%s5434 + $0x48] sm:$0xff]
    %v5445 = vld [vmem:[%s5434 + $0x50] sm:$0xff]
    %v5446 = vld [vmem:[%s5434 + $0x58] sm:$0xff]
    %v5447 = vld [vmem:[%s5434 + $0x60] sm:$0xff]
    %v5448 = vld [vmem:[%s5434 + $0x68] sm:$0xff]
    %v5449 = vld [vmem:[%s5434 + $0x70] sm:$0xff]
    %v5450 = vld [vmem:[%s5434 + $0x78] sm:$0xff]
    %v5451 = vld [vmem:[%s5434 + $0x80] sm:$0xff]
    %v5452 = vld [vmem:[%s5434 + $0x88] sm:$0xff]
    %v5453 = vld [vmem:[%s5434 + $0x90] sm:$0xff]
    %v5454 = vld [vmem:[%s5434 + $0x98] sm:$0xff]
    %v5455 = vld [vmem:[%s5434 + $0xa0] sm:$0xff]
    %v5456 = vld [vmem:[%s5434 + $0xa8] sm:$0xff]
    %v5457 = vld [vmem:[%s5434 + $0xb0] sm:$0xff]
    %v5458 = vld [vmem:[%s5434 + $0xb8] sm:$0xff]
    %v5459 = vld [vmem:[%s5434 + $0xc0] sm:$0xff]
    %v5460 = vld [vmem:[%s5434 + $0xc8] sm:$0xff]
    %v5461 = vld [vmem:[%s5434 + $0xd0] sm:$0xff]
    %v5462 = vld [vmem:[%s5434 + $0xd8] sm:$0xff]
    %v5463 = vld [vmem:[%s5434 + $0xe0] sm:$0xff]
    %v5464 = vld [vmem:[%s5434 + $0xe8] sm:$0xff]
    %v5465 = vld [vmem:[%s5434 + $0xf0] sm:$0xff]
    %v5466 = vld [vmem:[%s5434 + $0xf8] sm:$0xff]
    %v5467 = vld [vmem:[%s2801] sm:$0xff]
    %v5468 = vld [vmem:[%s2801 + $0x8] sm:$0xff]
    %v5469 = vld [vmem:[%s2801 + $0x10] sm:$0xff]
    %v5470 = vld [vmem:[%s2801 + $0x18] sm:$0xff]
    %v5471 = vld [vmem:[%s2801 + $0x20] sm:$0xff]
    %v5472 = vld [vmem:[%s2801 + $0x28] sm:$0xff]
    %v5473 = vld [vmem:[%s2801 + $0x30] sm:$0xff]
    %v5474 = vld [vmem:[%s2801 + $0x38] sm:$0xff]
    %v5475 = vld [vmem:[%s2801 + $0x40] sm:$0xff]
    %v5476 = vld [vmem:[%s2801 + $0x48] sm:$0xff]
    %v5477 = vld [vmem:[%s2801 + $0x50] sm:$0xff]
    %v5478 = vld [vmem:[%s2801 + $0x58] sm:$0xff]
    %v5479 = vld [vmem:[%s2801 + $0x60] sm:$0xff]
    %v5480 = vld [vmem:[%s2801 + $0x68] sm:$0xff]
    %v5481 = vld [vmem:[%s2801 + $0x70] sm:$0xff]
    %v5482 = vld [vmem:[%s2801 + $0x78] sm:$0xff]
    %s5483 = scalar_lea.vmem [#allocation6], 2816
    %v5484 = vld [vmem:[%s5483] sm:$0xff]
    %v5485 = vld [vmem:[%s5483 + $0x8] sm:$0xff]
    %v5486 = vld [vmem:[%s5483 + $0x10] sm:$0xff]
    %v5487 = vld [vmem:[%s5483 + $0x18] sm:$0xff]
    %v5488 = vld [vmem:[%s5483 + $0x20] sm:$0xff]
    %v5489 = vld [vmem:[%s5483 + $0x28] sm:$0xff]
    %v5490 = vld [vmem:[%s5483 + $0x30] sm:$0xff]
    %v5491 = vld [vmem:[%s5483 + $0x38] sm:$0xff]
    %v5492 = vld [vmem:[%s5483 + $0x40] sm:$0xff]
    %v5493 = vld [vmem:[%s5483 + $0x48] sm:$0xff]
    %v5494 = vld [vmem:[%s5483 + $0x50] sm:$0xff]
    %v5495 = vld [vmem:[%s5483 + $0x58] sm:$0xff]
    %v5496 = vld [vmem:[%s5483 + $0x60] sm:$0xff]
    %v5497 = vld [vmem:[%s5483 + $0x68] sm:$0xff]
    %v5498 = vld [vmem:[%s5483 + $0x70] sm:$0xff]
    %v5499 = vld [vmem:[%s5483 + $0x78] sm:$0xff]
    %v5500 = vld [vmem:[%s5483 + $0x80] sm:$0xff]
    %v5501 = vld [vmem:[%s5483 + $0x88] sm:$0xff]
    %v5502 = vld [vmem:[%s5483 + $0x90] sm:$0xff]
    %v5503 = vld [vmem:[%s5483 + $0x98] sm:$0xff]
    %v5504 = vld [vmem:[%s5483 + $0xa0] sm:$0xff]
    %v5505 = vld [vmem:[%s5483 + $0xa8] sm:$0xff]
    %v5506 = vld [vmem:[%s5483 + $0xb0] sm:$0xff]
    %v5507 = vld [vmem:[%s5483 + $0xb8] sm:$0xff]
    %v5508 = vld [vmem:[%s5483 + $0xc0] sm:$0xff]
    %v5509 = vld [vmem:[%s5483 + $0xc8] sm:$0xff]
    %v5510 = vld [vmem:[%s5483 + $0xd0] sm:$0xff]
    %v5511 = vld [vmem:[%s5483 + $0xd8] sm:$0xff]
    %v5512 = vld [vmem:[%s5483 + $0xe0] sm:$0xff]
    %v5513 = vld [vmem:[%s5483 + $0xe8] sm:$0xff]
    %v5514 = vld [vmem:[%s5483 + $0xf0] sm:$0xff]
    %v5515 = vld [vmem:[%s5483 + $0xf8] sm:$0xff]
    %v5532 = vunpack.c.l.b16 %v5467
    %v5533 = vunpack.c.h.b16 %v5467
    %v5534 = vunpack.c.l.b16 %v5468
    %v5535 = vunpack.c.h.b16 %v5468
    %v5536 = vunpack.c.l.b16 %v5469
    %v5537 = vunpack.c.h.b16 %v5469
    %v5538 = vunpack.c.l.b16 %v5470
    %v5539 = vunpack.c.h.b16 %v5470
    %v5540 = vunpack.c.l.b16 %v5471
    %v5541 = vunpack.c.h.b16 %v5471
    %v5542 = vunpack.c.l.b16 %v5472
    %v5543 = vunpack.c.h.b16 %v5472
    %v5544 = vunpack.c.l.b16 %v5473
    %v5545 = vunpack.c.h.b16 %v5473
    %v5546 = vunpack.c.l.b16 %v5474
    %v5547 = vunpack.c.h.b16 %v5474
    %v5548 = vunpack.c.l.b16 %v5475
    %v5549 = vunpack.c.h.b16 %v5475
    %v5550 = vunpack.c.l.b16 %v5476
    %v5551 = vunpack.c.h.b16 %v5476
    %v5552 = vunpack.c.l.b16 %v5477
    %v5553 = vunpack.c.h.b16 %v5477
    %v5554 = vunpack.c.l.b16 %v5478
    %v5555 = vunpack.c.h.b16 %v5478
    %v5556 = vunpack.c.l.b16 %v5479
    %v5557 = vunpack.c.h.b16 %v5479
    %v5558 = vunpack.c.l.b16 %v5480
    %v5559 = vunpack.c.h.b16 %v5480
    %v5560 = vunpack.c.l.b16 %v5481
    %v5561 = vunpack.c.h.b16 %v5481
    %v5562 = vunpack.c.l.b16 %v5482
    %v5563 = vunpack.c.h.b16 %v5482
    %v5564 = vpack.c.b16 %v5534, %v5532
    %v5565 = vpack.c.b16 %v5535, %v5533
    %v5566 = vpack.c.b16 %v5538, %v5536
    %v5567 = vpack.c.b16 %v5539, %v5537
    %v5568 = vpack.c.b16 %v5542, %v5540
    %v5569 = vpack.c.b16 %v5543, %v5541
    %v5570 = vpack.c.b16 %v5546, %v5544
    %v5571 = vpack.c.b16 %v5547, %v5545
    %v5572 = vpack.c.b16 %v5550, %v5548
    %v5573 = vpack.c.b16 %v5551, %v5549
    %v5574 = vpack.c.b16 %v5554, %v5552
    %v5575 = vpack.c.b16 %v5555, %v5553
    %v5576 = vpack.c.b16 %v5558, %v5556
    %v5577 = vpack.c.b16 %v5559, %v5557
    %v5578 = vpack.c.b16 %v5562, %v5560
    %v5579 = vpack.c.b16 %v5563, %v5561
    %v5628 = vunpack.c.l.b16 %v5484
    %v5629 = vunpack.c.h.b16 %v5484
    %v5630 = vunpack.c.l.b16 %v5485
    %v5631 = vunpack.c.h.b16 %v5485
    %v5632 = vunpack.c.l.b16 %v5486
    %v5633 = vunpack.c.h.b16 %v5486
    %v5634 = vunpack.c.l.b16 %v5487
    %v5635 = vunpack.c.h.b16 %v5487
    %v5636 = vunpack.c.l.b16 %v5488
    %v5637 = vunpack.c.h.b16 %v5488
    %v5638 = vunpack.c.l.b16 %v5489
    %v5639 = vunpack.c.h.b16 %v5489
    %v5640 = vunpack.c.l.b16 %v5490
    %v5641 = vunpack.c.h.b16 %v5490
    %v5642 = vunpack.c.l.b16 %v5491
    %v5643 = vunpack.c.h.b16 %v5491
    %v5644 = vunpack.c.l.b16 %v5492
    %v5645 = vunpack.c.h.b16 %v5492
    %v5646 = vunpack.c.l.b16 %v5493
    %v5647 = vunpack.c.h.b16 %v5493
    %v5648 = vunpack.c.l.b16 %v5494
    %v5649 = vunpack.c.h.b16 %v5494
    %v5650 = vunpack.c.l.b16 %v5495
    %v5651 = vunpack.c.h.b16 %v5495
    %v5652 = vunpack.c.l.b16 %v5496
    %v5653 = vunpack.c.h.b16 %v5496
    %v5654 = vunpack.c.l.b16 %v5497
    %v5655 = vunpack.c.h.b16 %v5497
    %v5656 = vunpack.c.l.b16 %v5498
    %v5657 = vunpack.c.h.b16 %v5498
    %v5658 = vunpack.c.l.b16 %v5499
    %v5659 = vunpack.c.h.b16 %v5499
    %v5660 = vunpack.c.l.b16 %v5500
    %v5661 = vunpack.c.h.b16 %v5500
    %v5662 = vunpack.c.l.b16 %v5501
    %v5663 = vunpack.c.h.b16 %v5501
    %v5664 = vunpack.c.l.b16 %v5502
    %v5665 = vunpack.c.h.b16 %v5502
    %v5666 = vunpack.c.l.b16 %v5503
    %v5667 = vunpack.c.h.b16 %v5503
    %v5668 = vunpack.c.l.b16 %v5504
    %v5669 = vunpack.c.h.b16 %v5504
    %v5670 = vunpack.c.l.b16 %v5505
    %v5671 = vunpack.c.h.b16 %v5505
    %v5672 = vunpack.c.l.b16 %v5506
    %v5673 = vunpack.c.h.b16 %v5506
    %v5674 = vunpack.c.l.b16 %v5507
    %v5675 = vunpack.c.h.b16 %v5507
    %v5676 = vunpack.c.l.b16 %v5508
    %v5677 = vunpack.c.h.b16 %v5508
    %v5678 = vunpack.c.l.b16 %v5509
    %v5679 = vunpack.c.h.b16 %v5509
    %v5680 = vunpack.c.l.b16 %v5510
    %v5681 = vunpack.c.h.b16 %v5510
    %v5682 = vunpack.c.l.b16 %v5511
    %v5683 = vunpack.c.h.b16 %v5511
    %v5684 = vunpack.c.l.b16 %v5512
    %v5685 = vunpack.c.h.b16 %v5512
    %v5686 = vunpack.c.l.b16 %v5513
    %v5687 = vunpack.c.h.b16 %v5513
    %v5688 = vunpack.c.l.b16 %v5514
    %v5689 = vunpack.c.h.b16 %v5514
    %v5690 = vunpack.c.l.b16 %v5515
    %v5691 = vunpack.c.h.b16 %v5515
    %v5692 = vpack.c.b16 %v5630, %v5628
    %v5693 = vpack.c.b16 %v5631, %v5629
    %v5694 = vpack.c.b16 %v5634, %v5632
    %v5695 = vpack.c.b16 %v5635, %v5633
    %v5696 = vpack.c.b16 %v5638, %v5636
    %v5697 = vpack.c.b16 %v5639, %v5637
    %v5698 = vpack.c.b16 %v5642, %v5640
    %v5699 = vpack.c.b16 %v5643, %v5641
    %v5700 = vpack.c.b16 %v5646, %v5644
    %v5701 = vpack.c.b16 %v5647, %v5645
    %v5702 = vpack.c.b16 %v5650, %v5648
    %v5703 = vpack.c.b16 %v5651, %v5649
    %v5704 = vpack.c.b16 %v5654, %v5652
    %v5705 = vpack.c.b16 %v5655, %v5653
    %v5706 = vpack.c.b16 %v5658, %v5656
    %v5707 = vpack.c.b16 %v5659, %v5657
    %v5708 = vpack.c.b16 %v5662, %v5660
    %v5709 = vpack.c.b16 %v5663, %v5661
    %v5710 = vpack.c.b16 %v5666, %v5664
    %v5711 = vpack.c.b16 %v5667, %v5665
    %v5712 = vpack.c.b16 %v5670, %v5668
    %v5713 = vpack.c.b16 %v5671, %v5669
    %v5714 = vpack.c.b16 %v5674, %v5672
    %v5715 = vpack.c.b16 %v5675, %v5673
    %v5716 = vpack.c.b16 %v5678, %v5676
    %v5717 = vpack.c.b16 %v5679, %v5677
    %v5718 = vpack.c.b16 %v5682, %v5680
    %v5719 = vpack.c.b16 %v5683, %v5681
    %v5720 = vpack.c.b16 %v5686, %v5684
    %v5721 = vpack.c.b16 %v5687, %v5685
    %v5722 = vpack.c.b16 %v5690, %v5688
    %v5723 = vpack.c.b16 %v5691, %v5689
    %5756 = vmatpush.bf16.msra.mxu0 %v5706
    %5757 = vmatpush.bf16.msra.mxu0 %v5704
    %5758 = vmatpush.bf16.msra.mxu0 %v5702
    %5759 = vmatpush.bf16.msra.mxu0 %v5700
    %5760 = vmatpush.bf16.msra.mxu0 %v5698
    %5761 = vmatpush.bf16.msra.mxu0 %v5696
    %5762 = vmatpush.bf16.msra.mxu0 %v5694
    %5763 = vmatpush.bf16.msra.mxu0 %v5692
    %5764 = vmatmul.bf16.gmra.mxu0 %v5564
    %v5765 = vpop.f32.mrf.mxu0
    %v5766 = vadd.f32 0.0, %v5765
    %v5767 = vpop.f32.mrf.mxu0
    %v5768 = vadd.f32 0.0, %v5767
    %5769 = vmatmul.bf16.gmra.mxu0 %v5566
    %v5770 = vpop.f32.mrf.mxu0
    %v5771 = vadd.f32 0.0, %v5770
    %v5772 = vpop.f32.mrf.mxu0
    %v5773 = vadd.f32 0.0, %v5772
    %5774 = vmatmul.bf16.gmra.mxu0 %v5568
    %v5775 = vpop.f32.mrf.mxu0
    %v5776 = vadd.f32 0.0, %v5775
    %v5777 = vpop.f32.mrf.mxu0
    %v5778 = vadd.f32 0.0, %v5777
    %5779 = vmatmul.bf16.gmra.mxu0 %v5570
    %v5780 = vpop.f32.mrf.mxu0
    %v5781 = vadd.f32 0.0, %v5780
    %v5782 = vpop.f32.mrf.mxu0
    %v5783 = vadd.f32 0.0, %v5782
    %5784 = vmatmul.bf16.gmra.mxu0 %v5572
    %v5785 = vpop.f32.mrf.mxu0
    %v5786 = vadd.f32 0.0, %v5785
    %v5787 = vpop.f32.mrf.mxu0
    %v5788 = vadd.f32 0.0, %v5787
    %5789 = vmatmul.bf16.gmra.mxu0 %v5574
    %v5790 = vpop.f32.mrf.mxu0
    %v5791 = vadd.f32 0.0, %v5790
    %v5792 = vpop.f32.mrf.mxu0
    %v5793 = vadd.f32 0.0, %v5792
    %5794 = vmatmul.bf16.gmra.mxu0 %v5576
    %v5795 = vpop.f32.mrf.mxu0
    %v5796 = vadd.f32 0.0, %v5795
    %v5797 = vpop.f32.mrf.mxu0
    %v5798 = vadd.f32 0.0, %v5797
    %5799 = vmatmul.bf16.gmra.mxu0 %v5578
    %v5800 = vpop.f32.mrf.mxu0
    %v5801 = vadd.f32 0.0, %v5800
    %v5802 = vpop.f32.mrf.mxu0
    %v5803 = vadd.f32 0.0, %v5802
    %5804 = vdwg.mxu0
    %5805 = vmatpush.bf16.msra.mxu0 %v5722
    %5806 = vmatpush.bf16.msra.mxu0 %v5720
    %5807 = vmatpush.bf16.msra.mxu0 %v5718
    %5808 = vmatpush.bf16.msra.mxu0 %v5716
    %5809 = vmatpush.bf16.msra.mxu0 %v5714
    %5810 = vmatpush.bf16.msra.mxu0 %v5712
    %5811 = vmatpush.bf16.msra.mxu0 %v5710
    %5812 = vmatpush.bf16.msra.mxu0 %v5708
    %5813 = vmatmul.bf16.gmra.mxu0 %v5565
    %v5814 = vpop.f32.mrf.mxu0
    %v5815 = vadd.f32 %v5766, %v5814
    %v5816 = vpop.f32.mrf.mxu0
    %v5817 = vadd.f32 %v5768, %v5816
    %5818 = vmatmul.bf16.gmra.mxu0 %v5567
    %v5819 = vpop.f32.mrf.mxu0
    %v5820 = vadd.f32 %v5771, %v5819
    %v5821 = vpop.f32.mrf.mxu0
    %v5822 = vadd.f32 %v5773, %v5821
    %5823 = vmatmul.bf16.gmra.mxu0 %v5569
    %v5824 = vpop.f32.mrf.mxu0
    %v5825 = vadd.f32 %v5776, %v5824
    %v5826 = vpop.f32.mrf.mxu0
    %v5827 = vadd.f32 %v5778, %v5826
    %5828 = vmatmul.bf16.gmra.mxu0 %v5571
    %v5829 = vpop.f32.mrf.mxu0
    %v5830 = vadd.f32 %v5781, %v5829
    %v5831 = vpop.f32.mrf.mxu0
    %v5832 = vadd.f32 %v5783, %v5831
    %5833 = vmatmul.bf16.gmra.mxu0 %v5573
    %v5834 = vpop.f32.mrf.mxu0
    %v5835 = vadd.f32 %v5786, %v5834
    %v5836 = vpop.f32.mrf.mxu0
    %v5837 = vadd.f32 %v5788, %v5836
    %5838 = vmatmul.bf16.gmra.mxu0 %v5575
    %v5839 = vpop.f32.mrf.mxu0
    %v5840 = vadd.f32 %v5791, %v5839
    %v5841 = vpop.f32.mrf.mxu0
    %v5842 = vadd.f32 %v5793, %v5841
    %5843 = vmatmul.bf16.gmra.mxu0 %v5577
    %v5844 = vpop.f32.mrf.mxu0
    %v5845 = vadd.f32 %v5796, %v5844
    %v5846 = vpop.f32.mrf.mxu0
    %v5847 = vadd.f32 %v5798, %v5846
    %5848 = vmatmul.bf16.gmra.mxu0 %v5579
    %v5849 = vpop.f32.mrf.mxu0
    %v5850 = vadd.f32 %v5801, %v5849
    %v5851 = vpop.f32.mrf.mxu0
    %v5852 = vadd.f32 %v5803, %v5851
    %5853 = vdwg.mxu0
    %5854 = vmatpush.bf16.msra.mxu0 %v5707
    %5855 = vmatpush.bf16.msra.mxu0 %v5705
    %5856 = vmatpush.bf16.msra.mxu0 %v5703
    %5857 = vmatpush.bf16.msra.mxu0 %v5701
    %5858 = vmatpush.bf16.msra.mxu0 %v5699
    %5859 = vmatpush.bf16.msra.mxu0 %v5697
    %5860 = vmatpush.bf16.msra.mxu0 %v5695
    %5861 = vmatpush.bf16.msra.mxu0 %v5693
    %5862 = vmatmul.bf16.gmra.mxu0 %v5564
    %v5863 = vpop.f32.mrf.mxu0
    %v5864 = vadd.f32 0.0, %v5863
    %v5865 = vpop.f32.mrf.mxu0
    %v5866 = vadd.f32 0.0, %v5865
    %5867 = vmatmul.bf16.gmra.mxu0 %v5566
    %v5868 = vpop.f32.mrf.mxu0
    %v5869 = vadd.f32 0.0, %v5868
    %v5870 = vpop.f32.mrf.mxu0
    %v5871 = vadd.f32 0.0, %v5870
    %5872 = vmatmul.bf16.gmra.mxu0 %v5568
    %v5873 = vpop.f32.mrf.mxu0
    %v5874 = vadd.f32 0.0, %v5873
    %v5875 = vpop.f32.mrf.mxu0
    %v5876 = vadd.f32 0.0, %v5875
    %5877 = vmatmul.bf16.gmra.mxu0 %v5570
    %v5878 = vpop.f32.mrf.mxu0
    %v5879 = vadd.f32 0.0, %v5878
    %v5880 = vpop.f32.mrf.mxu0
    %v5881 = vadd.f32 0.0, %v5880
    %5882 = vmatmul.bf16.gmra.mxu0 %v5572
    %v5883 = vpop.f32.mrf.mxu0
    %v5884 = vadd.f32 0.0, %v5883
    %v5885 = vpop.f32.mrf.mxu0
    %v5886 = vadd.f32 0.0, %v5885
    %5887 = vmatmul.bf16.gmra.mxu0 %v5574
    %v5888 = vpop.f32.mrf.mxu0
    %v5889 = vadd.f32 0.0, %v5888
    %v5890 = vpop.f32.mrf.mxu0
    %v5891 = vadd.f32 0.0, %v5890
    %5892 = vmatmul.bf16.gmra.mxu0 %v5576
    %v5893 = vpop.f32.mrf.mxu0
    %v5894 = vadd.f32 0.0, %v5893
    %v5895 = vpop.f32.mrf.mxu0
    %v5896 = vadd.f32 0.0, %v5895
    %5897 = vmatmul.bf16.gmra.mxu0 %v5578
    %v5898 = vpop.f32.mrf.mxu0
    %v5899 = vadd.f32 0.0, %v5898
    %v5900 = vpop.f32.mrf.mxu0
    %v5901 = vadd.f32 0.0, %v5900
    %5902 = vdwg.mxu0
    %5903 = vmatpush.bf16.msra.mxu0 %v5723
    %5904 = vmatpush.bf16.msra.mxu0 %v5721
    %5905 = vmatpush.bf16.msra.mxu0 %v5719
    %5906 = vmatpush.bf16.msra.mxu0 %v5717
    %5907 = vmatpush.bf16.msra.mxu0 %v5715
    %5908 = vmatpush.bf16.msra.mxu0 %v5713
    %5909 = vmatpush.bf16.msra.mxu0 %v5711
    %5910 = vmatpush.bf16.msra.mxu0 %v5709
    %5911 = vmatmul.bf16.gmra.mxu0 %v5565
    %v5912 = vpop.f32.mrf.mxu0
    %v5913 = vadd.f32 %v5864, %v5912
    %v5914 = vpop.f32.mrf.mxu0
    %v5915 = vadd.f32 %v5866, %v5914
    %5916 = vmatmul.bf16.gmra.mxu0 %v5567
    %v5917 = vpop.f32.mrf.mxu0
    %v5918 = vadd.f32 %v5869, %v5917
    %v5919 = vpop.f32.mrf.mxu0
    %v5920 = vadd.f32 %v5871, %v5919
    %5921 = vmatmul.bf16.gmra.mxu0 %v5569
    %v5922 = vpop.f32.mrf.mxu0
    %v5923 = vadd.f32 %v5874, %v5922
    %v5924 = vpop.f32.mrf.mxu0
    %v5925 = vadd.f32 %v5876, %v5924
    %5926 = vmatmul.bf16.gmra.mxu0 %v5571
    %v5927 = vpop.f32.mrf.mxu0
    %v5928 = vadd.f32 %v5879, %v5927
    %v5929 = vpop.f32.mrf.mxu0
    %v5930 = vadd.f32 %v5881, %v5929
    %5931 = vmatmul.bf16.gmra.mxu0 %v5573
    %v5932 = vpop.f32.mrf.mxu0
    %v5933 = vadd.f32 %v5884, %v5932
    %v5934 = vpop.f32.mrf.mxu0
    %v5935 = vadd.f32 %v5886, %v5934
    %5936 = vmatmul.bf16.gmra.mxu0 %v5575
    %v5937 = vpop.f32.mrf.mxu0
    %v5938 = vadd.f32 %v5889, %v5937
    %v5939 = vpop.f32.mrf.mxu0
    %v5940 = vadd.f32 %v5891, %v5939
    %5941 = vmatmul.bf16.gmra.mxu0 %v5577
    %v5942 = vpop.f32.mrf.mxu0
    %v5943 = vadd.f32 %v5894, %v5942
    %v5944 = vpop.f32.mrf.mxu0
    %v5945 = vadd.f32 %v5896, %v5944
    %5946 = vmatmul.bf16.gmra.mxu0 %v5579
    %v5947 = vpop.f32.mrf.mxu0
    %v5948 = vadd.f32 %v5899, %v5947
    %v5949 = vpop.f32.mrf.mxu0
    %v5950 = vadd.f32 %v5901, %v5949
    %5951 = vdwg.mxu0
    %v5968 = vunpack.c.l.b16 %v5418
    %v5969 = vunpack.c.h.b16 %v5418
    %v5970 = vunpack.c.l.b16 %v5419
    %v5971 = vunpack.c.h.b16 %v5419
    %v5972 = vunpack.c.l.b16 %v5420
    %v5973 = vunpack.c.h.b16 %v5420
    %v5974 = vunpack.c.l.b16 %v5421
    %v5975 = vunpack.c.h.b16 %v5421
    %v5976 = vunpack.c.l.b16 %v5422
    %v5977 = vunpack.c.h.b16 %v5422
    %v5978 = vunpack.c.l.b16 %v5423
    %v5979 = vunpack.c.h.b16 %v5423
    %v5980 = vunpack.c.l.b16 %v5424
    %v5981 = vunpack.c.h.b16 %v5424
    %v5982 = vunpack.c.l.b16 %v5425
    %v5983 = vunpack.c.h.b16 %v5425
    %v5984 = vunpack.c.l.b16 %v5426
    %v5985 = vunpack.c.h.b16 %v5426
    %v5986 = vunpack.c.l.b16 %v5427
    %v5987 = vunpack.c.h.b16 %v5427
    %v5988 = vunpack.c.l.b16 %v5428
    %v5989 = vunpack.c.h.b16 %v5428
    %v5990 = vunpack.c.l.b16 %v5429
    %v5991 = vunpack.c.h.b16 %v5429
    %v5992 = vunpack.c.l.b16 %v5430
    %v5993 = vunpack.c.h.b16 %v5430
    %v5994 = vunpack.c.l.b16 %v5431
    %v5995 = vunpack.c.h.b16 %v5431
    %v5996 = vunpack.c.l.b16 %v5432
    %v5997 = vunpack.c.h.b16 %v5432
    %v5998 = vunpack.c.l.b16 %v5433
    %v5999 = vunpack.c.h.b16 %v5433
    %v6000 = vpack.c.b16 %v5970, %v5968
    %v6001 = vpack.c.b16 %v5971, %v5969
    %v6002 = vpack.c.b16 %v5974, %v5972
    %v6003 = vpack.c.b16 %v5975, %v5973
    %v6004 = vpack.c.b16 %v5978, %v5976
    %v6005 = vpack.c.b16 %v5979, %v5977
    %v6006 = vpack.c.b16 %v5982, %v5980
    %v6007 = vpack.c.b16 %v5983, %v5981
    %v6008 = vpack.c.b16 %v5986, %v5984
    %v6009 = vpack.c.b16 %v5987, %v5985
    %v6010 = vpack.c.b16 %v5990, %v5988
    %v6011 = vpack.c.b16 %v5991, %v5989
    %v6012 = vpack.c.b16 %v5994, %v5992
    %v6013 = vpack.c.b16 %v5995, %v5993
    %v6014 = vpack.c.b16 %v5998, %v5996
    %v6015 = vpack.c.b16 %v5999, %v5997
    %v6064 = vunpack.c.l.b16 %v5435
    %v6065 = vunpack.c.h.b16 %v5435
    %v6066 = vunpack.c.l.b16 %v5436
    %v6067 = vunpack.c.h.b16 %v5436
    %v6068 = vunpack.c.l.b16 %v5437
    %v6069 = vunpack.c.h.b16 %v5437
    %v6070 = vunpack.c.l.b16 %v5438
    %v6071 = vunpack.c.h.b16 %v5438
    %v6072 = vunpack.c.l.b16 %v5439
    %v6073 = vunpack.c.h.b16 %v5439
    %v6074 = vunpack.c.l.b16 %v5440
    %v6075 = vunpack.c.h.b16 %v5440
    %v6076 = vunpack.c.l.b16 %v5441
    %v6077 = vunpack.c.h.b16 %v5441
    %v6078 = vunpack.c.l.b16 %v5442
    %v6079 = vunpack.c.h.b16 %v5442
    %v6080 = vunpack.c.l.b16 %v5443
    %v6081 = vunpack.c.h.b16 %v5443
    %v6082 = vunpack.c.l.b16 %v5444
    %v6083 = vunpack.c.h.b16 %v5444
    %v6084 = vunpack.c.l.b16 %v5445
    %v6085 = vunpack.c.h.b16 %v5445
    %v6086 = vunpack.c.l.b16 %v5446
    %v6087 = vunpack.c.h.b16 %v5446
    %v6088 = vunpack.c.l.b16 %v5447
    %v6089 = vunpack.c.h.b16 %v5447
    %v6090 = vunpack.c.l.b16 %v5448
    %v6091 = vunpack.c.h.b16 %v5448
    %v6092 = vunpack.c.l.b16 %v5449
    %v6093 = vunpack.c.h.b16 %v5449
    %v6094 = vunpack.c.l.b16 %v5450
    %v6095 = vunpack.c.h.b16 %v5450
    %v6096 = vunpack.c.l.b16 %v5451
    %v6097 = vunpack.c.h.b16 %v5451
    %v6098 = vunpack.c.l.b16 %v5452
    %v6099 = vunpack.c.h.b16 %v5452
    %v6100 = vunpack.c.l.b16 %v5453
    %v6101 = vunpack.c.h.b16 %v5453
    %v6102 = vunpack.c.l.b16 %v5454
    %v6103 = vunpack.c.h.b16 %v5454
    %v6104 = vunpack.c.l.b16 %v5455
    %v6105 = vunpack.c.h.b16 %v5455
    %v6106 = vunpack.c.l.b16 %v5456
    %v6107 = vunpack.c.h.b16 %v5456
    %v6108 = vunpack.c.l.b16 %v5457
    %v6109 = vunpack.c.h.b16 %v5457
    %v6110 = vunpack.c.l.b16 %v5458
    %v6111 = vunpack.c.h.b16 %v5458
    %v6112 = vunpack.c.l.b16 %v5459
    %v6113 = vunpack.c.h.b16 %v5459
    %v6114 = vunpack.c.l.b16 %v5460
    %v6115 = vunpack.c.h.b16 %v5460
    %v6116 = vunpack.c.l.b16 %v5461
    %v6117 = vunpack.c.h.b16 %v5461
    %v6118 = vunpack.c.l.b16 %v5462
    %v6119 = vunpack.c.h.b16 %v5462
    %v6120 = vunpack.c.l.b16 %v5463
    %v6121 = vunpack.c.h.b16 %v5463
    %v6122 = vunpack.c.l.b16 %v5464
    %v6123 = vunpack.c.h.b16 %v5464
    %v6124 = vunpack.c.l.b16 %v5465
    %v6125 = vunpack.c.h.b16 %v5465
    %v6126 = vunpack.c.l.b16 %v5466
    %v6127 = vunpack.c.h.b16 %v5466
    %v6128 = vpack.c.b16 %v6066, %v6064
    %v6129 = vpack.c.b16 %v6067, %v6065
    %v6130 = vpack.c.b16 %v6070, %v6068
    %v6131 = vpack.c.b16 %v6071, %v6069
    %v6132 = vpack.c.b16 %v6074, %v6072
    %v6133 = vpack.c.b16 %v6075, %v6073
    %v6134 = vpack.c.b16 %v6078, %v6076
    %v6135 = vpack.c.b16 %v6079, %v6077
    %v6136 = vpack.c.b16 %v6082, %v6080
    %v6137 = vpack.c.b16 %v6083, %v6081
    %v6138 = vpack.c.b16 %v6086, %v6084
    %v6139 = vpack.c.b16 %v6087, %v6085
    %v6140 = vpack.c.b16 %v6090, %v6088
    %v6141 = vpack.c.b16 %v6091, %v6089
    %v6142 = vpack.c.b16 %v6094, %v6092
    %v6143 = vpack.c.b16 %v6095, %v6093
    %v6144 = vpack.c.b16 %v6098, %v6096
    %v6145 = vpack.c.b16 %v6099, %v6097
    %v6146 = vpack.c.b16 %v6102, %v6100
    %v6147 = vpack.c.b16 %v6103, %v6101
    %v6148 = vpack.c.b16 %v6106, %v6104
    %v6149 = vpack.c.b16 %v6107, %v6105
    %v6150 = vpack.c.b16 %v6110, %v6108
    %v6151 = vpack.c.b16 %v6111, %v6109
    %v6152 = vpack.c.b16 %v6114, %v6112
    %v6153 = vpack.c.b16 %v6115, %v6113
    %v6154 = vpack.c.b16 %v6118, %v6116
    %v6155 = vpack.c.b16 %v6119, %v6117
    %v6156 = vpack.c.b16 %v6122, %v6120
    %v6157 = vpack.c.b16 %v6123, %v6121
    %v6158 = vpack.c.b16 %v6126, %v6124
    %v6159 = vpack.c.b16 %v6127, %v6125
    %6192 = vmatpush.bf16.msra.mxu0 %v6142
    %6193 = vmatpush.bf16.msra.mxu0 %v6140
    %6194 = vmatpush.bf16.msra.mxu0 %v6138
    %6195 = vmatpush.bf16.msra.mxu0 %v6136
    %6196 = vmatpush.bf16.msra.mxu0 %v6134
    %6197 = vmatpush.bf16.msra.mxu0 %v6132
    %6198 = vmatpush.bf16.msra.mxu0 %v6130
    %6199 = vmatpush.bf16.msra.mxu0 %v6128
    %6200 = vmatmul.bf16.gmra.mxu0 %v6000
    %v6201 = vpop.f32.mrf.mxu0
    %v6202 = vadd.f32 %v5815, %v6201
    %v6203 = vpop.f32.mrf.mxu0
    %v6204 = vadd.f32 %v5817, %v6203
    %6205 = vmatmul.bf16.gmra.mxu0 %v6002
    %v6206 = vpop.f32.mrf.mxu0
    %v6207 = vadd.f32 %v5820, %v6206
    %v6208 = vpop.f32.mrf.mxu0
    %v6209 = vadd.f32 %v5822, %v6208
    %6210 = vmatmul.bf16.gmra.mxu0 %v6004
    %v6211 = vpop.f32.mrf.mxu0
    %v6212 = vadd.f32 %v5825, %v6211
    %v6213 = vpop.f32.mrf.mxu0
    %v6214 = vadd.f32 %v5827, %v6213
    %6215 = vmatmul.bf16.gmra.mxu0 %v6006
    %v6216 = vpop.f32.mrf.mxu0
    %v6217 = vadd.f32 %v5830, %v6216
    %v6218 = vpop.f32.mrf.mxu0
    %v6219 = vadd.f32 %v5832, %v6218
    %6220 = vmatmul.bf16.gmra.mxu0 %v6008
    %v6221 = vpop.f32.mrf.mxu0
    %v6222 = vadd.f32 %v5835, %v6221
    %v6223 = vpop.f32.mrf.mxu0
    %v6224 = vadd.f32 %v5837, %v6223
    %6225 = vmatmul.bf16.gmra.mxu0 %v6010
    %v6226 = vpop.f32.mrf.mxu0
    %v6227 = vadd.f32 %v5840, %v6226
    %v6228 = vpop.f32.mrf.mxu0
    %v6229 = vadd.f32 %v5842, %v6228
    %6230 = vmatmul.bf16.gmra.mxu0 %v6012
    %v6231 = vpop.f32.mrf.mxu0
    %v6232 = vadd.f32 %v5845, %v6231
    %v6233 = vpop.f32.mrf.mxu0
    %v6234 = vadd.f32 %v5847, %v6233
    %6235 = vmatmul.bf16.gmra.mxu0 %v6014
    %v6236 = vpop.f32.mrf.mxu0
    %v6237 = vadd.f32 %v5850, %v6236
    %v6238 = vpop.f32.mrf.mxu0
    %v6239 = vadd.f32 %v5852, %v6238
    %6240 = vdwg.mxu0
    %6241 = vmatpush.bf16.msra.mxu0 %v6158
    %6242 = vmatpush.bf16.msra.mxu0 %v6156
    %6243 = vmatpush.bf16.msra.mxu0 %v6154
    %6244 = vmatpush.bf16.msra.mxu0 %v6152
    %6245 = vmatpush.bf16.msra.mxu0 %v6150
    %6246 = vmatpush.bf16.msra.mxu0 %v6148
    %6247 = vmatpush.bf16.msra.mxu0 %v6146
    %6248 = vmatpush.bf16.msra.mxu0 %v6144
    %6249 = vmatmul.bf16.gmra.mxu0 %v6001
    %v6250 = vpop.f32.mrf.mxu0
    %v6251 = vadd.f32 %v6202, %v6250
    %v6252 = vpop.f32.mrf.mxu0
    %v6253 = vadd.f32 %v6204, %v6252
    %6254 = vmatmul.bf16.gmra.mxu0 %v6003
    %v6255 = vpop.f32.mrf.mxu0
    %v6256 = vadd.f32 %v6207, %v6255
    %v6257 = vpop.f32.mrf.mxu0
    %v6258 = vadd.f32 %v6209, %v6257
    %6259 = vmatmul.bf16.gmra.mxu0 %v6005
    %v6260 = vpop.f32.mrf.mxu0
    %v6261 = vadd.f32 %v6212, %v6260
    %v6262 = vpop.f32.mrf.mxu0
    %v6263 = vadd.f32 %v6214, %v6262
    %6264 = vmatmul.bf16.gmra.mxu0 %v6007
    %v6265 = vpop.f32.mrf.mxu0
    %v6266 = vadd.f32 %v6217, %v6265
    %v6267 = vpop.f32.mrf.mxu0
    %v6268 = vadd.f32 %v6219, %v6267
    %6269 = vmatmul.bf16.gmra.mxu0 %v6009
    %v6270 = vpop.f32.mrf.mxu0
    %v6271 = vadd.f32 %v6222, %v6270
    %v6272 = vpop.f32.mrf.mxu0
    %v6273 = vadd.f32 %v6224, %v6272
    %6274 = vmatmul.bf16.gmra.mxu0 %v6011
    %v6275 = vpop.f32.mrf.mxu0
    %v6276 = vadd.f32 %v6227, %v6275
    %v6277 = vpop.f32.mrf.mxu0
    %v6278 = vadd.f32 %v6229, %v6277
    %6279 = vmatmul.bf16.gmra.mxu0 %v6013
    %v6280 = vpop.f32.mrf.mxu0
    %v6281 = vadd.f32 %v6232, %v6280
    %v6282 = vpop.f32.mrf.mxu0
    %v6283 = vadd.f32 %v6234, %v6282
    %6284 = vmatmul.bf16.gmra.mxu0 %v6015
    %v6285 = vpop.f32.mrf.mxu0
    %v6286 = vadd.f32 %v6237, %v6285
    %v6287 = vpop.f32.mrf.mxu0
    %v6288 = vadd.f32 %v6239, %v6287
    %6289 = vdwg.mxu0
    %6290 = vmatpush.bf16.msra.mxu0 %v6143
    %6291 = vmatpush.bf16.msra.mxu0 %v6141
    %6292 = vmatpush.bf16.msra.mxu0 %v6139
    %6293 = vmatpush.bf16.msra.mxu0 %v6137
    %6294 = vmatpush.bf16.msra.mxu0 %v6135
    %6295 = vmatpush.bf16.msra.mxu0 %v6133
    %6296 = vmatpush.bf16.msra.mxu0 %v6131
    %6297 = vmatpush.bf16.msra.mxu0 %v6129
    %6298 = vmatmul.bf16.gmra.mxu0 %v6000
    %v6299 = vpop.f32.mrf.mxu0
    %v6300 = vadd.f32 %v5913, %v6299
    %v6301 = vpop.f32.mrf.mxu0
    %v6302 = vadd.f32 %v5915, %v6301
    %6303 = vmatmul.bf16.gmra.mxu0 %v6002
    %v6304 = vpop.f32.mrf.mxu0
    %v6305 = vadd.f32 %v5918, %v6304
    %v6306 = vpop.f32.mrf.mxu0
    %v6307 = vadd.f32 %v5920, %v6306
    %6308 = vmatmul.bf16.gmra.mxu0 %v6004
    %v6309 = vpop.f32.mrf.mxu0
    %v6310 = vadd.f32 %v5923, %v6309
    %v6311 = vpop.f32.mrf.mxu0
    %v6312 = vadd.f32 %v5925, %v6311
    %6313 = vmatmul.bf16.gmra.mxu0 %v6006
    %v6314 = vpop.f32.mrf.mxu0
    %v6315 = vadd.f32 %v5928, %v6314
    %v6316 = vpop.f32.mrf.mxu0
    %v6317 = vadd.f32 %v5930, %v6316
    %6318 = vmatmul.bf16.gmra.mxu0 %v6008
    %v6319 = vpop.f32.mrf.mxu0
    %v6320 = vadd.f32 %v5933, %v6319
    %v6321 = vpop.f32.mrf.mxu0
    %v6322 = vadd.f32 %v5935, %v6321
    %6323 = vmatmul.bf16.gmra.mxu0 %v6010
    %v6324 = vpop.f32.mrf.mxu0
    %v6325 = vadd.f32 %v5938, %v6324
    %v6326 = vpop.f32.mrf.mxu0
    %v6327 = vadd.f32 %v5940, %v6326
    %6328 = vmatmul.bf16.gmra.mxu0 %v6012
    %v6329 = vpop.f32.mrf.mxu0
    %v6330 = vadd.f32 %v5943, %v6329
    %v6331 = vpop.f32.mrf.mxu0
    %v6332 = vadd.f32 %v5945, %v6331
    %6333 = vmatmul.bf16.gmra.mxu0 %v6014
    %v6334 = vpop.f32.mrf.mxu0
    %v6335 = vadd.f32 %v5948, %v6334
    %v6336 = vpop.f32.mrf.mxu0
    %v6337 = vadd.f32 %v5950, %v6336
    %6338 = vdwg.mxu0
    %6339 = vmatpush.bf16.msra.mxu0 %v6159
    %6340 = vmatpush.bf16.msra.mxu0 %v6157
    %6341 = vmatpush.bf16.msra.mxu0 %v6155
    %6342 = vmatpush.bf16.msra.mxu0 %v6153
    %6343 = vmatpush.bf16.msra.mxu0 %v6151
    %6344 = vmatpush.bf16.msra.mxu0 %v6149
    %6345 = vmatpush.bf16.msra.mxu0 %v6147
    %6346 = vmatpush.bf16.msra.mxu0 %v6145
    %6347 = vmatmul.bf16.gmra.mxu0 %v6001
    %v6348 = vpop.f32.mrf.mxu0
    %v6349 = vadd.f32 %v6300, %v6348
    %v6350 = vpop.f32.mrf.mxu0
    %v6351 = vadd.f32 %v6302, %v6350
    %6352 = vmatmul.bf16.gmra.mxu0 %v6003
    %v6353 = vpop.f32.mrf.mxu0
    %v6354 = vadd.f32 %v6305, %v6353
    %v6355 = vpop.f32.mrf.mxu0
    %v6356 = vadd.f32 %v6307, %v6355
    %6357 = vmatmul.bf16.gmra.mxu0 %v6005
    %v6358 = vpop.f32.mrf.mxu0
    %v6359 = vadd.f32 %v6310, %v6358
    %v6360 = vpop.f32.mrf.mxu0
    %v6361 = vadd.f32 %v6312, %v6360
    %6362 = vmatmul.bf16.gmra.mxu0 %v6007
    %v6363 = vpop.f32.mrf.mxu0
    %v6364 = vadd.f32 %v6315, %v6363
    %v6365 = vpop.f32.mrf.mxu0
    %v6366 = vadd.f32 %v6317, %v6365
    %6367 = vmatmul.bf16.gmra.mxu0 %v6009
    %v6368 = vpop.f32.mrf.mxu0
    %v6369 = vadd.f32 %v6320, %v6368
    %v6370 = vpop.f32.mrf.mxu0
    %v6371 = vadd.f32 %v6322, %v6370
    %6372 = vmatmul.bf16.gmra.mxu0 %v6011
    %v6373 = vpop.f32.mrf.mxu0
    %v6374 = vadd.f32 %v6325, %v6373
    %v6375 = vpop.f32.mrf.mxu0
    %v6376 = vadd.f32 %v6327, %v6375
    %6377 = vmatmul.bf16.gmra.mxu0 %v6013
    %v6378 = vpop.f32.mrf.mxu0
    %v6379 = vadd.f32 %v6330, %v6378
    %v6380 = vpop.f32.mrf.mxu0
    %v6381 = vadd.f32 %v6332, %v6380
    %6382 = vmatmul.bf16.gmra.mxu0 %v6015
    %v6383 = vpop.f32.mrf.mxu0
    %v6384 = vadd.f32 %v6335, %v6383
    %v6385 = vpop.f32.mrf.mxu0
    %v6386 = vadd.f32 %v6337, %v6385
    %6387 = vdwg.mxu0
    %v6388 = vld [vmem:[%s2735] sm:$0xff]
    %v6389 = vld [vmem:[%s2735 + $0x8] sm:$0xff]
    %v6390 = vld [vmem:[%s2735 + $0x10] sm:$0xff]
    %v6391 = vld [vmem:[%s2735 + $0x18] sm:$0xff]
    %v6392 = vld [vmem:[%s2735 + $0x20] sm:$0xff]
    %v6393 = vld [vmem:[%s2735 + $0x28] sm:$0xff]
    %v6394 = vld [vmem:[%s2735 + $0x30] sm:$0xff]
    %v6395 = vld [vmem:[%s2735 + $0x38] sm:$0xff]
    %v6396 = vld [vmem:[%s2735 + $0x40] sm:$0xff]
    %v6397 = vld [vmem:[%s2735 + $0x48] sm:$0xff]
    %v6398 = vld [vmem:[%s2735 + $0x50] sm:$0xff]
    %v6399 = vld [vmem:[%s2735 + $0x58] sm:$0xff]
    %v6400 = vld [vmem:[%s2735 + $0x60] sm:$0xff]
    %v6401 = vld [vmem:[%s2735 + $0x68] sm:$0xff]
    %v6402 = vld [vmem:[%s2735 + $0x70] sm:$0xff]
    %v6403 = vld [vmem:[%s2735 + $0x78] sm:$0xff]
    %s6404 = scalar_lea.vmem [#allocation6], 3072
    %v6405 = vld [vmem:[%s6404] sm:$0xff]
    %v6406 = vld [vmem:[%s6404 + $0x8] sm:$0xff]
    %v6407 = vld [vmem:[%s6404 + $0x10] sm:$0xff]
    %v6408 = vld [vmem:[%s6404 + $0x18] sm:$0xff]
    %v6409 = vld [vmem:[%s6404 + $0x20] sm:$0xff]
    %v6410 = vld [vmem:[%s6404 + $0x28] sm:$0xff]
    %v6411 = vld [vmem:[%s6404 + $0x30] sm:$0xff]
    %v6412 = vld [vmem:[%s6404 + $0x38] sm:$0xff]
    %v6413 = vld [vmem:[%s6404 + $0x40] sm:$0xff]
    %v6414 = vld [vmem:[%s6404 + $0x48] sm:$0xff]
    %v6415 = vld [vmem:[%s6404 + $0x50] sm:$0xff]
    %v6416 = vld [vmem:[%s6404 + $0x58] sm:$0xff]
    %v6417 = vld [vmem:[%s6404 + $0x60] sm:$0xff]
    %v6418 = vld [vmem:[%s6404 + $0x68] sm:$0xff]
    %v6419 = vld [vmem:[%s6404 + $0x70] sm:$0xff]
    %v6420 = vld [vmem:[%s6404 + $0x78] sm:$0xff]
    %v6421 = vld [vmem:[%s6404 + $0x80] sm:$0xff]
    %v6422 = vld [vmem:[%s6404 + $0x88] sm:$0xff]
    %v6423 = vld [vmem:[%s6404 + $0x90] sm:$0xff]
    %v6424 = vld [vmem:[%s6404 + $0x98] sm:$0xff]
    %v6425 = vld [vmem:[%s6404 + $0xa0] sm:$0xff]
    %v6426 = vld [vmem:[%s6404 + $0xa8] sm:$0xff]
    %v6427 = vld [vmem:[%s6404 + $0xb0] sm:$0xff]
    %v6428 = vld [vmem:[%s6404 + $0xb8] sm:$0xff]
    %v6429 = vld [vmem:[%s6404 + $0xc0] sm:$0xff]
    %v6430 = vld [vmem:[%s6404 + $0xc8] sm:$0xff]
    %v6431 = vld [vmem:[%s6404 + $0xd0] sm:$0xff]
    %v6432 = vld [vmem:[%s6404 + $0xd8] sm:$0xff]
    %v6433 = vld [vmem:[%s6404 + $0xe0] sm:$0xff]
    %v6434 = vld [vmem:[%s6404 + $0xe8] sm:$0xff]
    %v6435 = vld [vmem:[%s6404 + $0xf0] sm:$0xff]
    %v6436 = vld [vmem:[%s6404 + $0xf8] sm:$0xff]
    %v6453 = vunpack.c.l.b16 %v6388
    %v6454 = vunpack.c.h.b16 %v6388
    %v6455 = vunpack.c.l.b16 %v6389
    %v6456 = vunpack.c.h.b16 %v6389
    %v6457 = vunpack.c.l.b16 %v6390
    %v6458 = vunpack.c.h.b16 %v6390
    %v6459 = vunpack.c.l.b16 %v6391
    %v6460 = vunpack.c.h.b16 %v6391
    %v6461 = vunpack.c.l.b16 %v6392
    %v6462 = vunpack.c.h.b16 %v6392
    %v6463 = vunpack.c.l.b16 %v6393
    %v6464 = vunpack.c.h.b16 %v6393
    %v6465 = vunpack.c.l.b16 %v6394
    %v6466 = vunpack.c.h.b16 %v6394
    %v6467 = vunpack.c.l.b16 %v6395
    %v6468 = vunpack.c.h.b16 %v6395
    %v6469 = vunpack.c.l.b16 %v6396
    %v6470 = vunpack.c.h.b16 %v6396
    %v6471 = vunpack.c.l.b16 %v6397
    %v6472 = vunpack.c.h.b16 %v6397
    %v6473 = vunpack.c.l.b16 %v6398
    %v6474 = vunpack.c.h.b16 %v6398
    %v6475 = vunpack.c.l.b16 %v6399
    %v6476 = vunpack.c.h.b16 %v6399
    %v6477 = vunpack.c.l.b16 %v6400
    %v6478 = vunpack.c.h.b16 %v6400
    %v6479 = vunpack.c.l.b16 %v6401
    %v6480 = vunpack.c.h.b16 %v6401
    %v6481 = vunpack.c.l.b16 %v6402
    %v6482 = vunpack.c.h.b16 %v6402
    %v6483 = vunpack.c.l.b16 %v6403
    %v6484 = vunpack.c.h.b16 %v6403
    %v6485 = vpack.c.b16 %v6455, %v6453
    %v6486 = vpack.c.b16 %v6456, %v6454
    %v6487 = vpack.c.b16 %v6459, %v6457
    %v6488 = vpack.c.b16 %v6460, %v6458
    %v6489 = vpack.c.b16 %v6463, %v6461
    %v6490 = vpack.c.b16 %v6464, %v6462
    %v6491 = vpack.c.b16 %v6467, %v6465
    %v6492 = vpack.c.b16 %v6468, %v6466
    %v6493 = vpack.c.b16 %v6471, %v6469
    %v6494 = vpack.c.b16 %v6472, %v6470
    %v6495 = vpack.c.b16 %v6475, %v6473
    %v6496 = vpack.c.b16 %v6476, %v6474
    %v6497 = vpack.c.b16 %v6479, %v6477
    %v6498 = vpack.c.b16 %v6480, %v6478
    %v6499 = vpack.c.b16 %v6483, %v6481
    %v6500 = vpack.c.b16 %v6484, %v6482
    %v6549 = vunpack.c.l.b16 %v6405
    %v6550 = vunpack.c.h.b16 %v6405
    %v6551 = vunpack.c.l.b16 %v6406
    %v6552 = vunpack.c.h.b16 %v6406
    %v6553 = vunpack.c.l.b16 %v6407
    %v6554 = vunpack.c.h.b16 %v6407
    %v6555 = vunpack.c.l.b16 %v6408
    %v6556 = vunpack.c.h.b16 %v6408
    %v6557 = vunpack.c.l.b16 %v6409
    %v6558 = vunpack.c.h.b16 %v6409
    %v6559 = vunpack.c.l.b16 %v6410
    %v6560 = vunpack.c.h.b16 %v6410
    %v6561 = vunpack.c.l.b16 %v6411
    %v6562 = vunpack.c.h.b16 %v6411
    %v6563 = vunpack.c.l.b16 %v6412
    %v6564 = vunpack.c.h.b16 %v6412
    %v6565 = vunpack.c.l.b16 %v6413
    %v6566 = vunpack.c.h.b16 %v6413
    %v6567 = vunpack.c.l.b16 %v6414
    %v6568 = vunpack.c.h.b16 %v6414
    %v6569 = vunpack.c.l.b16 %v6415
    %v6570 = vunpack.c.h.b16 %v6415
    %v6571 = vunpack.c.l.b16 %v6416
    %v6572 = vunpack.c.h.b16 %v6416
    %v6573 = vunpack.c.l.b16 %v6417
    %v6574 = vunpack.c.h.b16 %v6417
    %v6575 = vunpack.c.l.b16 %v6418
    %v6576 = vunpack.c.h.b16 %v6418
    %v6577 = vunpack.c.l.b16 %v6419
    %v6578 = vunpack.c.h.b16 %v6419
    %v6579 = vunpack.c.l.b16 %v6420
    %v6580 = vunpack.c.h.b16 %v6420
    %v6581 = vunpack.c.l.b16 %v6421
    %v6582 = vunpack.c.h.b16 %v6421
    %v6583 = vunpack.c.l.b16 %v6422
    %v6584 = vunpack.c.h.b16 %v6422
    %v6585 = vunpack.c.l.b16 %v6423
    %v6586 = vunpack.c.h.b16 %v6423
    %v6587 = vunpack.c.l.b16 %v6424
    %v6588 = vunpack.c.h.b16 %v6424
    %v6589 = vunpack.c.l.b16 %v6425
    %v6590 = vunpack.c.h.b16 %v6425
    %v6591 = vunpack.c.l.b16 %v6426
    %v6592 = vunpack.c.h.b16 %v6426
    %v6593 = vunpack.c.l.b16 %v6427
    %v6594 = vunpack.c.h.b16 %v6427
    %v6595 = vunpack.c.l.b16 %v6428
    %v6596 = vunpack.c.h.b16 %v6428
    %v6597 = vunpack.c.l.b16 %v6429
    %v6598 = vunpack.c.h.b16 %v6429
    %v6599 = vunpack.c.l.b16 %v6430
    %v6600 = vunpack.c.h.b16 %v6430
    %v6601 = vunpack.c.l.b16 %v6431
    %v6602 = vunpack.c.h.b16 %v6431
    %v6603 = vunpack.c.l.b16 %v6432
    %v6604 = vunpack.c.h.b16 %v6432
    %v6605 = vunpack.c.l.b16 %v6433
    %v6606 = vunpack.c.h.b16 %v6433
    %v6607 = vunpack.c.l.b16 %v6434
    %v6608 = vunpack.c.h.b16 %v6434
    %v6609 = vunpack.c.l.b16 %v6435
    %v6610 = vunpack.c.h.b16 %v6435
    %v6611 = vunpack.c.l.b16 %v6436
    %v6612 = vunpack.c.h.b16 %v6436
    %v6613 = vpack.c.b16 %v6551, %v6549
    %v6614 = vpack.c.b16 %v6552, %v6550
    %v6615 = vpack.c.b16 %v6555, %v6553
    %v6616 = vpack.c.b16 %v6556, %v6554
    %v6617 = vpack.c.b16 %v6559, %v6557
    %v6618 = vpack.c.b16 %v6560, %v6558
    %v6619 = vpack.c.b16 %v6563, %v6561
    %v6620 = vpack.c.b16 %v6564, %v6562
    %v6621 = vpack.c.b16 %v6567, %v6565
    %v6622 = vpack.c.b16 %v6568, %v6566
    %v6623 = vpack.c.b16 %v6571, %v6569
    %v6624 = vpack.c.b16 %v6572, %v6570
    %v6625 = vpack.c.b16 %v6575, %v6573
    %v6626 = vpack.c.b16 %v6576, %v6574
    %v6627 = vpack.c.b16 %v6579, %v6577
    %v6628 = vpack.c.b16 %v6580, %v6578
    %v6629 = vpack.c.b16 %v6583, %v6581
    %v6630 = vpack.c.b16 %v6584, %v6582
    %v6631 = vpack.c.b16 %v6587, %v6585
    %v6632 = vpack.c.b16 %v6588, %v6586
    %v6633 = vpack.c.b16 %v6591, %v6589
    %v6634 = vpack.c.b16 %v6592, %v6590
    %v6635 = vpack.c.b16 %v6595, %v6593
    %v6636 = vpack.c.b16 %v6596, %v6594
    %v6637 = vpack.c.b16 %v6599, %v6597
    %v6638 = vpack.c.b16 %v6600, %v6598
    %v6639 = vpack.c.b16 %v6603, %v6601
    %v6640 = vpack.c.b16 %v6604, %v6602
    %v6641 = vpack.c.b16 %v6607, %v6605
    %v6642 = vpack.c.b16 %v6608, %v6606
    %v6643 = vpack.c.b16 %v6611, %v6609
    %v6644 = vpack.c.b16 %v6612, %v6610
    %6677 = vmatpush.bf16.msra.mxu0 %v6627
    %6678 = vmatpush.bf16.msra.mxu0 %v6625
    %6679 = vmatpush.bf16.msra.mxu0 %v6623
    %6680 = vmatpush.bf16.msra.mxu0 %v6621
    %6681 = vmatpush.bf16.msra.mxu0 %v6619
    %6682 = vmatpush.bf16.msra.mxu0 %v6617
    %6683 = vmatpush.bf16.msra.mxu0 %v6615
    %6684 = vmatpush.bf16.msra.mxu0 %v6613
    %6685 = vmatmul.bf16.gmra.mxu0 %v6485
    %v6686 = vpop.f32.mrf.mxu0
    %v6687 = vadd.f32 0.0, %v6686
    %v6688 = vpop.f32.mrf.mxu0
    %v6689 = vadd.f32 0.0, %v6688
    %6690 = vmatmul.bf16.gmra.mxu0 %v6487
    %v6691 = vpop.f32.mrf.mxu0
    %v6692 = vadd.f32 0.0, %v6691
    %v6693 = vpop.f32.mrf.mxu0
    %v6694 = vadd.f32 0.0, %v6693
    %6695 = vmatmul.bf16.gmra.mxu0 %v6489
    %v6696 = vpop.f32.mrf.mxu0
    %v6697 = vadd.f32 0.0, %v6696
    %v6698 = vpop.f32.mrf.mxu0
    %v6699 = vadd.f32 0.0, %v6698
    %6700 = vmatmul.bf16.gmra.mxu0 %v6491
    %v6701 = vpop.f32.mrf.mxu0
    %v6702 = vadd.f32 0.0, %v6701
    %v6703 = vpop.f32.mrf.mxu0
    %v6704 = vadd.f32 0.0, %v6703
    %6705 = vmatmul.bf16.gmra.mxu0 %v6493
    %v6706 = vpop.f32.mrf.mxu0
    %v6707 = vadd.f32 0.0, %v6706
    %v6708 = vpop.f32.mrf.mxu0
    %v6709 = vadd.f32 0.0, %v6708
    %6710 = vmatmul.bf16.gmra.mxu0 %v6495
    %v6711 = vpop.f32.mrf.mxu0
    %v6712 = vadd.f32 0.0, %v6711
    %v6713 = vpop.f32.mrf.mxu0
    %v6714 = vadd.f32 0.0, %v6713
    %6715 = vmatmul.bf16.gmra.mxu0 %v6497
    %v6716 = vpop.f32.mrf.mxu0
    %v6717 = vadd.f32 0.0, %v6716
    %v6718 = vpop.f32.mrf.mxu0
    %v6719 = vadd.f32 0.0, %v6718
    %6720 = vmatmul.bf16.gmra.mxu0 %v6499
    %v6721 = vpop.f32.mrf.mxu0
    %v6722 = vadd.f32 0.0, %v6721
    %v6723 = vpop.f32.mrf.mxu0
    %v6724 = vadd.f32 0.0, %v6723
    %6725 = vdwg.mxu0
    %6726 = vmatpush.bf16.msra.mxu0 %v6643
    %6727 = vmatpush.bf16.msra.mxu0 %v6641
    %6728 = vmatpush.bf16.msra.mxu0 %v6639
    %6729 = vmatpush.bf16.msra.mxu0 %v6637
    %6730 = vmatpush.bf16.msra.mxu0 %v6635
    %6731 = vmatpush.bf16.msra.mxu0 %v6633
    %6732 = vmatpush.bf16.msra.mxu0 %v6631
    %6733 = vmatpush.bf16.msra.mxu0 %v6629
    %6734 = vmatmul.bf16.gmra.mxu0 %v6486
    %v6735 = vpop.f32.mrf.mxu0
    %v6736 = vadd.f32 %v6687, %v6735
    %v6737 = vpop.f32.mrf.mxu0
    %v6738 = vadd.f32 %v6689, %v6737
    %6739 = vmatmul.bf16.gmra.mxu0 %v6488
    %v6740 = vpop.f32.mrf.mxu0
    %v6741 = vadd.f32 %v6692, %v6740
    %v6742 = vpop.f32.mrf.mxu0
    %v6743 = vadd.f32 %v6694, %v6742
    %6744 = vmatmul.bf16.gmra.mxu0 %v6490
    %v6745 = vpop.f32.mrf.mxu0
    %v6746 = vadd.f32 %v6697, %v6745
    %v6747 = vpop.f32.mrf.mxu0
    %v6748 = vadd.f32 %v6699, %v6747
    %6749 = vmatmul.bf16.gmra.mxu0 %v6492
    %v6750 = vpop.f32.mrf.mxu0
    %v6751 = vadd.f32 %v6702, %v6750
    %v6752 = vpop.f32.mrf.mxu0
    %v6753 = vadd.f32 %v6704, %v6752
    %6754 = vmatmul.bf16.gmra.mxu0 %v6494
    %v6755 = vpop.f32.mrf.mxu0
    %v6756 = vadd.f32 %v6707, %v6755
    %v6757 = vpop.f32.mrf.mxu0
    %v6758 = vadd.f32 %v6709, %v6757
    %6759 = vmatmul.bf16.gmra.mxu0 %v6496
    %v6760 = vpop.f32.mrf.mxu0
    %v6761 = vadd.f32 %v6712, %v6760
    %v6762 = vpop.f32.mrf.mxu0
    %v6763 = vadd.f32 %v6714, %v6762
    %6764 = vmatmul.bf16.gmra.mxu0 %v6498
    %v6765 = vpop.f32.mrf.mxu0
    %v6766 = vadd.f32 %v6717, %v6765
    %v6767 = vpop.f32.mrf.mxu0
    %v6768 = vadd.f32 %v6719, %v6767
    %6769 = vmatmul.bf16.gmra.mxu0 %v6500
    %v6770 = vpop.f32.mrf.mxu0
    %v6771 = vadd.f32 %v6722, %v6770
    %v6772 = vpop.f32.mrf.mxu0
    %v6773 = vadd.f32 %v6724, %v6772
    %6774 = vdwg.mxu0
    %6775 = vmatpush.bf16.msra.mxu0 %v6628
    %6776 = vmatpush.bf16.msra.mxu0 %v6626
    %6777 = vmatpush.bf16.msra.mxu0 %v6624
    %6778 = vmatpush.bf16.msra.mxu0 %v6622
    %6779 = vmatpush.bf16.msra.mxu0 %v6620
    %6780 = vmatpush.bf16.msra.mxu0 %v6618
    %6781 = vmatpush.bf16.msra.mxu0 %v6616
    %6782 = vmatpush.bf16.msra.mxu0 %v6614
    %6783 = vmatmul.bf16.gmra.mxu0 %v6485
    %v6784 = vpop.f32.mrf.mxu0
    %v6785 = vadd.f32 0.0, %v6784
    %v6786 = vpop.f32.mrf.mxu0
    %v6787 = vadd.f32 0.0, %v6786
    %6788 = vmatmul.bf16.gmra.mxu0 %v6487
    %v6789 = vpop.f32.mrf.mxu0
    %v6790 = vadd.f32 0.0, %v6789
    %v6791 = vpop.f32.mrf.mxu0
    %v6792 = vadd.f32 0.0, %v6791
    %6793 = vmatmul.bf16.gmra.mxu0 %v6489
    %v6794 = vpop.f32.mrf.mxu0
    %v6795 = vadd.f32 0.0, %v6794
    %v6796 = vpop.f32.mrf.mxu0
    %v6797 = vadd.f32 0.0, %v6796
    %6798 = vmatmul.bf16.gmra.mxu0 %v6491
    %v6799 = vpop.f32.mrf.mxu0
    %v6800 = vadd.f32 0.0, %v6799
    %v6801 = vpop.f32.mrf.mxu0
    %v6802 = vadd.f32 0.0, %v6801
    %6803 = vmatmul.bf16.gmra.mxu0 %v6493
    %v6804 = vpop.f32.mrf.mxu0
    %v6805 = vadd.f32 0.0, %v6804
    %v6806 = vpop.f32.mrf.mxu0
    %v6807 = vadd.f32 0.0, %v6806
    %6808 = vmatmul.bf16.gmra.mxu0 %v6495
    %v6809 = vpop.f32.mrf.mxu0
    %v6810 = vadd.f32 0.0, %v6809
    %v6811 = vpop.f32.mrf.mxu0
    %v6812 = vadd.f32 0.0, %v6811
    %6813 = vmatmul.bf16.gmra.mxu0 %v6497
    %v6814 = vpop.f32.mrf.mxu0
    %v6815 = vadd.f32 0.0, %v6814
    %v6816 = vpop.f32.mrf.mxu0
    %v6817 = vadd.f32 0.0, %v6816
    %6818 = vmatmul.bf16.gmra.mxu0 %v6499
    %v6819 = vpop.f32.mrf.mxu0
    %v6820 = vadd.f32 0.0, %v6819
    %v6821 = vpop.f32.mrf.mxu0
    %v6822 = vadd.f32 0.0, %v6821
    %6823 = vdwg.mxu0
    %6824 = vmatpush.bf16.msra.mxu0 %v6644
    %6825 = vmatpush.bf16.msra.mxu0 %v6642
    %6826 = vmatpush.bf16.msra.mxu0 %v6640
    %6827 = vmatpush.bf16.msra.mxu0 %v6638
    %6828 = vmatpush.bf16.msra.mxu0 %v6636
    %6829 = vmatpush.bf16.msra.mxu0 %v6634
    %6830 = vmatpush.bf16.msra.mxu0 %v6632
    %6831 = vmatpush.bf16.msra.mxu0 %v6630
    %6832 = vmatmul.bf16.gmra.mxu0 %v6486
    %v6833 = vpop.f32.mrf.mxu0
    %v6834 = vadd.f32 %v6785, %v6833
    %v6835 = vpop.f32.mrf.mxu0
    %v6836 = vadd.f32 %v6787, %v6835
    %6837 = vmatmul.bf16.gmra.mxu0 %v6488
    %v6838 = vpop.f32.mrf.mxu0
    %v6839 = vadd.f32 %v6790, %v6838
    %v6840 = vpop.f32.mrf.mxu0
    %v6841 = vadd.f32 %v6792, %v6840
    %6842 = vmatmul.bf16.gmra.mxu0 %v6490
    %v6843 = vpop.f32.mrf.mxu0
    %v6844 = vadd.f32 %v6795, %v6843
    %v6845 = vpop.f32.mrf.mxu0
    %v6846 = vadd.f32 %v6797, %v6845
    %6847 = vmatmul.bf16.gmra.mxu0 %v6492
    %v6848 = vpop.f32.mrf.mxu0
    %v6849 = vadd.f32 %v6800, %v6848
    %v6850 = vpop.f32.mrf.mxu0
    %v6851 = vadd.f32 %v6802, %v6850
    %6852 = vmatmul.bf16.gmra.mxu0 %v6494
    %v6853 = vpop.f32.mrf.mxu0
    %v6854 = vadd.f32 %v6805, %v6853
    %v6855 = vpop.f32.mrf.mxu0
    %v6856 = vadd.f32 %v6807, %v6855
    %6857 = vmatmul.bf16.gmra.mxu0 %v6496
    %v6858 = vpop.f32.mrf.mxu0
    %v6859 = vadd.f32 %v6810, %v6858
    %v6860 = vpop.f32.mrf.mxu0
    %v6861 = vadd.f32 %v6812, %v6860
    %6862 = vmatmul.bf16.gmra.mxu0 %v6498
    %v6863 = vpop.f32.mrf.mxu0
    %v6864 = vadd.f32 %v6815, %v6863
    %v6865 = vpop.f32.mrf.mxu0
    %v6866 = vadd.f32 %v6817, %v6865
    %6867 = vmatmul.bf16.gmra.mxu0 %v6500
    %v6868 = vpop.f32.mrf.mxu0
    %v6869 = vadd.f32 %v6820, %v6868
    %v6870 = vpop.f32.mrf.mxu0
    %v6871 = vadd.f32 %v6822, %v6870
    %6872 = vdwg.mxu0
    %v6873 = vadd.f32 %v6251, %v6736
    %v6874 = vadd.f32 %v6349, %v6834
    %v6875 = vadd.f32 %v6253, %v6738
    %v6876 = vadd.f32 %v6351, %v6836
    %v6877 = vadd.f32 %v6256, %v6741
    %v6878 = vadd.f32 %v6354, %v6839
    %v6879 = vadd.f32 %v6258, %v6743
    %v6880 = vadd.f32 %v6356, %v6841
    %v6881 = vadd.f32 %v6261, %v6746
    %v6882 = vadd.f32 %v6359, %v6844
    %v6883 = vadd.f32 %v6263, %v6748
    %v6884 = vadd.f32 %v6361, %v6846
    %v6885 = vadd.f32 %v6266, %v6751
    %v6886 = vadd.f32 %v6364, %v6849
    %v6887 = vadd.f32 %v6268, %v6753
    %v6888 = vadd.f32 %v6366, %v6851
    %v6889 = vadd.f32 %v6271, %v6756
    %v6890 = vadd.f32 %v6369, %v6854
    %v6891 = vadd.f32 %v6273, %v6758
    %v6892 = vadd.f32 %v6371, %v6856
    %v6893 = vadd.f32 %v6276, %v6761
    %v6894 = vadd.f32 %v6374, %v6859
    %v6895 = vadd.f32 %v6278, %v6763
    %v6896 = vadd.f32 %v6376, %v6861
    %v6897 = vadd.f32 %v6281, %v6766
    %v6898 = vadd.f32 %v6379, %v6864
    %v6899 = vadd.f32 %v6283, %v6768
    %v6900 = vadd.f32 %v6381, %v6866
    %v6901 = vadd.f32 %v6286, %v6771
    %v6902 = vadd.f32 %v6384, %v6869
    %v6903 = vadd.f32 %v6288, %v6773
    %v6904 = vadd.f32 %v6386, %v6871
    %v6905 = vld [vmem:[%s4240] sm:$0xff]
    %v6906 = vld [vmem:[%s4240 + $0x8] sm:$0xff]
    %v6907 = vld [vmem:[%s4240 + $0x10] sm:$0xff]
    %v6908 = vld [vmem:[%s4240 + $0x18] sm:$0xff]
    %v6909 = vld [vmem:[%s4240 + $0x20] sm:$0xff]
    %v6910 = vld [vmem:[%s4240 + $0x28] sm:$0xff]
    %v6911 = vld [vmem:[%s4240 + $0x30] sm:$0xff]
    %v6912 = vld [vmem:[%s4240 + $0x38] sm:$0xff]
    %v6913 = vld [vmem:[%s4240 + $0x40] sm:$0xff]
    %v6914 = vld [vmem:[%s4240 + $0x48] sm:$0xff]
    %v6915 = vld [vmem:[%s4240 + $0x50] sm:$0xff]
    %v6916 = vld [vmem:[%s4240 + $0x58] sm:$0xff]
    %v6917 = vld [vmem:[%s4240 + $0x60] sm:$0xff]
    %v6918 = vld [vmem:[%s4240 + $0x68] sm:$0xff]
    %v6919 = vld [vmem:[%s4240 + $0x70] sm:$0xff]
    %v6920 = vld [vmem:[%s4240 + $0x78] sm:$0xff]
    %s6921 = scalar_lea.vmem [#allocation6], 3328
    %v6922 = vld [vmem:[%s6921] sm:$0xff]
    %v6923 = vld [vmem:[%s6921 + $0x8] sm:$0xff]
    %v6924 = vld [vmem:[%s6921 + $0x10] sm:$0xff]
    %v6925 = vld [vmem:[%s6921 + $0x18] sm:$0xff]
    %v6926 = vld [vmem:[%s6921 + $0x20] sm:$0xff]
    %v6927 = vld [vmem:[%s6921 + $0x28] sm:$0xff]
    %v6928 = vld [vmem:[%s6921 + $0x30] sm:$0xff]
    %v6929 = vld [vmem:[%s6921 + $0x38] sm:$0xff]
    %v6930 = vld [vmem:[%s6921 + $0x40] sm:$0xff]
    %v6931 = vld [vmem:[%s6921 + $0x48] sm:$0xff]
    %v6932 = vld [vmem:[%s6921 + $0x50] sm:$0xff]
    %v6933 = vld [vmem:[%s6921 + $0x58] sm:$0xff]
    %v6934 = vld [vmem:[%s6921 + $0x60] sm:$0xff]
    %v6935 = vld [vmem:[%s6921 + $0x68] sm:$0xff]
    %v6936 = vld [vmem:[%s6921 + $0x70] sm:$0xff]
    %v6937 = vld [vmem:[%s6921 + $0x78] sm:$0xff]
    %v6938 = vld [vmem:[%s6921 + $0x80] sm:$0xff]
    %v6939 = vld [vmem:[%s6921 + $0x88] sm:$0xff]
    %v6940 = vld [vmem:[%s6921 + $0x90] sm:$0xff]
    %v6941 = vld [vmem:[%s6921 + $0x98] sm:$0xff]
    %v6942 = vld [vmem:[%s6921 + $0xa0] sm:$0xff]
    %v6943 = vld [vmem:[%s6921 + $0xa8] sm:$0xff]
    %v6944 = vld [vmem:[%s6921 + $0xb0] sm:$0xff]
    %v6945 = vld [vmem:[%s6921 + $0xb8] sm:$0xff]
    %v6946 = vld [vmem:[%s6921 + $0xc0] sm:$0xff]
    %v6947 = vld [vmem:[%s6921 + $0xc8] sm:$0xff]
    %v6948 = vld [vmem:[%s6921 + $0xd0] sm:$0xff]
    %v6949 = vld [vmem:[%s6921 + $0xd8] sm:$0xff]
    %v6950 = vld [vmem:[%s6921 + $0xe0] sm:$0xff]
    %v6951 = vld [vmem:[%s6921 + $0xe8] sm:$0xff]
    %v6952 = vld [vmem:[%s6921 + $0xf0] sm:$0xff]
    %v6953 = vld [vmem:[%s6921 + $0xf8] sm:$0xff]
    %v6970 = vunpack.c.l.b16 %v6905
    %v6971 = vunpack.c.h.b16 %v6905
    %v6972 = vunpack.c.l.b16 %v6906
    %v6973 = vunpack.c.h.b16 %v6906
    %v6974 = vunpack.c.l.b16 %v6907
    %v6975 = vunpack.c.h.b16 %v6907
    %v6976 = vunpack.c.l.b16 %v6908
    %v6977 = vunpack.c.h.b16 %v6908
    %v6978 = vunpack.c.l.b16 %v6909
    %v6979 = vunpack.c.h.b16 %v6909
    %v6980 = vunpack.c.l.b16 %v6910
    %v6981 = vunpack.c.h.b16 %v6910
    %v6982 = vunpack.c.l.b16 %v6911
    %v6983 = vunpack.c.h.b16 %v6911
    %v6984 = vunpack.c.l.b16 %v6912
    %v6985 = vunpack.c.h.b16 %v6912
    %v6986 = vunpack.c.l.b16 %v6913
    %v6987 = vunpack.c.h.b16 %v6913
    %v6988 = vunpack.c.l.b16 %v6914
    %v6989 = vunpack.c.h.b16 %v6914
    %v6990 = vunpack.c.l.b16 %v6915
    %v6991 = vunpack.c.h.b16 %v6915
    %v6992 = vunpack.c.l.b16 %v6916
    %v6993 = vunpack.c.h.b16 %v6916
    %v6994 = vunpack.c.l.b16 %v6917
    %v6995 = vunpack.c.h.b16 %v6917
    %v6996 = vunpack.c.l.b16 %v6918
    %v6997 = vunpack.c.h.b16 %v6918
    %v6998 = vunpack.c.l.b16 %v6919
    %v6999 = vunpack.c.h.b16 %v6919
    %v7000 = vunpack.c.l.b16 %v6920
    %v7001 = vunpack.c.h.b16 %v6920
    %v7002 = vpack.c.b16 %v6972, %v6970
    %v7003 = vpack.c.b16 %v6973, %v6971
    %v7004 = vpack.c.b16 %v6976, %v6974
    %v7005 = vpack.c.b16 %v6977, %v6975
    %v7006 = vpack.c.b16 %v6980, %v6978
    %v7007 = vpack.c.b16 %v6981, %v6979
    %v7008 = vpack.c.b16 %v6984, %v6982
    %v7009 = vpack.c.b16 %v6985, %v6983
    %v7010 = vpack.c.b16 %v6988, %v6986
    %v7011 = vpack.c.b16 %v6989, %v6987
    %v7012 = vpack.c.b16 %v6992, %v6990
    %v7013 = vpack.c.b16 %v6993, %v6991
    %v7014 = vpack.c.b16 %v6996, %v6994
    %v7015 = vpack.c.b16 %v6997, %v6995
    %v7016 = vpack.c.b16 %v7000, %v6998
    %v7017 = vpack.c.b16 %v7001, %v6999
    %v7066 = vunpack.c.l.b16 %v6922
    %v7067 = vunpack.c.h.b16 %v6922
    %v7068 = vunpack.c.l.b16 %v6923
    %v7069 = vunpack.c.h.b16 %v6923
    %v7070 = vunpack.c.l.b16 %v6924
    %v7071 = vunpack.c.h.b16 %v6924
    %v7072 = vunpack.c.l.b16 %v6925
    %v7073 = vunpack.c.h.b16 %v6925
    %v7074 = vunpack.c.l.b16 %v6926
    %v7075 = vunpack.c.h.b16 %v6926
    %v7076 = vunpack.c.l.b16 %v6927
    %v7077 = vunpack.c.h.b16 %v6927
    %v7078 = vunpack.c.l.b16 %v6928
    %v7079 = vunpack.c.h.b16 %v6928
    %v7080 = vunpack.c.l.b16 %v6929
    %v7081 = vunpack.c.h.b16 %v6929
    %v7082 = vunpack.c.l.b16 %v6930
    %v7083 = vunpack.c.h.b16 %v6930
    %v7084 = vunpack.c.l.b16 %v6931
    %v7085 = vunpack.c.h.b16 %v6931
    %v7086 = vunpack.c.l.b16 %v6932
    %v7087 = vunpack.c.h.b16 %v6932
    %v7088 = vunpack.c.l.b16 %v6933
    %v7089 = vunpack.c.h.b16 %v6933
    %v7090 = vunpack.c.l.b16 %v6934
    %v7091 = vunpack.c.h.b16 %v6934
    %v7092 = vunpack.c.l.b16 %v6935
    %v7093 = vunpack.c.h.b16 %v6935
    %v7094 = vunpack.c.l.b16 %v6936
    %v7095 = vunpack.c.h.b16 %v6936
    %v7096 = vunpack.c.l.b16 %v6937
    %v7097 = vunpack.c.h.b16 %v6937
    %v7098 = vunpack.c.l.b16 %v6938
    %v7099 = vunpack.c.h.b16 %v6938
    %v7100 = vunpack.c.l.b16 %v6939
    %v7101 = vunpack.c.h.b16 %v6939
    %v7102 = vunpack.c.l.b16 %v6940
    %v7103 = vunpack.c.h.b16 %v6940
    %v7104 = vunpack.c.l.b16 %v6941
    %v7105 = vunpack.c.h.b16 %v6941
    %v7106 = vunpack.c.l.b16 %v6942
    %v7107 = vunpack.c.h.b16 %v6942
    %v7108 = vunpack.c.l.b16 %v6943
    %v7109 = vunpack.c.h.b16 %v6943
    %v7110 = vunpack.c.l.b16 %v6944
    %v7111 = vunpack.c.h.b16 %v6944
    %v7112 = vunpack.c.l.b16 %v6945
    %v7113 = vunpack.c.h.b16 %v6945
    %v7114 = vunpack.c.l.b16 %v6946
    %v7115 = vunpack.c.h.b16 %v6946
    %v7116 = vunpack.c.l.b16 %v6947
    %v7117 = vunpack.c.h.b16 %v6947
    %v7118 = vunpack.c.l.b16 %v6948
    %v7119 = vunpack.c.h.b16 %v6948
    %v7120 = vunpack.c.l.b16 %v6949
    %v7121 = vunpack.c.h.b16 %v6949
    %v7122 = vunpack.c.l.b16 %v6950
    %v7123 = vunpack.c.h.b16 %v6950
    %v7124 = vunpack.c.l.b16 %v6951
    %v7125 = vunpack.c.h.b16 %v6951
    %v7126 = vunpack.c.l.b16 %v6952
    %v7127 = vunpack.c.h.b16 %v6952
    %v7128 = vunpack.c.l.b16 %v6953
    %v7129 = vunpack.c.h.b16 %v6953
    %v7130 = vpack.c.b16 %v7068, %v7066
    %v7131 = vpack.c.b16 %v7069, %v7067
    %v7132 = vpack.c.b16 %v7072, %v7070
    %v7133 = vpack.c.b16 %v7073, %v7071
    %v7134 = vpack.c.b16 %v7076, %v7074
    %v7135 = vpack.c.b16 %v7077, %v7075
    %v7136 = vpack.c.b16 %v7080, %v7078
    %v7137 = vpack.c.b16 %v7081, %v7079
    %v7138 = vpack.c.b16 %v7084, %v7082
    %v7139 = vpack.c.b16 %v7085, %v7083
    %v7140 = vpack.c.b16 %v7088, %v7086
    %v7141 = vpack.c.b16 %v7089, %v7087
    %v7142 = vpack.c.b16 %v7092, %v7090
    %v7143 = vpack.c.b16 %v7093, %v7091
    %v7144 = vpack.c.b16 %v7096, %v7094
    %v7145 = vpack.c.b16 %v7097, %v7095
    %v7146 = vpack.c.b16 %v7100, %v7098
    %v7147 = vpack.c.b16 %v7101, %v7099
    %v7148 = vpack.c.b16 %v7104, %v7102
    %v7149 = vpack.c.b16 %v7105, %v7103
    %v7150 = vpack.c.b16 %v7108, %v7106
    %v7151 = vpack.c.b16 %v7109, %v7107
    %v7152 = vpack.c.b16 %v7112, %v7110
    %v7153 = vpack.c.b16 %v7113, %v7111
    %v7154 = vpack.c.b16 %v7116, %v7114
    %v7155 = vpack.c.b16 %v7117, %v7115
    %v7156 = vpack.c.b16 %v7120, %v7118
    %v7157 = vpack.c.b16 %v7121, %v7119
    %v7158 = vpack.c.b16 %v7124, %v7122
    %v7159 = vpack.c.b16 %v7125, %v7123
    %v7160 = vpack.c.b16 %v7128, %v7126
    %v7161 = vpack.c.b16 %v7129, %v7127
    %7194 = vmatpush.bf16.msra.mxu0 %v7144
    %7195 = vmatpush.bf16.msra.mxu0 %v7142
    %7196 = vmatpush.bf16.msra.mxu0 %v7140
    %7197 = vmatpush.bf16.msra.mxu0 %v7138
    %7198 = vmatpush.bf16.msra.mxu0 %v7136
    %7199 = vmatpush.bf16.msra.mxu0 %v7134
    %7200 = vmatpush.bf16.msra.mxu0 %v7132
    %7201 = vmatpush.bf16.msra.mxu0 %v7130
    %7202 = vmatmul.bf16.gmra.mxu0 %v7002
    %v7203 = vpop.f32.mrf.mxu0
    %v7204 = vadd.f32 0.0, %v7203
    %v7205 = vpop.f32.mrf.mxu0
    %v7206 = vadd.f32 0.0, %v7205
    %7207 = vmatmul.bf16.gmra.mxu0 %v7004
    %v7208 = vpop.f32.mrf.mxu0
    %v7209 = vadd.f32 0.0, %v7208
    %v7210 = vpop.f32.mrf.mxu0
    %v7211 = vadd.f32 0.0, %v7210
    %7212 = vmatmul.bf16.gmra.mxu0 %v7006
    %v7213 = vpop.f32.mrf.mxu0
    %v7214 = vadd.f32 0.0, %v7213
    %v7215 = vpop.f32.mrf.mxu0
    %v7216 = vadd.f32 0.0, %v7215
    %7217 = vmatmul.bf16.gmra.mxu0 %v7008
    %v7218 = vpop.f32.mrf.mxu0
    %v7219 = vadd.f32 0.0, %v7218
    %v7220 = vpop.f32.mrf.mxu0
    %v7221 = vadd.f32 0.0, %v7220
    %7222 = vmatmul.bf16.gmra.mxu0 %v7010
    %v7223 = vpop.f32.mrf.mxu0
    %v7224 = vadd.f32 0.0, %v7223
    %v7225 = vpop.f32.mrf.mxu0
    %v7226 = vadd.f32 0.0, %v7225
    %7227 = vmatmul.bf16.gmra.mxu0 %v7012
    %v7228 = vpop.f32.mrf.mxu0
    %v7229 = vadd.f32 0.0, %v7228
    %v7230 = vpop.f32.mrf.mxu0
    %v7231 = vadd.f32 0.0, %v7230
    %7232 = vmatmul.bf16.gmra.mxu0 %v7014
    %v7233 = vpop.f32.mrf.mxu0
    %v7234 = vadd.f32 0.0, %v7233
    %v7235 = vpop.f32.mrf.mxu0
    %v7236 = vadd.f32 0.0, %v7235
    %7237 = vmatmul.bf16.gmra.mxu0 %v7016
    %v7238 = vpop.f32.mrf.mxu0
    %v7239 = vadd.f32 0.0, %v7238
    %v7240 = vpop.f32.mrf.mxu0
    %v7241 = vadd.f32 0.0, %v7240
    %7242 = vdwg.mxu0
    %7243 = vmatpush.bf16.msra.mxu0 %v7160
    %7244 = vmatpush.bf16.msra.mxu0 %v7158
    %7245 = vmatpush.bf16.msra.mxu0 %v7156
    %7246 = vmatpush.bf16.msra.mxu0 %v7154
    %7247 = vmatpush.bf16.msra.mxu0 %v7152
    %7248 = vmatpush.bf16.msra.mxu0 %v7150
    %7249 = vmatpush.bf16.msra.mxu0 %v7148
    %7250 = vmatpush.bf16.msra.mxu0 %v7146
    %7251 = vmatmul.bf16.gmra.mxu0 %v7003
    %v7252 = vpop.f32.mrf.mxu0
    %v7253 = vadd.f32 %v7204, %v7252
    %v7254 = vpop.f32.mrf.mxu0
    %v7255 = vadd.f32 %v7206, %v7254
    %7256 = vmatmul.bf16.gmra.mxu0 %v7005
    %v7257 = vpop.f32.mrf.mxu0
    %v7258 = vadd.f32 %v7209, %v7257
    %v7259 = vpop.f32.mrf.mxu0
    %v7260 = vadd.f32 %v7211, %v7259
    %7261 = vmatmul.bf16.gmra.mxu0 %v7007
    %v7262 = vpop.f32.mrf.mxu0
    %v7263 = vadd.f32 %v7214, %v7262
    %v7264 = vpop.f32.mrf.mxu0
    %v7265 = vadd.f32 %v7216, %v7264
    %7266 = vmatmul.bf16.gmra.mxu0 %v7009
    %v7267 = vpop.f32.mrf.mxu0
    %v7268 = vadd.f32 %v7219, %v7267
    %v7269 = vpop.f32.mrf.mxu0
    %v7270 = vadd.f32 %v7221, %v7269
    %7271 = vmatmul.bf16.gmra.mxu0 %v7011
    %v7272 = vpop.f32.mrf.mxu0
    %v7273 = vadd.f32 %v7224, %v7272
    %v7274 = vpop.f32.mrf.mxu0
    %v7275 = vadd.f32 %v7226, %v7274
    %7276 = vmatmul.bf16.gmra.mxu0 %v7013
    %v7277 = vpop.f32.mrf.mxu0
    %v7278 = vadd.f32 %v7229, %v7277
    %v7279 = vpop.f32.mrf.mxu0
    %v7280 = vadd.f32 %v7231, %v7279
    %7281 = vmatmul.bf16.gmra.mxu0 %v7015
    %v7282 = vpop.f32.mrf.mxu0
    %v7283 = vadd.f32 %v7234, %v7282
    %v7284 = vpop.f32.mrf.mxu0
    %v7285 = vadd.f32 %v7236, %v7284
    %7286 = vmatmul.bf16.gmra.mxu0 %v7017
    %v7287 = vpop.f32.mrf.mxu0
    %v7288 = vadd.f32 %v7239, %v7287
    %v7289 = vpop.f32.mrf.mxu0
    %v7290 = vadd.f32 %v7241, %v7289
    %7291 = vdwg.mxu0
    %7292 = vmatpush.bf16.msra.mxu0 %v7145
    %7293 = vmatpush.bf16.msra.mxu0 %v7143
    %7294 = vmatpush.bf16.msra.mxu0 %v7141
    %7295 = vmatpush.bf16.msra.mxu0 %v7139
    %7296 = vmatpush.bf16.msra.mxu0 %v7137
    %7297 = vmatpush.bf16.msra.mxu0 %v7135
    %7298 = vmatpush.bf16.msra.mxu0 %v7133
    %7299 = vmatpush.bf16.msra.mxu0 %v7131
    %7300 = vmatmul.bf16.gmra.mxu0 %v7002
    %v7301 = vpop.f32.mrf.mxu0
    %v7302 = vadd.f32 0.0, %v7301
    %v7303 = vpop.f32.mrf.mxu0
    %v7304 = vadd.f32 0.0, %v7303
    %7305 = vmatmul.bf16.gmra.mxu0 %v7004
    %v7306 = vpop.f32.mrf.mxu0
    %v7307 = vadd.f32 0.0, %v7306
    %v7308 = vpop.f32.mrf.mxu0
    %v7309 = vadd.f32 0.0, %v7308
    %7310 = vmatmul.bf16.gmra.mxu0 %v7006
    %v7311 = vpop.f32.mrf.mxu0
    %v7312 = vadd.f32 0.0, %v7311
    %v7313 = vpop.f32.mrf.mxu0
    %v7314 = vadd.f32 0.0, %v7313
    %7315 = vmatmul.bf16.gmra.mxu0 %v7008
    %v7316 = vpop.f32.mrf.mxu0
    %v7317 = vadd.f32 0.0, %v7316
    %v7318 = vpop.f32.mrf.mxu0
    %v7319 = vadd.f32 0.0, %v7318
    %7320 = vmatmul.bf16.gmra.mxu0 %v7010
    %v7321 = vpop.f32.mrf.mxu0
    %v7322 = vadd.f32 0.0, %v7321
    %v7323 = vpop.f32.mrf.mxu0
    %v7324 = vadd.f32 0.0, %v7323
    %7325 = vmatmul.bf16.gmra.mxu0 %v7012
    %v7326 = vpop.f32.mrf.mxu0
    %v7327 = vadd.f32 0.0, %v7326
    %v7328 = vpop.f32.mrf.mxu0
    %v7329 = vadd.f32 0.0, %v7328
    %7330 = vmatmul.bf16.gmra.mxu0 %v7014
    %v7331 = vpop.f32.mrf.mxu0
    %v7332 = vadd.f32 0.0, %v7331
    %v7333 = vpop.f32.mrf.mxu0
    %v7334 = vadd.f32 0.0, %v7333
    %7335 = vmatmul.bf16.gmra.mxu0 %v7016
    %v7336 = vpop.f32.mrf.mxu0
    %v7337 = vadd.f32 0.0, %v7336
    %v7338 = vpop.f32.mrf.mxu0
    %v7339 = vadd.f32 0.0, %v7338
    %7340 = vdwg.mxu0
    %7341 = vmatpush.bf16.msra.mxu0 %v7161
    %7342 = vmatpush.bf16.msra.mxu0 %v7159
    %7343 = vmatpush.bf16.msra.mxu0 %v7157
    %7344 = vmatpush.bf16.msra.mxu0 %v7155
    %7345 = vmatpush.bf16.msra.mxu0 %v7153
    %7346 = vmatpush.bf16.msra.mxu0 %v7151
    %7347 = vmatpush.bf16.msra.mxu0 %v7149
    %7348 = vmatpush.bf16.msra.mxu0 %v7147
    %7349 = vmatmul.bf16.gmra.mxu0 %v7003
    %v7350 = vpop.f32.mrf.mxu0
    %v7351 = vadd.f32 %v7302, %v7350
    %v7352 = vpop.f32.mrf.mxu0
    %v7353 = vadd.f32 %v7304, %v7352
    %7354 = vmatmul.bf16.gmra.mxu0 %v7005
    %v7355 = vpop.f32.mrf.mxu0
    %v7356 = vadd.f32 %v7307, %v7355
    %v7357 = vpop.f32.mrf.mxu0
    %v7358 = vadd.f32 %v7309, %v7357
    %7359 = vmatmul.bf16.gmra.mxu0 %v7007
    %v7360 = vpop.f32.mrf.mxu0
    %v7361 = vadd.f32 %v7312, %v7360
    %v7362 = vpop.f32.mrf.mxu0
    %v7363 = vadd.f32 %v7314, %v7362
    %7364 = vmatmul.bf16.gmra.mxu0 %v7009
    %v7365 = vpop.f32.mrf.mxu0
    %v7366 = vadd.f32 %v7317, %v7365
    %v7367 = vpop.f32.mrf.mxu0
    %v7368 = vadd.f32 %v7319, %v7367
    %7369 = vmatmul.bf16.gmra.mxu0 %v7011
    %v7370 = vpop.f32.mrf.mxu0
    %v7371 = vadd.f32 %v7322, %v7370
    %v7372 = vpop.f32.mrf.mxu0
    %v7373 = vadd.f32 %v7324, %v7372
    %7374 = vmatmul.bf16.gmra.mxu0 %v7013
    %v7375 = vpop.f32.mrf.mxu0
    %v7376 = vadd.f32 %v7327, %v7375
    %v7377 = vpop.f32.mrf.mxu0
    %v7378 = vadd.f32 %v7329, %v7377
    %7379 = vmatmul.bf16.gmra.mxu0 %v7015
    %v7380 = vpop.f32.mrf.mxu0
    %v7381 = vadd.f32 %v7332, %v7380
    %v7382 = vpop.f32.mrf.mxu0
    %v7383 = vadd.f32 %v7334, %v7382
    %7384 = vmatmul.bf16.gmra.mxu0 %v7017
    %v7385 = vpop.f32.mrf.mxu0
    %v7386 = vadd.f32 %v7337, %v7385
    %v7387 = vpop.f32.mrf.mxu0
    %v7388 = vadd.f32 %v7339, %v7387
    %7389 = vdwg.mxu0
    %v7390 = vadd.f32 %v6873, %v7253
    %v7391 = vadd.f32 %v6874, %v7351
    %v7392 = vadd.f32 %v6875, %v7255
    %v7393 = vadd.f32 %v6876, %v7353
    %v7394 = vadd.f32 %v6877, %v7258
    %v7395 = vadd.f32 %v6878, %v7356
    %v7396 = vadd.f32 %v6879, %v7260
    %v7397 = vadd.f32 %v6880, %v7358
    %v7398 = vadd.f32 %v6881, %v7263
    %v7399 = vadd.f32 %v6882, %v7361
    %v7400 = vadd.f32 %v6883, %v7265
    %v7401 = vadd.f32 %v6884, %v7363
    %v7402 = vadd.f32 %v6885, %v7268
    %v7403 = vadd.f32 %v6886, %v7366
    %v7404 = vadd.f32 %v6887, %v7270
    %v7405 = vadd.f32 %v6888, %v7368
    %v7406 = vadd.f32 %v6889, %v7273
    %v7407 = vadd.f32 %v6890, %v7371
    %v7408 = vadd.f32 %v6891, %v7275
    %v7409 = vadd.f32 %v6892, %v7373
    %v7410 = vadd.f32 %v6893, %v7278
    %v7411 = vadd.f32 %v6894, %v7376
    %v7412 = vadd.f32 %v6895, %v7280
    %v7413 = vadd.f32 %v6896, %v7378
    %v7414 = vadd.f32 %v6897, %v7283
    %v7415 = vadd.f32 %v6898, %v7381
    %v7416 = vadd.f32 %v6899, %v7285
    %v7417 = vadd.f32 %v6900, %v7383
    %v7418 = vadd.f32 %v6901, %v7288
    %v7419 = vadd.f32 %v6902, %v7386
    %v7420 = vadd.f32 %v6903, %v7290
    %v7421 = vadd.f32 %v6904, %v7388
    %v7422 = vld [vmem:[%s4758] sm:$0xff]
    %v7423 = vld [vmem:[%s4758 + $0x8] sm:$0xff]
    %v7424 = vld [vmem:[%s4758 + $0x10] sm:$0xff]
    %v7425 = vld [vmem:[%s4758 + $0x18] sm:$0xff]
    %v7426 = vld [vmem:[%s4758 + $0x20] sm:$0xff]
    %v7427 = vld [vmem:[%s4758 + $0x28] sm:$0xff]
    %v7428 = vld [vmem:[%s4758 + $0x30] sm:$0xff]
    %v7429 = vld [vmem:[%s4758 + $0x38] sm:$0xff]
    %v7430 = vld [vmem:[%s4758 + $0x40] sm:$0xff]
    %v7431 = vld [vmem:[%s4758 + $0x48] sm:$0xff]
    %v7432 = vld [vmem:[%s4758 + $0x50] sm:$0xff]
    %v7433 = vld [vmem:[%s4758 + $0x58] sm:$0xff]
    %v7434 = vld [vmem:[%s4758 + $0x60] sm:$0xff]
    %v7435 = vld [vmem:[%s4758 + $0x68] sm:$0xff]
    %v7436 = vld [vmem:[%s4758 + $0x70] sm:$0xff]
    %v7437 = vld [vmem:[%s4758 + $0x78] sm:$0xff]
    %s7438 = scalar_lea.vmem [#allocation6], 3584
    %v7439 = vld [vmem:[%s7438] sm:$0xff]
    %v7440 = vld [vmem:[%s7438 + $0x8] sm:$0xff]
    %v7441 = vld [vmem:[%s7438 + $0x10] sm:$0xff]
    %v7442 = vld [vmem:[%s7438 + $0x18] sm:$0xff]
    %v7443 = vld [vmem:[%s7438 + $0x20] sm:$0xff]
    %v7444 = vld [vmem:[%s7438 + $0x28] sm:$0xff]
    %v7445 = vld [vmem:[%s7438 + $0x30] sm:$0xff]
    %v7446 = vld [vmem:[%s7438 + $0x38] sm:$0xff]
    %v7447 = vld [vmem:[%s7438 + $0x40] sm:$0xff]
    %v7448 = vld [vmem:[%s7438 + $0x48] sm:$0xff]
    %v7449 = vld [vmem:[%s7438 + $0x50] sm:$0xff]
    %v7450 = vld [vmem:[%s7438 + $0x58] sm:$0xff]
    %v7451 = vld [vmem:[%s7438 + $0x60] sm:$0xff]
    %v7452 = vld [vmem:[%s7438 + $0x68] sm:$0xff]
    %v7453 = vld [vmem:[%s7438 + $0x70] sm:$0xff]
    %v7454 = vld [vmem:[%s7438 + $0x78] sm:$0xff]
    %v7455 = vld [vmem:[%s7438 + $0x80] sm:$0xff]
    %v7456 = vld [vmem:[%s7438 + $0x88] sm:$0xff]
    %v7457 = vld [vmem:[%s7438 + $0x90] sm:$0xff]
    %v7458 = vld [vmem:[%s7438 + $0x98] sm:$0xff]
    %v7459 = vld [vmem:[%s7438 + $0xa0] sm:$0xff]
    %v7460 = vld [vmem:[%s7438 + $0xa8] sm:$0xff]
    %v7461 = vld [vmem:[%s7438 + $0xb0] sm:$0xff]
    %v7462 = vld [vmem:[%s7438 + $0xb8] sm:$0xff]
    %v7463 = vld [vmem:[%s7438 + $0xc0] sm:$0xff]
    %v7464 = vld [vmem:[%s7438 + $0xc8] sm:$0xff]
    %v7465 = vld [vmem:[%s7438 + $0xd0] sm:$0xff]
    %v7466 = vld [vmem:[%s7438 + $0xd8] sm:$0xff]
    %v7467 = vld [vmem:[%s7438 + $0xe0] sm:$0xff]
    %v7468 = vld [vmem:[%s7438 + $0xe8] sm:$0xff]
    %v7469 = vld [vmem:[%s7438 + $0xf0] sm:$0xff]
    %v7470 = vld [vmem:[%s7438 + $0xf8] sm:$0xff]
    %v7487 = vunpack.c.l.b16 %v7422
    %v7488 = vunpack.c.h.b16 %v7422
    %v7489 = vunpack.c.l.b16 %v7423
    %v7490 = vunpack.c.h.b16 %v7423
    %v7491 = vunpack.c.l.b16 %v7424
    %v7492 = vunpack.c.h.b16 %v7424
    %v7493 = vunpack.c.l.b16 %v7425
    %v7494 = vunpack.c.h.b16 %v7425
    %v7495 = vunpack.c.l.b16 %v7426
    %v7496 = vunpack.c.h.b16 %v7426
    %v7497 = vunpack.c.l.b16 %v7427
    %v7498 = vunpack.c.h.b16 %v7427
    %v7499 = vunpack.c.l.b16 %v7428
    %v7500 = vunpack.c.h.b16 %v7428
    %v7501 = vunpack.c.l.b16 %v7429
    %v7502 = vunpack.c.h.b16 %v7429
    %v7503 = vunpack.c.l.b16 %v7430
    %v7504 = vunpack.c.h.b16 %v7430
    %v7505 = vunpack.c.l.b16 %v7431
    %v7506 = vunpack.c.h.b16 %v7431
    %v7507 = vunpack.c.l.b16 %v7432
    %v7508 = vunpack.c.h.b16 %v7432
    %v7509 = vunpack.c.l.b16 %v7433
    %v7510 = vunpack.c.h.b16 %v7433
    %v7511 = vunpack.c.l.b16 %v7434
    %v7512 = vunpack.c.h.b16 %v7434
    %v7513 = vunpack.c.l.b16 %v7435
    %v7514 = vunpack.c.h.b16 %v7435
    %v7515 = vunpack.c.l.b16 %v7436
    %v7516 = vunpack.c.h.b16 %v7436
    %v7517 = vunpack.c.l.b16 %v7437
    %v7518 = vunpack.c.h.b16 %v7437
    %v7519 = vpack.c.b16 %v7489, %v7487
    %v7520 = vpack.c.b16 %v7490, %v7488
    %v7521 = vpack.c.b16 %v7493, %v7491
    %v7522 = vpack.c.b16 %v7494, %v7492
    %v7523 = vpack.c.b16 %v7497, %v7495
    %v7524 = vpack.c.b16 %v7498, %v7496
    %v7525 = vpack.c.b16 %v7501, %v7499
    %v7526 = vpack.c.b16 %v7502, %v7500
    %v7527 = vpack.c.b16 %v7505, %v7503
    %v7528 = vpack.c.b16 %v7506, %v7504
    %v7529 = vpack.c.b16 %v7509, %v7507
    %v7530 = vpack.c.b16 %v7510, %v7508
    %v7531 = vpack.c.b16 %v7513, %v7511
    %v7532 = vpack.c.b16 %v7514, %v7512
    %v7533 = vpack.c.b16 %v7517, %v7515
    %v7534 = vpack.c.b16 %v7518, %v7516
    %v7583 = vunpack.c.l.b16 %v7439
    %v7584 = vunpack.c.h.b16 %v7439
    %v7585 = vunpack.c.l.b16 %v7440
    %v7586 = vunpack.c.h.b16 %v7440
    %v7587 = vunpack.c.l.b16 %v7441
    %v7588 = vunpack.c.h.b16 %v7441
    %v7589 = vunpack.c.l.b16 %v7442
    %v7590 = vunpack.c.h.b16 %v7442
    %v7591 = vunpack.c.l.b16 %v7443
    %v7592 = vunpack.c.h.b16 %v7443
    %v7593 = vunpack.c.l.b16 %v7444
    %v7594 = vunpack.c.h.b16 %v7444
    %v7595 = vunpack.c.l.b16 %v7445
    %v7596 = vunpack.c.h.b16 %v7445
    %v7597 = vunpack.c.l.b16 %v7446
    %v7598 = vunpack.c.h.b16 %v7446
    %v7599 = vunpack.c.l.b16 %v7447
    %v7600 = vunpack.c.h.b16 %v7447
    %v7601 = vunpack.c.l.b16 %v7448
    %v7602 = vunpack.c.h.b16 %v7448
    %v7603 = vunpack.c.l.b16 %v7449
    %v7604 = vunpack.c.h.b16 %v7449
    %v7605 = vunpack.c.l.b16 %v7450
    %v7606 = vunpack.c.h.b16 %v7450
    %v7607 = vunpack.c.l.b16 %v7451
    %v7608 = vunpack.c.h.b16 %v7451
    %v7609 = vunpack.c.l.b16 %v7452
    %v7610 = vunpack.c.h.b16 %v7452
    %v7611 = vunpack.c.l.b16 %v7453
    %v7612 = vunpack.c.h.b16 %v7453
    %v7613 = vunpack.c.l.b16 %v7454
    %v7614 = vunpack.c.h.b16 %v7454
    %v7615 = vunpack.c.l.b16 %v7455
    %v7616 = vunpack.c.h.b16 %v7455
    %v7617 = vunpack.c.l.b16 %v7456
    %v7618 = vunpack.c.h.b16 %v7456
    %v7619 = vunpack.c.l.b16 %v7457
    %v7620 = vunpack.c.h.b16 %v7457
    %v7621 = vunpack.c.l.b16 %v7458
    %v7622 = vunpack.c.h.b16 %v7458
    %v7623 = vunpack.c.l.b16 %v7459
    %v7624 = vunpack.c.h.b16 %v7459
    %v7625 = vunpack.c.l.b16 %v7460
    %v7626 = vunpack.c.h.b16 %v7460
    %v7627 = vunpack.c.l.b16 %v7461
    %v7628 = vunpack.c.h.b16 %v7461
    %v7629 = vunpack.c.l.b16 %v7462
    %v7630 = vunpack.c.h.b16 %v7462
    %v7631 = vunpack.c.l.b16 %v7463
    %v7632 = vunpack.c.h.b16 %v7463
    %v7633 = vunpack.c.l.b16 %v7464
    %v7634 = vunpack.c.h.b16 %v7464
    %v7635 = vunpack.c.l.b16 %v7465
    %v7636 = vunpack.c.h.b16 %v7465
    %v7637 = vunpack.c.l.b16 %v7466
    %v7638 = vunpack.c.h.b16 %v7466
    %v7639 = vunpack.c.l.b16 %v7467
    %v7640 = vunpack.c.h.b16 %v7467
    %v7641 = vunpack.c.l.b16 %v7468
    %v7642 = vunpack.c.h.b16 %v7468
    %v7643 = vunpack.c.l.b16 %v7469
    %v7644 = vunpack.c.h.b16 %v7469
    %v7645 = vunpack.c.l.b16 %v7470
    %v7646 = vunpack.c.h.b16 %v7470
    %v7647 = vpack.c.b16 %v7585, %v7583
    %v7648 = vpack.c.b16 %v7586, %v7584
    %v7649 = vpack.c.b16 %v7589, %v7587
    %v7650 = vpack.c.b16 %v7590, %v7588
    %v7651 = vpack.c.b16 %v7593, %v7591
    %v7652 = vpack.c.b16 %v7594, %v7592
    %v7653 = vpack.c.b16 %v7597, %v7595
    %v7654 = vpack.c.b16 %v7598, %v7596
    %v7655 = vpack.c.b16 %v7601, %v7599
    %v7656 = vpack.c.b16 %v7602, %v7600
    %v7657 = vpack.c.b16 %v7605, %v7603
    %v7658 = vpack.c.b16 %v7606, %v7604
    %v7659 = vpack.c.b16 %v7609, %v7607
    %v7660 = vpack.c.b16 %v7610, %v7608
    %v7661 = vpack.c.b16 %v7613, %v7611
    %v7662 = vpack.c.b16 %v7614, %v7612
    %v7663 = vpack.c.b16 %v7617, %v7615
    %v7664 = vpack.c.b16 %v7618, %v7616
    %v7665 = vpack.c.b16 %v7621, %v7619
    %v7666 = vpack.c.b16 %v7622, %v7620
    %v7667 = vpack.c.b16 %v7625, %v7623
    %v7668 = vpack.c.b16 %v7626, %v7624
    %v7669 = vpack.c.b16 %v7629, %v7627
    %v7670 = vpack.c.b16 %v7630, %v7628
    %v7671 = vpack.c.b16 %v7633, %v7631
    %v7672 = vpack.c.b16 %v7634, %v7632
    %v7673 = vpack.c.b16 %v7637, %v7635
    %v7674 = vpack.c.b16 %v7638, %v7636
    %v7675 = vpack.c.b16 %v7641, %v7639
    %v7676 = vpack.c.b16 %v7642, %v7640
    %v7677 = vpack.c.b16 %v7645, %v7643
    %v7678 = vpack.c.b16 %v7646, %v7644
    %7711 = vmatpush.bf16.msra.mxu0 %v7661
    %7712 = vmatpush.bf16.msra.mxu0 %v7659
    %7713 = vmatpush.bf16.msra.mxu0 %v7657
    %7714 = vmatpush.bf16.msra.mxu0 %v7655
    %7715 = vmatpush.bf16.msra.mxu0 %v7653
    %7716 = vmatpush.bf16.msra.mxu0 %v7651
    %7717 = vmatpush.bf16.msra.mxu0 %v7649
    %7718 = vmatpush.bf16.msra.mxu0 %v7647
    %7719 = vmatmul.bf16.gmra.mxu0 %v7519
    %v7720 = vpop.f32.mrf.mxu0
    %v7721 = vadd.f32 0.0, %v7720
    %v7722 = vpop.f32.mrf.mxu0
    %v7723 = vadd.f32 0.0, %v7722
    %7724 = vmatmul.bf16.gmra.mxu0 %v7521
    %v7725 = vpop.f32.mrf.mxu0
    %v7726 = vadd.f32 0.0, %v7725
    %v7727 = vpop.f32.mrf.mxu0
    %v7728 = vadd.f32 0.0, %v7727
    %7729 = vmatmul.bf16.gmra.mxu0 %v7523
    %v7730 = vpop.f32.mrf.mxu0
    %v7731 = vadd.f32 0.0, %v7730
    %v7732 = vpop.f32.mrf.mxu0
    %v7733 = vadd.f32 0.0, %v7732
    %7734 = vmatmul.bf16.gmra.mxu0 %v7525
    %v7735 = vpop.f32.mrf.mxu0
    %v7736 = vadd.f32 0.0, %v7735
    %v7737 = vpop.f32.mrf.mxu0
    %v7738 = vadd.f32 0.0, %v7737
    %7739 = vmatmul.bf16.gmra.mxu0 %v7527
    %v7740 = vpop.f32.mrf.mxu0
    %v7741 = vadd.f32 0.0, %v7740
    %v7742 = vpop.f32.mrf.mxu0
    %v7743 = vadd.f32 0.0, %v7742
    %7744 = vmatmul.bf16.gmra.mxu0 %v7529
    %v7745 = vpop.f32.mrf.mxu0
    %v7746 = vadd.f32 0.0, %v7745
    %v7747 = vpop.f32.mrf.mxu0
    %v7748 = vadd.f32 0.0, %v7747
    %7749 = vmatmul.bf16.gmra.mxu0 %v7531
    %v7750 = vpop.f32.mrf.mxu0
    %v7751 = vadd.f32 0.0, %v7750
    %v7752 = vpop.f32.mrf.mxu0
    %v7753 = vadd.f32 0.0, %v7752
    %7754 = vmatmul.bf16.gmra.mxu0 %v7533
    %v7755 = vpop.f32.mrf.mxu0
    %v7756 = vadd.f32 0.0, %v7755
    %v7757 = vpop.f32.mrf.mxu0
    %v7758 = vadd.f32 0.0, %v7757
    %7759 = vdwg.mxu0
    %7760 = vmatpush.bf16.msra.mxu0 %v7677
    %7761 = vmatpush.bf16.msra.mxu0 %v7675
    %7762 = vmatpush.bf16.msra.mxu0 %v7673
    %7763 = vmatpush.bf16.msra.mxu0 %v7671
    %7764 = vmatpush.bf16.msra.mxu0 %v7669
    %7765 = vmatpush.bf16.msra.mxu0 %v7667
    %7766 = vmatpush.bf16.msra.mxu0 %v7665
    %7767 = vmatpush.bf16.msra.mxu0 %v7663
    %7768 = vmatmul.bf16.gmra.mxu0 %v7520
    %v7769 = vpop.f32.mrf.mxu0
    %v7770 = vadd.f32 %v7721, %v7769
    %v7771 = vpop.f32.mrf.mxu0
    %v7772 = vadd.f32 %v7723, %v7771
    %7773 = vmatmul.bf16.gmra.mxu0 %v7522
    %v7774 = vpop.f32.mrf.mxu0
    %v7775 = vadd.f32 %v7726, %v7774
    %v7776 = vpop.f32.mrf.mxu0
    %v7777 = vadd.f32 %v7728, %v7776
    %7778 = vmatmul.bf16.gmra.mxu0 %v7524
    %v7779 = vpop.f32.mrf.mxu0
    %v7780 = vadd.f32 %v7731, %v7779
    %v7781 = vpop.f32.mrf.mxu0
    %v7782 = vadd.f32 %v7733, %v7781
    %7783 = vmatmul.bf16.gmra.mxu0 %v7526
    %v7784 = vpop.f32.mrf.mxu0
    %v7785 = vadd.f32 %v7736, %v7784
    %v7786 = vpop.f32.mrf.mxu0
    %v7787 = vadd.f32 %v7738, %v7786
    %7788 = vmatmul.bf16.gmra.mxu0 %v7528
    %v7789 = vpop.f32.mrf.mxu0
    %v7790 = vadd.f32 %v7741, %v7789
    %v7791 = vpop.f32.mrf.mxu0
    %v7792 = vadd.f32 %v7743, %v7791
    %7793 = vmatmul.bf16.gmra.mxu0 %v7530
    %v7794 = vpop.f32.mrf.mxu0
    %v7795 = vadd.f32 %v7746, %v7794
    %v7796 = vpop.f32.mrf.mxu0
    %v7797 = vadd.f32 %v7748, %v7796
    %7798 = vmatmul.bf16.gmra.mxu0 %v7532
    %v7799 = vpop.f32.mrf.mxu0
    %v7800 = vadd.f32 %v7751, %v7799
    %v7801 = vpop.f32.mrf.mxu0
    %v7802 = vadd.f32 %v7753, %v7801
    %7803 = vmatmul.bf16.gmra.mxu0 %v7534
    %v7804 = vpop.f32.mrf.mxu0
    %v7805 = vadd.f32 %v7756, %v7804
    %v7806 = vpop.f32.mrf.mxu0
    %v7807 = vadd.f32 %v7758, %v7806
    %7808 = vdwg.mxu0
    %7809 = vmatpush.bf16.msra.mxu0 %v7662
    %7810 = vmatpush.bf16.msra.mxu0 %v7660
    %7811 = vmatpush.bf16.msra.mxu0 %v7658
    %7812 = vmatpush.bf16.msra.mxu0 %v7656
    %7813 = vmatpush.bf16.msra.mxu0 %v7654
    %7814 = vmatpush.bf16.msra.mxu0 %v7652
    %7815 = vmatpush.bf16.msra.mxu0 %v7650
    %7816 = vmatpush.bf16.msra.mxu0 %v7648
    %7817 = vmatmul.bf16.gmra.mxu0 %v7519
    %v7818 = vpop.f32.mrf.mxu0
    %v7819 = vadd.f32 0.0, %v7818
    %v7820 = vpop.f32.mrf.mxu0
    %v7821 = vadd.f32 0.0, %v7820
    %7822 = vmatmul.bf16.gmra.mxu0 %v7521
    %v7823 = vpop.f32.mrf.mxu0
    %v7824 = vadd.f32 0.0, %v7823
    %v7825 = vpop.f32.mrf.mxu0
    %v7826 = vadd.f32 0.0, %v7825
    %7827 = vmatmul.bf16.gmra.mxu0 %v7523
    %v7828 = vpop.f32.mrf.mxu0
    %v7829 = vadd.f32 0.0, %v7828
    %v7830 = vpop.f32.mrf.mxu0
    %v7831 = vadd.f32 0.0, %v7830
    %7832 = vmatmul.bf16.gmra.mxu0 %v7525
    %v7833 = vpop.f32.mrf.mxu0
    %v7834 = vadd.f32 0.0, %v7833
    %v7835 = vpop.f32.mrf.mxu0
    %v7836 = vadd.f32 0.0, %v7835
    %7837 = vmatmul.bf16.gmra.mxu0 %v7527
    %v7838 = vpop.f32.mrf.mxu0
    %v7839 = vadd.f32 0.0, %v7838
    %v7840 = vpop.f32.mrf.mxu0
    %v7841 = vadd.f32 0.0, %v7840
    %7842 = vmatmul.bf16.gmra.mxu0 %v7529
    %v7843 = vpop.f32.mrf.mxu0
    %v7844 = vadd.f32 0.0, %v7843
    %v7845 = vpop.f32.mrf.mxu0
    %v7846 = vadd.f32 0.0, %v7845
    %7847 = vmatmul.bf16.gmra.mxu0 %v7531
    %v7848 = vpop.f32.mrf.mxu0
    %v7849 = vadd.f32 0.0, %v7848
    %v7850 = vpop.f32.mrf.mxu0
    %v7851 = vadd.f32 0.0, %v7850
    %7852 = vmatmul.bf16.gmra.mxu0 %v7533
    %v7853 = vpop.f32.mrf.mxu0
    %v7854 = vadd.f32 0.0, %v7853
    %v7855 = vpop.f32.mrf.mxu0
    %v7856 = vadd.f32 0.0, %v7855
    %7857 = vdwg.mxu0
    %7858 = vmatpush.bf16.msra.mxu0 %v7678
    %7859 = vmatpush.bf16.msra.mxu0 %v7676
    %7860 = vmatpush.bf16.msra.mxu0 %v7674
    %7861 = vmatpush.bf16.msra.mxu0 %v7672
    %7862 = vmatpush.bf16.msra.mxu0 %v7670
    %7863 = vmatpush.bf16.msra.mxu0 %v7668
    %7864 = vmatpush.bf16.msra.mxu0 %v7666
    %7865 = vmatpush.bf16.msra.mxu0 %v7664
    %7866 = vmatmul.bf16.gmra.mxu0 %v7520
    %v7867 = vpop.f32.mrf.mxu0
    %v7868 = vadd.f32 %v7819, %v7867
    %v7869 = vpop.f32.mrf.mxu0
    %v7870 = vadd.f32 %v7821, %v7869
    %7871 = vmatmul.bf16.gmra.mxu0 %v7522
    %v7872 = vpop.f32.mrf.mxu0
    %v7873 = vadd.f32 %v7824, %v7872
    %v7874 = vpop.f32.mrf.mxu0
    %v7875 = vadd.f32 %v7826, %v7874
    %7876 = vmatmul.bf16.gmra.mxu0 %v7524
    %v7877 = vpop.f32.mrf.mxu0
    %v7878 = vadd.f32 %v7829, %v7877
    %v7879 = vpop.f32.mrf.mxu0
    %v7880 = vadd.f32 %v7831, %v7879
    %7881 = vmatmul.bf16.gmra.mxu0 %v7526
    %v7882 = vpop.f32.mrf.mxu0
    %v7883 = vadd.f32 %v7834, %v7882
    %v7884 = vpop.f32.mrf.mxu0
    %v7885 = vadd.f32 %v7836, %v7884
    %7886 = vmatmul.bf16.gmra.mxu0 %v7528
    %v7887 = vpop.f32.mrf.mxu0
    %v7888 = vadd.f32 %v7839, %v7887
    %v7889 = vpop.f32.mrf.mxu0
    %v7890 = vadd.f32 %v7841, %v7889
    %7891 = vmatmul.bf16.gmra.mxu0 %v7530
    %v7892 = vpop.f32.mrf.mxu0
    %v7893 = vadd.f32 %v7844, %v7892
    %v7894 = vpop.f32.mrf.mxu0
    %v7895 = vadd.f32 %v7846, %v7894
    %7896 = vmatmul.bf16.gmra.mxu0 %v7532
    %v7897 = vpop.f32.mrf.mxu0
    %v7898 = vadd.f32 %v7849, %v7897
    %v7899 = vpop.f32.mrf.mxu0
    %v7900 = vadd.f32 %v7851, %v7899
    %7901 = vmatmul.bf16.gmra.mxu0 %v7534
    %v7902 = vpop.f32.mrf.mxu0
    %v7903 = vadd.f32 %v7854, %v7902
    %v7904 = vpop.f32.mrf.mxu0
    %v7905 = vadd.f32 %v7856, %v7904
    %7906 = vdwg.mxu0
    %v7907 = vadd.f32 %v7390, %v7770
    %v7908 = vadd.f32 %v7391, %v7868
    %v7909 = vadd.f32 %v7392, %v7772
    %v7910 = vadd.f32 %v7393, %v7870
    %v7911 = vadd.f32 %v7394, %v7775
    %v7912 = vadd.f32 %v7395, %v7873
    %v7913 = vadd.f32 %v7396, %v7777
    %v7914 = vadd.f32 %v7397, %v7875
    %v7915 = vadd.f32 %v7398, %v7780
    %v7916 = vadd.f32 %v7399, %v7878
    %v7917 = vadd.f32 %v7400, %v7782
    %v7918 = vadd.f32 %v7401, %v7880
    %v7919 = vadd.f32 %v7402, %v7785
    %v7920 = vadd.f32 %v7403, %v7883
    %v7921 = vadd.f32 %v7404, %v7787
    %v7922 = vadd.f32 %v7405, %v7885
    %v7923 = vadd.f32 %v7406, %v7790
    %v7924 = vadd.f32 %v7407, %v7888
    %v7925 = vadd.f32 %v7408, %v7792
    %v7926 = vadd.f32 %v7409, %v7890
    %v7927 = vadd.f32 %v7410, %v7795
    %v7928 = vadd.f32 %v7411, %v7893
    %v7929 = vadd.f32 %v7412, %v7797
    %v7930 = vadd.f32 %v7413, %v7895
    %v7931 = vadd.f32 %v7414, %v7800
    %v7932 = vadd.f32 %v7415, %v7898
    %v7933 = vadd.f32 %v7416, %v7802
    %v7934 = vadd.f32 %v7417, %v7900
    %v7935 = vadd.f32 %v7418, %v7805
    %v7936 = vadd.f32 %v7419, %v7903
    %v7937 = vadd.f32 %v7420, %v7807
    %v7938 = vadd.f32 %v7421, %v7905
    %s7939 = scalar_lea.vmem [#allocation8], 4
    %v7940 = vld [vmem:[%s7939] sm:$0x3]
    %v7942 = vperm.slane %v7940, 0
    %v7943 = vperm.slane %v7940, 1
    %v7946 = vmul.f32 %v7907, %v7942
    %v7947 = vmul.f32 %v7908, %v7943
    %v7948 = vmul.f32 %v7909, %v7942
    %v7949 = vmul.f32 %v7910, %v7943
    %v7950 = vmul.f32 %v7911, %v7942
    %v7951 = vmul.f32 %v7912, %v7943
    %v7952 = vmul.f32 %v7913, %v7942
    %v7953 = vmul.f32 %v7914, %v7943
    %v7954 = vmul.f32 %v7915, %v7942
    %v7955 = vmul.f32 %v7916, %v7943
    %v7956 = vmul.f32 %v7917, %v7942
    %v7957 = vmul.f32 %v7918, %v7943
    %v7958 = vmul.f32 %v7919, %v7942
    %v7959 = vmul.f32 %v7920, %v7943
    %v7960 = vmul.f32 %v7921, %v7942
    %v7961 = vmul.f32 %v7922, %v7943
    %v7962 = vmul.f32 %v7923, %v7942
    %v7963 = vmul.f32 %v7924, %v7943
    %v7964 = vmul.f32 %v7925, %v7942
    %v7965 = vmul.f32 %v7926, %v7943
    %v7966 = vmul.f32 %v7927, %v7942
    %v7967 = vmul.f32 %v7928, %v7943
    %v7968 = vmul.f32 %v7929, %v7942
    %v7969 = vmul.f32 %v7930, %v7943
    %v7970 = vmul.f32 %v7931, %v7942
    %v7971 = vmul.f32 %v7932, %v7943
    %v7972 = vmul.f32 %v7933, %v7942
    %v7973 = vmul.f32 %v7934, %v7943
    %v7974 = vmul.f32 %v7935, %v7942
    %v7975 = vmul.f32 %v7936, %v7943
    %v7976 = vmul.f32 %v7937, %v7942
    %v7977 = vmul.f32 %v7938, %v7943
    %s7978 = scalar_lea.vmem [#allocation9], 4
    %v7979 = vld [vmem:[%s7978] sm:$0x3]
    %v7981 = vperm.slane %v7979, 0
    %v7982 = vperm.slane %v7979, 1
    %v7985 = vadd.f32 %v7946, %v7981
    %v7986 = vadd.f32 %v7947, %v7982
    %v7987 = vadd.f32 %v7948, %v7981
    %v7988 = vadd.f32 %v7949, %v7982
    %v7989 = vadd.f32 %v7950, %v7981
    %v7990 = vadd.f32 %v7951, %v7982
    %v7991 = vadd.f32 %v7952, %v7981
    %v7992 = vadd.f32 %v7953, %v7982
    %v7993 = vadd.f32 %v7954, %v7981
    %v7994 = vadd.f32 %v7955, %v7982
    %v7995 = vadd.f32 %v7956, %v7981
    %v7996 = vadd.f32 %v7957, %v7982
    %v7997 = vadd.f32 %v7958, %v7981
    %v7998 = vadd.f32 %v7959, %v7982
    %v7999 = vadd.f32 %v7960, %v7981
    %v8000 = vadd.f32 %v7961, %v7982
    %v8001 = vadd.f32 %v7962, %v7981
    %v8002 = vadd.f32 %v7963, %v7982
    %v8003 = vadd.f32 %v7964, %v7981
    %v8004 = vadd.f32 %v7965, %v7982
    %v8005 = vadd.f32 %v7966, %v7981
    %v8006 = vadd.f32 %v7967, %v7982
    %v8007 = vadd.f32 %v7968, %v7981
    %v8008 = vadd.f32 %v7969, %v7982
    %v8009 = vadd.f32 %v7970, %v7981
    %v8010 = vadd.f32 %v7971, %v7982
    %v8011 = vadd.f32 %v7972, %v7981
    %v8012 = vadd.f32 %v7973, %v7982
    %v8013 = vadd.f32 %v7974, %v7981
    %v8014 = vadd.f32 %v7975, %v7982
    %v8015 = vadd.f32 %v7976, %v7981
    %v8016 = vadd.f32 %v7977, %v7982
    %v8017 = vmax.f32 %v7985, 0.0
    %v8018 = vmax.f32 %v7986, 0.0
    %v8019 = vmax.f32 %v7987, 0.0
    %v8020 = vmax.f32 %v7988, 0.0
    %v8021 = vmax.f32 %v7989, 0.0
    %v8022 = vmax.f32 %v7990, 0.0
    %v8023 = vmax.f32 %v7991, 0.0
    %v8024 = vmax.f32 %v7992, 0.0
    %v8025 = vmax.f32 %v7993, 0.0
    %v8026 = vmax.f32 %v7994, 0.0
    %v8027 = vmax.f32 %v7995, 0.0
    %v8028 = vmax.f32 %v7996, 0.0
    %v8029 = vmax.f32 %v7997, 0.0
    %v8030 = vmax.f32 %v7998, 0.0
    %v8031 = vmax.f32 %v7999, 0.0
    %v8032 = vmax.f32 %v8000, 0.0
    %v8033 = vmax.f32 %v8001, 0.0
    %v8034 = vmax.f32 %v8002, 0.0
    %v8035 = vmax.f32 %v8003, 0.0
    %v8036 = vmax.f32 %v8004, 0.0
    %v8037 = vmax.f32 %v8005, 0.0
    %v8038 = vmax.f32 %v8006, 0.0
    %v8039 = vmax.f32 %v8007, 0.0
    %v8040 = vmax.f32 %v8008, 0.0
    %v8041 = vmax.f32 %v8009, 0.0
    %v8042 = vmax.f32 %v8010, 0.0
    %v8043 = vmax.f32 %v8011, 0.0
    %v8044 = vmax.f32 %v8012, 0.0
    %v8045 = vmax.f32 %v8013, 0.0
    %v8046 = vmax.f32 %v8014, 0.0
    %v8047 = vmax.f32 %v8015, 0.0
    %v8048 = vmax.f32 %v8016, 0.0
    %v8049 = vpack.c.bf16 %v8018, %v8017
    %v8050 = vpack.c.bf16 %v8020, %v8019
    %v8051 = vpack.c.bf16 %v8022, %v8021
    %v8052 = vpack.c.bf16 %v8024, %v8023
    %v8053 = vpack.c.bf16 %v8026, %v8025
    %v8054 = vpack.c.bf16 %v8028, %v8027
    %v8055 = vpack.c.bf16 %v8030, %v8029
    %v8056 = vpack.c.bf16 %v8032, %v8031
    %v8057 = vpack.c.bf16 %v8034, %v8033
    %v8058 = vpack.c.bf16 %v8036, %v8035
    %v8059 = vpack.c.bf16 %v8038, %v8037
    %v8060 = vpack.c.bf16 %v8040, %v8039
    %v8061 = vpack.c.bf16 %v8042, %v8041
    %v8062 = vpack.c.bf16 %v8044, %v8043
    %v8063 = vpack.c.bf16 %v8046, %v8045
    %v8064 = vpack.c.bf16 %v8048, %v8047
    %8065 = vst [vmem:[#allocation11] sm:$0xff] %v8049
    %8066 = vst [vmem:[#allocation11 + $0x8] sm:$0xff] %v8050
    %8067 = vst [vmem:[#allocation11 + $0x10] sm:$0xff] %v8051
    %8068 = vst [vmem:[#allocation11 + $0x18] sm:$0xff] %v8052
    %8069 = vst [vmem:[#allocation11 + $0x20] sm:$0xff] %v8053
    %8070 = vst [vmem:[#allocation11 + $0x28] sm:$0xff] %v8054
    %8071 = vst [vmem:[#allocation11 + $0x30] sm:$0xff] %v8055
    %8072 = vst [vmem:[#allocation11 + $0x38] sm:$0xff] %v8056
    %8073 = vst [vmem:[#allocation11 + $0x40] sm:$0xff] %v8057
    %8074 = vst [vmem:[#allocation11 + $0x48] sm:$0xff] %v8058
    %8075 = vst [vmem:[#allocation11 + $0x50] sm:$0xff] %v8059
    %8076 = vst [vmem:[#allocation11 + $0x58] sm:$0xff] %v8060
    %8077 = vst [vmem:[#allocation11 + $0x60] sm:$0xff] %v8061
    %8078 = vst [vmem:[#allocation11 + $0x68] sm:$0xff] %v8062
    %8079 = vst [vmem:[#allocation11 + $0x70] sm:$0xff] %v8063
    %8080 = vst [vmem:[#allocation11 + $0x78] sm:$0xff] %v8064
    // Predicated region
    $region34: #{tpu_custom_call.1} parent=1 // pred_check
      _
    $region35: #{tpu_custom_call.1} parent=1 // pred_check_branch
      %8082 = sbr.rel (0) target = $region37
    $region36: #{tpu_custom_call.1} parent=1 // pred_region
      %8084 = vsyncadd [#allocation5], 0
      %s8085 = sshll.u32 [#allocation11], 4
      %s8086 = int_to_ptr.vmem [resolvable:$true] %s8085
      %s8087 = sshll.u32 %s4, 4
      %s8088 = int_to_ptr.hbm [resolvable:$true] %s8087
      %8093 = dma.vmem_to_hbm [thread:$0]  %s8086, 2048, %s8088, [#allocation5], 128, 128, 8
    $region37: #{tpu_custom_call.1} parent=1 // pred_fallthru
      _
    // Predicated region
    $region38: #{tpu_custom_call.1} parent=1 // pred_check
      _
    $region39: #{tpu_custom_call.1} parent=1 // pred_check_branch
      %8095 = sbr.rel (0) target = $region41
    $region40: #{tpu_custom_call.1} parent=1 // pred_region
      %8097 = dma.done [#allocation5], 2048
    $region41: #{tpu_custom_call.1} parent=1 // pred_fallthru
      _
    %8098 = vsyncpa [#allocation4], 1
    %8099 = vsyncpa [#allocation7], 1
    %8100 = vsyncpa [#allocation10], 1
    %8101 = vsyncpa [#allocation5], 1

</llo_original>
